<compile_context>
chip_gen: v7x
topology: tpu7x:2x2x1
jax: 0.10.0
libtpu: 0.0.40
codegen_flags: <defaults>
</compile_context>

<pallas_src>
import functools

import jax
import jax.numpy as jnp
from jax import lax
from jax.experimental import pallas as pl
from jax.experimental.pallas import tpu as pltpu


# ---------------------------------------------------------------------------
# layer1: Linear(89 -> cols_out) + LogSoftmax, computed transposed (lane-dense).
# ---------------------------------------------------------------------------
def _layer1_kernel(x_ref, wt_ref, b_ref, o_ref):
    x = x_ref[...]                                   # (tm, 89)
    wt = wt_ref[...]                                 # (C, 89), same dtype as x
    # (C, tm): contract the shared K(=89) lane dims of both operands (q@k.T flavour).
    y = lax.dot_general(wt, x, (((1,), (1,)), ((), ())),
                        preferred_element_type=jnp.float32)
    y = y + b_ref[...]                               # (C, 1) broadcast along lanes
    # LogSoftmax over the C sublane rows: full-vreg VPU/EUP work, lane-dense store.
    m = jnp.max(y, axis=0, keepdims=True)
    s = y - m
    y = s - jnp.log(jnp.sum(jnp.exp(s), axis=0, keepdims=True))
    o_ref[...] = y.astype(o_ref.dtype)


def _pick_row_tile(M, K, itemsize, budget_bytes=2 << 20):
    """Largest divisor of M that is a multiple of 128 (so the transposed (C, tm)
    output block is lane-dense) whose (tm, K) input tile is <= ~2 MiB."""
    if M % 128 != 0:
        return M                                      # full-extent block is always legal
    divs = [d for d in range(128, M + 1, 128) if M % d == 0]
    fit = [d for d in divs if d * K * itemsize <= budget_bytes]
    return max(fit) if fit else min(divs)


def layer1_pallas(x2d, w1, b1):
    """x2d: (M, 89); w1: (89, C); b1: (C,).  Returns (C, M) f32 log-probs."""
    M, K = x2d.shape
    Kw, C = w1.shape
    assert K == Kw
    # Single-shot inference reads x as f32 from HBM either way (HBM-bound), so f32 MXU
    # operands keep parity with torch fp32 at no wall-clock cost.
    # TODO(synk): for serving where x is reused across calls, pre-cast x to bf16 once
    # outside and pass it here (the kernel follows x's dtype) to halve the dominant read.
    w1t = w1.T.astype(x2d.dtype)                     # (C, K)
    b = b1.reshape(C, 1).astype(jnp.float32)
    tm = _pick_row_tile(M, K, x2d.dtype.itemsize)    # 5760 -> grid=(3,)
    grid = (M // tm,)
    return pl.pallas_call(
        _layer1_kernel,
        out_shape=jax.ShapeDtypeStruct((C, M), jnp.float32),
        grid_spec=pltpu.PrefetchScalarGridSpec(
            num_scalar_prefetch=0,
            grid=grid,
            in_specs=[
                pl.BlockSpec((tm, K), lambda i: (i, 0)),   # row tile of x
                pl.BlockSpec((C, K), lambda i: (0, 0)),    # full (transposed) weight
                pl.BlockSpec((C, 1), lambda i: (0, 0)),    # bias column
            ],
            out_specs=pl.BlockSpec((C, tm), lambda i: (0, i)),
        ),
        compiler_params=pltpu.CompilerParams(
            dimension_semantics=("parallel",)),
        cost_estimate=pl.CostEstimate(
            flops=2 * M * K * C,
            transcendentals=M * (C + 1),
            bytes_accessed=(M * K + M * C + K * C) * 4),
    )(x2d, w1t, b)


# ---------------------------------------------------------------------------
# Fused layer2 (Linear 180 -> rows_out) + LogSoftmax
#       + layer3 (Linear 2 -> opps_out)  + LogSoftmax.
# layer3's K=2 pairs are the (even col, odd col) of layer2's output (rows_out even),
# so layer2 is split into even/odd-column matmuls and layer3 is pure VPU work with
# scalar weights read from SMEM.
# ---------------------------------------------------------------------------
def _layer23_kernel(x_ref, w2e_ref, w2o_ref, b2e_ref, b2o_ref, w3_ref, b3_ref,
                    o_ref, *, opps_out):
    x = x_ref[...]                                                     # (768, 180)
    ye = jnp.dot(x, w2e_ref[...], preferred_element_type=jnp.float32) + b2e_ref[...]
    yo = jnp.dot(x, w2o_ref[...], preferred_element_type=jnp.float32) + b2o_ref[...]
    # Joint LogSoftmax over the full rows_out columns (even + odd halves).
    m2 = jnp.maximum(jnp.max(ye, axis=-1, keepdims=True),
                     jnp.max(yo, axis=-1, keepdims=True))
    lse = jnp.log(jnp.sum(jnp.exp(ye - m2), axis=-1, keepdims=True) +
                  jnp.sum(jnp.exp(yo - m2), axis=-1, keepdims=True))
    ae = ye - m2 - lse                                                 # log-probs, even r
    ao = yo - m2 - lse                                                 # log-probs, odd r
    # layer3: z_o = ae*W3[0,o] + ao*W3[1,o] + b3[o], then LogSoftmax over the O channels.
    zs = [ae * w3_ref[0, oc] + ao * w3_ref[1, oc] + b3_ref[0, oc]
          for oc in range(opps_out)]
    m3 = zs[0]
    for z in zs[1:]:
        m3 = jnp.maximum(m3, z)
    den = jnp.exp(zs[0] - m3)
    for z in zs[1:]:
        den = den + jnp.exp(z - m3)
    l3 = m3 + jnp.log(den)
    for oc in range(opps_out):
        o_ref[oc] = (zs[oc] - l3).astype(o_ref.dtype)


def layer23_pallas(x2, w2, b2, w3, b3, *, opps_out):
    """x2: (768, 180); w2: (180, R); b2: (R,); w3: (2, O); b3: (O,).
    Returns (O, 768, R//2) f32 (dims ordered (o, layer2-row, pair-within-row))."""
    M2, K2 = x2.shape
    _, R = w2.shape
    R2 = R // 2
    w2e = w2[:, 0::2].astype(jnp.float32)            # (180, R/2)
    w2o = w2[:, 1::2].astype(jnp.float32)
    b2e = b2[0::2].reshape(1, R2).astype(jnp.float32)
    b2o = b2[1::2].reshape(1, R2).astype(jnp.float32)
    kernel = functools.partial(_layer23_kernel, opps_out=opps_out)
    return pl.pallas_call(
        kernel,
        out_shape=jax.ShapeDtypeStruct((opps_out, M2, R2), jnp.float32),
        grid_spec=pltpu.PrefetchScalarGridSpec(
            num_scalar_prefetch=0,
            grid=(1,),
            in_specs=[
                pl.BlockSpec((M2, K2), lambda i: (0, 0)),
                pl.BlockSpec((K2, R2), lambda i: (0, 0)),
                pl.BlockSpec((K2, R2), lambda i: (0, 0)),
                pl.BlockSpec((1, R2), lambda i: (0, 0)),
                pl.BlockSpec((1, R2), lambda i: (0, 0)),
                pl.BlockSpec(memory_space=pltpu.MemorySpace.SMEM),   # w3 scalars
                pl.BlockSpec(memory_space=pltpu.MemorySpace.SMEM),   # b3 scalars
            ],
            out_specs=pl.BlockSpec((opps_out, M2, R2), lambda i: (0, 0, 0)),
        ),
        compiler_params=pltpu.CompilerParams(
            dimension_semantics=("arbitrary",)),
        cost_estimate=pl.CostEstimate(
            flops=2 * M2 * K2 * R + 8 * M2 * R,
            transcendentals=2 * M2 * R,
            bytes_accessed=(M2 * K2 + K2 * R + opps_out * M2 * R2) * 4),
    )(x2, w2e, w2o, b2e, b2o,
      w3.astype(jnp.float32), b3.reshape(1, opps_out).astype(jnp.float32))


# ---------------------------------------------------------------------------
# Fused layer4 (Linear 48 -> games_out) + LogSoftmax + layer5 (Linear -> 43).
# layer5 is done as an unrolled (over games_out) broadcast-multiply + row reduction
# against a (G, O*R*C, 43) re-arranged weight, avoiding any in-kernel flatten/relayout.
# ---------------------------------------------------------------------------
def _layer45_kernel(x_ref, w4_ref, b4_ref, w5r_ref, b5_ref, o_ref, *, games_out):
    x = x_ref[...]                                                     # (128, 48)
    y4 = jnp.dot(x, w4_ref[...], preferred_element_type=jnp.float32) + b4_ref[...]
    m4 = jnp.max(y4, axis=-1, keepdims=True)
    s4 = y4 - m4
    a4 = s4 - jnp.log(jnp.sum(jnp.exp(s4), axis=-1, keepdims=True))    # (128, G)
    acc = b5_ref[...].astype(jnp.float32)                              # (1, 43)
    for g in range(games_out):
        acc = acc + jnp.sum(a4[:, g:g + 1] * w5r_ref[g], axis=0, keepdims=True)
    o_ref[...] = acc.astype(o_ref.dtype)


def layer45_pallas(x4, w4, b4, w5, b5, *, games_out):
    """x4: (O*R*C, 48); w4: (48, G); b4: (G,); w5: (O*R*C*G, 43); b5: (43,)."""
    N4, K4 = x4.shape
    _, G = w4.shape
    P, out_dim = w5.shape
    assert P == N4 * G
    # w5r[g, n, :] = w5[n*G + g, :]  (canonical flat order of the layer4 output).
    w5r = w5.reshape(N4, G, out_dim).transpose(1, 0, 2).astype(jnp.float32)
    kernel = functools.partial(_layer45_kernel, games_out=games_out)
    return pl.pallas_call(
        kernel,
        out_shape=jax.ShapeDtypeStruct((1, out_dim), jnp.float32),
        grid_spec=pltpu.PrefetchScalarGridSpec(
            num_scalar_prefetch=0,
            grid=(1,),
            in_specs=[
                pl.BlockSpec((N4, K4), lambda i: (0, 0)),
                pl.BlockSpec((K4, G), lambda i: (0, 0)),
                pl.BlockSpec((1, G), lambda i: (0, 0)),
                pl.BlockSpec((G, N4, out_dim), lambda i: (0, 0, 0)),
                pl.BlockSpec((1, out_dim), lambda i: (0, 0)),
            ],
            out_specs=pl.BlockSpec((1, out_dim), lambda i: (0, 0)),
        ),
        compiler_params=pltpu.CompilerParams(
            dimension_semantics=("arbitrary",)),
        cost_estimate=pl.CostEstimate(
            flops=2 * N4 * K4 * G + 2 * N4 * G * out_dim,
            transcendentals=N4 * (G + 1),
            bytes_accessed=(N4 * K4 + K4 * G + N4 * G * out_dim + out_dim) * 4),
    )(x4, w4.astype(jnp.float32), b4.reshape(1, G).astype(jnp.float32),
      w5r, b5.reshape(1, out_dim).astype(jnp.float32))


# ---------------------------------------------------------------------------
# Parameters (weights stored transposed, (in, out), relative to torch's (out, in)).
# ---------------------------------------------------------------------------
def init_params(key, games_out, opps_out, rows_out, cols_out):
    dims = [
        (89, cols_out),                                        # layer1
        (180, rows_out),                                       # layer2
        (2, opps_out),                                         # layer3
        (48, games_out),                                       # layer4
        (games_out * opps_out * rows_out * cols_out, 43),      # layer5
    ]
    params = []
    for fan_in, fan_out in dims:
        key, kw, kb = jax.random.split(key, 3)
        bound = float(fan_in) ** -0.5
        w = jax.random.uniform(kw, (fan_in, fan_out), jnp.float32, -bound, bound)
        b = jax.random.uniform(kb, (fan_out,), jnp.float32, -bound, bound)
        params.append((w, b))
    return params


# ---------------------------------------------------------------------------
# Forward pass.  All torch `.reshape(...)` calls are row-major flat reinterpretations
# of contiguous tensors; the composition below is written purely in flat-order terms.
# ---------------------------------------------------------------------------
def neural_network_forward(x, params, games_out, opps_out, rows_out, cols_out):
    (w1, b1), (w2, b2), (w3, b3), (w4, b4), (w5, b5) = params
    s0, s1, s2, s3 = x.shape
    assert (s0, s1, s2, s3) == (48, 2, 180, 89)   # forced by the Linear in-features
    G, O, R, C = games_out, opps_out, rows_out, cols_out
    # TODO(synk): odd rows_out would make layer3's K=2 pairs straddle layer2 rows; the
    # even/odd-column fusion assumes rows_out is even (true for this model config).
    assert R % 2 == 0

    M = s0 * s1 * s2                                          # 17280

    # layer1 + LogSoftmax (Dropout(0.1) is identity in eval mode); (C, M) lane-dense.
    h1t = layer1_pallas(x.reshape(M, s3), w1, b1)             # (C, 17280) f32

    # Flat-order glue into layer2's 2-D view.  XLA needs one relayout copy here anyway
    # (lane dim changes C -> 180); the transpose rides along in the same copy.
    x2 = h1t.T.reshape(s0 * s1 * C, s2)                       # (768, 180)

    # layer2 + LogSoftmax + layer3 + LogSoftmax, one fused kernel.
    z = layer23_pallas(x2, w2, b2, w3, b3, opps_out=O)        # (O, 768, R//2)

    # Flat-order glue into layer4's 2-D view (canonical (pair, o) order, rows of 48).
    x4 = jnp.transpose(z, (1, 2, 0)).reshape(O * R * C, s0)   # (128, 48), ~24 KB copy

    # layer4 + LogSoftmax + layer5, one fused kernel (final Dropout = identity).
    # TODO(synk): nn.Dropout(0.1) is stochastic only in training mode; modeled as
    # eval-mode identity (a training path would use pltpu.prng_seed/prng_random_bits).
    out = layer45_pallas(x4, w4, b4, w5, b5, games_out=G)     # (1, 43)
    return out.reshape(out.shape[-1])


# ---------------------------------------------------------------------------
# Pure-JAX reference (mirrors the torch module op-for-op) for a self-check.
# ---------------------------------------------------------------------------
def reference_forward(x, params):
    (w1, b1), (w2, b2), (w3, b3), (w4, b4), (w5, b5) = params

    def logsoftmax(v):
        m = jnp.max(v, axis=-1, keepdims=True)
        s = v - m
        return s - jnp.log(jnp.sum(jnp.exp(s), axis=-1, keepdims=True))

    def lin(v, w, b):
        return jnp.einsum('...k,kn->...n', v, w,
                          precision=jax.lax.Precision.HIGHEST) + b

    h = logsoftmax(lin(x, w1, b1))
    h = h.reshape(h.shape[0], h.shape[1], h.shape[3], h.shape[2])
    h = logsoftmax(lin(h, w2, b2))
    h = h.reshape(h.shape[0], h.shape[3], h.shape[2], h.shape[1])
    h = logsoftmax(lin(h, w3, b3))
    h = h.reshape(h.shape[3], h.shape[1], h.shape[2], h.shape[0])
    h = logsoftmax(lin(h, w4, b4))
    return jnp.einsum('k,kn->n', h.reshape(-1), w5,
                      precision=jax.lax.Precision.HIGHEST) + b5


if __name__ == "__main__":
    games_out, opps_out, rows_out, cols_out = 4, 2, 8, 8

    key = jax.random.PRNGKey(0)
    kx, kp = jax.random.split(key)
    # Input shape is dictated by the module's Linear in-features: (48, 2, 180, 89)
    x = jax.random.normal(kx, (48, 2, 180, 89), dtype=jnp.float32)
    params = init_params(kp, games_out, opps_out, rows_out, cols_out)

    fwd = jax.jit(functools.partial(
        neural_network_forward,
        games_out=games_out, opps_out=opps_out,
        rows_out=rows_out, cols_out=cols_out))

    out = jax.block_until_ready(fwd(x, params))
    assert out.shape == (43,) and out.dtype == jnp.float32
    assert bool(jnp.all(jnp.isfinite(out)))

    ref = jax.block_until_ready(jax.jit(reference_forward)(x, params))
    assert bool(jnp.allclose(out, ref, rtol=5e-2, atol=5e-2)), \
        f"max |diff| = {float(jnp.max(jnp.abs(out - ref)))}"

    print("KERNEL_OK")
</pallas_src>

<mosaic_0001>
module attributes {stable_mosaic.version = 11 : i64} {
  func.func @_layer1_kernel(%arg0: i32, %arg1: memref<5760x89xf32, #tpu.memory_space<vmem>>, %arg2: memref<8x89xf32, #tpu.memory_space<vmem>>, %arg3: memref<8x1xf32, #tpu.memory_space<vmem>>, %arg4: memref<8x5760xf32, #tpu.memory_space<vmem>>) attributes {dimension_semantics = [#tpu.dimension_semantics<parallel>], iteration_bounds = array<i64: 3>, scalar_prefetch = 0 : i64, scratch_operands = 0 : i64, tpu.core_type = #tpu.core_type<tc>, window_params = [{transform_indices = @transform_0, window_bounds = array<i64: 5760, 89>}, {pipeline_mode = #tpu.pipeline_mode<synchronous>, transform_indices = @transform_1, window_bounds = array<i64: 8, 89>}, {pipeline_mode = #tpu.pipeline_mode<synchronous>, transform_indices = @transform_2, window_bounds = array<i64: 8, 1>}, {transform_indices = @transform_3, window_bounds = array<i64: 8, 5760>}]} {
    %c0 = arith.constant 0 : index
    %c0_0 = arith.constant 0 : index
    %0 = vector.load %arg1[%c0, %c0_0] : memref<5760x89xf32, #tpu.memory_space<vmem>>, vector<5760x89xf32>
    %c0_1 = arith.constant 0 : index
    %c0_2 = arith.constant 0 : index
    %1 = vector.load %arg2[%c0_1, %c0_2] : memref<8x89xf32, #tpu.memory_space<vmem>>, vector<8x89xf32>
    %cst = arith.constant dense<0.000000e+00> : vector<8x5760xf32>
    %2 = tpu.matmul %1, %0, %cst {dimension_numbers = #tpu.dot_dimension_numbers<[1], [1], [0], [0], [0, 0, 1, 0], [], []>} : vector<8x89xf32>, vector<5760x89xf32>, vector<8x5760xf32> -> vector<8x5760xf32>
    %c0_3 = arith.constant 0 : index
    %c0_4 = arith.constant 0 : index
    %3 = vector.load %arg3[%c0_3, %c0_4] : memref<8x1xf32, #tpu.memory_space<vmem>>, vector<8x1xf32>
    %4 = vector.broadcast %3 : vector<8x1xf32> to vector<8x5760xf32>
    %5 = arith.addf %2, %4 : vector<8x5760xf32>
    %cst_5 = arith.constant dense<0xFF800000> : vector<5760xf32>
    %6 = vector.multi_reduction <maximumf>, %5, %cst_5 [0] : vector<8x5760xf32> to vector<5760xf32>
    %7 = vector.shape_cast %6 : vector<5760xf32> to vector<1x5760xf32>
    %8 = vector.broadcast %7 : vector<1x5760xf32> to vector<8x5760xf32>
    %9 = arith.subf %5, %8 : vector<8x5760xf32>
    %10 = math.exp %9 : vector<8x5760xf32>
    %cst_6 = arith.constant dense<0.000000e+00> : vector<5760xf32>
    %11 = vector.multi_reduction <add>, %10, %cst_6 [0] : vector<8x5760xf32> to vector<5760xf32>
    %12 = vector.shape_cast %11 : vector<5760xf32> to vector<1x5760xf32>
    %13 = math.log %12 : vector<1x5760xf32>
    %14 = vector.broadcast %13 : vector<1x5760xf32> to vector<8x5760xf32>
    %15 = arith.subf %9, %14 : vector<8x5760xf32>
    %c0_7 = arith.constant 0 : index
    %c0_8 = arith.constant 0 : index
    %16 = vector.load %arg4[%c0_7, %c0_8] : memref<8x5760xf32, #tpu.memory_space<vmem>>, vector<8x5760xf32>
    tpu.vector_store %arg4[%c0_7, %c0_8], %15 {strides = array<i32>} : memref<8x5760xf32, #tpu.memory_space<vmem>>, vector<8x5760xf32>,
    return
  }
  func.func @transform_0(%arg0: i32) -> (i32, i32) {
    %c0_i32 = arith.constant 0 : i32
    %c0_i32_0 = arith.constant 0 : i32
    return %arg0, %c0_i32 : i32, i32
  }
  func.func @transform_1(%arg0: i32) -> (i32, i32) {
    %c0_i32 = arith.constant 0 : i32
    %c0_i32_0 = arith.constant 0 : i32
    %c0_i32_1 = arith.constant 0 : i32
    return %c0_i32, %c0_i32_0 : i32, i32
  }
  func.func @transform_2(%arg0: i32) -> (i32, i32) {
    %c0_i32 = arith.constant 0 : i32
    %c0_i32_0 = arith.constant 0 : i32
    %c0_i32_1 = arith.constant 0 : i32
    return %c0_i32, %c0_i32_0 : i32, i32
  }
  func.func @transform_3(%arg0: i32) -> (i32, i32) {
    %c0_i32 = arith.constant 0 : i32
    %c0_i32_0 = arith.constant 0 : i32
    return %c0_i32, %arg0 : i32, i32
  }
}

module attributes {stable_mosaic.version = 11 : i64} {
  func.func @_layer23_kernel(%arg0: i32, %arg1: memref<768x180xf32, #tpu.memory_space<vmem>>, %arg2: memref<180x4xf32, #tpu.memory_space<vmem>>, %arg3: memref<180x4xf32, #tpu.memory_space<vmem>>, %arg4: memref<1x4xf32, #tpu.memory_space<vmem>>, %arg5: memref<1x4xf32, #tpu.memory_space<vmem>>, %arg6: memref<2x2xf32, #tpu.memory_space<smem>>, %arg7: memref<1x2xf32, #tpu.memory_space<smem>>, %arg8: memref<2x768x4xf32, #tpu.memory_space<vmem>>) attributes {dimension_semantics = [#tpu.dimension_semantics<arbitrary>], iteration_bounds = array<i64: 1>, scalar_prefetch = 0 : i64, scratch_operands = 0 : i64, tpu.core_type = #tpu.core_type<tc>, window_params = [{pipeline_mode = #tpu.pipeline_mode<synchronous>, transform_indices = @transform_0, window_bounds = array<i64: 768, 180>}, {pipeline_mode = #tpu.pipeline_mode<synchronous>, transform_indices = @transform_1, window_bounds = array<i64: 180, 4>}, {pipeline_mode = #tpu.pipeline_mode<synchronous>, transform_indices = @transform_2, window_bounds = array<i64: 180, 4>}, {pipeline_mode = #tpu.pipeline_mode<synchronous>, transform_indices = @transform_3, window_bounds = array<i64: 1, 4>}, {pipeline_mode = #tpu.pipeline_mode<synchronous>, transform_indices = @transform_4, window_bounds = array<i64: 1, 4>}, {transform_indices = @transform_5, window_bounds = array<i64: 2, 2>}, {transform_indices = @transform_6, window_bounds = array<i64: 1, 2>}, {pipeline_mode = #tpu.pipeline_mode<synchronous>, transform_indices = @transform_7, window_bounds = array<i64: 2, 768, 4>}]} {
    %c0 = arith.constant 0 : index
    %c0_0 = arith.constant 0 : index
    %0 = vector.load %arg1[%c0, %c0_0] : memref<768x180xf32, #tpu.memory_space<vmem>>, vector<768x180xf32>
    %c0_1 = arith.constant 0 : index
    %c0_2 = arith.constant 0 : index
    %1 = vector.load %arg2[%c0_1, %c0_2] : memref<180x4xf32, #tpu.memory_space<vmem>>, vector<180x4xf32>
    %cst = arith.constant dense<0.000000e+00> : vector<768x4xf32>
    %2 = tpu.matmul %0, %1, %cst {dimension_numbers = #tpu.dot_dimension_numbers<[1], [0], [0], [1], [0, 0, 1, 1], [], []>} : vector<768x180xf32>, vector<180x4xf32>, vector<768x4xf32> -> vector<768x4xf32>
    %c0_3 = arith.constant 0 : index
    %c0_4 = arith.constant 0 : index
    %3 = vector.load %arg4[%c0_3, %c0_4] : memref<1x4xf32, #tpu.memory_space<vmem>>, vector<1x4xf32>
    %4 = vector.broadcast %3 : vector<1x4xf32> to vector<768x4xf32>
    %5 = arith.addf %2, %4 : vector<768x4xf32>
    %c0_5 = arith.constant 0 : index
    %c0_6 = arith.constant 0 : index
    %6 = vector.load %arg3[%c0_5, %c0_6] : memref<180x4xf32, #tpu.memory_space<vmem>>, vector<180x4xf32>
    %cst_7 = arith.constant dense<0.000000e+00> : vector<768x4xf32>
    %7 = tpu.matmul %0, %6, %cst_7 {dimension_numbers = #tpu.dot_dimension_numbers<[1], [0], [0], [1], [0, 0, 1, 1], [], []>} : vector<768x180xf32>, vector<180x4xf32>, vector<768x4xf32> -> vector<768x4xf32>
    %c0_8 = arith.constant 0 : index
    %c0_9 = arith.constant 0 : index
    %8 = vector.load %arg5[%c0_8, %c0_9] : memref<1x4xf32, #tpu.memory_space<vmem>>, vector<1x4xf32>
    %9 = vector.broadcast %8 : vector<1x4xf32> to vector<768x4xf32>
    %10 = arith.addf %7, %9 : vector<768x4xf32>
    %cst_10 = arith.constant dense<0xFF800000> : vector<768xf32>
    %11 = vector.multi_reduction <maximumf>, %5, %cst_10 [1] : vector<768x4xf32> to vector<768xf32>
    %12 = vector.shape_cast %11 : vector<768xf32> to vector<768x1xf32>
    %cst_11 = arith.constant dense<0xFF800000> : vector<768xf32>
    %13 = vector.multi_reduction <maximumf>, %10, %cst_11 [1] : vector<768x4xf32> to vector<768xf32>
    %14 = vector.shape_cast %13 : vector<768xf32> to vector<768x1xf32>
    %15 = arith.maximumf %12, %14 : vector<768x1xf32>
    %16 = vector.broadcast %15 : vector<768x1xf32> to vector<768x4xf32>
    %17 = arith.subf %5, %16 : vector<768x4xf32>
    %18 = math.exp %17 : vector<768x4xf32>
    %cst_12 = arith.constant dense<0.000000e+00> : vector<768xf32>
    %19 = vector.multi_reduction <add>, %18, %cst_12 [1] : vector<768x4xf32> to vector<768xf32>
    %20 = vector.shape_cast %19 : vector<768xf32> to vector<768x1xf32>
    %21 = vector.broadcast %15 : vector<768x1xf32> to vector<768x4xf32>
    %22 = arith.subf %10, %21 : vector<768x4xf32>
    %23 = math.exp %22 : vector<768x4xf32>
    %cst_13 = arith.constant dense<0.000000e+00> : vector<768xf32>
    %24 = vector.multi_reduction <add>, %23, %cst_13 [1] : vector<768x4xf32> to vector<768xf32>
    %25 = vector.shape_cast %24 : vector<768xf32> to vector<768x1xf32>
    %26 = arith.addf %20, %25 : vector<768x1xf32>
    %27 = math.log %26 : vector<768x1xf32>
    %28 = vector.broadcast %15 : vector<768x1xf32> to vector<768x4xf32>
    %29 = arith.subf %5, %28 : vector<768x4xf32>
    %30 = vector.broadcast %27 : vector<768x1xf32> to vector<768x4xf32>
    %31 = arith.subf %29, %30 : vector<768x4xf32>
    %32 = vector.broadcast %15 : vector<768x1xf32> to vector<768x4xf32>
    %33 = arith.subf %10, %32 : vector<768x4xf32>
    %34 = vector.broadcast %27 : vector<768x1xf32> to vector<768x4xf32>
    %35 = arith.subf %33, %34 : vector<768x4xf32>
    %c0_14 = arith.constant 0 : index
    %c0_15 = arith.constant 0 : index
    %36 = memref.load %arg6[%c0_14, %c0_15] : memref<2x2xf32, #tpu.memory_space<smem>>
    %37 = vector.broadcast %36 : f32 to vector<768x4xf32>
    %38 = arith.mulf %31, %37 : vector<768x4xf32>
    %c1 = arith.constant 1 : index
    %c0_16 = arith.constant 0 : index
    %39 = memref.load %arg6[%c1, %c0_16] : memref<2x2xf32, #tpu.memory_space<smem>>
    %40 = vector.broadcast %39 : f32 to vector<768x4xf32>
    %41 = arith.mulf %35, %40 : vector<768x4xf32>
    %42 = arith.addf %38, %41 : vector<768x4xf32>
    %c0_17 = arith.constant 0 : index
    %c0_18 = arith.constant 0 : index
    %43 = memref.load %arg7[%c0_17, %c0_18] : memref<1x2xf32, #tpu.memory_space<smem>>
    %44 = vector.broadcast %43 : f32 to vector<768x4xf32>
    %45 = arith.addf %42, %44 : vector<768x4xf32>
    %c0_19 = arith.constant 0 : index
    %c1_20 = arith.constant 1 : index
    %46 = memref.load %arg6[%c0_19, %c1_20] : memref<2x2xf32, #tpu.memory_space<smem>>
    %47 = vector.broadcast %46 : f32 to vector<768x4xf32>
    %48 = arith.mulf %31, %47 : vector<768x4xf32>
    %c1_21 = arith.constant 1 : index
    %c1_22 = arith.constant 1 : index
    %49 = memref.load %arg6[%c1_21, %c1_22] : memref<2x2xf32, #tpu.memory_space<smem>>
    %50 = vector.broadcast %49 : f32 to vector<768x4xf32>
    %51 = arith.mulf %35, %50 : vector<768x4xf32>
    %52 = arith.addf %48, %51 : vector<768x4xf32>
    %c0_23 = arith.constant 0 : index
    %c1_24 = arith.constant 1 : index
    %53 = memref.load %arg7[%c0_23, %c1_24] : memref<1x2xf32, #tpu.memory_space<smem>>
    %54 = vector.broadcast %53 : f32 to vector<768x4xf32>
    %55 = arith.addf %52, %54 : vector<768x4xf32>
    %56 = arith.maximumf %45, %55 : vector<768x4xf32>
    %57 = arith.subf %45, %56 : vector<768x4xf32>
    %58 = math.exp %57 : vector<768x4xf32>
    %59 = arith.subf %55, %56 : vector<768x4xf32>
    %60 = math.exp %59 : vector<768x4xf32>
    %61 = arith.addf %58, %60 : vector<768x4xf32>
    %62 = math.log %61 : vector<768x4xf32>
    %63 = arith.addf %56, %62 : vector<768x4xf32>
    %64 = arith.subf %45, %63 : vector<768x4xf32>
    %c0_25 = arith.constant 0 : index
    %c0_26 = arith.constant 0 : index
    %c0_27 = arith.constant 0 : index
    %65 = vector.load %arg8[%c0_25, %c0_26, %c0_27] : memref<2x768x4xf32, #tpu.memory_space<vmem>>, vector<1x768x4xf32>
    %66 = vector.shape_cast %65 : vector<1x768x4xf32> to vector<768x4xf32>
    %67 = vector.shape_cast %64 : vector<768x4xf32> to vector<1x768x4xf32>
    tpu.vector_store %arg8[%c0_25, %c0_26, %c0_27], %67 {strides = array<i32>} : memref<2x768x4xf32, #tpu.memory_space<vmem>>, vector<1x768x4xf32>,
    %68 = arith.subf %55, %63 : vector<768x4xf32>
    %c1_28 = arith.constant 1 : index
    %c0_29 = arith.constant 0 : index
    %c0_30 = arith.constant 0 : index
    %69 = vector.load %arg8[%c1_28, %c0_29, %c0_30] : memref<2x768x4xf32, #tpu.memory_space<vmem>>, vector<1x768x4xf32>
    %70 = vector.shape_cast %69 : vector<1x768x4xf32> to vector<768x4xf32>
    %71 = vector.shape_cast %68 : vector<768x4xf32> to vector<1x768x4xf32>
    tpu.vector_store %arg8[%c1_28, %c0_29, %c0_30], %71 {strides = array<i32>} : memref<2x768x4xf32, #tpu.memory_space<vmem>>, vector<1x768x4xf32>,
    return
  }
  func.func @transform_0(%arg0: i32) -> (i32, i32) {
    %c0_i32 = arith.constant 0 : i32
    %c0_i32_0 = arith.constant 0 : i32
    %c0_i32_1 = arith.constant 0 : i32
    return %c0_i32, %c0_i32_0 : i32, i32
  }
  func.func @transform_1(%arg0: i32) -> (i32, i32) {
    %c0_i32 = arith.constant 0 : i32
    %c0_i32_0 = arith.constant 0 : i32
    %c0_i32_1 = arith.constant 0 : i32
    return %c0_i32, %c0_i32_0 : i32, i32
  }
  func.func @transform_2(%arg0: i32) -> (i32, i32) {
    %c0_i32 = arith.constant 0 : i32
    %c0_i32_0 = arith.constant 0 : i32
    %c0_i32_1 = arith.constant 0 : i32
    return %c0_i32, %c0_i32_0 : i32, i32
  }
  func.func @transform_3(%arg0: i32) -> (i32, i32) {
    %c0_i32 = arith.constant 0 : i32
    %c0_i32_0 = arith.constant 0 : i32
    %c0_i32_1 = arith.constant 0 : i32
    return %c0_i32, %c0_i32_0 : i32, i32
  }
  func.func @transform_4(%arg0: i32) -> (i32, i32) {
    %c0_i32 = arith.constant 0 : i32
    %c0_i32_0 = arith.constant 0 : i32
    %c0_i32_1 = arith.constant 0 : i32
    return %c0_i32, %c0_i32_0 : i32, i32
  }
  func.func @transform_5(%arg0: i32) -> (i32, i32) {
    %c0_i32 = arith.constant 0 : i32
    %c0_i32_0 = arith.constant 0 : i32
    %c0_i32_1 = arith.constant 0 : i32
    return %c0_i32, %c0_i32_0 : i32, i32
  }
  func.func @transform_6(%arg0: i32) -> (i32, i32) {
    %c0_i32 = arith.constant 0 : i32
    %c0_i32_0 = arith.constant 0 : i32
    %c0_i32_1 = arith.constant 0 : i32
    return %c0_i32, %c0_i32_0 : i32, i32
  }
  func.func @transform_7(%arg0: i32) -> (i32, i32, i32) {
    %c0_i32 = arith.constant 0 : i32
    %c0_i32_0 = arith.constant 0 : i32
    %c0_i32_1 = arith.constant 0 : i32
    %c0_i32_2 = arith.constant 0 : i32
    return %c0_i32, %c0_i32_0, %c0_i32_1 : i32, i32, i32
  }
}

module attributes {stable_mosaic.version = 11 : i64} {
  func.func @_layer45_kernel(%arg0: i32, %arg1: memref<128x48xf32, #tpu.memory_space<vmem>>, %arg2: memref<48x4xf32, #tpu.memory_space<vmem>>, %arg3: memref<1x4xf32, #tpu.memory_space<vmem>>, %arg4: memref<4x128x43xf32, #tpu.memory_space<vmem>>, %arg5: memref<1x43xf32, #tpu.memory_space<vmem>>, %arg6: memref<1x43xf32, #tpu.memory_space<vmem>>) attributes {dimension_semantics = [#tpu.dimension_semantics<arbitrary>], iteration_bounds = array<i64: 1>, scalar_prefetch = 0 : i64, scratch_operands = 0 : i64, tpu.core_type = #tpu.core_type<tc>, window_params = [{pipeline_mode = #tpu.pipeline_mode<synchronous>, transform_indices = @transform_0, window_bounds = array<i64: 128, 48>}, {pipeline_mode = #tpu.pipeline_mode<synchronous>, transform_indices = @transform_1, window_bounds = array<i64: 48, 4>}, {pipeline_mode = #tpu.pipeline_mode<synchronous>, transform_indices = @transform_2, window_bounds = array<i64: 1, 4>}, {pipeline_mode = #tpu.pipeline_mode<synchronous>, transform_indices = @transform_3, window_bounds = array<i64: 4, 128, 43>}, {pipeline_mode = #tpu.pipeline_mode<synchronous>, transform_indices = @transform_4, window_bounds = array<i64: 1, 43>}, {pipeline_mode = #tpu.pipeline_mode<synchronous>, transform_indices = @transform_5, window_bounds = array<i64: 1, 43>}]} {
    %c0 = arith.constant 0 : index
    %c0_0 = arith.constant 0 : index
    %0 = vector.load %arg1[%c0, %c0_0] : memref<128x48xf32, #tpu.memory_space<vmem>>, vector<128x48xf32>
    %c0_1 = arith.constant 0 : index
    %c0_2 = arith.constant 0 : index
    %1 = vector.load %arg2[%c0_1, %c0_2] : memref<48x4xf32, #tpu.memory_space<vmem>>, vector<48x4xf32>
    %cst = arith.constant dense<0.000000e+00> : vector<128x4xf32>
    %2 = tpu.matmul %0, %1, %cst {dimension_numbers = #tpu.dot_dimension_numbers<[1], [0], [0], [1], [0, 0, 1, 1], [], []>} : vector<128x48xf32>, vector<48x4xf32>, vector<128x4xf32> -> vector<128x4xf32>
    %c0_3 = arith.constant 0 : index
    %c0_4 = arith.constant 0 : index
    %3 = vector.load %arg3[%c0_3, %c0_4] : memref<1x4xf32, #tpu.memory_space<vmem>>, vector<1x4xf32>
    %4 = vector.broadcast %3 : vector<1x4xf32> to vector<128x4xf32>
    %5 = arith.addf %2, %4 : vector<128x4xf32>
    %cst_5 = arith.constant dense<0xFF800000> : vector<128xf32>
    %6 = vector.multi_reduction <maximumf>, %5, %cst_5 [1] : vector<128x4xf32> to vector<128xf32>
    %7 = vector.shape_cast %6 : vector<128xf32> to vector<128x1xf32>
    %8 = vector.broadcast %7 : vector<128x1xf32> to vector<128x4xf32>
    %9 = arith.subf %5, %8 : vector<128x4xf32>
    %10 = math.exp %9 : vector<128x4xf32>
    %cst_6 = arith.constant dense<0.000000e+00> : vector<128xf32>
    %11 = vector.multi_reduction <add>, %10, %cst_6 [1] : vector<128x4xf32> to vector<128xf32>
    %12 = vector.shape_cast %11 : vector<128xf32> to vector<128x1xf32>
    %13 = math.log %12 : vector<128x1xf32>
    %14 = vector.broadcast %13 : vector<128x1xf32> to vector<128x4xf32>
    %15 = arith.subf %9, %14 : vector<128x4xf32>
    %c0_7 = arith.constant 0 : index
    %c0_8 = arith.constant 0 : index
    %16 = vector.load %arg5[%c0_7, %c0_8] : memref<1x43xf32, #tpu.memory_space<vmem>>, vector<1x43xf32>
    %17 = vector.extract_strided_slice %15 {offsets = [0, 0], sizes = [128, 1], strides = [1, 1]} : vector<128x4xf32> to vector<128x1xf32>
    %c0_9 = arith.constant 0 : index
    %c0_10 = arith.constant 0 : index
    %c0_11 = arith.constant 0 : index
    %18 = vector.load %arg4[%c0_9, %c0_10, %c0_11] : memref<4x128x43xf32, #tpu.memory_space<vmem>>, vector<1x128x43xf32>
    %19 = vector.shape_cast %18 : vector<1x128x43xf32> to vector<128x43xf32>
    %20 = vector.broadcast %17 : vector<128x1xf32> to vector<128x43xf32>
    %21 = arith.mulf %20, %19 : vector<128x43xf32>
    %cst_12 = arith.constant dense<0.000000e+00> : vector<43xf32>
    %22 = vector.multi_reduction <add>, %21, %cst_12 [0] : vector<128x43xf32> to vector<43xf32>
    %23 = vector.shape_cast %22 : vector<43xf32> to vector<1x43xf32>
    %24 = arith.addf %16, %23 : vector<1x43xf32>
    %25 = vector.extract_strided_slice %15 {offsets = [0, 1], sizes = [128, 1], strides = [1, 1]} : vector<128x4xf32> to vector<128x1xf32>
    %c1 = arith.constant 1 : index
    %c0_13 = arith.constant 0 : index
    %c0_14 = arith.constant 0 : index
    %26 = vector.load %arg4[%c1, %c0_13, %c0_14] : memref<4x128x43xf32, #tpu.memory_space<vmem>>, vector<1x128x43xf32>
    %27 = vector.shape_cast %26 : vector<1x128x43xf32> to vector<128x43xf32>
    %28 = vector.broadcast %25 : vector<128x1xf32> to vector<128x43xf32>
    %29 = arith.mulf %28, %27 : vector<128x43xf32>
    %cst_15 = arith.constant dense<0.000000e+00> : vector<43xf32>
    %30 = vector.multi_reduction <add>, %29, %cst_15 [0] : vector<128x43xf32> to vector<43xf32>
    %31 = vector.shape_cast %30 : vector<43xf32> to vector<1x43xf32>
    %32 = arith.addf %24, %31 : vector<1x43xf32>
    %33 = vector.extract_strided_slice %15 {offsets = [0, 2], sizes = [128, 1], strides = [1, 1]} : vector<128x4xf32> to vector<128x1xf32>
    %c2 = arith.constant 2 : index
    %c0_16 = arith.constant 0 : index
    %c0_17 = arith.constant 0 : index
    %34 = vector.load %arg4[%c2, %c0_16, %c0_17] : memref<4x128x43xf32, #tpu.memory_space<vmem>>, vector<1x128x43xf32>
    %35 = vector.shape_cast %34 : vector<1x128x43xf32> to vector<128x43xf32>
    %36 = vector.broadcast %33 : vector<128x1xf32> to vector<128x43xf32>
    %37 = arith.mulf %36, %35 : vector<128x43xf32>
    %cst_18 = arith.constant dense<0.000000e+00> : vector<43xf32>
    %38 = vector.multi_reduction <add>, %37, %cst_18 [0] : vector<128x43xf32> to vector<43xf32>
    %39 = vector.shape_cast %38 : vector<43xf32> to vector<1x43xf32>
    %40 = arith.addf %32, %39 : vector<1x43xf32>
    %41 = vector.extract_strided_slice %15 {offsets = [0, 3], sizes = [128, 1], strides = [1, 1]} : vector<128x4xf32> to vector<128x1xf32>
    %c3 = arith.constant 3 : index
    %c0_19 = arith.constant 0 : index
    %c0_20 = arith.constant 0 : index
    %42 = vector.load %arg4[%c3, %c0_19, %c0_20] : memref<4x128x43xf32, #tpu.memory_space<vmem>>, vector<1x128x43xf32>
    %43 = vector.shape_cast %42 : vector<1x128x43xf32> to vector<128x43xf32>
    %44 = vector.broadcast %41 : vector<128x1xf32> to vector<128x43xf32>
    %45 = arith.mulf %44, %43 : vector<128x43xf32>
    %cst_21 = arith.constant dense<0.000000e+00> : vector<43xf32>
    %46 = vector.multi_reduction <add>, %45, %cst_21 [0] : vector<128x43xf32> to vector<43xf32>
    %47 = vector.shape_cast %46 : vector<43xf32> to vector<1x43xf32>
    %48 = arith.addf %40, %47 : vector<1x43xf32>
    %c0_22 = arith.constant 0 : index
    %c0_23 = arith.constant 0 : index
    %49 = vector.load %arg6[%c0_22, %c0_23] : memref<1x43xf32, #tpu.memory_space<vmem>>, vector<1x43xf32>
    tpu.vector_store %arg6[%c0_22, %c0_23], %48 {strides = array<i32>} : memref<1x43xf32, #tpu.memory_space<vmem>>, vector<1x43xf32>,
    return
  }
  func.func @transform_0(%arg0: i32) -> (i32, i32) {
    %c0_i32 = arith.constant 0 : i32
    %c0_i32_0 = arith.constant 0 : i32
    %c0_i32_1 = arith.constant 0 : i32
    return %c0_i32, %c0_i32_0 : i32, i32
  }
  func.func @transform_1(%arg0: i32) -> (i32, i32) {
    %c0_i32 = arith.constant 0 : i32
    %c0_i32_0 = arith.constant 0 : i32
    %c0_i32_1 = arith.constant 0 : i32
    return %c0_i32, %c0_i32_0 : i32, i32
  }
  func.func @transform_2(%arg0: i32) -> (i32, i32) {
    %c0_i32 = arith.constant 0 : i32
    %c0_i32_0 = arith.constant 0 : i32
    %c0_i32_1 = arith.constant 0 : i32
    return %c0_i32, %c0_i32_0 : i32, i32
  }
  func.func @transform_3(%arg0: i32) -> (i32, i32, i32) {
    %c0_i32 = arith.constant 0 : i32
    %c0_i32_0 = arith.constant 0 : i32
    %c0_i32_1 = arith.constant 0 : i32
    %c0_i32_2 = arith.constant 0 : i32
    return %c0_i32, %c0_i32_0, %c0_i32_1 : i32, i32, i32
  }
  func.func @transform_4(%arg0: i32) -> (i32, i32) {
    %c0_i32 = arith.constant 0 : i32
    %c0_i32_0 = arith.constant 0 : i32
    %c0_i32_1 = arith.constant 0 : i32
    return %c0_i32, %c0_i32_0 : i32, i32
  }
  func.func @transform_5(%arg0: i32) -> (i32, i32) {
    %c0_i32 = arith.constant 0 : i32
    %c0_i32_0 = arith.constant 0 : i32
    %c0_i32_1 = arith.constant 0 : i32
    return %c0_i32, %c0_i32_0 : i32, i32
  }
}

</mosaic_0001>

<llo_original>
// kernel: neural_network_forward.3
$region0: #{neural_network_forward.3}
  #allocation0 [shape = 'u32[]', space=smem, size = 0x4, offset = 0x4, fixed_abs, tag = 'smem constant byte address 0x4 - core index']
  #allocation1 [shape = 'u32[144,128]{1,0:T(1,128)}', space=vmem, size = 0x12000, scoped, tag = 'internal scratch']
  %s0 = inlined_call_operand.vmem [shape: f32[17280,89], index: 0, kind: input, shape index: {}]
  %s1 = inlined_call_operand.vmem [shape: f32[8,89], index: 1, kind: input, shape index: {}]
  %s2 = inlined_call_operand.vmem [shape: f32[8,1], index: 2, kind: input, shape index: {}]
  %s3 = inlined_call_operand.vmem [shape: f32[8,17280], index: 3, kind: output, shape index: {}]
  %s4 = sld [smem:[#allocation0]]
  $region45: #{neural_network_forward.3} parent=0
    _
  %s6 = ssub.s32 1, %s4
  %s7 = scalar_select 0, %s6, %s4
  loop: start=0, step=1, limit=5
  $region2: #{neural_network_forward.3} parent=0 // loop_pre_header
    _
  $region3: #{neural_network_forward.3} parent=0 // loop_header
    %s9 = sphi 0, %s13
    %p10 = scmp.ge.s32.totalorder %s9, 5
    %s19 = sphi 0, %s21
    %s22 = sphi 0, %s19
    %s23 = sphi 0, %s22
    %s39 = sphi 0, %s23
    %s43 = sphi 0, %s43
    %s45 = sphi 0, %s43
    %s46 = sphi 0, %s45
    %s60 = sphi 0, %s46
    %s64 = sphi 0, %s64
    %s66 = sphi 0, %s64
    %s67 = sphi 0, %s66
    %s81 = sphi 0, %s67
    %s87 = sphi 0, %s89
    %s90 = sphi 0, %s87
    %s91 = sphi 0, %s90
    %s107 = sphi 0, %s91
  $region4: #{neural_network_forward.3} parent=0 // loop_header_branch
    %12 = sbr.rel (%p10) target = $region8
  $region5: #{neural_network_forward.3} parent=0 // loop_body
    %s14 = ssub.s32 %s9, 1
    %s15 = ssub.s32 %s9, 2
    %s16 = sadd.s32 %s9, 1
    %s17 = ssub.s32 %s9, %s16
    %p18 = scmp.eq.s32.totalorder %s17, 0
    %s20 = sadd.s32 %s19, 1
    %s21 = scalar_select %p18, %s19, %s20
    %p24 = pneg %p18
    %p25 = scmp.eq.s32.totalorder %s9, 2
    %p26 = por %p24, %p25
    %p27 = scmp.ne.s32.totalorder %s19, %s22
    %p28 = scmp.eq.s32.totalorder %s9, 0
    %p29 = por %p27, %p28
    %p30 = scmp.ne.s32.totalorder %s19, %s22
    %p31 = scmp.eq.s32.totalorder %s14, 2
    %p32 = por %p30, %p31
    %p33 = scmp.ne.s32.totalorder %s22, %s23
    %p34 = scmp.eq.s32.totalorder %s14, 0
    %p35 = por %p33, %p34
    %p36 = scmp.ne.s32.totalorder %s22, %s23
    %p37 = scmp.eq.s32.totalorder %s15, 2
    %p38 = por %p36, %p37
    %p40 = scmp.ne.s32.totalorder %s23, %s39
    %p41 = scmp.eq.s32.totalorder %s15, 0
    %p42 = por %p40, %p41
    %s44 = sadd.s32 %s43, 1
    %p47 = scmp.eq.s32.totalorder %s9, 2
    %p48 = scmp.ne.s32.totalorder %s43, %s45
    %p49 = scmp.eq.s32.totalorder %s9, 0
    %p50 = por %p48, %p49
    %p51 = scmp.ne.s32.totalorder %s43, %s45
    %p52 = scmp.eq.s32.totalorder %s14, 2
    %p53 = por %p51, %p52
    %p54 = scmp.ne.s32.totalorder %s45, %s46
    %p55 = scmp.eq.s32.totalorder %s14, 0
    %p56 = por %p54, %p55
    %p57 = scmp.ne.s32.totalorder %s45, %s46
    %p58 = scmp.eq.s32.totalorder %s15, 2
    %p59 = por %p57, %p58
    %p61 = scmp.ne.s32.totalorder %s46, %s60
    %p62 = scmp.eq.s32.totalorder %s15, 0
    %p63 = por %p61, %p62
    %s65 = sadd.s32 %s64, 1
    %p68 = scmp.eq.s32.totalorder %s9, 2
    %p69 = scmp.ne.s32.totalorder %s64, %s66
    %p70 = scmp.eq.s32.totalorder %s9, 0
    %p71 = por %p69, %p70
    %p72 = scmp.ne.s32.totalorder %s64, %s66
    %p73 = scmp.eq.s32.totalorder %s14, 2
    %p74 = por %p72, %p73
    %p75 = scmp.ne.s32.totalorder %s66, %s67
    %p76 = scmp.eq.s32.totalorder %s14, 0
    %p77 = por %p75, %p76
    %p78 = scmp.ne.s32.totalorder %s66, %s67
    %p79 = scmp.eq.s32.totalorder %s15, 2
    %p80 = por %p78, %p79
    %p82 = scmp.ne.s32.totalorder %s67, %s81
    %p83 = scmp.eq.s32.totalorder %s15, 0
    %p84 = por %p82, %p83
    %s85 = ssub.s32 %s9, %s16
    %p86 = scmp.eq.s32.totalorder %s85, 0
    %s88 = sadd.s32 %s87, 1
    %s89 = scalar_select %p86, %s87, %s88
    %p92 = pneg %p86
    %p93 = scmp.eq.s32.totalorder %s9, 2
    %p94 = por %p92, %p93
    %p95 = scmp.ne.s32.totalorder %s87, %s90
    %p96 = scmp.eq.s32.totalorder %s9, 0
    %p97 = por %p95, %p96
    %p98 = scmp.ne.s32.totalorder %s87, %s90
    %p99 = scmp.eq.s32.totalorder %s14, 2
    %p100 = por %p98, %p99
    %p101 = scmp.ne.s32.totalorder %s90, %s91
    %p102 = scmp.eq.s32.totalorder %s14, 0
    %p103 = por %p101, %p102
    %p104 = scmp.ne.s32.totalorder %s90, %s91
    %p105 = scmp.eq.s32.totalorder %s15, 2
    %p106 = por %p104, %p105
    %p108 = scmp.ne.s32.totalorder %s91, %s107
    %p109 = scmp.eq.s32.totalorder %s15, 0
    %p110 = por %p108, %p109
    %p111 = scmp.le.s32.totalorder 1, %s9
    %p112 = scmp.lt.s32.totalorder %s9, 4
    %p113 = pnand %p111, %p112
    %p114 = pneg %p113
    // Predicated region
    $region9: #{neural_network_forward.3} parent=5 // pred_check
      _
    $region10: #{neural_network_forward.3} parent=5 // pred_check_branch
      %116 = sbr.rel (%p113) target = $region12
    $region11: #{neural_network_forward.3} parent=5 // pred_region
      %s117 = ssub.s32 %s9, 1
      // Predicated region
      $region13: #{neural_network_forward.3} parent=11 // pred_check
        %p118 = pneg %p56
      $region14: #{neural_network_forward.3} parent=11 // pred_check_branch
        %120 = sbr.rel (%p118) target = $region16
      $region15: #{neural_network_forward.3} parent=11 // pred_region
        _
      $region16: #{neural_network_forward.3} parent=11 // pred_fallthru
        _
      // Predicated region
      $region17: #{neural_network_forward.3} parent=11 // pred_check
        %p121 = pneg %p77
      $region18: #{neural_network_forward.3} parent=11 // pred_check_branch
        %123 = sbr.rel (%p121) target = $region20
      $region19: #{neural_network_forward.3} parent=11 // pred_region
        _
      $region20: #{neural_network_forward.3} parent=11 // pred_fallthru
        _
    $region12: #{neural_network_forward.3} parent=5 // pred_fallthru
      _
    %p124 = scmp.lt.s32.totalorder %s9, 3
    // Predicated region
    $region21: #{neural_network_forward.3} parent=5 // pred_check
      %p125 = pneg %p124
    $region22: #{neural_network_forward.3} parent=5 // pred_check_branch
      %127 = sbr.rel (%p125) target = $region24
    $region23: #{neural_network_forward.3} parent=5 // pred_region
      // Predicated region
      $region25: #{neural_network_forward.3} parent=23 // pred_check
        %p128 = pneg %p29
      $region26: #{neural_network_forward.3} parent=23 // pred_check_branch
        %130 = sbr.rel (%p128) target = $region28
      $region27: #{neural_network_forward.3} parent=23 // pred_region
        %s131 = smul.u32 720, %s9
        %p132 = scmp.lt.s32.totalorder %s131, 2159
        %s133 = scalar_select %p132, %s131, 2159
        %s134 = smul.addr %s133, 8
        %s135 = scalar_lea.vmem %s0, %s134
        %s136 = smul.u32 720, %s9
      $region28: #{neural_network_forward.3} parent=23 // pred_fallthru
        _
    $region24: #{neural_network_forward.3} parent=5 // pred_fallthru
      _
    %p137 = scmp.le.s32.totalorder 1, %s9
    %p138 = scmp.lt.s32.totalorder %s9, 4
    %p139 = pnand %p137, %p138
    %p140 = pneg %p139
    // Predicated region
    $region29: #{neural_network_forward.3} parent=5 // pred_check
      _
    $region30: #{neural_network_forward.3} parent=5 // pred_check_branch
      %142 = sbr.rel (%p139) target = $region32
    $region31: #{neural_network_forward.3} parent=5 // pred_region
      %s143 = ssub.s32 %s9, 1
      %s144 = smul.u32 720, %s14
      %p145 = scmp.lt.s32.totalorder %s144, 2159
      %s146 = scalar_select %p145, %s144, 2159
      %s147 = smul.addr %s146, 8
      %s148 = scalar_lea.vmem %s0, %s147
      %p149 = pneg %p35
      %p150 = pneg %p32
      %p151 = pneg %p56
      %p152 = pneg %p53
      %p153 = pneg %p77
      %p154 = pneg %p74
      %p155 = pneg %p103
      %p156 = pneg %p100
      %s157 = smul.u32 45, %s14
      %p158 = scmp.lt.s32.totalorder %s157, 134
      %s159 = scalar_select %p158, %s157, 134
      %s160 = smul.addr %s159, 8
      %s161 = scalar_lea.vmem %s3, %s160
      %s162 = smul.u32 720, %s14
      %p163 = scmp.lt.s32.totalorder %s162, 2159
      %s164 = scalar_select %p163, %s162, 2159
      %s165 = smul.addr %s164, 8
      %s166 = scalar_lea.vmem %s0, %s165
      %s167 = smul.u32 720, %s14
      %s168 = smul.u32 45, %s14
      %p169 = scmp.lt.s32.totalorder %s168, 134
      %s170 = scalar_select %p169, %s168, 134
      %s171 = smul.addr %s170, 8
      %s172 = scalar_lea.vmem %s3, %s171
      %s173 = smul.u32 45, %s14
      %v174 = vld [vmem:[%s166] sm:$0xff]
      %v175 = vld [vmem:[%s166 + $0x8] sm:$0xff]
      %v176 = vld [vmem:[%s166 + $0x10] sm:$0xff]
      %v177 = vld [vmem:[%s166 + $0x18] sm:$0xff]
      %v178 = vld [vmem:[%s166 + $0x20] sm:$0xff]
      %v179 = vld [vmem:[%s166 + $0x28] sm:$0xff]
      %v180 = vld [vmem:[%s166 + $0x30] sm:$0xff]
      %v181 = vld [vmem:[%s166 + $0x38] sm:$0xff]
      %v182 = vld [vmem:[%s166 + $0x40] sm:$0xff]
      %v183 = vld [vmem:[%s166 + $0x48] sm:$0xff]
      %v184 = vld [vmem:[%s166 + $0x50] sm:$0xff]
      %v185 = vld [vmem:[%s166 + $0x58] sm:$0xff]
      %v186 = vld [vmem:[%s166 + $0x60] sm:$0xff]
      %v187 = vld [vmem:[%s166 + $0x68] sm:$0xff]
      %v188 = vld [vmem:[%s166 + $0x70] sm:$0xff]
      %v189 = vld [vmem:[%s166 + $0x78] sm:$0xff]
      %v190 = vld [vmem:[%s166 + $0x80] sm:$0xff]
      %v191 = vld [vmem:[%s166 + $0x88] sm:$0xff]
      %v192 = vld [vmem:[%s166 + $0x90] sm:$0xff]
      %v193 = vld [vmem:[%s166 + $0x98] sm:$0xff]
      %v194 = vld [vmem:[%s166 + $0xa0] sm:$0xff]
      %v195 = vld [vmem:[%s166 + $0xa8] sm:$0xff]
      %v196 = vld [vmem:[%s166 + $0xb0] sm:$0xff]
      %v197 = vld [vmem:[%s166 + $0xb8] sm:$0xff]
      %v198 = vld [vmem:[%s166 + $0xc0] sm:$0xff]
      %v199 = vld [vmem:[%s166 + $0xc8] sm:$0xff]
      %v200 = vld [vmem:[%s166 + $0xd0] sm:$0xff]
      %v201 = vld [vmem:[%s166 + $0xd8] sm:$0xff]
      %v202 = vld [vmem:[%s166 + $0xe0] sm:$0xff]
      %v203 = vld [vmem:[%s166 + $0xe8] sm:$0xff]
      %v204 = vld [vmem:[%s166 + $0xf0] sm:$0xff]
      %v205 = vld [vmem:[%s166 + $0xf8] sm:$0xff]
      %v206 = vld [vmem:[%s166 + $0x100] sm:$0xff]
      %v207 = vld [vmem:[%s166 + $0x108] sm:$0xff]
      %v208 = vld [vmem:[%s166 + $0x110] sm:$0xff]
      %v209 = vld [vmem:[%s166 + $0x118] sm:$0xff]
      %v210 = vld [vmem:[%s166 + $0x120] sm:$0xff]
      %v211 = vld [vmem:[%s166 + $0x128] sm:$0xff]
      %v212 = vld [vmem:[%s166 + $0x130] sm:$0xff]
      %v213 = vld [vmem:[%s166 + $0x138] sm:$0xff]
      %v214 = vld [vmem:[%s166 + $0x140] sm:$0xff]
      %v215 = vld [vmem:[%s166 + $0x148] sm:$0xff]
      %v216 = vld [vmem:[%s166 + $0x150] sm:$0xff]
      %v217 = vld [vmem:[%s166 + $0x158] sm:$0xff]
      %v218 = vld [vmem:[%s166 + $0x160] sm:$0xff]
      %v219 = vld [vmem:[%s166 + $0x168] sm:$0xff]
      %v220 = vld [vmem:[%s166 + $0x170] sm:$0xff]
      %v221 = vld [vmem:[%s166 + $0x178] sm:$0xff]
      %v222 = vld [vmem:[%s166 + $0x180] sm:$0xff]
      %v223 = vld [vmem:[%s166 + $0x188] sm:$0xff]
      %v224 = vld [vmem:[%s166 + $0x190] sm:$0xff]
      %v225 = vld [vmem:[%s166 + $0x198] sm:$0xff]
      %v226 = vld [vmem:[%s166 + $0x1a0] sm:$0xff]
      %v227 = vld [vmem:[%s166 + $0x1a8] sm:$0xff]
      %v228 = vld [vmem:[%s166 + $0x1b0] sm:$0xff]
      %v229 = vld [vmem:[%s166 + $0x1b8] sm:$0xff]
      %v230 = vld [vmem:[%s166 + $0x1c0] sm:$0xff]
      %v231 = vld [vmem:[%s166 + $0x1c8] sm:$0xff]
      %v232 = vld [vmem:[%s166 + $0x1d0] sm:$0xff]
      %v233 = vld [vmem:[%s166 + $0x1d8] sm:$0xff]
      %v234 = vld [vmem:[%s166 + $0x1e0] sm:$0xff]
      %v235 = vld [vmem:[%s166 + $0x1e8] sm:$0xff]
      %v236 = vld [vmem:[%s166 + $0x1f0] sm:$0xff]
      %v237 = vld [vmem:[%s166 + $0x1f8] sm:$0xff]
      %v238 = vld [vmem:[%s166 + $0x200] sm:$0xff]
      %v239 = vld [vmem:[%s166 + $0x208] sm:$0xff]
      %v240 = vld [vmem:[%s166 + $0x210] sm:$0xff]
      %v241 = vld [vmem:[%s166 + $0x218] sm:$0xff]
      %v242 = vld [vmem:[%s166 + $0x220] sm:$0xff]
      %v243 = vld [vmem:[%s166 + $0x228] sm:$0xff]
      %v244 = vld [vmem:[%s166 + $0x230] sm:$0xff]
      %v245 = vld [vmem:[%s166 + $0x238] sm:$0xff]
      %v246 = vld [vmem:[%s166 + $0x240] sm:$0xff]
      %v247 = vld [vmem:[%s166 + $0x248] sm:$0xff]
      %v248 = vld [vmem:[%s166 + $0x250] sm:$0xff]
      %v249 = vld [vmem:[%s166 + $0x258] sm:$0xff]
      %v250 = vld [vmem:[%s166 + $0x260] sm:$0xff]
      %v251 = vld [vmem:[%s166 + $0x268] sm:$0xff]
      %v252 = vld [vmem:[%s166 + $0x270] sm:$0xff]
      %v253 = vld [vmem:[%s166 + $0x278] sm:$0xff]
      %v254 = vld [vmem:[%s166 + $0x280] sm:$0xff]
      %v255 = vld [vmem:[%s166 + $0x288] sm:$0xff]
      %v256 = vld [vmem:[%s166 + $0x290] sm:$0xff]
      %v257 = vld [vmem:[%s166 + $0x298] sm:$0xff]
      %v258 = vld [vmem:[%s166 + $0x2a0] sm:$0xff]
      %v259 = vld [vmem:[%s166 + $0x2a8] sm:$0xff]
      %v260 = vld [vmem:[%s166 + $0x2b0] sm:$0xff]
      %v261 = vld [vmem:[%s166 + $0x2b8] sm:$0xff]
      %v262 = vld [vmem:[%s166 + $0x2c0] sm:$0xff]
      %v263 = vld [vmem:[%s166 + $0x2c8] sm:$0xff]
      %v264 = vld [vmem:[%s166 + $0x2d0] sm:$0xff]
      %v265 = vld [vmem:[%s166 + $0x2d8] sm:$0xff]
      %v266 = vld [vmem:[%s166 + $0x2e0] sm:$0xff]
      %v267 = vld [vmem:[%s166 + $0x2e8] sm:$0xff]
      %v268 = vld [vmem:[%s166 + $0x2f0] sm:$0xff]
      %v269 = vld [vmem:[%s166 + $0x2f8] sm:$0xff]
      %v270 = vld [vmem:[%s166 + $0x300] sm:$0xff]
      %v271 = vld [vmem:[%s166 + $0x308] sm:$0xff]
      %v272 = vld [vmem:[%s166 + $0x310] sm:$0xff]
      %v273 = vld [vmem:[%s166 + $0x318] sm:$0xff]
      %v274 = vld [vmem:[%s166 + $0x320] sm:$0xff]
      %v275 = vld [vmem:[%s166 + $0x328] sm:$0xff]
      %v276 = vld [vmem:[%s166 + $0x330] sm:$0xff]
      %v277 = vld [vmem:[%s166 + $0x338] sm:$0xff]
      %v278 = vld [vmem:[%s166 + $0x340] sm:$0xff]
      %v279 = vld [vmem:[%s166 + $0x348] sm:$0xff]
      %v280 = vld [vmem:[%s166 + $0x350] sm:$0xff]
      %v281 = vld [vmem:[%s166 + $0x358] sm:$0xff]
      %v282 = vld [vmem:[%s166 + $0x360] sm:$0xff]
      %v283 = vld [vmem:[%s166 + $0x368] sm:$0xff]
      %v284 = vld [vmem:[%s166 + $0x370] sm:$0xff]
      %v285 = vld [vmem:[%s166 + $0x378] sm:$0xff]
      %v286 = vld [vmem:[%s166 + $0x380] sm:$0xff]
      %v287 = vld [vmem:[%s166 + $0x388] sm:$0xff]
      %v288 = vld [vmem:[%s166 + $0x390] sm:$0xff]
      %v289 = vld [vmem:[%s166 + $0x398] sm:$0xff]
      %v290 = vld [vmem:[%s166 + $0x3a0] sm:$0xff]
      %v291 = vld [vmem:[%s166 + $0x3a8] sm:$0xff]
      %v292 = vld [vmem:[%s166 + $0x3b0] sm:$0xff]
      %v293 = vld [vmem:[%s166 + $0x3b8] sm:$0xff]
      %v294 = vld [vmem:[%s166 + $0x3c0] sm:$0xff]
      %v295 = vld [vmem:[%s166 + $0x3c8] sm:$0xff]
      %v296 = vld [vmem:[%s166 + $0x3d0] sm:$0xff]
      %v297 = vld [vmem:[%s166 + $0x3d8] sm:$0xff]
      %v298 = vld [vmem:[%s166 + $0x3e0] sm:$0xff]
      %v299 = vld [vmem:[%s166 + $0x3e8] sm:$0xff]
      %v300 = vld [vmem:[%s166 + $0x3f0] sm:$0xff]
      %v301 = vld [vmem:[%s166 + $0x3f8] sm:$0xff]
      %v302 = vld [vmem:[%s166 + $0x400] sm:$0xff]
      %v303 = vld [vmem:[%s166 + $0x408] sm:$0xff]
      %v304 = vld [vmem:[%s166 + $0x410] sm:$0xff]
      %v305 = vld [vmem:[%s166 + $0x418] sm:$0xff]
      %v306 = vld [vmem:[%s166 + $0x420] sm:$0xff]
      %v307 = vld [vmem:[%s166 + $0x428] sm:$0xff]
      %v308 = vld [vmem:[%s166 + $0x430] sm:$0xff]
      %v309 = vld [vmem:[%s166 + $0x438] sm:$0xff]
      %v310 = vld [vmem:[%s166 + $0x440] sm:$0xff]
      %v311 = vld [vmem:[%s166 + $0x448] sm:$0xff]
      %v312 = vld [vmem:[%s166 + $0x450] sm:$0xff]
      %v313 = vld [vmem:[%s166 + $0x458] sm:$0xff]
      %v314 = vld [vmem:[%s166 + $0x460] sm:$0xff]
      %v315 = vld [vmem:[%s166 + $0x468] sm:$0xff]
      %v316 = vld [vmem:[%s166 + $0x470] sm:$0xff]
      %v317 = vld [vmem:[%s166 + $0x478] sm:$0xff]
      %v318 = vld [vmem:[%s166 + $0x480] sm:$0xff]
      %v319 = vld [vmem:[%s166 + $0x488] sm:$0xff]
      %v320 = vld [vmem:[%s166 + $0x490] sm:$0xff]
      %v321 = vld [vmem:[%s166 + $0x498] sm:$0xff]
      %v322 = vld [vmem:[%s166 + $0x4a0] sm:$0xff]
      %v323 = vld [vmem:[%s166 + $0x4a8] sm:$0xff]
      %v324 = vld [vmem:[%s166 + $0x4b0] sm:$0xff]
      %v325 = vld [vmem:[%s166 + $0x4b8] sm:$0xff]
      %v326 = vld [vmem:[%s166 + $0x4c0] sm:$0xff]
      %v327 = vld [vmem:[%s166 + $0x4c8] sm:$0xff]
      %v328 = vld [vmem:[%s166 + $0x4d0] sm:$0xff]
      %v329 = vld [vmem:[%s166 + $0x4d8] sm:$0xff]
      %v330 = vld [vmem:[%s166 + $0x4e0] sm:$0xff]
      %v331 = vld [vmem:[%s166 + $0x4e8] sm:$0xff]
      %v332 = vld [vmem:[%s166 + $0x4f0] sm:$0xff]
      %v333 = vld [vmem:[%s166 + $0x4f8] sm:$0xff]
      %v334 = vld [vmem:[%s166 + $0x500] sm:$0xff]
      %v335 = vld [vmem:[%s166 + $0x508] sm:$0xff]
      %v336 = vld [vmem:[%s166 + $0x510] sm:$0xff]
      %v337 = vld [vmem:[%s166 + $0x518] sm:$0xff]
      %v338 = vld [vmem:[%s166 + $0x520] sm:$0xff]
      %v339 = vld [vmem:[%s166 + $0x528] sm:$0xff]
      %v340 = vld [vmem:[%s166 + $0x530] sm:$0xff]
      %v341 = vld [vmem:[%s166 + $0x538] sm:$0xff]
      %v342 = vld [vmem:[%s166 + $0x540] sm:$0xff]
      %v343 = vld [vmem:[%s166 + $0x548] sm:$0xff]
      %v344 = vld [vmem:[%s166 + $0x550] sm:$0xff]
      %v345 = vld [vmem:[%s166 + $0x558] sm:$0xff]
      %v346 = vld [vmem:[%s166 + $0x560] sm:$0xff]
      %v347 = vld [vmem:[%s166 + $0x568] sm:$0xff]
      %v348 = vld [vmem:[%s166 + $0x570] sm:$0xff]
      %v349 = vld [vmem:[%s166 + $0x578] sm:$0xff]
      %v350 = vld [vmem:[%s166 + $0x580] sm:$0xff]
      %v351 = vld [vmem:[%s166 + $0x588] sm:$0xff]
      %v352 = vld [vmem:[%s166 + $0x590] sm:$0xff]
      %v353 = vld [vmem:[%s166 + $0x598] sm:$0xff]
      %v354 = vld [vmem:[%s166 + $0x5a0] sm:$0xff]
      %v355 = vld [vmem:[%s166 + $0x5a8] sm:$0xff]
      %v356 = vld [vmem:[%s166 + $0x5b0] sm:$0xff]
      %v357 = vld [vmem:[%s166 + $0x5b8] sm:$0xff]
      %v358 = vld [vmem:[%s166 + $0x5c0] sm:$0xff]
      %v359 = vld [vmem:[%s166 + $0x5c8] sm:$0xff]
      %v360 = vld [vmem:[%s166 + $0x5d0] sm:$0xff]
      %v361 = vld [vmem:[%s166 + $0x5d8] sm:$0xff]
      %v362 = vld [vmem:[%s166 + $0x5e0] sm:$0xff]
      %v363 = vld [vmem:[%s166 + $0x5e8] sm:$0xff]
      %v364 = vld [vmem:[%s166 + $0x5f0] sm:$0xff]
      %v365 = vld [vmem:[%s166 + $0x5f8] sm:$0xff]
      %v366 = vld [vmem:[%s166 + $0x600] sm:$0xff]
      %v367 = vld [vmem:[%s166 + $0x608] sm:$0xff]
      %v368 = vld [vmem:[%s166 + $0x610] sm:$0xff]
      %v369 = vld [vmem:[%s166 + $0x618] sm:$0xff]
      %v370 = vld [vmem:[%s166 + $0x620] sm:$0xff]
      %v371 = vld [vmem:[%s166 + $0x628] sm:$0xff]
      %v372 = vld [vmem:[%s166 + $0x630] sm:$0xff]
      %v373 = vld [vmem:[%s166 + $0x638] sm:$0xff]
      %v374 = vld [vmem:[%s166 + $0x640] sm:$0xff]
      %v375 = vld [vmem:[%s166 + $0x648] sm:$0xff]
      %v376 = vld [vmem:[%s166 + $0x650] sm:$0xff]
      %v377 = vld [vmem:[%s166 + $0x658] sm:$0xff]
      %v378 = vld [vmem:[%s166 + $0x660] sm:$0xff]
      %v379 = vld [vmem:[%s166 + $0x668] sm:$0xff]
      %v380 = vld [vmem:[%s166 + $0x670] sm:$0xff]
      %v381 = vld [vmem:[%s166 + $0x678] sm:$0xff]
      %v382 = vld [vmem:[%s166 + $0x680] sm:$0xff]
      %v383 = vld [vmem:[%s166 + $0x688] sm:$0xff]
      %v384 = vld [vmem:[%s166 + $0x690] sm:$0xff]
      %v385 = vld [vmem:[%s166 + $0x698] sm:$0xff]
      %v386 = vld [vmem:[%s166 + $0x6a0] sm:$0xff]
      %v387 = vld [vmem:[%s166 + $0x6a8] sm:$0xff]
      %v388 = vld [vmem:[%s166 + $0x6b0] sm:$0xff]
      %v389 = vld [vmem:[%s166 + $0x6b8] sm:$0xff]
      %v390 = vld [vmem:[%s166 + $0x6c0] sm:$0xff]
      %v391 = vld [vmem:[%s166 + $0x6c8] sm:$0xff]
      %v392 = vld [vmem:[%s166 + $0x6d0] sm:$0xff]
      %v393 = vld [vmem:[%s166 + $0x6d8] sm:$0xff]
      %v394 = vld [vmem:[%s166 + $0x6e0] sm:$0xff]
      %v395 = vld [vmem:[%s166 + $0x6e8] sm:$0xff]
      %v396 = vld [vmem:[%s166 + $0x6f0] sm:$0xff]
      %v397 = vld [vmem:[%s166 + $0x6f8] sm:$0xff]
      %v398 = vld [vmem:[%s166 + $0x700] sm:$0xff]
      %v399 = vld [vmem:[%s166 + $0x708] sm:$0xff]
      %v400 = vld [vmem:[%s166 + $0x710] sm:$0xff]
      %v401 = vld [vmem:[%s166 + $0x718] sm:$0xff]
      %v402 = vld [vmem:[%s166 + $0x720] sm:$0xff]
      %v403 = vld [vmem:[%s166 + $0x728] sm:$0xff]
      %v404 = vld [vmem:[%s166 + $0x730] sm:$0xff]
      %v405 = vld [vmem:[%s166 + $0x738] sm:$0xff]
      %v406 = vld [vmem:[%s166 + $0x740] sm:$0xff]
      %v407 = vld [vmem:[%s166 + $0x748] sm:$0xff]
      %v408 = vld [vmem:[%s166 + $0x750] sm:$0xff]
      %v409 = vld [vmem:[%s166 + $0x758] sm:$0xff]
      %v410 = vld [vmem:[%s166 + $0x760] sm:$0xff]
      %v411 = vld [vmem:[%s166 + $0x768] sm:$0xff]
      %v412 = vld [vmem:[%s166 + $0x770] sm:$0xff]
      %v413 = vld [vmem:[%s166 + $0x778] sm:$0xff]
      %v414 = vld [vmem:[%s166 + $0x780] sm:$0xff]
      %v415 = vld [vmem:[%s166 + $0x788] sm:$0xff]
      %v416 = vld [vmem:[%s166 + $0x790] sm:$0xff]
      %v417 = vld [vmem:[%s166 + $0x798] sm:$0xff]
      %v418 = vld [vmem:[%s166 + $0x7a0] sm:$0xff]
      %v419 = vld [vmem:[%s166 + $0x7a8] sm:$0xff]
      %v420 = vld [vmem:[%s166 + $0x7b0] sm:$0xff]
      %v421 = vld [vmem:[%s166 + $0x7b8] sm:$0xff]
      %v422 = vld [vmem:[%s166 + $0x7c0] sm:$0xff]
      %v423 = vld [vmem:[%s166 + $0x7c8] sm:$0xff]
      %v424 = vld [vmem:[%s166 + $0x7d0] sm:$0xff]
      %v425 = vld [vmem:[%s166 + $0x7d8] sm:$0xff]
      %v426 = vld [vmem:[%s166 + $0x7e0] sm:$0xff]
      %v427 = vld [vmem:[%s166 + $0x7e8] sm:$0xff]
      %v428 = vld [vmem:[%s166 + $0x7f0] sm:$0xff]
      %v429 = vld [vmem:[%s166 + $0x7f8] sm:$0xff]
      %v430 = vld [vmem:[%s166 + $0x800] sm:$0xff]
      %v431 = vld [vmem:[%s166 + $0x808] sm:$0xff]
      %v432 = vld [vmem:[%s166 + $0x810] sm:$0xff]
      %v433 = vld [vmem:[%s166 + $0x818] sm:$0xff]
      %v434 = vld [vmem:[%s166 + $0x820] sm:$0xff]
      %v435 = vld [vmem:[%s166 + $0x828] sm:$0xff]
      %v436 = vld [vmem:[%s166 + $0x830] sm:$0xff]
      %v437 = vld [vmem:[%s166 + $0x838] sm:$0xff]
      %v438 = vld [vmem:[%s166 + $0x840] sm:$0xff]
      %v439 = vld [vmem:[%s166 + $0x848] sm:$0xff]
      %v440 = vld [vmem:[%s166 + $0x850] sm:$0xff]
      %v441 = vld [vmem:[%s166 + $0x858] sm:$0xff]
      %v442 = vld [vmem:[%s166 + $0x860] sm:$0xff]
      %v443 = vld [vmem:[%s166 + $0x868] sm:$0xff]
      %v444 = vld [vmem:[%s166 + $0x870] sm:$0xff]
      %v445 = vld [vmem:[%s166 + $0x878] sm:$0xff]
      %v446 = vld [vmem:[%s166 + $0x880] sm:$0xff]
      %v447 = vld [vmem:[%s166 + $0x888] sm:$0xff]
      %v448 = vld [vmem:[%s166 + $0x890] sm:$0xff]
      %v449 = vld [vmem:[%s166 + $0x898] sm:$0xff]
      %v450 = vld [vmem:[%s166 + $0x8a0] sm:$0xff]
      %v451 = vld [vmem:[%s166 + $0x8a8] sm:$0xff]
      %v452 = vld [vmem:[%s166 + $0x8b0] sm:$0xff]
      %v453 = vld [vmem:[%s166 + $0x8b8] sm:$0xff]
      %v454 = vld [vmem:[%s166 + $0x8c0] sm:$0xff]
      %v455 = vld [vmem:[%s166 + $0x8c8] sm:$0xff]
      %v456 = vld [vmem:[%s166 + $0x8d0] sm:$0xff]
      %v457 = vld [vmem:[%s166 + $0x8d8] sm:$0xff]
      %v458 = vld [vmem:[%s166 + $0x8e0] sm:$0xff]
      %v459 = vld [vmem:[%s166 + $0x8e8] sm:$0xff]
      %v460 = vld [vmem:[%s166 + $0x8f0] sm:$0xff]
      %v461 = vld [vmem:[%s166 + $0x8f8] sm:$0xff]
      %v462 = vld [vmem:[%s166 + $0x900] sm:$0xff]
      %v463 = vld [vmem:[%s166 + $0x908] sm:$0xff]
      %v464 = vld [vmem:[%s166 + $0x910] sm:$0xff]
      %v465 = vld [vmem:[%s166 + $0x918] sm:$0xff]
      %v466 = vld [vmem:[%s166 + $0x920] sm:$0xff]
      %v467 = vld [vmem:[%s166 + $0x928] sm:$0xff]
      %v468 = vld [vmem:[%s166 + $0x930] sm:$0xff]
      %v469 = vld [vmem:[%s166 + $0x938] sm:$0xff]
      %v470 = vld [vmem:[%s166 + $0x940] sm:$0xff]
      %v471 = vld [vmem:[%s166 + $0x948] sm:$0xff]
      %v472 = vld [vmem:[%s166 + $0x950] sm:$0xff]
      %v473 = vld [vmem:[%s166 + $0x958] sm:$0xff]
      %v474 = vld [vmem:[%s166 + $0x960] sm:$0xff]
      %v475 = vld [vmem:[%s166 + $0x968] sm:$0xff]
      %v476 = vld [vmem:[%s166 + $0x970] sm:$0xff]
      %v477 = vld [vmem:[%s166 + $0x978] sm:$0xff]
      %v478 = vld [vmem:[%s166 + $0x980] sm:$0xff]
      %v479 = vld [vmem:[%s166 + $0x988] sm:$0xff]
      %v480 = vld [vmem:[%s166 + $0x990] sm:$0xff]
      %v481 = vld [vmem:[%s166 + $0x998] sm:$0xff]
      %v482 = vld [vmem:[%s166 + $0x9a0] sm:$0xff]
      %v483 = vld [vmem:[%s166 + $0x9a8] sm:$0xff]
      %v484 = vld [vmem:[%s166 + $0x9b0] sm:$0xff]
      %v485 = vld [vmem:[%s166 + $0x9b8] sm:$0xff]
      %v486 = vld [vmem:[%s166 + $0x9c0] sm:$0xff]
      %v487 = vld [vmem:[%s166 + $0x9c8] sm:$0xff]
      %v488 = vld [vmem:[%s166 + $0x9d0] sm:$0xff]
      %v489 = vld [vmem:[%s166 + $0x9d8] sm:$0xff]
      %v490 = vld [vmem:[%s166 + $0x9e0] sm:$0xff]
      %v491 = vld [vmem:[%s166 + $0x9e8] sm:$0xff]
      %v492 = vld [vmem:[%s166 + $0x9f0] sm:$0xff]
      %v493 = vld [vmem:[%s166 + $0x9f8] sm:$0xff]
      %v494 = vld [vmem:[%s166 + $0xa00] sm:$0xff]
      %v495 = vld [vmem:[%s166 + $0xa08] sm:$0xff]
      %v496 = vld [vmem:[%s166 + $0xa10] sm:$0xff]
      %v497 = vld [vmem:[%s166 + $0xa18] sm:$0xff]
      %v498 = vld [vmem:[%s166 + $0xa20] sm:$0xff]
      %v499 = vld [vmem:[%s166 + $0xa28] sm:$0xff]
      %v500 = vld [vmem:[%s166 + $0xa30] sm:$0xff]
      %v501 = vld [vmem:[%s166 + $0xa38] sm:$0xff]
      %v502 = vld [vmem:[%s166 + $0xa40] sm:$0xff]
      %v503 = vld [vmem:[%s166 + $0xa48] sm:$0xff]
      %v504 = vld [vmem:[%s166 + $0xa50] sm:$0xff]
      %v505 = vld [vmem:[%s166 + $0xa58] sm:$0xff]
      %v506 = vld [vmem:[%s166 + $0xa60] sm:$0xff]
      %v507 = vld [vmem:[%s166 + $0xa68] sm:$0xff]
      %v508 = vld [vmem:[%s166 + $0xa70] sm:$0xff]
      %v509 = vld [vmem:[%s166 + $0xa78] sm:$0xff]
      %v510 = vld [vmem:[%s166 + $0xa80] sm:$0xff]
      %v511 = vld [vmem:[%s166 + $0xa88] sm:$0xff]
      %v512 = vld [vmem:[%s166 + $0xa90] sm:$0xff]
      %v513 = vld [vmem:[%s166 + $0xa98] sm:$0xff]
      %v514 = vld [vmem:[%s166 + $0xaa0] sm:$0xff]
      %v515 = vld [vmem:[%s166 + $0xaa8] sm:$0xff]
      %v516 = vld [vmem:[%s166 + $0xab0] sm:$0xff]
      %v517 = vld [vmem:[%s166 + $0xab8] sm:$0xff]
      %v518 = vld [vmem:[%s166 + $0xac0] sm:$0xff]
      %v519 = vld [vmem:[%s166 + $0xac8] sm:$0xff]
      %v520 = vld [vmem:[%s166 + $0xad0] sm:$0xff]
      %v521 = vld [vmem:[%s166 + $0xad8] sm:$0xff]
      %v522 = vld [vmem:[%s166 + $0xae0] sm:$0xff]
      %v523 = vld [vmem:[%s166 + $0xae8] sm:$0xff]
      %v524 = vld [vmem:[%s166 + $0xaf0] sm:$0xff]
      %v525 = vld [vmem:[%s166 + $0xaf8] sm:$0xff]
      %v526 = vld [vmem:[%s166 + $0xb00] sm:$0xff]
      %v527 = vld [vmem:[%s166 + $0xb08] sm:$0xff]
      %v528 = vld [vmem:[%s166 + $0xb10] sm:$0xff]
      %v529 = vld [vmem:[%s166 + $0xb18] sm:$0xff]
      %v530 = vld [vmem:[%s166 + $0xb20] sm:$0xff]
      %v531 = vld [vmem:[%s166 + $0xb28] sm:$0xff]
      %v532 = vld [vmem:[%s166 + $0xb30] sm:$0xff]
      %v533 = vld [vmem:[%s166 + $0xb38] sm:$0xff]
      %v534 = vld [vmem:[%s166 + $0xb40] sm:$0xff]
      %v535 = vld [vmem:[%s166 + $0xb48] sm:$0xff]
      %v536 = vld [vmem:[%s166 + $0xb50] sm:$0xff]
      %v537 = vld [vmem:[%s166 + $0xb58] sm:$0xff]
      %v538 = vld [vmem:[%s166 + $0xb60] sm:$0xff]
      %v539 = vld [vmem:[%s166 + $0xb68] sm:$0xff]
      %v540 = vld [vmem:[%s166 + $0xb70] sm:$0xff]
      %v541 = vld [vmem:[%s166 + $0xb78] sm:$0xff]
      %v542 = vld [vmem:[%s166 + $0xb80] sm:$0xff]
      %v543 = vld [vmem:[%s166 + $0xb88] sm:$0xff]
      %v544 = vld [vmem:[%s166 + $0xb90] sm:$0xff]
      %v545 = vld [vmem:[%s166 + $0xb98] sm:$0xff]
      %v546 = vld [vmem:[%s166 + $0xba0] sm:$0xff]
      %v547 = vld [vmem:[%s166 + $0xba8] sm:$0xff]
      %v548 = vld [vmem:[%s166 + $0xbb0] sm:$0xff]
      %v549 = vld [vmem:[%s166 + $0xbb8] sm:$0xff]
      %v550 = vld [vmem:[%s166 + $0xbc0] sm:$0xff]
      %v551 = vld [vmem:[%s166 + $0xbc8] sm:$0xff]
      %v552 = vld [vmem:[%s166 + $0xbd0] sm:$0xff]
      %v553 = vld [vmem:[%s166 + $0xbd8] sm:$0xff]
      %v554 = vld [vmem:[%s166 + $0xbe0] sm:$0xff]
      %v555 = vld [vmem:[%s166 + $0xbe8] sm:$0xff]
      %v556 = vld [vmem:[%s166 + $0xbf0] sm:$0xff]
      %v557 = vld [vmem:[%s166 + $0xbf8] sm:$0xff]
      %v558 = vld [vmem:[%s166 + $0xc00] sm:$0xff]
      %v559 = vld [vmem:[%s166 + $0xc08] sm:$0xff]
      %v560 = vld [vmem:[%s166 + $0xc10] sm:$0xff]
      %v561 = vld [vmem:[%s166 + $0xc18] sm:$0xff]
      %v562 = vld [vmem:[%s166 + $0xc20] sm:$0xff]
      %v563 = vld [vmem:[%s166 + $0xc28] sm:$0xff]
      %v564 = vld [vmem:[%s166 + $0xc30] sm:$0xff]
      %v565 = vld [vmem:[%s166 + $0xc38] sm:$0xff]
      %v566 = vld [vmem:[%s166 + $0xc40] sm:$0xff]
      %v567 = vld [vmem:[%s166 + $0xc48] sm:$0xff]
      %v568 = vld [vmem:[%s166 + $0xc50] sm:$0xff]
      %v569 = vld [vmem:[%s166 + $0xc58] sm:$0xff]
      %v570 = vld [vmem:[%s166 + $0xc60] sm:$0xff]
      %v571 = vld [vmem:[%s166 + $0xc68] sm:$0xff]
      %v572 = vld [vmem:[%s166 + $0xc70] sm:$0xff]
      %v573 = vld [vmem:[%s166 + $0xc78] sm:$0xff]
      %v574 = vld [vmem:[%s166 + $0xc80] sm:$0xff]
      %v575 = vld [vmem:[%s166 + $0xc88] sm:$0xff]
      %v576 = vld [vmem:[%s166 + $0xc90] sm:$0xff]
      %v577 = vld [vmem:[%s166 + $0xc98] sm:$0xff]
      %v578 = vld [vmem:[%s166 + $0xca0] sm:$0xff]
      %v579 = vld [vmem:[%s166 + $0xca8] sm:$0xff]
      %v580 = vld [vmem:[%s166 + $0xcb0] sm:$0xff]
      %v581 = vld [vmem:[%s166 + $0xcb8] sm:$0xff]
      %v582 = vld [vmem:[%s166 + $0xcc0] sm:$0xff]
      %v583 = vld [vmem:[%s166 + $0xcc8] sm:$0xff]
      %v584 = vld [vmem:[%s166 + $0xcd0] sm:$0xff]
      %v585 = vld [vmem:[%s166 + $0xcd8] sm:$0xff]
      %v586 = vld [vmem:[%s166 + $0xce0] sm:$0xff]
      %v587 = vld [vmem:[%s166 + $0xce8] sm:$0xff]
      %v588 = vld [vmem:[%s166 + $0xcf0] sm:$0xff]
      %v589 = vld [vmem:[%s166 + $0xcf8] sm:$0xff]
      %v590 = vld [vmem:[%s166 + $0xd00] sm:$0xff]
      %v591 = vld [vmem:[%s166 + $0xd08] sm:$0xff]
      %v592 = vld [vmem:[%s166 + $0xd10] sm:$0xff]
      %v593 = vld [vmem:[%s166 + $0xd18] sm:$0xff]
      %v594 = vld [vmem:[%s166 + $0xd20] sm:$0xff]
      %v595 = vld [vmem:[%s166 + $0xd28] sm:$0xff]
      %v596 = vld [vmem:[%s166 + $0xd30] sm:$0xff]
      %v597 = vld [vmem:[%s166 + $0xd38] sm:$0xff]
      %v598 = vld [vmem:[%s166 + $0xd40] sm:$0xff]
      %v599 = vld [vmem:[%s166 + $0xd48] sm:$0xff]
      %v600 = vld [vmem:[%s166 + $0xd50] sm:$0xff]
      %v601 = vld [vmem:[%s166 + $0xd58] sm:$0xff]
      %v602 = vld [vmem:[%s166 + $0xd60] sm:$0xff]
      %v603 = vld [vmem:[%s166 + $0xd68] sm:$0xff]
      %v604 = vld [vmem:[%s166 + $0xd70] sm:$0xff]
      %v605 = vld [vmem:[%s166 + $0xd78] sm:$0xff]
      %v606 = vld [vmem:[%s166 + $0xd80] sm:$0xff]
      %v607 = vld [vmem:[%s166 + $0xd88] sm:$0xff]
      %v608 = vld [vmem:[%s166 + $0xd90] sm:$0xff]
      %v609 = vld [vmem:[%s166 + $0xd98] sm:$0xff]
      %v610 = vld [vmem:[%s166 + $0xda0] sm:$0xff]
      %v611 = vld [vmem:[%s166 + $0xda8] sm:$0xff]
      %v612 = vld [vmem:[%s166 + $0xdb0] sm:$0xff]
      %v613 = vld [vmem:[%s166 + $0xdb8] sm:$0xff]
      %v614 = vld [vmem:[%s166 + $0xdc0] sm:$0xff]
      %v615 = vld [vmem:[%s166 + $0xdc8] sm:$0xff]
      %v616 = vld [vmem:[%s166 + $0xdd0] sm:$0xff]
      %v617 = vld [vmem:[%s166 + $0xdd8] sm:$0xff]
      %v618 = vld [vmem:[%s166 + $0xde0] sm:$0xff]
      %v619 = vld [vmem:[%s166 + $0xde8] sm:$0xff]
      %v620 = vld [vmem:[%s166 + $0xdf0] sm:$0xff]
      %v621 = vld [vmem:[%s166 + $0xdf8] sm:$0xff]
      %v622 = vld [vmem:[%s166 + $0xe00] sm:$0xff]
      %v623 = vld [vmem:[%s166 + $0xe08] sm:$0xff]
      %v624 = vld [vmem:[%s166 + $0xe10] sm:$0xff]
      %v625 = vld [vmem:[%s166 + $0xe18] sm:$0xff]
      %v626 = vld [vmem:[%s166 + $0xe20] sm:$0xff]
      %v627 = vld [vmem:[%s166 + $0xe28] sm:$0xff]
      %v628 = vld [vmem:[%s166 + $0xe30] sm:$0xff]
      %v629 = vld [vmem:[%s166 + $0xe38] sm:$0xff]
      %v630 = vld [vmem:[%s166 + $0xe40] sm:$0xff]
      %v631 = vld [vmem:[%s166 + $0xe48] sm:$0xff]
      %v632 = vld [vmem:[%s166 + $0xe50] sm:$0xff]
      %v633 = vld [vmem:[%s166 + $0xe58] sm:$0xff]
      %v634 = vld [vmem:[%s166 + $0xe60] sm:$0xff]
      %v635 = vld [vmem:[%s166 + $0xe68] sm:$0xff]
      %v636 = vld [vmem:[%s166 + $0xe70] sm:$0xff]
      %v637 = vld [vmem:[%s166 + $0xe78] sm:$0xff]
      %v638 = vld [vmem:[%s166 + $0xe80] sm:$0xff]
      %v639 = vld [vmem:[%s166 + $0xe88] sm:$0xff]
      %v640 = vld [vmem:[%s166 + $0xe90] sm:$0xff]
      %v641 = vld [vmem:[%s166 + $0xe98] sm:$0xff]
      %v642 = vld [vmem:[%s166 + $0xea0] sm:$0xff]
      %v643 = vld [vmem:[%s166 + $0xea8] sm:$0xff]
      %v644 = vld [vmem:[%s166 + $0xeb0] sm:$0xff]
      %v645 = vld [vmem:[%s166 + $0xeb8] sm:$0xff]
      %v646 = vld [vmem:[%s166 + $0xec0] sm:$0xff]
      %v647 = vld [vmem:[%s166 + $0xec8] sm:$0xff]
      %v648 = vld [vmem:[%s166 + $0xed0] sm:$0xff]
      %v649 = vld [vmem:[%s166 + $0xed8] sm:$0xff]
      %v650 = vld [vmem:[%s166 + $0xee0] sm:$0xff]
      %v651 = vld [vmem:[%s166 + $0xee8] sm:$0xff]
      %v652 = vld [vmem:[%s166 + $0xef0] sm:$0xff]
      %v653 = vld [vmem:[%s166 + $0xef8] sm:$0xff]
      %v654 = vld [vmem:[%s166 + $0xf00] sm:$0xff]
      %v655 = vld [vmem:[%s166 + $0xf08] sm:$0xff]
      %v656 = vld [vmem:[%s166 + $0xf10] sm:$0xff]
      %v657 = vld [vmem:[%s166 + $0xf18] sm:$0xff]
      %v658 = vld [vmem:[%s166 + $0xf20] sm:$0xff]
      %v659 = vld [vmem:[%s166 + $0xf28] sm:$0xff]
      %v660 = vld [vmem:[%s166 + $0xf30] sm:$0xff]
      %v661 = vld [vmem:[%s166 + $0xf38] sm:$0xff]
      %v662 = vld [vmem:[%s166 + $0xf40] sm:$0xff]
      %v663 = vld [vmem:[%s166 + $0xf48] sm:$0xff]
      %v664 = vld [vmem:[%s166 + $0xf50] sm:$0xff]
      %v665 = vld [vmem:[%s166 + $0xf58] sm:$0xff]
      %v666 = vld [vmem:[%s166 + $0xf60] sm:$0xff]
      %v667 = vld [vmem:[%s166 + $0xf68] sm:$0xff]
      %v668 = vld [vmem:[%s166 + $0xf70] sm:$0xff]
      %v669 = vld [vmem:[%s166 + $0xf78] sm:$0xff]
      %v670 = vld [vmem:[%s166 + $0xf80] sm:$0xff]
      %v671 = vld [vmem:[%s166 + $0xf88] sm:$0xff]
      %v672 = vld [vmem:[%s166 + $0xf90] sm:$0xff]
      %v673 = vld [vmem:[%s166 + $0xf98] sm:$0xff]
      %v674 = vld [vmem:[%s166 + $0xfa0] sm:$0xff]
      %v675 = vld [vmem:[%s166 + $0xfa8] sm:$0xff]
      %v676 = vld [vmem:[%s166 + $0xfb0] sm:$0xff]
      %v677 = vld [vmem:[%s166 + $0xfb8] sm:$0xff]
      %v678 = vld [vmem:[%s166 + $0xfc0] sm:$0xff]
      %v679 = vld [vmem:[%s166 + $0xfc8] sm:$0xff]
      %v680 = vld [vmem:[%s166 + $0xfd0] sm:$0xff]
      %v681 = vld [vmem:[%s166 + $0xfd8] sm:$0xff]
      %v682 = vld [vmem:[%s166 + $0xfe0] sm:$0xff]
      %v683 = vld [vmem:[%s166 + $0xfe8] sm:$0xff]
      %v684 = vld [vmem:[%s166 + $0xff0] sm:$0xff]
      %v685 = vld [vmem:[%s166 + $0xff8] sm:$0xff]
      %v686 = vld [vmem:[%s166 + $0x1000] sm:$0xff]
      %v687 = vld [vmem:[%s166 + $0x1008] sm:$0xff]
      %v688 = vld [vmem:[%s166 + $0x1010] sm:$0xff]
      %v689 = vld [vmem:[%s166 + $0x1018] sm:$0xff]
      %v690 = vld [vmem:[%s166 + $0x1020] sm:$0xff]
      %v691 = vld [vmem:[%s166 + $0x1028] sm:$0xff]
      %v692 = vld [vmem:[%s166 + $0x1030] sm:$0xff]
      %v693 = vld [vmem:[%s166 + $0x1038] sm:$0xff]
      %v694 = vld [vmem:[%s166 + $0x1040] sm:$0xff]
      %v695 = vld [vmem:[%s166 + $0x1048] sm:$0xff]
      %v696 = vld [vmem:[%s166 + $0x1050] sm:$0xff]
      %v697 = vld [vmem:[%s166 + $0x1058] sm:$0xff]
      %v698 = vld [vmem:[%s166 + $0x1060] sm:$0xff]
      %v699 = vld [vmem:[%s166 + $0x1068] sm:$0xff]
      %v700 = vld [vmem:[%s166 + $0x1070] sm:$0xff]
      %v701 = vld [vmem:[%s166 + $0x1078] sm:$0xff]
      %v702 = vld [vmem:[%s166 + $0x1080] sm:$0xff]
      %v703 = vld [vmem:[%s166 + $0x1088] sm:$0xff]
      %v704 = vld [vmem:[%s166 + $0x1090] sm:$0xff]
      %v705 = vld [vmem:[%s166 + $0x1098] sm:$0xff]
      %v706 = vld [vmem:[%s166 + $0x10a0] sm:$0xff]
      %v707 = vld [vmem:[%s166 + $0x10a8] sm:$0xff]
      %v708 = vld [vmem:[%s166 + $0x10b0] sm:$0xff]
      %v709 = vld [vmem:[%s166 + $0x10b8] sm:$0xff]
      %v710 = vld [vmem:[%s166 + $0x10c0] sm:$0xff]
      %v711 = vld [vmem:[%s166 + $0x10c8] sm:$0xff]
      %v712 = vld [vmem:[%s166 + $0x10d0] sm:$0xff]
      %v713 = vld [vmem:[%s166 + $0x10d8] sm:$0xff]
      %v714 = vld [vmem:[%s166 + $0x10e0] sm:$0xff]
      %v715 = vld [vmem:[%s166 + $0x10e8] sm:$0xff]
      %v716 = vld [vmem:[%s166 + $0x10f0] sm:$0xff]
      %v717 = vld [vmem:[%s166 + $0x10f8] sm:$0xff]
      %v718 = vld [vmem:[%s166 + $0x1100] sm:$0xff]
      %v719 = vld [vmem:[%s166 + $0x1108] sm:$0xff]
      %v720 = vld [vmem:[%s166 + $0x1110] sm:$0xff]
      %v721 = vld [vmem:[%s166 + $0x1118] sm:$0xff]
      %v722 = vld [vmem:[%s166 + $0x1120] sm:$0xff]
      %v723 = vld [vmem:[%s166 + $0x1128] sm:$0xff]
      %v724 = vld [vmem:[%s166 + $0x1130] sm:$0xff]
      %v725 = vld [vmem:[%s166 + $0x1138] sm:$0xff]
      %v726 = vld [vmem:[%s166 + $0x1140] sm:$0xff]
      %v727 = vld [vmem:[%s166 + $0x1148] sm:$0xff]
      %v728 = vld [vmem:[%s166 + $0x1150] sm:$0xff]
      %v729 = vld [vmem:[%s166 + $0x1158] sm:$0xff]
      %v730 = vld [vmem:[%s166 + $0x1160] sm:$0xff]
      %v731 = vld [vmem:[%s166 + $0x1168] sm:$0xff]
      %v732 = vld [vmem:[%s166 + $0x1170] sm:$0xff]
      %v733 = vld [vmem:[%s166 + $0x1178] sm:$0xff]
      %v734 = vld [vmem:[%s166 + $0x1180] sm:$0xff]
      %v735 = vld [vmem:[%s166 + $0x1188] sm:$0xff]
      %v736 = vld [vmem:[%s166 + $0x1190] sm:$0xff]
      %v737 = vld [vmem:[%s166 + $0x1198] sm:$0xff]
      %v738 = vld [vmem:[%s166 + $0x11a0] sm:$0xff]
      %v739 = vld [vmem:[%s166 + $0x11a8] sm:$0xff]
      %v740 = vld [vmem:[%s166 + $0x11b0] sm:$0xff]
      %v741 = vld [vmem:[%s166 + $0x11b8] sm:$0xff]
      %v742 = vld [vmem:[%s166 + $0x11c0] sm:$0xff]
      %v743 = vld [vmem:[%s166 + $0x11c8] sm:$0xff]
      %v744 = vld [vmem:[%s166 + $0x11d0] sm:$0xff]
      %v745 = vld [vmem:[%s166 + $0x11d8] sm:$0xff]
      %v746 = vld [vmem:[%s166 + $0x11e0] sm:$0xff]
      %v747 = vld [vmem:[%s166 + $0x11e8] sm:$0xff]
      %v748 = vld [vmem:[%s166 + $0x11f0] sm:$0xff]
      %v749 = vld [vmem:[%s166 + $0x11f8] sm:$0xff]
      %v750 = vld [vmem:[%s166 + $0x1200] sm:$0xff]
      %v751 = vld [vmem:[%s166 + $0x1208] sm:$0xff]
      %v752 = vld [vmem:[%s166 + $0x1210] sm:$0xff]
      %v753 = vld [vmem:[%s166 + $0x1218] sm:$0xff]
      %v754 = vld [vmem:[%s166 + $0x1220] sm:$0xff]
      %v755 = vld [vmem:[%s166 + $0x1228] sm:$0xff]
      %v756 = vld [vmem:[%s166 + $0x1230] sm:$0xff]
      %v757 = vld [vmem:[%s166 + $0x1238] sm:$0xff]
      %v758 = vld [vmem:[%s166 + $0x1240] sm:$0xff]
      %v759 = vld [vmem:[%s166 + $0x1248] sm:$0xff]
      %v760 = vld [vmem:[%s166 + $0x1250] sm:$0xff]
      %v761 = vld [vmem:[%s166 + $0x1258] sm:$0xff]
      %v762 = vld [vmem:[%s166 + $0x1260] sm:$0xff]
      %v763 = vld [vmem:[%s166 + $0x1268] sm:$0xff]
      %v764 = vld [vmem:[%s166 + $0x1270] sm:$0xff]
      %v765 = vld [vmem:[%s166 + $0x1278] sm:$0xff]
      %v766 = vld [vmem:[%s166 + $0x1280] sm:$0xff]
      %v767 = vld [vmem:[%s166 + $0x1288] sm:$0xff]
      %v768 = vld [vmem:[%s166 + $0x1290] sm:$0xff]
      %v769 = vld [vmem:[%s166 + $0x1298] sm:$0xff]
      %v770 = vld [vmem:[%s166 + $0x12a0] sm:$0xff]
      %v771 = vld [vmem:[%s166 + $0x12a8] sm:$0xff]
      %v772 = vld [vmem:[%s166 + $0x12b0] sm:$0xff]
      %v773 = vld [vmem:[%s166 + $0x12b8] sm:$0xff]
      %v774 = vld [vmem:[%s166 + $0x12c0] sm:$0xff]
      %v775 = vld [vmem:[%s166 + $0x12c8] sm:$0xff]
      %v776 = vld [vmem:[%s166 + $0x12d0] sm:$0xff]
      %v777 = vld [vmem:[%s166 + $0x12d8] sm:$0xff]
      %v778 = vld [vmem:[%s166 + $0x12e0] sm:$0xff]
      %v779 = vld [vmem:[%s166 + $0x12e8] sm:$0xff]
      %v780 = vld [vmem:[%s166 + $0x12f0] sm:$0xff]
      %v781 = vld [vmem:[%s166 + $0x12f8] sm:$0xff]
      %v782 = vld [vmem:[%s166 + $0x1300] sm:$0xff]
      %v783 = vld [vmem:[%s166 + $0x1308] sm:$0xff]
      %v784 = vld [vmem:[%s166 + $0x1310] sm:$0xff]
      %v785 = vld [vmem:[%s166 + $0x1318] sm:$0xff]
      %v786 = vld [vmem:[%s166 + $0x1320] sm:$0xff]
      %v787 = vld [vmem:[%s166 + $0x1328] sm:$0xff]
      %v788 = vld [vmem:[%s166 + $0x1330] sm:$0xff]
      %v789 = vld [vmem:[%s166 + $0x1338] sm:$0xff]
      %v790 = vld [vmem:[%s166 + $0x1340] sm:$0xff]
      %v791 = vld [vmem:[%s166 + $0x1348] sm:$0xff]
      %v792 = vld [vmem:[%s166 + $0x1350] sm:$0xff]
      %v793 = vld [vmem:[%s166 + $0x1358] sm:$0xff]
      %v794 = vld [vmem:[%s166 + $0x1360] sm:$0xff]
      %v795 = vld [vmem:[%s166 + $0x1368] sm:$0xff]
      %v796 = vld [vmem:[%s166 + $0x1370] sm:$0xff]
      %v797 = vld [vmem:[%s166 + $0x1378] sm:$0xff]
      %v798 = vld [vmem:[%s166 + $0x1380] sm:$0xff]
      %v799 = vld [vmem:[%s166 + $0x1388] sm:$0xff]
      %v800 = vld [vmem:[%s166 + $0x1390] sm:$0xff]
      %v801 = vld [vmem:[%s166 + $0x1398] sm:$0xff]
      %v802 = vld [vmem:[%s166 + $0x13a0] sm:$0xff]
      %v803 = vld [vmem:[%s166 + $0x13a8] sm:$0xff]
      %v804 = vld [vmem:[%s166 + $0x13b0] sm:$0xff]
      %v805 = vld [vmem:[%s166 + $0x13b8] sm:$0xff]
      %v806 = vld [vmem:[%s166 + $0x13c0] sm:$0xff]
      %v807 = vld [vmem:[%s166 + $0x13c8] sm:$0xff]
      %v808 = vld [vmem:[%s166 + $0x13d0] sm:$0xff]
      %v809 = vld [vmem:[%s166 + $0x13d8] sm:$0xff]
      %v810 = vld [vmem:[%s166 + $0x13e0] sm:$0xff]
      %v811 = vld [vmem:[%s166 + $0x13e8] sm:$0xff]
      %v812 = vld [vmem:[%s166 + $0x13f0] sm:$0xff]
      %v813 = vld [vmem:[%s166 + $0x13f8] sm:$0xff]
      %v814 = vld [vmem:[%s166 + $0x1400] sm:$0xff]
      %v815 = vld [vmem:[%s166 + $0x1408] sm:$0xff]
      %v816 = vld [vmem:[%s166 + $0x1410] sm:$0xff]
      %v817 = vld [vmem:[%s166 + $0x1418] sm:$0xff]
      %v818 = vld [vmem:[%s166 + $0x1420] sm:$0xff]
      %v819 = vld [vmem:[%s166 + $0x1428] sm:$0xff]
      %v820 = vld [vmem:[%s166 + $0x1430] sm:$0xff]
      %v821 = vld [vmem:[%s166 + $0x1438] sm:$0xff]
      %v822 = vld [vmem:[%s166 + $0x1440] sm:$0xff]
      %v823 = vld [vmem:[%s166 + $0x1448] sm:$0xff]
      %v824 = vld [vmem:[%s166 + $0x1450] sm:$0xff]
      %v825 = vld [vmem:[%s166 + $0x1458] sm:$0xff]
      %v826 = vld [vmem:[%s166 + $0x1460] sm:$0xff]
      %v827 = vld [vmem:[%s166 + $0x1468] sm:$0xff]
      %v828 = vld [vmem:[%s166 + $0x1470] sm:$0xff]
      %v829 = vld [vmem:[%s166 + $0x1478] sm:$0xff]
      %v830 = vld [vmem:[%s166 + $0x1480] sm:$0xff]
      %v831 = vld [vmem:[%s166 + $0x1488] sm:$0xff]
      %v832 = vld [vmem:[%s166 + $0x1490] sm:$0xff]
      %v833 = vld [vmem:[%s166 + $0x1498] sm:$0xff]
      %v834 = vld [vmem:[%s166 + $0x14a0] sm:$0xff]
      %v835 = vld [vmem:[%s166 + $0x14a8] sm:$0xff]
      %v836 = vld [vmem:[%s166 + $0x14b0] sm:$0xff]
      %v837 = vld [vmem:[%s166 + $0x14b8] sm:$0xff]
      %v838 = vld [vmem:[%s166 + $0x14c0] sm:$0xff]
      %v839 = vld [vmem:[%s166 + $0x14c8] sm:$0xff]
      %v840 = vld [vmem:[%s166 + $0x14d0] sm:$0xff]
      %v841 = vld [vmem:[%s166 + $0x14d8] sm:$0xff]
      %v842 = vld [vmem:[%s166 + $0x14e0] sm:$0xff]
      %v843 = vld [vmem:[%s166 + $0x14e8] sm:$0xff]
      %v844 = vld [vmem:[%s166 + $0x14f0] sm:$0xff]
      %v845 = vld [vmem:[%s166 + $0x14f8] sm:$0xff]
      %v846 = vld [vmem:[%s166 + $0x1500] sm:$0xff]
      %v847 = vld [vmem:[%s166 + $0x1508] sm:$0xff]
      %v848 = vld [vmem:[%s166 + $0x1510] sm:$0xff]
      %v849 = vld [vmem:[%s166 + $0x1518] sm:$0xff]
      %v850 = vld [vmem:[%s166 + $0x1520] sm:$0xff]
      %v851 = vld [vmem:[%s166 + $0x1528] sm:$0xff]
      %v852 = vld [vmem:[%s166 + $0x1530] sm:$0xff]
      %v853 = vld [vmem:[%s166 + $0x1538] sm:$0xff]
      %v854 = vld [vmem:[%s166 + $0x1540] sm:$0xff]
      %v855 = vld [vmem:[%s166 + $0x1548] sm:$0xff]
      %v856 = vld [vmem:[%s166 + $0x1550] sm:$0xff]
      %v857 = vld [vmem:[%s166 + $0x1558] sm:$0xff]
      %v858 = vld [vmem:[%s166 + $0x1560] sm:$0xff]
      %v859 = vld [vmem:[%s166 + $0x1568] sm:$0xff]
      %v860 = vld [vmem:[%s166 + $0x1570] sm:$0xff]
      %v861 = vld [vmem:[%s166 + $0x1578] sm:$0xff]
      %v862 = vld [vmem:[%s166 + $0x1580] sm:$0xff]
      %v863 = vld [vmem:[%s166 + $0x1588] sm:$0xff]
      %v864 = vld [vmem:[%s166 + $0x1590] sm:$0xff]
      %v865 = vld [vmem:[%s166 + $0x1598] sm:$0xff]
      %v866 = vld [vmem:[%s166 + $0x15a0] sm:$0xff]
      %v867 = vld [vmem:[%s166 + $0x15a8] sm:$0xff]
      %v868 = vld [vmem:[%s166 + $0x15b0] sm:$0xff]
      %v869 = vld [vmem:[%s166 + $0x15b8] sm:$0xff]
      %v870 = vld [vmem:[%s166 + $0x15c0] sm:$0xff]
      %v871 = vld [vmem:[%s166 + $0x15c8] sm:$0xff]
      %v872 = vld [vmem:[%s166 + $0x15d0] sm:$0xff]
      %v873 = vld [vmem:[%s166 + $0x15d8] sm:$0xff]
      %v874 = vld [vmem:[%s166 + $0x15e0] sm:$0xff]
      %v875 = vld [vmem:[%s166 + $0x15e8] sm:$0xff]
      %v876 = vld [vmem:[%s166 + $0x15f0] sm:$0xff]
      %v877 = vld [vmem:[%s166 + $0x15f8] sm:$0xff]
      %v878 = vld [vmem:[%s166 + $0x1600] sm:$0xff]
      %v879 = vld [vmem:[%s166 + $0x1608] sm:$0xff]
      %v880 = vld [vmem:[%s166 + $0x1610] sm:$0xff]
      %v881 = vld [vmem:[%s166 + $0x1618] sm:$0xff]
      %v882 = vld [vmem:[%s166 + $0x1620] sm:$0xff]
      %v883 = vld [vmem:[%s166 + $0x1628] sm:$0xff]
      %v884 = vld [vmem:[%s166 + $0x1630] sm:$0xff]
      %v885 = vld [vmem:[%s166 + $0x1638] sm:$0xff]
      %v886 = vld [vmem:[%s166 + $0x1640] sm:$0xff]
      %v887 = vld [vmem:[%s166 + $0x1648] sm:$0xff]
      %v888 = vld [vmem:[%s166 + $0x1650] sm:$0xff]
      %v889 = vld [vmem:[%s166 + $0x1658] sm:$0xff]
      %v890 = vld [vmem:[%s166 + $0x1660] sm:$0xff]
      %v891 = vld [vmem:[%s166 + $0x1668] sm:$0xff]
      %v892 = vld [vmem:[%s166 + $0x1670] sm:$0xff]
      %v893 = vld [vmem:[%s166 + $0x1678] sm:$0xff]
      %v894 = vld [vmem:[%s1] sm:$0xff]
      %v895 = vld [vmem:[%s2] sm:$0xff]
      %897 = vset.pattern.permute.xlu0 0
      %898 = vperm.xlu0 %897, %v895
      %v899 = vpop.permute.xlu0 %898
      %vm901 = vcmask 728064
      %v903 = vsel %vm901, %v894, 0
      %v906 = vsel %vm901, %v174, 0
      %v909 = vsel %vm901, %v175, 0
      %v912 = vsel %vm901, %v176, 0
      %v915 = vsel %vm901, %v177, 0
      %v918 = vsel %vm901, %v178, 0
      %v921 = vsel %vm901, %v179, 0
      %v924 = vsel %vm901, %v180, 0
      %v927 = vsel %vm901, %v181, 0
      %v930 = vsel %vm901, %v182, 0
      %v933 = vsel %vm901, %v183, 0
      %v936 = vsel %vm901, %v184, 0
      %v939 = vsel %vm901, %v185, 0
      %v942 = vsel %vm901, %v186, 0
      %v945 = vsel %vm901, %v187, 0
      %v948 = vsel %vm901, %v188, 0
      %v951 = vsel %vm901, %v189, 0
      %v954 = vsel %vm901, %v190, 0
      %v957 = vsel %vm901, %v191, 0
      %v960 = vsel %vm901, %v192, 0
      %v963 = vsel %vm901, %v193, 0
      %v966 = vsel %vm901, %v194, 0
      %v969 = vsel %vm901, %v195, 0
      %v972 = vsel %vm901, %v196, 0
      %v975 = vsel %vm901, %v197, 0
      %v978 = vsel %vm901, %v198, 0
      %v981 = vsel %vm901, %v199, 0
      %v984 = vsel %vm901, %v200, 0
      %v987 = vsel %vm901, %v201, 0
      %v990 = vsel %vm901, %v202, 0
      %v993 = vsel %vm901, %v203, 0
      %v996 = vsel %vm901, %v204, 0
      %v999 = vsel %vm901, %v205, 0
      %v1002 = vsel %vm901, %v206, 0
      %v1005 = vsel %vm901, %v207, 0
      %v1008 = vsel %vm901, %v208, 0
      %v1011 = vsel %vm901, %v209, 0
      %v1014 = vsel %vm901, %v210, 0
      %v1017 = vsel %vm901, %v211, 0
      %v1020 = vsel %vm901, %v212, 0
      %v1023 = vsel %vm901, %v213, 0
      %v1026 = vsel %vm901, %v214, 0
      %v1029 = vsel %vm901, %v215, 0
      %v1032 = vsel %vm901, %v216, 0
      %v1035 = vsel %vm901, %v217, 0
      %v1038 = vsel %vm901, %v218, 0
      %v1041 = vsel %vm901, %v219, 0
      %v1044 = vsel %vm901, %v220, 0
      %v1047 = vsel %vm901, %v221, 0
      %v1050 = vsel %vm901, %v222, 0
      %v1053 = vsel %vm901, %v223, 0
      %v1056 = vsel %vm901, %v224, 0
      %v1059 = vsel %vm901, %v225, 0
      %v1062 = vsel %vm901, %v226, 0
      %v1065 = vsel %vm901, %v227, 0
      %v1068 = vsel %vm901, %v228, 0
      %v1071 = vsel %vm901, %v229, 0
      %v1074 = vsel %vm901, %v230, 0
      %v1077 = vsel %vm901, %v231, 0
      %v1080 = vsel %vm901, %v232, 0
      %v1083 = vsel %vm901, %v233, 0
      %v1086 = vsel %vm901, %v234, 0
      %v1089 = vsel %vm901, %v235, 0
      %v1092 = vsel %vm901, %v236, 0
      %v1095 = vsel %vm901, %v237, 0
      %v1098 = vsel %vm901, %v238, 0
      %v1101 = vsel %vm901, %v239, 0
      %v1104 = vsel %vm901, %v240, 0
      %v1107 = vsel %vm901, %v241, 0
      %v1110 = vsel %vm901, %v242, 0
      %v1113 = vsel %vm901, %v243, 0
      %v1116 = vsel %vm901, %v244, 0
      %v1119 = vsel %vm901, %v245, 0
      %v1122 = vsel %vm901, %v246, 0
      %v1125 = vsel %vm901, %v247, 0
      %v1128 = vsel %vm901, %v248, 0
      %v1131 = vsel %vm901, %v249, 0
      %v1134 = vsel %vm901, %v250, 0
      %v1137 = vsel %vm901, %v251, 0
      %v1140 = vsel %vm901, %v252, 0
      %v1143 = vsel %vm901, %v253, 0
      %v1146 = vsel %vm901, %v254, 0
      %v1149 = vsel %vm901, %v255, 0
      %v1152 = vsel %vm901, %v256, 0
      %v1155 = vsel %vm901, %v257, 0
      %v1158 = vsel %vm901, %v258, 0
      %v1161 = vsel %vm901, %v259, 0
      %v1164 = vsel %vm901, %v260, 0
      %v1167 = vsel %vm901, %v261, 0
      %v1170 = vsel %vm901, %v262, 0
      %v1173 = vsel %vm901, %v263, 0
      %v1176 = vsel %vm901, %v264, 0
      %v1179 = vsel %vm901, %v265, 0
      %v1182 = vsel %vm901, %v266, 0
      %v1185 = vsel %vm901, %v267, 0
      %v1188 = vsel %vm901, %v268, 0
      %v1191 = vsel %vm901, %v269, 0
      %v1194 = vsel %vm901, %v270, 0
      %v1197 = vsel %vm901, %v271, 0
      %v1200 = vsel %vm901, %v272, 0
      %v1203 = vsel %vm901, %v273, 0
      %v1206 = vsel %vm901, %v274, 0
      %v1209 = vsel %vm901, %v275, 0
      %v1212 = vsel %vm901, %v276, 0
      %v1215 = vsel %vm901, %v277, 0
      %v1218 = vsel %vm901, %v278, 0
      %v1221 = vsel %vm901, %v279, 0
      %v1224 = vsel %vm901, %v280, 0
      %v1227 = vsel %vm901, %v281, 0
      %v1230 = vsel %vm901, %v282, 0
      %v1233 = vsel %vm901, %v283, 0
      %v1236 = vsel %vm901, %v284, 0
      %v1239 = vsel %vm901, %v285, 0
      %v1242 = vsel %vm901, %v286, 0
      %v1245 = vsel %vm901, %v287, 0
      %v1248 = vsel %vm901, %v288, 0
      %v1251 = vsel %vm901, %v289, 0
      %v1254 = vsel %vm901, %v290, 0
      %v1257 = vsel %vm901, %v291, 0
      %v1260 = vsel %vm901, %v292, 0
      %v1263 = vsel %vm901, %v293, 0
      %v1266 = vsel %vm901, %v294, 0
      %v1269 = vsel %vm901, %v295, 0
      %v1272 = vsel %vm901, %v296, 0
      %v1275 = vsel %vm901, %v297, 0
      %v1278 = vsel %vm901, %v298, 0
      %v1281 = vsel %vm901, %v299, 0
      %v1284 = vsel %vm901, %v300, 0
      %v1287 = vsel %vm901, %v301, 0
      %v1290 = vsel %vm901, %v302, 0
      %v1293 = vsel %vm901, %v303, 0
      %v1296 = vsel %vm901, %v304, 0
      %v1299 = vsel %vm901, %v305, 0
      %v1302 = vsel %vm901, %v306, 0
      %v1305 = vsel %vm901, %v307, 0
      %v1308 = vsel %vm901, %v308, 0
      %v1311 = vsel %vm901, %v309, 0
      %v1314 = vsel %vm901, %v310, 0
      %v1317 = vsel %vm901, %v311, 0
      %v1320 = vsel %vm901, %v312, 0
      %v1323 = vsel %vm901, %v313, 0
      %v1326 = vsel %vm901, %v314, 0
      %v1329 = vsel %vm901, %v315, 0
      %v1332 = vsel %vm901, %v316, 0
      %v1335 = vsel %vm901, %v317, 0
      %v1338 = vsel %vm901, %v318, 0
      %v1341 = vsel %vm901, %v319, 0
      %v1344 = vsel %vm901, %v320, 0
      %v1347 = vsel %vm901, %v321, 0
      %v1350 = vsel %vm901, %v322, 0
      %v1353 = vsel %vm901, %v323, 0
      %v1356 = vsel %vm901, %v324, 0
      %v1359 = vsel %vm901, %v325, 0
      %v1362 = vsel %vm901, %v326, 0
      %v1365 = vsel %vm901, %v327, 0
      %v1368 = vsel %vm901, %v328, 0
      %v1371 = vsel %vm901, %v329, 0
      %v1374 = vsel %vm901, %v330, 0
      %v1377 = vsel %vm901, %v331, 0
      %v1380 = vsel %vm901, %v332, 0
      %v1383 = vsel %vm901, %v333, 0
      %v1386 = vsel %vm901, %v334, 0
      %v1389 = vsel %vm901, %v335, 0
      %v1392 = vsel %vm901, %v336, 0
      %v1395 = vsel %vm901, %v337, 0
      %v1398 = vsel %vm901, %v338, 0
      %v1401 = vsel %vm901, %v339, 0
      %v1404 = vsel %vm901, %v340, 0
      %v1407 = vsel %vm901, %v341, 0
      %v1410 = vsel %vm901, %v342, 0
      %v1413 = vsel %vm901, %v343, 0
      %v1416 = vsel %vm901, %v344, 0
      %v1419 = vsel %vm901, %v345, 0
      %v1422 = vsel %vm901, %v346, 0
      %v1425 = vsel %vm901, %v347, 0
      %v1428 = vsel %vm901, %v348, 0
      %v1431 = vsel %vm901, %v349, 0
      %v1434 = vsel %vm901, %v350, 0
      %v1437 = vsel %vm901, %v351, 0
      %v1440 = vsel %vm901, %v352, 0
      %v1443 = vsel %vm901, %v353, 0
      %v1446 = vsel %vm901, %v354, 0
      %v1449 = vsel %vm901, %v355, 0
      %v1452 = vsel %vm901, %v356, 0
      %v1455 = vsel %vm901, %v357, 0
      %v1458 = vsel %vm901, %v358, 0
      %v1461 = vsel %vm901, %v359, 0
      %v1464 = vsel %vm901, %v360, 0
      %v1467 = vsel %vm901, %v361, 0
      %v1470 = vsel %vm901, %v362, 0
      %v1473 = vsel %vm901, %v363, 0
      %v1476 = vsel %vm901, %v364, 0
      %v1479 = vsel %vm901, %v365, 0
      %v1482 = vsel %vm901, %v366, 0
      %v1485 = vsel %vm901, %v367, 0
      %v1488 = vsel %vm901, %v368, 0
      %v1491 = vsel %vm901, %v369, 0
      %v1494 = vsel %vm901, %v370, 0
      %v1497 = vsel %vm901, %v371, 0
      %v1500 = vsel %vm901, %v372, 0
      %v1503 = vsel %vm901, %v373, 0
      %v1506 = vsel %vm901, %v374, 0
      %v1509 = vsel %vm901, %v375, 0
      %v1512 = vsel %vm901, %v376, 0
      %v1515 = vsel %vm901, %v377, 0
      %v1518 = vsel %vm901, %v378, 0
      %v1521 = vsel %vm901, %v379, 0
      %v1524 = vsel %vm901, %v380, 0
      %v1527 = vsel %vm901, %v381, 0
      %v1530 = vsel %vm901, %v382, 0
      %v1533 = vsel %vm901, %v383, 0
      %v1536 = vsel %vm901, %v384, 0
      %v1539 = vsel %vm901, %v385, 0
      %v1542 = vsel %vm901, %v386, 0
      %v1545 = vsel %vm901, %v387, 0
      %v1548 = vsel %vm901, %v388, 0
      %v1551 = vsel %vm901, %v389, 0
      %v1554 = vsel %vm901, %v390, 0
      %v1557 = vsel %vm901, %v391, 0
      %v1560 = vsel %vm901, %v392, 0
      %v1563 = vsel %vm901, %v393, 0
      %v1566 = vsel %vm901, %v394, 0
      %v1569 = vsel %vm901, %v395, 0
      %v1572 = vsel %vm901, %v396, 0
      %v1575 = vsel %vm901, %v397, 0
      %v1578 = vsel %vm901, %v398, 0
      %v1581 = vsel %vm901, %v399, 0
      %v1584 = vsel %vm901, %v400, 0
      %v1587 = vsel %vm901, %v401, 0
      %v1590 = vsel %vm901, %v402, 0
      %v1593 = vsel %vm901, %v403, 0
      %v1596 = vsel %vm901, %v404, 0
      %v1599 = vsel %vm901, %v405, 0
      %v1602 = vsel %vm901, %v406, 0
      %v1605 = vsel %vm901, %v407, 0
      %v1608 = vsel %vm901, %v408, 0
      %v1611 = vsel %vm901, %v409, 0
      %v1614 = vsel %vm901, %v410, 0
      %v1617 = vsel %vm901, %v411, 0
      %v1620 = vsel %vm901, %v412, 0
      %v1623 = vsel %vm901, %v413, 0
      %v1626 = vsel %vm901, %v414, 0
      %v1629 = vsel %vm901, %v415, 0
      %v1632 = vsel %vm901, %v416, 0
      %v1635 = vsel %vm901, %v417, 0
      %v1638 = vsel %vm901, %v418, 0
      %v1641 = vsel %vm901, %v419, 0
      %v1644 = vsel %vm901, %v420, 0
      %v1647 = vsel %vm901, %v421, 0
      %v1650 = vsel %vm901, %v422, 0
      %v1653 = vsel %vm901, %v423, 0
      %v1656 = vsel %vm901, %v424, 0
      %v1659 = vsel %vm901, %v425, 0
      %v1662 = vsel %vm901, %v426, 0
      %v1665 = vsel %vm901, %v427, 0
      %v1668 = vsel %vm901, %v428, 0
      %v1671 = vsel %vm901, %v429, 0
      %v1674 = vsel %vm901, %v430, 0
      %v1677 = vsel %vm901, %v431, 0
      %v1680 = vsel %vm901, %v432, 0
      %v1683 = vsel %vm901, %v433, 0
      %v1686 = vsel %vm901, %v434, 0
      %v1689 = vsel %vm901, %v435, 0
      %v1692 = vsel %vm901, %v436, 0
      %v1695 = vsel %vm901, %v437, 0
      %v1698 = vsel %vm901, %v438, 0
      %v1701 = vsel %vm901, %v439, 0
      %v1704 = vsel %vm901, %v440, 0
      %v1707 = vsel %vm901, %v441, 0
      %v1710 = vsel %vm901, %v442, 0
      %v1713 = vsel %vm901, %v443, 0
      %v1716 = vsel %vm901, %v444, 0
      %v1719 = vsel %vm901, %v445, 0
      %v1722 = vsel %vm901, %v446, 0
      %v1725 = vsel %vm901, %v447, 0
      %v1728 = vsel %vm901, %v448, 0
      %v1731 = vsel %vm901, %v449, 0
      %v1734 = vsel %vm901, %v450, 0
      %v1737 = vsel %vm901, %v451, 0
      %v1740 = vsel %vm901, %v452, 0
      %v1743 = vsel %vm901, %v453, 0
      %v1746 = vsel %vm901, %v454, 0
      %v1749 = vsel %vm901, %v455, 0
      %v1752 = vsel %vm901, %v456, 0
      %v1755 = vsel %vm901, %v457, 0
      %v1758 = vsel %vm901, %v458, 0
      %v1761 = vsel %vm901, %v459, 0
      %v1764 = vsel %vm901, %v460, 0
      %v1767 = vsel %vm901, %v461, 0
      %v1770 = vsel %vm901, %v462, 0
      %v1773 = vsel %vm901, %v463, 0
      %v1776 = vsel %vm901, %v464, 0
      %v1779 = vsel %vm901, %v465, 0
      %v1782 = vsel %vm901, %v466, 0
      %v1785 = vsel %vm901, %v467, 0
      %v1788 = vsel %vm901, %v468, 0
      %v1791 = vsel %vm901, %v469, 0
      %v1794 = vsel %vm901, %v470, 0
      %v1797 = vsel %vm901, %v471, 0
      %v1800 = vsel %vm901, %v472, 0
      %v1803 = vsel %vm901, %v473, 0
      %v1806 = vsel %vm901, %v474, 0
      %v1809 = vsel %vm901, %v475, 0
      %v1812 = vsel %vm901, %v476, 0
      %v1815 = vsel %vm901, %v477, 0
      %v1818 = vsel %vm901, %v478, 0
      %v1821 = vsel %vm901, %v479, 0
      %v1824 = vsel %vm901, %v480, 0
      %v1827 = vsel %vm901, %v481, 0
      %v1830 = vsel %vm901, %v482, 0
      %v1833 = vsel %vm901, %v483, 0
      %v1836 = vsel %vm901, %v484, 0
      %v1839 = vsel %vm901, %v485, 0
      %v1842 = vsel %vm901, %v486, 0
      %v1845 = vsel %vm901, %v487, 0
      %v1848 = vsel %vm901, %v488, 0
      %v1851 = vsel %vm901, %v489, 0
      %v1854 = vsel %vm901, %v490, 0
      %v1857 = vsel %vm901, %v491, 0
      %v1860 = vsel %vm901, %v492, 0
      %v1863 = vsel %vm901, %v493, 0
      %v1866 = vsel %vm901, %v494, 0
      %v1869 = vsel %vm901, %v495, 0
      %v1872 = vsel %vm901, %v496, 0
      %v1875 = vsel %vm901, %v497, 0
      %v1878 = vsel %vm901, %v498, 0
      %v1881 = vsel %vm901, %v499, 0
      %v1884 = vsel %vm901, %v500, 0
      %v1887 = vsel %vm901, %v501, 0
      %v1890 = vsel %vm901, %v502, 0
      %v1893 = vsel %vm901, %v503, 0
      %v1896 = vsel %vm901, %v504, 0
      %v1899 = vsel %vm901, %v505, 0
      %v1902 = vsel %vm901, %v506, 0
      %v1905 = vsel %vm901, %v507, 0
      %v1908 = vsel %vm901, %v508, 0
      %v1911 = vsel %vm901, %v509, 0
      %v1914 = vsel %vm901, %v510, 0
      %v1917 = vsel %vm901, %v511, 0
      %v1920 = vsel %vm901, %v512, 0
      %v1923 = vsel %vm901, %v513, 0
      %v1926 = vsel %vm901, %v514, 0
      %v1929 = vsel %vm901, %v515, 0
      %v1932 = vsel %vm901, %v516, 0
      %v1935 = vsel %vm901, %v517, 0
      %v1938 = vsel %vm901, %v518, 0
      %v1941 = vsel %vm901, %v519, 0
      %v1944 = vsel %vm901, %v520, 0
      %v1947 = vsel %vm901, %v521, 0
      %v1950 = vsel %vm901, %v522, 0
      %v1953 = vsel %vm901, %v523, 0
      %v1956 = vsel %vm901, %v524, 0
      %v1959 = vsel %vm901, %v525, 0
      %v1962 = vsel %vm901, %v526, 0
      %v1965 = vsel %vm901, %v527, 0
      %v1968 = vsel %vm901, %v528, 0
      %v1971 = vsel %vm901, %v529, 0
      %v1974 = vsel %vm901, %v530, 0
      %v1977 = vsel %vm901, %v531, 0
      %v1980 = vsel %vm901, %v532, 0
      %v1983 = vsel %vm901, %v533, 0
      %v1986 = vsel %vm901, %v534, 0
      %v1989 = vsel %vm901, %v535, 0
      %v1992 = vsel %vm901, %v536, 0
      %v1995 = vsel %vm901, %v537, 0
      %v1998 = vsel %vm901, %v538, 0
      %v2001 = vsel %vm901, %v539, 0
      %v2004 = vsel %vm901, %v540, 0
      %v2007 = vsel %vm901, %v541, 0
      %v2010 = vsel %vm901, %v542, 0
      %v2013 = vsel %vm901, %v543, 0
      %v2016 = vsel %vm901, %v544, 0
      %v2019 = vsel %vm901, %v545, 0
      %v2022 = vsel %vm901, %v546, 0
      %v2025 = vsel %vm901, %v547, 0
      %v2028 = vsel %vm901, %v548, 0
      %v2031 = vsel %vm901, %v549, 0
      %v2034 = vsel %vm901, %v550, 0
      %v2037 = vsel %vm901, %v551, 0
      %v2040 = vsel %vm901, %v552, 0
      %v2043 = vsel %vm901, %v553, 0
      %v2046 = vsel %vm901, %v554, 0
      %v2049 = vsel %vm901, %v555, 0
      %v2052 = vsel %vm901, %v556, 0
      %v2055 = vsel %vm901, %v557, 0
      %v2058 = vsel %vm901, %v558, 0
      %v2061 = vsel %vm901, %v559, 0
      %v2064 = vsel %vm901, %v560, 0
      %v2067 = vsel %vm901, %v561, 0
      %v2070 = vsel %vm901, %v562, 0
      %v2073 = vsel %vm901, %v563, 0
      %v2076 = vsel %vm901, %v564, 0
      %v2079 = vsel %vm901, %v565, 0
      %v2082 = vsel %vm901, %v566, 0
      %v2085 = vsel %vm901, %v567, 0
      %v2088 = vsel %vm901, %v568, 0
      %v2091 = vsel %vm901, %v569, 0
      %v2094 = vsel %vm901, %v570, 0
      %v2097 = vsel %vm901, %v571, 0
      %v2100 = vsel %vm901, %v572, 0
      %v2103 = vsel %vm901, %v573, 0
      %v2106 = vsel %vm901, %v574, 0
      %v2109 = vsel %vm901, %v575, 0
      %v2112 = vsel %vm901, %v576, 0
      %v2115 = vsel %vm901, %v577, 0
      %v2118 = vsel %vm901, %v578, 0
      %v2121 = vsel %vm901, %v579, 0
      %v2124 = vsel %vm901, %v580, 0
      %v2127 = vsel %vm901, %v581, 0
      %v2130 = vsel %vm901, %v582, 0
      %v2133 = vsel %vm901, %v583, 0
      %v2136 = vsel %vm901, %v584, 0
      %v2139 = vsel %vm901, %v585, 0
      %v2142 = vsel %vm901, %v586, 0
      %v2145 = vsel %vm901, %v587, 0
      %v2148 = vsel %vm901, %v588, 0
      %v2151 = vsel %vm901, %v589, 0
      %v2154 = vsel %vm901, %v590, 0
      %v2157 = vsel %vm901, %v591, 0
      %v2160 = vsel %vm901, %v592, 0
      %v2163 = vsel %vm901, %v593, 0
      %v2166 = vsel %vm901, %v594, 0
      %v2169 = vsel %vm901, %v595, 0
      %v2172 = vsel %vm901, %v596, 0
      %v2175 = vsel %vm901, %v597, 0
      %v2178 = vsel %vm901, %v598, 0
      %v2181 = vsel %vm901, %v599, 0
      %v2184 = vsel %vm901, %v600, 0
      %v2187 = vsel %vm901, %v601, 0
      %v2190 = vsel %vm901, %v602, 0
      %v2193 = vsel %vm901, %v603, 0
      %v2196 = vsel %vm901, %v604, 0
      %v2199 = vsel %vm901, %v605, 0
      %v2202 = vsel %vm901, %v606, 0
      %v2205 = vsel %vm901, %v607, 0
      %v2208 = vsel %vm901, %v608, 0
      %v2211 = vsel %vm901, %v609, 0
      %v2214 = vsel %vm901, %v610, 0
      %v2217 = vsel %vm901, %v611, 0
      %v2220 = vsel %vm901, %v612, 0
      %v2223 = vsel %vm901, %v613, 0
      %v2226 = vsel %vm901, %v614, 0
      %v2229 = vsel %vm901, %v615, 0
      %v2232 = vsel %vm901, %v616, 0
      %v2235 = vsel %vm901, %v617, 0
      %v2238 = vsel %vm901, %v618, 0
      %v2241 = vsel %vm901, %v619, 0
      %v2244 = vsel %vm901, %v620, 0
      %v2247 = vsel %vm901, %v621, 0
      %v2250 = vsel %vm901, %v622, 0
      %v2253 = vsel %vm901, %v623, 0
      %v2256 = vsel %vm901, %v624, 0
      %v2259 = vsel %vm901, %v625, 0
      %v2262 = vsel %vm901, %v626, 0
      %v2265 = vsel %vm901, %v627, 0
      %v2268 = vsel %vm901, %v628, 0
      %v2271 = vsel %vm901, %v629, 0
      %v2274 = vsel %vm901, %v630, 0
      %v2277 = vsel %vm901, %v631, 0
      %v2280 = vsel %vm901, %v632, 0
      %v2283 = vsel %vm901, %v633, 0
      %v2286 = vsel %vm901, %v634, 0
      %v2289 = vsel %vm901, %v635, 0
      %v2292 = vsel %vm901, %v636, 0
      %v2295 = vsel %vm901, %v637, 0
      %v2298 = vsel %vm901, %v638, 0
      %v2301 = vsel %vm901, %v639, 0
      %v2304 = vsel %vm901, %v640, 0
      %v2307 = vsel %vm901, %v641, 0
      %v2310 = vsel %vm901, %v642, 0
      %v2313 = vsel %vm901, %v643, 0
      %v2316 = vsel %vm901, %v644, 0
      %v2319 = vsel %vm901, %v645, 0
      %v2322 = vsel %vm901, %v646, 0
      %v2325 = vsel %vm901, %v647, 0
      %v2328 = vsel %vm901, %v648, 0
      %v2331 = vsel %vm901, %v649, 0
      %v2334 = vsel %vm901, %v650, 0
      %v2337 = vsel %vm901, %v651, 0
      %v2340 = vsel %vm901, %v652, 0
      %v2343 = vsel %vm901, %v653, 0
      %v2346 = vsel %vm901, %v654, 0
      %v2349 = vsel %vm901, %v655, 0
      %v2352 = vsel %vm901, %v656, 0
      %v2355 = vsel %vm901, %v657, 0
      %v2358 = vsel %vm901, %v658, 0
      %v2361 = vsel %vm901, %v659, 0
      %v2364 = vsel %vm901, %v660, 0
      %v2367 = vsel %vm901, %v661, 0
      %v2370 = vsel %vm901, %v662, 0
      %v2373 = vsel %vm901, %v663, 0
      %v2376 = vsel %vm901, %v664, 0
      %v2379 = vsel %vm901, %v665, 0
      %v2382 = vsel %vm901, %v666, 0
      %v2385 = vsel %vm901, %v667, 0
      %v2388 = vsel %vm901, %v668, 0
      %v2391 = vsel %vm901, %v669, 0
      %v2394 = vsel %vm901, %v670, 0
      %v2397 = vsel %vm901, %v671, 0
      %v2400 = vsel %vm901, %v672, 0
      %v2403 = vsel %vm901, %v673, 0
      %v2406 = vsel %vm901, %v674, 0
      %v2409 = vsel %vm901, %v675, 0
      %v2412 = vsel %vm901, %v676, 0
      %v2415 = vsel %vm901, %v677, 0
      %v2418 = vsel %vm901, %v678, 0
      %v2421 = vsel %vm901, %v679, 0
      %v2424 = vsel %vm901, %v680, 0
      %v2427 = vsel %vm901, %v681, 0
      %v2430 = vsel %vm901, %v682, 0
      %v2433 = vsel %vm901, %v683, 0
      %v2436 = vsel %vm901, %v684, 0
      %v2439 = vsel %vm901, %v685, 0
      %v2442 = vsel %vm901, %v686, 0
      %v2445 = vsel %vm901, %v687, 0
      %v2448 = vsel %vm901, %v688, 0
      %v2451 = vsel %vm901, %v689, 0
      %v2454 = vsel %vm901, %v690, 0
      %v2457 = vsel %vm901, %v691, 0
      %v2460 = vsel %vm901, %v692, 0
      %v2463 = vsel %vm901, %v693, 0
      %v2466 = vsel %vm901, %v694, 0
      %v2469 = vsel %vm901, %v695, 0
      %v2472 = vsel %vm901, %v696, 0
      %v2475 = vsel %vm901, %v697, 0
      %v2478 = vsel %vm901, %v698, 0
      %v2481 = vsel %vm901, %v699, 0
      %v2484 = vsel %vm901, %v700, 0
      %v2487 = vsel %vm901, %v701, 0
      %v2490 = vsel %vm901, %v702, 0
      %v2493 = vsel %vm901, %v703, 0
      %v2496 = vsel %vm901, %v704, 0
      %v2499 = vsel %vm901, %v705, 0
      %v2502 = vsel %vm901, %v706, 0
      %v2505 = vsel %vm901, %v707, 0
      %v2508 = vsel %vm901, %v708, 0
      %v2511 = vsel %vm901, %v709, 0
      %v2514 = vsel %vm901, %v710, 0
      %v2517 = vsel %vm901, %v711, 0
      %v2520 = vsel %vm901, %v712, 0
      %v2523 = vsel %vm901, %v713, 0
      %v2526 = vsel %vm901, %v714, 0
      %v2529 = vsel %vm901, %v715, 0
      %v2532 = vsel %vm901, %v716, 0
      %v2535 = vsel %vm901, %v717, 0
      %v2538 = vsel %vm901, %v718, 0
      %v2541 = vsel %vm901, %v719, 0
      %v2544 = vsel %vm901, %v720, 0
      %v2547 = vsel %vm901, %v721, 0
      %v2550 = vsel %vm901, %v722, 0
      %v2553 = vsel %vm901, %v723, 0
      %v2556 = vsel %vm901, %v724, 0
      %v2559 = vsel %vm901, %v725, 0
      %v2562 = vsel %vm901, %v726, 0
      %v2565 = vsel %vm901, %v727, 0
      %v2568 = vsel %vm901, %v728, 0
      %v2571 = vsel %vm901, %v729, 0
      %v2574 = vsel %vm901, %v730, 0
      %v2577 = vsel %vm901, %v731, 0
      %v2580 = vsel %vm901, %v732, 0
      %v2583 = vsel %vm901, %v733, 0
      %v2586 = vsel %vm901, %v734, 0
      %v2589 = vsel %vm901, %v735, 0
      %v2592 = vsel %vm901, %v736, 0
      %v2595 = vsel %vm901, %v737, 0
      %v2598 = vsel %vm901, %v738, 0
      %v2601 = vsel %vm901, %v739, 0
      %v2604 = vsel %vm901, %v740, 0
      %v2607 = vsel %vm901, %v741, 0
      %v2610 = vsel %vm901, %v742, 0
      %v2613 = vsel %vm901, %v743, 0
      %v2616 = vsel %vm901, %v744, 0
      %v2619 = vsel %vm901, %v745, 0
      %v2622 = vsel %vm901, %v746, 0
      %v2625 = vsel %vm901, %v747, 0
      %v2628 = vsel %vm901, %v748, 0
      %v2631 = vsel %vm901, %v749, 0
      %v2634 = vsel %vm901, %v750, 0
      %v2637 = vsel %vm901, %v751, 0
      %v2640 = vsel %vm901, %v752, 0
      %v2643 = vsel %vm901, %v753, 0
      %v2646 = vsel %vm901, %v754, 0
      %v2649 = vsel %vm901, %v755, 0
      %v2652 = vsel %vm901, %v756, 0
      %v2655 = vsel %vm901, %v757, 0
      %v2658 = vsel %vm901, %v758, 0
      %v2661 = vsel %vm901, %v759, 0
      %v2664 = vsel %vm901, %v760, 0
      %v2667 = vsel %vm901, %v761, 0
      %v2670 = vsel %vm901, %v762, 0
      %v2673 = vsel %vm901, %v763, 0
      %v2676 = vsel %vm901, %v764, 0
      %v2679 = vsel %vm901, %v765, 0
      %v2682 = vsel %vm901, %v766, 0
      %v2685 = vsel %vm901, %v767, 0
      %v2688 = vsel %vm901, %v768, 0
      %v2691 = vsel %vm901, %v769, 0
      %v2694 = vsel %vm901, %v770, 0
      %v2697 = vsel %vm901, %v771, 0
      %v2700 = vsel %vm901, %v772, 0
      %v2703 = vsel %vm901, %v773, 0
      %v2706 = vsel %vm901, %v774, 0
      %v2709 = vsel %vm901, %v775, 0
      %v2712 = vsel %vm901, %v776, 0
      %v2715 = vsel %vm901, %v777, 0
      %v2718 = vsel %vm901, %v778, 0
      %v2721 = vsel %vm901, %v779, 0
      %v2724 = vsel %vm901, %v780, 0
      %v2727 = vsel %vm901, %v781, 0
      %v2730 = vsel %vm901, %v782, 0
      %v2733 = vsel %vm901, %v783, 0
      %v2736 = vsel %vm901, %v784, 0
      %v2739 = vsel %vm901, %v785, 0
      %v2742 = vsel %vm901, %v786, 0
      %v2745 = vsel %vm901, %v787, 0
      %v2748 = vsel %vm901, %v788, 0
      %v2751 = vsel %vm901, %v789, 0
      %v2754 = vsel %vm901, %v790, 0
      %v2757 = vsel %vm901, %v791, 0
      %v2760 = vsel %vm901, %v792, 0
      %v2763 = vsel %vm901, %v793, 0
      %v2766 = vsel %vm901, %v794, 0
      %v2769 = vsel %vm901, %v795, 0
      %v2772 = vsel %vm901, %v796, 0
      %v2775 = vsel %vm901, %v797, 0
      %v2778 = vsel %vm901, %v798, 0
      %v2781 = vsel %vm901, %v799, 0
      %v2784 = vsel %vm901, %v800, 0
      %v2787 = vsel %vm901, %v801, 0
      %v2790 = vsel %vm901, %v802, 0
      %v2793 = vsel %vm901, %v803, 0
      %v2796 = vsel %vm901, %v804, 0
      %v2799 = vsel %vm901, %v805, 0
      %v2802 = vsel %vm901, %v806, 0
      %v2805 = vsel %vm901, %v807, 0
      %v2808 = vsel %vm901, %v808, 0
      %v2811 = vsel %vm901, %v809, 0
      %v2814 = vsel %vm901, %v810, 0
      %v2817 = vsel %vm901, %v811, 0
      %v2820 = vsel %vm901, %v812, 0
      %v2823 = vsel %vm901, %v813, 0
      %v2826 = vsel %vm901, %v814, 0
      %v2829 = vsel %vm901, %v815, 0
      %v2832 = vsel %vm901, %v816, 0
      %v2835 = vsel %vm901, %v817, 0
      %v2838 = vsel %vm901, %v818, 0
      %v2841 = vsel %vm901, %v819, 0
      %v2844 = vsel %vm901, %v820, 0
      %v2847 = vsel %vm901, %v821, 0
      %v2850 = vsel %vm901, %v822, 0
      %v2853 = vsel %vm901, %v823, 0
      %v2856 = vsel %vm901, %v824, 0
      %v2859 = vsel %vm901, %v825, 0
      %v2862 = vsel %vm901, %v826, 0
      %v2865 = vsel %vm901, %v827, 0
      %v2868 = vsel %vm901, %v828, 0
      %v2871 = vsel %vm901, %v829, 0
      %v2874 = vsel %vm901, %v830, 0
      %v2877 = vsel %vm901, %v831, 0
      %v2880 = vsel %vm901, %v832, 0
      %v2883 = vsel %vm901, %v833, 0
      %v2886 = vsel %vm901, %v834, 0
      %v2889 = vsel %vm901, %v835, 0
      %v2892 = vsel %vm901, %v836, 0
      %v2895 = vsel %vm901, %v837, 0
      %v2898 = vsel %vm901, %v838, 0
      %v2901 = vsel %vm901, %v839, 0
      %v2904 = vsel %vm901, %v840, 0
      %v2907 = vsel %vm901, %v841, 0
      %v2910 = vsel %vm901, %v842, 0
      %v2913 = vsel %vm901, %v843, 0
      %v2916 = vsel %vm901, %v844, 0
      %v2919 = vsel %vm901, %v845, 0
      %v2922 = vsel %vm901, %v846, 0
      %v2925 = vsel %vm901, %v847, 0
      %v2928 = vsel %vm901, %v848, 0
      %v2931 = vsel %vm901, %v849, 0
      %v2934 = vsel %vm901, %v850, 0
      %v2937 = vsel %vm901, %v851, 0
      %v2940 = vsel %vm901, %v852, 0
      %v2943 = vsel %vm901, %v853, 0
      %v2946 = vsel %vm901, %v854, 0
      %v2949 = vsel %vm901, %v855, 0
      %v2952 = vsel %vm901, %v856, 0
      %v2955 = vsel %vm901, %v857, 0
      %v2958 = vsel %vm901, %v858, 0
      %v2961 = vsel %vm901, %v859, 0
      %v2964 = vsel %vm901, %v860, 0
      %v2967 = vsel %vm901, %v861, 0
      %v2970 = vsel %vm901, %v862, 0
      %v2973 = vsel %vm901, %v863, 0
      %v2976 = vsel %vm901, %v864, 0
      %v2979 = vsel %vm901, %v865, 0
      %v2982 = vsel %vm901, %v866, 0
      %v2985 = vsel %vm901, %v867, 0
      %v2988 = vsel %vm901, %v868, 0
      %v2991 = vsel %vm901, %v869, 0
      %v2994 = vsel %vm901, %v870, 0
      %v2997 = vsel %vm901, %v871, 0
      %v3000 = vsel %vm901, %v872, 0
      %v3003 = vsel %vm901, %v873, 0
      %v3006 = vsel %vm901, %v874, 0
      %v3009 = vsel %vm901, %v875, 0
      %v3012 = vsel %vm901, %v876, 0
      %v3015 = vsel %vm901, %v877, 0
      %v3018 = vsel %vm901, %v878, 0
      %v3021 = vsel %vm901, %v879, 0
      %v3024 = vsel %vm901, %v880, 0
      %v3027 = vsel %vm901, %v881, 0
      %v3030 = vsel %vm901, %v882, 0
      %v3033 = vsel %vm901, %v883, 0
      %v3036 = vsel %vm901, %v884, 0
      %v3039 = vsel %vm901, %v885, 0
      %v3042 = vsel %vm901, %v886, 0
      %v3045 = vsel %vm901, %v887, 0
      %v3048 = vsel %vm901, %v888, 0
      %v3051 = vsel %vm901, %v889, 0
      %v3054 = vsel %vm901, %v890, 0
      %v3057 = vsel %vm901, %v891, 0
      %v3060 = vsel %vm901, %v892, 0
      %v3063 = vsel %vm901, %v893, 0
      %3065 = vmatprep.subr.mxu0 0.0
      %3066 = vmatpush1.xpose.msra.mxu0 %v906
      %3067 = vmatprep.subr.mxu0 0.0
      %3068 = vmatpush1.xpose.msra.mxu0 %v909
      %3069 = vmatprep.subr.mxu0 0.0
      %3070 = vmatpush1.xpose.msra.mxu0 %v912
      %3071 = vmatprep.subr.mxu0 0.0
      %3072 = vmatpush1.xpose.msra.mxu0 %v915
      %3073 = vmatprep.subr.mxu0 0.0
      %3074 = vmatpush1.xpose.msra.mxu0 %v918
      %3075 = vmatprep.subr.mxu0 0.0
      %3076 = vmatpush1.xpose.msra.mxu0 %v921
      %3077 = vmatprep.subr.mxu0 0.0
      %3078 = vmatpush1.xpose.msra.mxu0 %v924
      %3079 = vmatprep.subr.mxu0 0.0
      %3080 = vmatpush1.xpose.msra.mxu0 %v927
      %3081 = vmatprep.subr.mxu0 0.0
      %3082 = vmatpush1.xpose.msra.mxu0 %v930
      %3083 = vmatprep.subr.mxu0 0.0
      %3084 = vmatpush1.xpose.msra.mxu0 %v933
      %3085 = vmatprep.subr.mxu0 0.0
      %3086 = vmatpush1.xpose.msra.mxu0 %v936
      %3087 = vmatprep.subr.mxu0 0.0
      %3088 = vmatpush1.xpose.msra.mxu0 %v939
      %3089 = vmatprep.subr.mxu0 0.0
      %3090 = vmatpush1.xpose.msra.mxu0 %v942
      %3091 = vmatprep.subr.mxu0 0.0
      %3092 = vmatpush1.xpose.msra.mxu0 %v945
      %3093 = vmatprep.subr.mxu0 0.0
      %3094 = vmatpush1.xpose.msra.mxu0 %v948
      %3095 = vmatprep.subr.mxu0 0.0
      %3096 = vmatpush1.xpose.msra.mxu0 %v951
      %3097 = vmatprep.subr.mxu0 0.0
      %3098 = vmatpush1.xpose.msra.mxu0 %v954
      %3099 = vmatprep.subr.mxu0 0.0
      %3100 = vmatpush1.xpose.msra.mxu0 %v957
      %3101 = vmatprep.subr.mxu0 0.0
      %3102 = vmatpush1.xpose.msra.mxu0 %v960
      %3103 = vmatprep.subr.mxu0 0.0
      %3104 = vmatpush1.xpose.msra.mxu0 %v963
      %3105 = vmatprep.subr.mxu0 0.0
      %3106 = vmatpush1.xpose.msra.mxu0 %v966
      %3107 = vmatprep.subr.mxu0 0.0
      %3108 = vmatpush1.xpose.msra.mxu0 %v969
      %3109 = vmatprep.subr.mxu0 0.0
      %3110 = vmatpush1.xpose.msra.mxu0 %v972
      %3111 = vmatprep.subr.mxu0 0.0
      %3112 = vmatpush1.xpose.msra.mxu0 %v975
      %3113 = vmatprep.subr.mxu0 0.0
      %3114 = vmatpush1.xpose.msra.mxu0 %v978
      %3115 = vmatprep.subr.mxu0 0.0
      %3116 = vmatpush1.xpose.msra.mxu0 %v981
      %3117 = vmatprep.subr.mxu0 0.0
      %3118 = vmatpush1.xpose.msra.mxu0 %v984
      %3119 = vmatprep.subr.mxu0 0.0
      %3120 = vmatpush1.xpose.msra.mxu0 %v987
      %3121 = vmatprep.subr.mxu0 0.0
      %3122 = vmatpush1.xpose.msra.mxu0 %v990
      %3123 = vmatprep.subr.mxu0 0.0
      %3124 = vmatpush1.xpose.msra.mxu0 %v993
      %3125 = vmatprep.subr.mxu0 0.0
      %3126 = vmatpush1.xpose.msra.mxu0 %v996
      %3127 = vmatprep.subr.mxu0 0.0
      %3128 = vmatpush1.xpose.msra.mxu0 %v999
      %3129 = vmatprep.mubr.f32.mxu0 0.0
      %3130 = vmatmul.mubr.f32.gmra.mrb[0].mxu0 %v903
      %v3131 = vpop.f32.mrb[0].mxu0
      %v3132 = vadd.f32 %v899, %v3131
      %v3133 = vpop.f32.mrb[0].mxu0
      %v3134 = vadd.f32 %v899, %v3133
      %3135 = vdwg.mxu0
      %3136 = vmatprep.subr.mxu0 0.0
      %3137 = vmatpush1.xpose.msra.mxu0 %v1002
      %3138 = vmatprep.subr.mxu0 0.0
      %3139 = vmatpush1.xpose.msra.mxu0 %v1005
      %3140 = vmatprep.subr.mxu0 0.0
      %3141 = vmatpush1.xpose.msra.mxu0 %v1008
      %3142 = vmatprep.subr.mxu0 0.0
      %3143 = vmatpush1.xpose.msra.mxu0 %v1011
      %3144 = vmatprep.subr.mxu0 0.0
      %3145 = vmatpush1.xpose.msra.mxu0 %v1014
      %3146 = vmatprep.subr.mxu0 0.0
      %3147 = vmatpush1.xpose.msra.mxu0 %v1017
      %3148 = vmatprep.subr.mxu0 0.0
      %3149 = vmatpush1.xpose.msra.mxu0 %v1020
      %3150 = vmatprep.subr.mxu0 0.0
      %3151 = vmatpush1.xpose.msra.mxu0 %v1023
      %3152 = vmatprep.subr.mxu0 0.0
      %3153 = vmatpush1.xpose.msra.mxu0 %v1026
      %3154 = vmatprep.subr.mxu0 0.0
      %3155 = vmatpush1.xpose.msra.mxu0 %v1029
      %3156 = vmatprep.subr.mxu0 0.0
      %3157 = vmatpush1.xpose.msra.mxu0 %v1032
      %3158 = vmatprep.subr.mxu0 0.0
      %3159 = vmatpush1.xpose.msra.mxu0 %v1035
      %3160 = vmatprep.subr.mxu0 0.0
      %3161 = vmatpush1.xpose.msra.mxu0 %v1038
      %3162 = vmatprep.subr.mxu0 0.0
      %3163 = vmatpush1.xpose.msra.mxu0 %v1041
      %3164 = vmatprep.subr.mxu0 0.0
      %3165 = vmatpush1.xpose.msra.mxu0 %v1044
      %3166 = vmatprep.subr.mxu0 0.0
      %3167 = vmatpush1.xpose.msra.mxu0 %v1047
      %3168 = vmatprep.subr.mxu0 0.0
      %3169 = vmatpush1.xpose.msra.mxu0 %v1050
      %3170 = vmatprep.subr.mxu0 0.0
      %3171 = vmatpush1.xpose.msra.mxu0 %v1053
      %3172 = vmatprep.subr.mxu0 0.0
      %3173 = vmatpush1.xpose.msra.mxu0 %v1056
      %3174 = vmatprep.subr.mxu0 0.0
      %3175 = vmatpush1.xpose.msra.mxu0 %v1059
      %3176 = vmatprep.subr.mxu0 0.0
      %3177 = vmatpush1.xpose.msra.mxu0 %v1062
      %3178 = vmatprep.subr.mxu0 0.0
      %3179 = vmatpush1.xpose.msra.mxu0 %v1065
      %3180 = vmatprep.subr.mxu0 0.0
      %3181 = vmatpush1.xpose.msra.mxu0 %v1068
      %3182 = vmatprep.subr.mxu0 0.0
      %3183 = vmatpush1.xpose.msra.mxu0 %v1071
      %3184 = vmatprep.subr.mxu0 0.0
      %3185 = vmatpush1.xpose.msra.mxu0 %v1074
      %3186 = vmatprep.subr.mxu0 0.0
      %3187 = vmatpush1.xpose.msra.mxu0 %v1077
      %3188 = vmatprep.subr.mxu0 0.0
      %3189 = vmatpush1.xpose.msra.mxu0 %v1080
      %3190 = vmatprep.subr.mxu0 0.0
      %3191 = vmatpush1.xpose.msra.mxu0 %v1083
      %3192 = vmatprep.subr.mxu0 0.0
      %3193 = vmatpush1.xpose.msra.mxu0 %v1086
      %3194 = vmatprep.subr.mxu0 0.0
      %3195 = vmatpush1.xpose.msra.mxu0 %v1089
      %3196 = vmatprep.subr.mxu0 0.0
      %3197 = vmatpush1.xpose.msra.mxu0 %v1092
      %3198 = vmatprep.subr.mxu0 0.0
      %3199 = vmatpush1.xpose.msra.mxu0 %v1095
      %3200 = vmatprep.mubr.f32.mxu0 0.0
      %3201 = vmatmul.mubr.f32.gmra.mrb[0].mxu0 %v903
      %v3202 = vpop.f32.mrb[0].mxu0
      %v3203 = vadd.f32 %v899, %v3202
      %v3204 = vpop.f32.mrb[0].mxu0
      %v3205 = vadd.f32 %v899, %v3204
      %3206 = vdwg.mxu0
      %3207 = vmatprep.subr.mxu0 0.0
      %3208 = vmatpush1.xpose.msra.mxu0 %v1098
      %3209 = vmatprep.subr.mxu0 0.0
      %3210 = vmatpush1.xpose.msra.mxu0 %v1101
      %3211 = vmatprep.subr.mxu0 0.0
      %3212 = vmatpush1.xpose.msra.mxu0 %v1104
      %3213 = vmatprep.subr.mxu0 0.0
      %3214 = vmatpush1.xpose.msra.mxu0 %v1107
      %3215 = vmatprep.subr.mxu0 0.0
      %3216 = vmatpush1.xpose.msra.mxu0 %v1110
      %3217 = vmatprep.subr.mxu0 0.0
      %3218 = vmatpush1.xpose.msra.mxu0 %v1113
      %3219 = vmatprep.subr.mxu0 0.0
      %3220 = vmatpush1.xpose.msra.mxu0 %v1116
      %3221 = vmatprep.subr.mxu0 0.0
      %3222 = vmatpush1.xpose.msra.mxu0 %v1119
      %3223 = vmatprep.subr.mxu0 0.0
      %3224 = vmatpush1.xpose.msra.mxu0 %v1122
      %3225 = vmatprep.subr.mxu0 0.0
      %3226 = vmatpush1.xpose.msra.mxu0 %v1125
      %3227 = vmatprep.subr.mxu0 0.0
      %3228 = vmatpush1.xpose.msra.mxu0 %v1128
      %3229 = vmatprep.subr.mxu0 0.0
      %3230 = vmatpush1.xpose.msra.mxu0 %v1131
      %3231 = vmatprep.subr.mxu0 0.0
      %3232 = vmatpush1.xpose.msra.mxu0 %v1134
      %3233 = vmatprep.subr.mxu0 0.0
      %3234 = vmatpush1.xpose.msra.mxu0 %v1137
      %3235 = vmatprep.subr.mxu0 0.0
      %3236 = vmatpush1.xpose.msra.mxu0 %v1140
      %3237 = vmatprep.subr.mxu0 0.0
      %3238 = vmatpush1.xpose.msra.mxu0 %v1143
      %3239 = vmatprep.subr.mxu0 0.0
      %3240 = vmatpush1.xpose.msra.mxu0 %v1146
      %3241 = vmatprep.subr.mxu0 0.0
      %3242 = vmatpush1.xpose.msra.mxu0 %v1149
      %3243 = vmatprep.subr.mxu0 0.0
      %3244 = vmatpush1.xpose.msra.mxu0 %v1152
      %3245 = vmatprep.subr.mxu0 0.0
      %3246 = vmatpush1.xpose.msra.mxu0 %v1155
      %3247 = vmatprep.subr.mxu0 0.0
      %3248 = vmatpush1.xpose.msra.mxu0 %v1158
      %3249 = vmatprep.subr.mxu0 0.0
      %3250 = vmatpush1.xpose.msra.mxu0 %v1161
      %3251 = vmatprep.subr.mxu0 0.0
      %3252 = vmatpush1.xpose.msra.mxu0 %v1164
      %3253 = vmatprep.subr.mxu0 0.0
      %3254 = vmatpush1.xpose.msra.mxu0 %v1167
      %3255 = vmatprep.subr.mxu0 0.0
      %3256 = vmatpush1.xpose.msra.mxu0 %v1170
      %3257 = vmatprep.subr.mxu0 0.0
      %3258 = vmatpush1.xpose.msra.mxu0 %v1173
      %3259 = vmatprep.subr.mxu0 0.0
      %3260 = vmatpush1.xpose.msra.mxu0 %v1176
      %3261 = vmatprep.subr.mxu0 0.0
      %3262 = vmatpush1.xpose.msra.mxu0 %v1179
      %3263 = vmatprep.subr.mxu0 0.0
      %3264 = vmatpush1.xpose.msra.mxu0 %v1182
      %3265 = vmatprep.subr.mxu0 0.0
      %3266 = vmatpush1.xpose.msra.mxu0 %v1185
      %3267 = vmatprep.subr.mxu0 0.0
      %3268 = vmatpush1.xpose.msra.mxu0 %v1188
      %3269 = vmatprep.subr.mxu0 0.0
      %3270 = vmatpush1.xpose.msra.mxu0 %v1191
      %3271 = vmatprep.mubr.f32.mxu0 0.0
      %3272 = vmatmul.mubr.f32.gmra.mrb[0].mxu0 %v903
      %v3273 = vpop.f32.mrb[0].mxu0
      %v3274 = vadd.f32 %v899, %v3273
      %v3275 = vpop.f32.mrb[0].mxu0
      %v3276 = vadd.f32 %v899, %v3275
      %3277 = vdwg.mxu0
      %3278 = vmatprep.subr.mxu0 0.0
      %3279 = vmatpush1.xpose.msra.mxu0 %v1194
      %3280 = vmatprep.subr.mxu0 0.0
      %3281 = vmatpush1.xpose.msra.mxu0 %v1197
      %3282 = vmatprep.subr.mxu0 0.0
      %3283 = vmatpush1.xpose.msra.mxu0 %v1200
      %3284 = vmatprep.subr.mxu0 0.0
      %3285 = vmatpush1.xpose.msra.mxu0 %v1203
      %3286 = vmatprep.subr.mxu0 0.0
      %3287 = vmatpush1.xpose.msra.mxu0 %v1206
      %3288 = vmatprep.subr.mxu0 0.0
      %3289 = vmatpush1.xpose.msra.mxu0 %v1209
      %3290 = vmatprep.subr.mxu0 0.0
      %3291 = vmatpush1.xpose.msra.mxu0 %v1212
      %3292 = vmatprep.subr.mxu0 0.0
      %3293 = vmatpush1.xpose.msra.mxu0 %v1215
      %3294 = vmatprep.subr.mxu0 0.0
      %3295 = vmatpush1.xpose.msra.mxu0 %v1218
      %3296 = vmatprep.subr.mxu0 0.0
      %3297 = vmatpush1.xpose.msra.mxu0 %v1221
      %3298 = vmatprep.subr.mxu0 0.0
      %3299 = vmatpush1.xpose.msra.mxu0 %v1224
      %3300 = vmatprep.subr.mxu0 0.0
      %3301 = vmatpush1.xpose.msra.mxu0 %v1227
      %3302 = vmatprep.subr.mxu0 0.0
      %3303 = vmatpush1.xpose.msra.mxu0 %v1230
      %3304 = vmatprep.subr.mxu0 0.0
      %3305 = vmatpush1.xpose.msra.mxu0 %v1233
      %3306 = vmatprep.subr.mxu0 0.0
      %3307 = vmatpush1.xpose.msra.mxu0 %v1236
      %3308 = vmatprep.subr.mxu0 0.0
      %3309 = vmatpush1.xpose.msra.mxu0 %v1239
      %3310 = vmatprep.subr.mxu0 0.0
      %3311 = vmatpush1.xpose.msra.mxu0 %v1242
      %3312 = vmatprep.subr.mxu0 0.0
      %3313 = vmatpush1.xpose.msra.mxu0 %v1245
      %3314 = vmatprep.subr.mxu0 0.0
      %3315 = vmatpush1.xpose.msra.mxu0 %v1248
      %3316 = vmatprep.subr.mxu0 0.0
      %3317 = vmatpush1.xpose.msra.mxu0 %v1251
      %3318 = vmatprep.subr.mxu0 0.0
      %3319 = vmatpush1.xpose.msra.mxu0 %v1254
      %3320 = vmatprep.subr.mxu0 0.0
      %3321 = vmatpush1.xpose.msra.mxu0 %v1257
      %3322 = vmatprep.subr.mxu0 0.0
      %3323 = vmatpush1.xpose.msra.mxu0 %v1260
      %3324 = vmatprep.subr.mxu0 0.0
      %3325 = vmatpush1.xpose.msra.mxu0 %v1263
      %3326 = vmatprep.subr.mxu0 0.0
      %3327 = vmatpush1.xpose.msra.mxu0 %v1266
      %3328 = vmatprep.subr.mxu0 0.0
      %3329 = vmatpush1.xpose.msra.mxu0 %v1269
      %3330 = vmatprep.subr.mxu0 0.0
      %3331 = vmatpush1.xpose.msra.mxu0 %v1272
      %3332 = vmatprep.subr.mxu0 0.0
      %3333 = vmatpush1.xpose.msra.mxu0 %v1275
      %3334 = vmatprep.subr.mxu0 0.0
      %3335 = vmatpush1.xpose.msra.mxu0 %v1278
      %3336 = vmatprep.subr.mxu0 0.0
      %3337 = vmatpush1.xpose.msra.mxu0 %v1281
      %3338 = vmatprep.subr.mxu0 0.0
      %3339 = vmatpush1.xpose.msra.mxu0 %v1284
      %3340 = vmatprep.subr.mxu0 0.0
      %3341 = vmatpush1.xpose.msra.mxu0 %v1287
      %3342 = vmatprep.mubr.f32.mxu0 0.0
      %3343 = vmatmul.mubr.f32.gmra.mrb[0].mxu0 %v903
      %v3344 = vpop.f32.mrb[0].mxu0
      %v3345 = vadd.f32 %v899, %v3344
      %v3346 = vpop.f32.mrb[0].mxu0
      %v3347 = vadd.f32 %v899, %v3346
      %3348 = vdwg.mxu0
      %3349 = vmatprep.subr.mxu0 0.0
      %3350 = vmatpush1.xpose.msra.mxu0 %v1290
      %3351 = vmatprep.subr.mxu0 0.0
      %3352 = vmatpush1.xpose.msra.mxu0 %v1293
      %3353 = vmatprep.subr.mxu0 0.0
      %3354 = vmatpush1.xpose.msra.mxu0 %v1296
      %3355 = vmatprep.subr.mxu0 0.0
      %3356 = vmatpush1.xpose.msra.mxu0 %v1299
      %3357 = vmatprep.subr.mxu0 0.0
      %3358 = vmatpush1.xpose.msra.mxu0 %v1302
      %3359 = vmatprep.subr.mxu0 0.0
      %3360 = vmatpush1.xpose.msra.mxu0 %v1305
      %3361 = vmatprep.subr.mxu0 0.0
      %3362 = vmatpush1.xpose.msra.mxu0 %v1308
      %3363 = vmatprep.subr.mxu0 0.0
      %3364 = vmatpush1.xpose.msra.mxu0 %v1311
      %3365 = vmatprep.subr.mxu0 0.0
      %3366 = vmatpush1.xpose.msra.mxu0 %v1314
      %3367 = vmatprep.subr.mxu0 0.0
      %3368 = vmatpush1.xpose.msra.mxu0 %v1317
      %3369 = vmatprep.subr.mxu0 0.0
      %3370 = vmatpush1.xpose.msra.mxu0 %v1320
      %3371 = vmatprep.subr.mxu0 0.0
      %3372 = vmatpush1.xpose.msra.mxu0 %v1323
      %3373 = vmatprep.subr.mxu0 0.0
      %3374 = vmatpush1.xpose.msra.mxu0 %v1326
      %3375 = vmatprep.subr.mxu0 0.0
      %3376 = vmatpush1.xpose.msra.mxu0 %v1329
      %3377 = vmatprep.subr.mxu0 0.0
      %3378 = vmatpush1.xpose.msra.mxu0 %v1332
      %3379 = vmatprep.subr.mxu0 0.0
      %3380 = vmatpush1.xpose.msra.mxu0 %v1335
      %3381 = vmatprep.subr.mxu0 0.0
      %3382 = vmatpush1.xpose.msra.mxu0 %v1338
      %3383 = vmatprep.subr.mxu0 0.0
      %3384 = vmatpush1.xpose.msra.mxu0 %v1341
      %3385 = vmatprep.subr.mxu0 0.0
      %3386 = vmatpush1.xpose.msra.mxu0 %v1344
      %3387 = vmatprep.subr.mxu0 0.0
      %3388 = vmatpush1.xpose.msra.mxu0 %v1347
      %3389 = vmatprep.subr.mxu0 0.0
      %3390 = vmatpush1.xpose.msra.mxu0 %v1350
      %3391 = vmatprep.subr.mxu0 0.0
      %3392 = vmatpush1.xpose.msra.mxu0 %v1353
      %3393 = vmatprep.subr.mxu0 0.0
      %3394 = vmatpush1.xpose.msra.mxu0 %v1356
      %3395 = vmatprep.subr.mxu0 0.0
      %3396 = vmatpush1.xpose.msra.mxu0 %v1359
      %3397 = vmatprep.subr.mxu0 0.0
      %3398 = vmatpush1.xpose.msra.mxu0 %v1362
      %3399 = vmatprep.subr.mxu0 0.0
      %3400 = vmatpush1.xpose.msra.mxu0 %v1365
      %3401 = vmatprep.subr.mxu0 0.0
      %3402 = vmatpush1.xpose.msra.mxu0 %v1368
      %3403 = vmatprep.subr.mxu0 0.0
      %3404 = vmatpush1.xpose.msra.mxu0 %v1371
      %3405 = vmatprep.subr.mxu0 0.0
      %3406 = vmatpush1.xpose.msra.mxu0 %v1374
      %3407 = vmatprep.subr.mxu0 0.0
      %3408 = vmatpush1.xpose.msra.mxu0 %v1377
      %3409 = vmatprep.subr.mxu0 0.0
      %3410 = vmatpush1.xpose.msra.mxu0 %v1380
      %3411 = vmatprep.subr.mxu0 0.0
      %3412 = vmatpush1.xpose.msra.mxu0 %v1383
      %3413 = vmatprep.mubr.f32.mxu0 0.0
      %3414 = vmatmul.mubr.f32.gmra.mrb[0].mxu0 %v903
      %v3415 = vpop.f32.mrb[0].mxu0
      %v3416 = vadd.f32 %v899, %v3415
      %v3417 = vpop.f32.mrb[0].mxu0
      %v3418 = vadd.f32 %v899, %v3417
      %3419 = vdwg.mxu0
      %3420 = vmatprep.subr.mxu0 0.0
      %3421 = vmatpush1.xpose.msra.mxu0 %v1386
      %3422 = vmatprep.subr.mxu0 0.0
      %3423 = vmatpush1.xpose.msra.mxu0 %v1389
      %3424 = vmatprep.subr.mxu0 0.0
      %3425 = vmatpush1.xpose.msra.mxu0 %v1392
      %3426 = vmatprep.subr.mxu0 0.0
      %3427 = vmatpush1.xpose.msra.mxu0 %v1395
      %3428 = vmatprep.subr.mxu0 0.0
      %3429 = vmatpush1.xpose.msra.mxu0 %v1398
      %3430 = vmatprep.subr.mxu0 0.0
      %3431 = vmatpush1.xpose.msra.mxu0 %v1401
      %3432 = vmatprep.subr.mxu0 0.0
      %3433 = vmatpush1.xpose.msra.mxu0 %v1404
      %3434 = vmatprep.subr.mxu0 0.0
      %3435 = vmatpush1.xpose.msra.mxu0 %v1407
      %3436 = vmatprep.subr.mxu0 0.0
      %3437 = vmatpush1.xpose.msra.mxu0 %v1410
      %3438 = vmatprep.subr.mxu0 0.0
      %3439 = vmatpush1.xpose.msra.mxu0 %v1413
      %3440 = vmatprep.subr.mxu0 0.0
      %3441 = vmatpush1.xpose.msra.mxu0 %v1416
      %3442 = vmatprep.subr.mxu0 0.0
      %3443 = vmatpush1.xpose.msra.mxu0 %v1419
      %3444 = vmatprep.subr.mxu0 0.0
      %3445 = vmatpush1.xpose.msra.mxu0 %v1422
      %3446 = vmatprep.subr.mxu0 0.0
      %3447 = vmatpush1.xpose.msra.mxu0 %v1425
      %3448 = vmatprep.subr.mxu0 0.0
      %3449 = vmatpush1.xpose.msra.mxu0 %v1428
      %3450 = vmatprep.subr.mxu0 0.0
      %3451 = vmatpush1.xpose.msra.mxu0 %v1431
      %3452 = vmatprep.subr.mxu0 0.0
      %3453 = vmatpush1.xpose.msra.mxu0 %v1434
      %3454 = vmatprep.subr.mxu0 0.0
      %3455 = vmatpush1.xpose.msra.mxu0 %v1437
      %3456 = vmatprep.subr.mxu0 0.0
      %3457 = vmatpush1.xpose.msra.mxu0 %v1440
      %3458 = vmatprep.subr.mxu0 0.0
      %3459 = vmatpush1.xpose.msra.mxu0 %v1443
      %3460 = vmatprep.subr.mxu0 0.0
      %3461 = vmatpush1.xpose.msra.mxu0 %v1446
      %3462 = vmatprep.subr.mxu0 0.0
      %3463 = vmatpush1.xpose.msra.mxu0 %v1449
      %3464 = vmatprep.subr.mxu0 0.0
      %3465 = vmatpush1.xpose.msra.mxu0 %v1452
      %3466 = vmatprep.subr.mxu0 0.0
      %3467 = vmatpush1.xpose.msra.mxu0 %v1455
      %3468 = vmatprep.subr.mxu0 0.0
      %3469 = vmatpush1.xpose.msra.mxu0 %v1458
      %3470 = vmatprep.subr.mxu0 0.0
      %3471 = vmatpush1.xpose.msra.mxu0 %v1461
      %3472 = vmatprep.subr.mxu0 0.0
      %3473 = vmatpush1.xpose.msra.mxu0 %v1464
      %3474 = vmatprep.subr.mxu0 0.0
      %3475 = vmatpush1.xpose.msra.mxu0 %v1467
      %3476 = vmatprep.subr.mxu0 0.0
      %3477 = vmatpush1.xpose.msra.mxu0 %v1470
      %3478 = vmatprep.subr.mxu0 0.0
      %3479 = vmatpush1.xpose.msra.mxu0 %v1473
      %3480 = vmatprep.subr.mxu0 0.0
      %3481 = vmatpush1.xpose.msra.mxu0 %v1476
      %3482 = vmatprep.subr.mxu0 0.0
      %3483 = vmatpush1.xpose.msra.mxu0 %v1479
      %3484 = vmatprep.mubr.f32.mxu0 0.0
      %3485 = vmatmul.mubr.f32.gmra.mrb[0].mxu0 %v903
      %v3486 = vpop.f32.mrb[0].mxu0
      %v3487 = vadd.f32 %v899, %v3486
      %v3488 = vpop.f32.mrb[0].mxu0
      %v3489 = vadd.f32 %v899, %v3488
      %3490 = vdwg.mxu0
      %3491 = vmatprep.subr.mxu0 0.0
      %3492 = vmatpush1.xpose.msra.mxu0 %v1482
      %3493 = vmatprep.subr.mxu0 0.0
      %3494 = vmatpush1.xpose.msra.mxu0 %v1485
      %3495 = vmatprep.subr.mxu0 0.0
      %3496 = vmatpush1.xpose.msra.mxu0 %v1488
      %3497 = vmatprep.subr.mxu0 0.0
      %3498 = vmatpush1.xpose.msra.mxu0 %v1491
      %3499 = vmatprep.subr.mxu0 0.0
      %3500 = vmatpush1.xpose.msra.mxu0 %v1494
      %3501 = vmatprep.subr.mxu0 0.0
      %3502 = vmatpush1.xpose.msra.mxu0 %v1497
      %3503 = vmatprep.subr.mxu0 0.0
      %3504 = vmatpush1.xpose.msra.mxu0 %v1500
      %3505 = vmatprep.subr.mxu0 0.0
      %3506 = vmatpush1.xpose.msra.mxu0 %v1503
      %3507 = vmatprep.subr.mxu0 0.0
      %3508 = vmatpush1.xpose.msra.mxu0 %v1506
      %3509 = vmatprep.subr.mxu0 0.0
      %3510 = vmatpush1.xpose.msra.mxu0 %v1509
      %3511 = vmatprep.subr.mxu0 0.0
      %3512 = vmatpush1.xpose.msra.mxu0 %v1512
      %3513 = vmatprep.subr.mxu0 0.0
      %3514 = vmatpush1.xpose.msra.mxu0 %v1515
      %3515 = vmatprep.subr.mxu0 0.0
      %3516 = vmatpush1.xpose.msra.mxu0 %v1518
      %3517 = vmatprep.subr.mxu0 0.0
      %3518 = vmatpush1.xpose.msra.mxu0 %v1521
      %3519 = vmatprep.subr.mxu0 0.0
      %3520 = vmatpush1.xpose.msra.mxu0 %v1524
      %3521 = vmatprep.subr.mxu0 0.0
      %3522 = vmatpush1.xpose.msra.mxu0 %v1527
      %3523 = vmatprep.subr.mxu0 0.0
      %3524 = vmatpush1.xpose.msra.mxu0 %v1530
      %3525 = vmatprep.subr.mxu0 0.0
      %3526 = vmatpush1.xpose.msra.mxu0 %v1533
      %3527 = vmatprep.subr.mxu0 0.0
      %3528 = vmatpush1.xpose.msra.mxu0 %v1536
      %3529 = vmatprep.subr.mxu0 0.0
      %3530 = vmatpush1.xpose.msra.mxu0 %v1539
      %3531 = vmatprep.subr.mxu0 0.0
      %3532 = vmatpush1.xpose.msra.mxu0 %v1542
      %3533 = vmatprep.subr.mxu0 0.0
      %3534 = vmatpush1.xpose.msra.mxu0 %v1545
      %3535 = vmatprep.subr.mxu0 0.0
      %3536 = vmatpush1.xpose.msra.mxu0 %v1548
      %3537 = vmatprep.subr.mxu0 0.0
      %3538 = vmatpush1.xpose.msra.mxu0 %v1551
      %3539 = vmatprep.subr.mxu0 0.0
      %3540 = vmatpush1.xpose.msra.mxu0 %v1554
      %3541 = vmatprep.subr.mxu0 0.0
      %3542 = vmatpush1.xpose.msra.mxu0 %v1557
      %3543 = vmatprep.subr.mxu0 0.0
      %3544 = vmatpush1.xpose.msra.mxu0 %v1560
      %3545 = vmatprep.subr.mxu0 0.0
      %3546 = vmatpush1.xpose.msra.mxu0 %v1563
      %3547 = vmatprep.subr.mxu0 0.0
      %3548 = vmatpush1.xpose.msra.mxu0 %v1566
      %3549 = vmatprep.subr.mxu0 0.0
      %3550 = vmatpush1.xpose.msra.mxu0 %v1569
      %3551 = vmatprep.subr.mxu0 0.0
      %3552 = vmatpush1.xpose.msra.mxu0 %v1572
      %3553 = vmatprep.subr.mxu0 0.0
      %3554 = vmatpush1.xpose.msra.mxu0 %v1575
      %3555 = vmatprep.mubr.f32.mxu0 0.0
      %3556 = vmatmul.mubr.f32.gmra.mrb[0].mxu0 %v903
      %v3557 = vpop.f32.mrb[0].mxu0
      %v3558 = vadd.f32 %v899, %v3557
      %v3559 = vpop.f32.mrb[0].mxu0
      %v3560 = vadd.f32 %v899, %v3559
      %3561 = vdwg.mxu0
      %3562 = vmatprep.subr.mxu0 0.0
      %3563 = vmatpush1.xpose.msra.mxu0 %v1578
      %3564 = vmatprep.subr.mxu0 0.0
      %3565 = vmatpush1.xpose.msra.mxu0 %v1581
      %3566 = vmatprep.subr.mxu0 0.0
      %3567 = vmatpush1.xpose.msra.mxu0 %v1584
      %3568 = vmatprep.subr.mxu0 0.0
      %3569 = vmatpush1.xpose.msra.mxu0 %v1587
      %3570 = vmatprep.subr.mxu0 0.0
      %3571 = vmatpush1.xpose.msra.mxu0 %v1590
      %3572 = vmatprep.subr.mxu0 0.0
      %3573 = vmatpush1.xpose.msra.mxu0 %v1593
      %3574 = vmatprep.subr.mxu0 0.0
      %3575 = vmatpush1.xpose.msra.mxu0 %v1596
      %3576 = vmatprep.subr.mxu0 0.0
      %3577 = vmatpush1.xpose.msra.mxu0 %v1599
      %3578 = vmatprep.subr.mxu0 0.0
      %3579 = vmatpush1.xpose.msra.mxu0 %v1602
      %3580 = vmatprep.subr.mxu0 0.0
      %3581 = vmatpush1.xpose.msra.mxu0 %v1605
      %3582 = vmatprep.subr.mxu0 0.0
      %3583 = vmatpush1.xpose.msra.mxu0 %v1608
      %3584 = vmatprep.subr.mxu0 0.0
      %3585 = vmatpush1.xpose.msra.mxu0 %v1611
      %3586 = vmatprep.subr.mxu0 0.0
      %3587 = vmatpush1.xpose.msra.mxu0 %v1614
      %3588 = vmatprep.subr.mxu0 0.0
      %3589 = vmatpush1.xpose.msra.mxu0 %v1617
      %3590 = vmatprep.subr.mxu0 0.0
      %3591 = vmatpush1.xpose.msra.mxu0 %v1620
      %3592 = vmatprep.subr.mxu0 0.0
      %3593 = vmatpush1.xpose.msra.mxu0 %v1623
      %3594 = vmatprep.subr.mxu0 0.0
      %3595 = vmatpush1.xpose.msra.mxu0 %v1626
      %3596 = vmatprep.subr.mxu0 0.0
      %3597 = vmatpush1.xpose.msra.mxu0 %v1629
      %3598 = vmatprep.subr.mxu0 0.0
      %3599 = vmatpush1.xpose.msra.mxu0 %v1632
      %3600 = vmatprep.subr.mxu0 0.0
      %3601 = vmatpush1.xpose.msra.mxu0 %v1635
      %3602 = vmatprep.subr.mxu0 0.0
      %3603 = vmatpush1.xpose.msra.mxu0 %v1638
      %3604 = vmatprep.subr.mxu0 0.0
      %3605 = vmatpush1.xpose.msra.mxu0 %v1641
      %3606 = vmatprep.subr.mxu0 0.0
      %3607 = vmatpush1.xpose.msra.mxu0 %v1644
      %3608 = vmatprep.subr.mxu0 0.0
      %3609 = vmatpush1.xpose.msra.mxu0 %v1647
      %3610 = vmatprep.subr.mxu0 0.0
      %3611 = vmatpush1.xpose.msra.mxu0 %v1650
      %3612 = vmatprep.subr.mxu0 0.0
      %3613 = vmatpush1.xpose.msra.mxu0 %v1653
      %3614 = vmatprep.subr.mxu0 0.0
      %3615 = vmatpush1.xpose.msra.mxu0 %v1656
      %3616 = vmatprep.subr.mxu0 0.0
      %3617 = vmatpush1.xpose.msra.mxu0 %v1659
      %3618 = vmatprep.subr.mxu0 0.0
      %3619 = vmatpush1.xpose.msra.mxu0 %v1662
      %3620 = vmatprep.subr.mxu0 0.0
      %3621 = vmatpush1.xpose.msra.mxu0 %v1665
      %3622 = vmatprep.subr.mxu0 0.0
      %3623 = vmatpush1.xpose.msra.mxu0 %v1668
      %3624 = vmatprep.subr.mxu0 0.0
      %3625 = vmatpush1.xpose.msra.mxu0 %v1671
      %3626 = vmatprep.mubr.f32.mxu0 0.0
      %3627 = vmatmul.mubr.f32.gmra.mrb[0].mxu0 %v903
      %v3628 = vpop.f32.mrb[0].mxu0
      %v3629 = vadd.f32 %v899, %v3628
      %v3630 = vpop.f32.mrb[0].mxu0
      %v3631 = vadd.f32 %v899, %v3630
      %3632 = vdwg.mxu0
      %3633 = vmatprep.subr.mxu0 0.0
      %3634 = vmatpush1.xpose.msra.mxu0 %v1674
      %3635 = vmatprep.subr.mxu0 0.0
      %3636 = vmatpush1.xpose.msra.mxu0 %v1677
      %3637 = vmatprep.subr.mxu0 0.0
      %3638 = vmatpush1.xpose.msra.mxu0 %v1680
      %3639 = vmatprep.subr.mxu0 0.0
      %3640 = vmatpush1.xpose.msra.mxu0 %v1683
      %3641 = vmatprep.subr.mxu0 0.0
      %3642 = vmatpush1.xpose.msra.mxu0 %v1686
      %3643 = vmatprep.subr.mxu0 0.0
      %3644 = vmatpush1.xpose.msra.mxu0 %v1689
      %3645 = vmatprep.subr.mxu0 0.0
      %3646 = vmatpush1.xpose.msra.mxu0 %v1692
      %3647 = vmatprep.subr.mxu0 0.0
      %3648 = vmatpush1.xpose.msra.mxu0 %v1695
      %3649 = vmatprep.subr.mxu0 0.0
      %3650 = vmatpush1.xpose.msra.mxu0 %v1698
      %3651 = vmatprep.subr.mxu0 0.0
      %3652 = vmatpush1.xpose.msra.mxu0 %v1701
      %3653 = vmatprep.subr.mxu0 0.0
      %3654 = vmatpush1.xpose.msra.mxu0 %v1704
      %3655 = vmatprep.subr.mxu0 0.0
      %3656 = vmatpush1.xpose.msra.mxu0 %v1707
      %3657 = vmatprep.subr.mxu0 0.0
      %3658 = vmatpush1.xpose.msra.mxu0 %v1710
      %3659 = vmatprep.subr.mxu0 0.0
      %3660 = vmatpush1.xpose.msra.mxu0 %v1713
      %3661 = vmatprep.subr.mxu0 0.0
      %3662 = vmatpush1.xpose.msra.mxu0 %v1716
      %3663 = vmatprep.subr.mxu0 0.0
      %3664 = vmatpush1.xpose.msra.mxu0 %v1719
      %3665 = vmatprep.subr.mxu0 0.0
      %3666 = vmatpush1.xpose.msra.mxu0 %v1722
      %3667 = vmatprep.subr.mxu0 0.0
      %3668 = vmatpush1.xpose.msra.mxu0 %v1725
      %3669 = vmatprep.subr.mxu0 0.0
      %3670 = vmatpush1.xpose.msra.mxu0 %v1728
      %3671 = vmatprep.subr.mxu0 0.0
      %3672 = vmatpush1.xpose.msra.mxu0 %v1731
      %3673 = vmatprep.subr.mxu0 0.0
      %3674 = vmatpush1.xpose.msra.mxu0 %v1734
      %3675 = vmatprep.subr.mxu0 0.0
      %3676 = vmatpush1.xpose.msra.mxu0 %v1737
      %3677 = vmatprep.subr.mxu0 0.0
      %3678 = vmatpush1.xpose.msra.mxu0 %v1740
      %3679 = vmatprep.subr.mxu0 0.0
      %3680 = vmatpush1.xpose.msra.mxu0 %v1743
      %3681 = vmatprep.subr.mxu0 0.0
      %3682 = vmatpush1.xpose.msra.mxu0 %v1746
      %3683 = vmatprep.subr.mxu0 0.0
      %3684 = vmatpush1.xpose.msra.mxu0 %v1749
      %3685 = vmatprep.subr.mxu0 0.0
      %3686 = vmatpush1.xpose.msra.mxu0 %v1752
      %3687 = vmatprep.subr.mxu0 0.0
      %3688 = vmatpush1.xpose.msra.mxu0 %v1755
      %3689 = vmatprep.subr.mxu0 0.0
      %3690 = vmatpush1.xpose.msra.mxu0 %v1758
      %3691 = vmatprep.subr.mxu0 0.0
      %3692 = vmatpush1.xpose.msra.mxu0 %v1761
      %3693 = vmatprep.subr.mxu0 0.0
      %3694 = vmatpush1.xpose.msra.mxu0 %v1764
      %3695 = vmatprep.subr.mxu0 0.0
      %3696 = vmatpush1.xpose.msra.mxu0 %v1767
      %3697 = vmatprep.mubr.f32.mxu0 0.0
      %3698 = vmatmul.mubr.f32.gmra.mrb[0].mxu0 %v903
      %v3699 = vpop.f32.mrb[0].mxu0
      %v3700 = vadd.f32 %v899, %v3699
      %v3701 = vpop.f32.mrb[0].mxu0
      %v3702 = vadd.f32 %v899, %v3701
      %3703 = vdwg.mxu0
      %3704 = vmatprep.subr.mxu0 0.0
      %3705 = vmatpush1.xpose.msra.mxu0 %v1770
      %3706 = vmatprep.subr.mxu0 0.0
      %3707 = vmatpush1.xpose.msra.mxu0 %v1773
      %3708 = vmatprep.subr.mxu0 0.0
      %3709 = vmatpush1.xpose.msra.mxu0 %v1776
      %3710 = vmatprep.subr.mxu0 0.0
      %3711 = vmatpush1.xpose.msra.mxu0 %v1779
      %3712 = vmatprep.subr.mxu0 0.0
      %3713 = vmatpush1.xpose.msra.mxu0 %v1782
      %3714 = vmatprep.subr.mxu0 0.0
      %3715 = vmatpush1.xpose.msra.mxu0 %v1785
      %3716 = vmatprep.subr.mxu0 0.0
      %3717 = vmatpush1.xpose.msra.mxu0 %v1788
      %3718 = vmatprep.subr.mxu0 0.0
      %3719 = vmatpush1.xpose.msra.mxu0 %v1791
      %3720 = vmatprep.subr.mxu0 0.0
      %3721 = vmatpush1.xpose.msra.mxu0 %v1794
      %3722 = vmatprep.subr.mxu0 0.0
      %3723 = vmatpush1.xpose.msra.mxu0 %v1797
      %3724 = vmatprep.subr.mxu0 0.0
      %3725 = vmatpush1.xpose.msra.mxu0 %v1800
      %3726 = vmatprep.subr.mxu0 0.0
      %3727 = vmatpush1.xpose.msra.mxu0 %v1803
      %3728 = vmatprep.subr.mxu0 0.0
      %3729 = vmatpush1.xpose.msra.mxu0 %v1806
      %3730 = vmatprep.subr.mxu0 0.0
      %3731 = vmatpush1.xpose.msra.mxu0 %v1809
      %3732 = vmatprep.subr.mxu0 0.0
      %3733 = vmatpush1.xpose.msra.mxu0 %v1812
      %3734 = vmatprep.subr.mxu0 0.0
      %3735 = vmatpush1.xpose.msra.mxu0 %v1815
      %3736 = vmatprep.subr.mxu0 0.0
      %3737 = vmatpush1.xpose.msra.mxu0 %v1818
      %3738 = vmatprep.subr.mxu0 0.0
      %3739 = vmatpush1.xpose.msra.mxu0 %v1821
      %3740 = vmatprep.subr.mxu0 0.0
      %3741 = vmatpush1.xpose.msra.mxu0 %v1824
      %3742 = vmatprep.subr.mxu0 0.0
      %3743 = vmatpush1.xpose.msra.mxu0 %v1827
      %3744 = vmatprep.subr.mxu0 0.0
      %3745 = vmatpush1.xpose.msra.mxu0 %v1830
      %3746 = vmatprep.subr.mxu0 0.0
      %3747 = vmatpush1.xpose.msra.mxu0 %v1833
      %3748 = vmatprep.subr.mxu0 0.0
      %3749 = vmatpush1.xpose.msra.mxu0 %v1836
      %3750 = vmatprep.subr.mxu0 0.0
      %3751 = vmatpush1.xpose.msra.mxu0 %v1839
      %3752 = vmatprep.subr.mxu0 0.0
      %3753 = vmatpush1.xpose.msra.mxu0 %v1842
      %3754 = vmatprep.subr.mxu0 0.0
      %3755 = vmatpush1.xpose.msra.mxu0 %v1845
      %3756 = vmatprep.subr.mxu0 0.0
      %3757 = vmatpush1.xpose.msra.mxu0 %v1848
      %3758 = vmatprep.subr.mxu0 0.0
      %3759 = vmatpush1.xpose.msra.mxu0 %v1851
      %3760 = vmatprep.subr.mxu0 0.0
      %3761 = vmatpush1.xpose.msra.mxu0 %v1854
      %3762 = vmatprep.subr.mxu0 0.0
      %3763 = vmatpush1.xpose.msra.mxu0 %v1857
      %3764 = vmatprep.subr.mxu0 0.0
      %3765 = vmatpush1.xpose.msra.mxu0 %v1860
      %3766 = vmatprep.subr.mxu0 0.0
      %3767 = vmatpush1.xpose.msra.mxu0 %v1863
      %3768 = vmatprep.mubr.f32.mxu0 0.0
      %3769 = vmatmul.mubr.f32.gmra.mrb[0].mxu0 %v903
      %v3770 = vpop.f32.mrb[0].mxu0
      %v3771 = vadd.f32 %v899, %v3770
      %v3772 = vpop.f32.mrb[0].mxu0
      %v3773 = vadd.f32 %v899, %v3772
      %3774 = vdwg.mxu0
      %3775 = vmatprep.subr.mxu0 0.0
      %3776 = vmatpush1.xpose.msra.mxu0 %v1866
      %3777 = vmatprep.subr.mxu0 0.0
      %3778 = vmatpush1.xpose.msra.mxu0 %v1869
      %3779 = vmatprep.subr.mxu0 0.0
      %3780 = vmatpush1.xpose.msra.mxu0 %v1872
      %3781 = vmatprep.subr.mxu0 0.0
      %3782 = vmatpush1.xpose.msra.mxu0 %v1875
      %3783 = vmatprep.subr.mxu0 0.0
      %3784 = vmatpush1.xpose.msra.mxu0 %v1878
      %3785 = vmatprep.subr.mxu0 0.0
      %3786 = vmatpush1.xpose.msra.mxu0 %v1881
      %3787 = vmatprep.subr.mxu0 0.0
      %3788 = vmatpush1.xpose.msra.mxu0 %v1884
      %3789 = vmatprep.subr.mxu0 0.0
      %3790 = vmatpush1.xpose.msra.mxu0 %v1887
      %3791 = vmatprep.subr.mxu0 0.0
      %3792 = vmatpush1.xpose.msra.mxu0 %v1890
      %3793 = vmatprep.subr.mxu0 0.0
      %3794 = vmatpush1.xpose.msra.mxu0 %v1893
      %3795 = vmatprep.subr.mxu0 0.0
      %3796 = vmatpush1.xpose.msra.mxu0 %v1896
      %3797 = vmatprep.subr.mxu0 0.0
      %3798 = vmatpush1.xpose.msra.mxu0 %v1899
      %3799 = vmatprep.subr.mxu0 0.0
      %3800 = vmatpush1.xpose.msra.mxu0 %v1902
      %3801 = vmatprep.subr.mxu0 0.0
      %3802 = vmatpush1.xpose.msra.mxu0 %v1905
      %3803 = vmatprep.subr.mxu0 0.0
      %3804 = vmatpush1.xpose.msra.mxu0 %v1908
      %3805 = vmatprep.subr.mxu0 0.0
      %3806 = vmatpush1.xpose.msra.mxu0 %v1911
      %3807 = vmatprep.subr.mxu0 0.0
      %3808 = vmatpush1.xpose.msra.mxu0 %v1914
      %3809 = vmatprep.subr.mxu0 0.0
      %3810 = vmatpush1.xpose.msra.mxu0 %v1917
      %3811 = vmatprep.subr.mxu0 0.0
      %3812 = vmatpush1.xpose.msra.mxu0 %v1920
      %3813 = vmatprep.subr.mxu0 0.0
      %3814 = vmatpush1.xpose.msra.mxu0 %v1923
      %3815 = vmatprep.subr.mxu0 0.0
      %3816 = vmatpush1.xpose.msra.mxu0 %v1926
      %3817 = vmatprep.subr.mxu0 0.0
      %3818 = vmatpush1.xpose.msra.mxu0 %v1929
      %3819 = vmatprep.subr.mxu0 0.0
      %3820 = vmatpush1.xpose.msra.mxu0 %v1932
      %3821 = vmatprep.subr.mxu0 0.0
      %3822 = vmatpush1.xpose.msra.mxu0 %v1935
      %3823 = vmatprep.subr.mxu0 0.0
      %3824 = vmatpush1.xpose.msra.mxu0 %v1938
      %3825 = vmatprep.subr.mxu0 0.0
      %3826 = vmatpush1.xpose.msra.mxu0 %v1941
      %3827 = vmatprep.subr.mxu0 0.0
      %3828 = vmatpush1.xpose.msra.mxu0 %v1944
      %3829 = vmatprep.subr.mxu0 0.0
      %3830 = vmatpush1.xpose.msra.mxu0 %v1947
      %3831 = vmatprep.subr.mxu0 0.0
      %3832 = vmatpush1.xpose.msra.mxu0 %v1950
      %3833 = vmatprep.subr.mxu0 0.0
      %3834 = vmatpush1.xpose.msra.mxu0 %v1953
      %3835 = vmatprep.subr.mxu0 0.0
      %3836 = vmatpush1.xpose.msra.mxu0 %v1956
      %3837 = vmatprep.subr.mxu0 0.0
      %3838 = vmatpush1.xpose.msra.mxu0 %v1959
      %3839 = vmatprep.mubr.f32.mxu0 0.0
      %3840 = vmatmul.mubr.f32.gmra.mrb[0].mxu0 %v903
      %v3841 = vpop.f32.mrb[0].mxu0
      %v3842 = vadd.f32 %v899, %v3841
      %v3843 = vpop.f32.mrb[0].mxu0
      %v3844 = vadd.f32 %v899, %v3843
      %3845 = vdwg.mxu0
      %3846 = vmatprep.subr.mxu0 0.0
      %3847 = vmatpush1.xpose.msra.mxu0 %v1962
      %3848 = vmatprep.subr.mxu0 0.0
      %3849 = vmatpush1.xpose.msra.mxu0 %v1965
      %3850 = vmatprep.subr.mxu0 0.0
      %3851 = vmatpush1.xpose.msra.mxu0 %v1968
      %3852 = vmatprep.subr.mxu0 0.0
      %3853 = vmatpush1.xpose.msra.mxu0 %v1971
      %3854 = vmatprep.subr.mxu0 0.0
      %3855 = vmatpush1.xpose.msra.mxu0 %v1974
      %3856 = vmatprep.subr.mxu0 0.0
      %3857 = vmatpush1.xpose.msra.mxu0 %v1977
      %3858 = vmatprep.subr.mxu0 0.0
      %3859 = vmatpush1.xpose.msra.mxu0 %v1980
      %3860 = vmatprep.subr.mxu0 0.0
      %3861 = vmatpush1.xpose.msra.mxu0 %v1983
      %3862 = vmatprep.subr.mxu0 0.0
      %3863 = vmatpush1.xpose.msra.mxu0 %v1986
      %3864 = vmatprep.subr.mxu0 0.0
      %3865 = vmatpush1.xpose.msra.mxu0 %v1989
      %3866 = vmatprep.subr.mxu0 0.0
      %3867 = vmatpush1.xpose.msra.mxu0 %v1992
      %3868 = vmatprep.subr.mxu0 0.0
      %3869 = vmatpush1.xpose.msra.mxu0 %v1995
      %3870 = vmatprep.subr.mxu0 0.0
      %3871 = vmatpush1.xpose.msra.mxu0 %v1998
      %3872 = vmatprep.subr.mxu0 0.0
      %3873 = vmatpush1.xpose.msra.mxu0 %v2001
      %3874 = vmatprep.subr.mxu0 0.0
      %3875 = vmatpush1.xpose.msra.mxu0 %v2004
      %3876 = vmatprep.subr.mxu0 0.0
      %3877 = vmatpush1.xpose.msra.mxu0 %v2007
      %3878 = vmatprep.subr.mxu0 0.0
      %3879 = vmatpush1.xpose.msra.mxu0 %v2010
      %3880 = vmatprep.subr.mxu0 0.0
      %3881 = vmatpush1.xpose.msra.mxu0 %v2013
      %3882 = vmatprep.subr.mxu0 0.0
      %3883 = vmatpush1.xpose.msra.mxu0 %v2016
      %3884 = vmatprep.subr.mxu0 0.0
      %3885 = vmatpush1.xpose.msra.mxu0 %v2019
      %3886 = vmatprep.subr.mxu0 0.0
      %3887 = vmatpush1.xpose.msra.mxu0 %v2022
      %3888 = vmatprep.subr.mxu0 0.0
      %3889 = vmatpush1.xpose.msra.mxu0 %v2025
      %3890 = vmatprep.subr.mxu0 0.0
      %3891 = vmatpush1.xpose.msra.mxu0 %v2028
      %3892 = vmatprep.subr.mxu0 0.0
      %3893 = vmatpush1.xpose.msra.mxu0 %v2031
      %3894 = vmatprep.subr.mxu0 0.0
      %3895 = vmatpush1.xpose.msra.mxu0 %v2034
      %3896 = vmatprep.subr.mxu0 0.0
      %3897 = vmatpush1.xpose.msra.mxu0 %v2037
      %3898 = vmatprep.subr.mxu0 0.0
      %3899 = vmatpush1.xpose.msra.mxu0 %v2040
      %3900 = vmatprep.subr.mxu0 0.0
      %3901 = vmatpush1.xpose.msra.mxu0 %v2043
      %3902 = vmatprep.subr.mxu0 0.0
      %3903 = vmatpush1.xpose.msra.mxu0 %v2046
      %3904 = vmatprep.subr.mxu0 0.0
      %3905 = vmatpush1.xpose.msra.mxu0 %v2049
      %3906 = vmatprep.subr.mxu0 0.0
      %3907 = vmatpush1.xpose.msra.mxu0 %v2052
      %3908 = vmatprep.subr.mxu0 0.0
      %3909 = vmatpush1.xpose.msra.mxu0 %v2055
      %3910 = vmatprep.mubr.f32.mxu0 0.0
      %3911 = vmatmul.mubr.f32.gmra.mrb[0].mxu0 %v903
      %v3912 = vpop.f32.mrb[0].mxu0
      %v3913 = vadd.f32 %v899, %v3912
      %v3914 = vpop.f32.mrb[0].mxu0
      %v3915 = vadd.f32 %v899, %v3914
      %3916 = vdwg.mxu0
      %3917 = vmatprep.subr.mxu0 0.0
      %3918 = vmatpush1.xpose.msra.mxu0 %v2058
      %3919 = vmatprep.subr.mxu0 0.0
      %3920 = vmatpush1.xpose.msra.mxu0 %v2061
      %3921 = vmatprep.subr.mxu0 0.0
      %3922 = vmatpush1.xpose.msra.mxu0 %v2064
      %3923 = vmatprep.subr.mxu0 0.0
      %3924 = vmatpush1.xpose.msra.mxu0 %v2067
      %3925 = vmatprep.subr.mxu0 0.0
      %3926 = vmatpush1.xpose.msra.mxu0 %v2070
      %3927 = vmatprep.subr.mxu0 0.0
      %3928 = vmatpush1.xpose.msra.mxu0 %v2073
      %3929 = vmatprep.subr.mxu0 0.0
      %3930 = vmatpush1.xpose.msra.mxu0 %v2076
      %3931 = vmatprep.subr.mxu0 0.0
      %3932 = vmatpush1.xpose.msra.mxu0 %v2079
      %3933 = vmatprep.subr.mxu0 0.0
      %3934 = vmatpush1.xpose.msra.mxu0 %v2082
      %3935 = vmatprep.subr.mxu0 0.0
      %3936 = vmatpush1.xpose.msra.mxu0 %v2085
      %3937 = vmatprep.subr.mxu0 0.0
      %3938 = vmatpush1.xpose.msra.mxu0 %v2088
      %3939 = vmatprep.subr.mxu0 0.0
      %3940 = vmatpush1.xpose.msra.mxu0 %v2091
      %3941 = vmatprep.subr.mxu0 0.0
      %3942 = vmatpush1.xpose.msra.mxu0 %v2094
      %3943 = vmatprep.subr.mxu0 0.0
      %3944 = vmatpush1.xpose.msra.mxu0 %v2097
      %3945 = vmatprep.subr.mxu0 0.0
      %3946 = vmatpush1.xpose.msra.mxu0 %v2100
      %3947 = vmatprep.subr.mxu0 0.0
      %3948 = vmatpush1.xpose.msra.mxu0 %v2103
      %3949 = vmatprep.subr.mxu0 0.0
      %3950 = vmatpush1.xpose.msra.mxu0 %v2106
      %3951 = vmatprep.subr.mxu0 0.0
      %3952 = vmatpush1.xpose.msra.mxu0 %v2109
      %3953 = vmatprep.subr.mxu0 0.0
      %3954 = vmatpush1.xpose.msra.mxu0 %v2112
      %3955 = vmatprep.subr.mxu0 0.0
      %3956 = vmatpush1.xpose.msra.mxu0 %v2115
      %3957 = vmatprep.subr.mxu0 0.0
      %3958 = vmatpush1.xpose.msra.mxu0 %v2118
      %3959 = vmatprep.subr.mxu0 0.0
      %3960 = vmatpush1.xpose.msra.mxu0 %v2121
      %3961 = vmatprep.subr.mxu0 0.0
      %3962 = vmatpush1.xpose.msra.mxu0 %v2124
      %3963 = vmatprep.subr.mxu0 0.0
      %3964 = vmatpush1.xpose.msra.mxu0 %v2127
      %3965 = vmatprep.subr.mxu0 0.0
      %3966 = vmatpush1.xpose.msra.mxu0 %v2130
      %3967 = vmatprep.subr.mxu0 0.0
      %3968 = vmatpush1.xpose.msra.mxu0 %v2133
      %3969 = vmatprep.subr.mxu0 0.0
      %3970 = vmatpush1.xpose.msra.mxu0 %v2136
      %3971 = vmatprep.subr.mxu0 0.0
      %3972 = vmatpush1.xpose.msra.mxu0 %v2139
      %3973 = vmatprep.subr.mxu0 0.0
      %3974 = vmatpush1.xpose.msra.mxu0 %v2142
      %3975 = vmatprep.subr.mxu0 0.0
      %3976 = vmatpush1.xpose.msra.mxu0 %v2145
      %3977 = vmatprep.subr.mxu0 0.0
      %3978 = vmatpush1.xpose.msra.mxu0 %v2148
      %3979 = vmatprep.subr.mxu0 0.0
      %3980 = vmatpush1.xpose.msra.mxu0 %v2151
      %3981 = vmatprep.mubr.f32.mxu0 0.0
      %3982 = vmatmul.mubr.f32.gmra.mrb[0].mxu0 %v903
      %v3983 = vpop.f32.mrb[0].mxu0
      %v3984 = vadd.f32 %v899, %v3983
      %v3985 = vpop.f32.mrb[0].mxu0
      %v3986 = vadd.f32 %v899, %v3985
      %3987 = vdwg.mxu0
      %3988 = vmatprep.subr.mxu0 0.0
      %3989 = vmatpush1.xpose.msra.mxu0 %v2154
      %3990 = vmatprep.subr.mxu0 0.0
      %3991 = vmatpush1.xpose.msra.mxu0 %v2157
      %3992 = vmatprep.subr.mxu0 0.0
      %3993 = vmatpush1.xpose.msra.mxu0 %v2160
      %3994 = vmatprep.subr.mxu0 0.0
      %3995 = vmatpush1.xpose.msra.mxu0 %v2163
      %3996 = vmatprep.subr.mxu0 0.0
      %3997 = vmatpush1.xpose.msra.mxu0 %v2166
      %3998 = vmatprep.subr.mxu0 0.0
      %3999 = vmatpush1.xpose.msra.mxu0 %v2169
      %4000 = vmatprep.subr.mxu0 0.0
      %4001 = vmatpush1.xpose.msra.mxu0 %v2172
      %4002 = vmatprep.subr.mxu0 0.0
      %4003 = vmatpush1.xpose.msra.mxu0 %v2175
      %4004 = vmatprep.subr.mxu0 0.0
      %4005 = vmatpush1.xpose.msra.mxu0 %v2178
      %4006 = vmatprep.subr.mxu0 0.0
      %4007 = vmatpush1.xpose.msra.mxu0 %v2181
      %4008 = vmatprep.subr.mxu0 0.0
      %4009 = vmatpush1.xpose.msra.mxu0 %v2184
      %4010 = vmatprep.subr.mxu0 0.0
      %4011 = vmatpush1.xpose.msra.mxu0 %v2187
      %4012 = vmatprep.subr.mxu0 0.0
      %4013 = vmatpush1.xpose.msra.mxu0 %v2190
      %4014 = vmatprep.subr.mxu0 0.0
      %4015 = vmatpush1.xpose.msra.mxu0 %v2193
      %4016 = vmatprep.subr.mxu0 0.0
      %4017 = vmatpush1.xpose.msra.mxu0 %v2196
      %4018 = vmatprep.subr.mxu0 0.0
      %4019 = vmatpush1.xpose.msra.mxu0 %v2199
      %4020 = vmatprep.subr.mxu0 0.0
      %4021 = vmatpush1.xpose.msra.mxu0 %v2202
      %4022 = vmatprep.subr.mxu0 0.0
      %4023 = vmatpush1.xpose.msra.mxu0 %v2205
      %4024 = vmatprep.subr.mxu0 0.0
      %4025 = vmatpush1.xpose.msra.mxu0 %v2208
      %4026 = vmatprep.subr.mxu0 0.0
      %4027 = vmatpush1.xpose.msra.mxu0 %v2211
      %4028 = vmatprep.subr.mxu0 0.0
      %4029 = vmatpush1.xpose.msra.mxu0 %v2214
      %4030 = vmatprep.subr.mxu0 0.0
      %4031 = vmatpush1.xpose.msra.mxu0 %v2217
      %4032 = vmatprep.subr.mxu0 0.0
      %4033 = vmatpush1.xpose.msra.mxu0 %v2220
      %4034 = vmatprep.subr.mxu0 0.0
      %4035 = vmatpush1.xpose.msra.mxu0 %v2223
      %4036 = vmatprep.subr.mxu0 0.0
      %4037 = vmatpush1.xpose.msra.mxu0 %v2226
      %4038 = vmatprep.subr.mxu0 0.0
      %4039 = vmatpush1.xpose.msra.mxu0 %v2229
      %4040 = vmatprep.subr.mxu0 0.0
      %4041 = vmatpush1.xpose.msra.mxu0 %v2232
      %4042 = vmatprep.subr.mxu0 0.0
      %4043 = vmatpush1.xpose.msra.mxu0 %v2235
      %4044 = vmatprep.subr.mxu0 0.0
      %4045 = vmatpush1.xpose.msra.mxu0 %v2238
      %4046 = vmatprep.subr.mxu0 0.0
      %4047 = vmatpush1.xpose.msra.mxu0 %v2241
      %4048 = vmatprep.subr.mxu0 0.0
      %4049 = vmatpush1.xpose.msra.mxu0 %v2244
      %4050 = vmatprep.subr.mxu0 0.0
      %4051 = vmatpush1.xpose.msra.mxu0 %v2247
      %4052 = vmatprep.mubr.f32.mxu0 0.0
      %4053 = vmatmul.mubr.f32.gmra.mrb[0].mxu0 %v903
      %v4054 = vpop.f32.mrb[0].mxu0
      %v4055 = vadd.f32 %v899, %v4054
      %v4056 = vpop.f32.mrb[0].mxu0
      %v4057 = vadd.f32 %v899, %v4056
      %4058 = vdwg.mxu0
      %4059 = vmatprep.subr.mxu0 0.0
      %4060 = vmatpush1.xpose.msra.mxu0 %v2250
      %4061 = vmatprep.subr.mxu0 0.0
      %4062 = vmatpush1.xpose.msra.mxu0 %v2253
      %4063 = vmatprep.subr.mxu0 0.0
      %4064 = vmatpush1.xpose.msra.mxu0 %v2256
      %4065 = vmatprep.subr.mxu0 0.0
      %4066 = vmatpush1.xpose.msra.mxu0 %v2259
      %4067 = vmatprep.subr.mxu0 0.0
      %4068 = vmatpush1.xpose.msra.mxu0 %v2262
      %4069 = vmatprep.subr.mxu0 0.0
      %4070 = vmatpush1.xpose.msra.mxu0 %v2265
      %4071 = vmatprep.subr.mxu0 0.0
      %4072 = vmatpush1.xpose.msra.mxu0 %v2268
      %4073 = vmatprep.subr.mxu0 0.0
      %4074 = vmatpush1.xpose.msra.mxu0 %v2271
      %4075 = vmatprep.subr.mxu0 0.0
      %4076 = vmatpush1.xpose.msra.mxu0 %v2274
      %4077 = vmatprep.subr.mxu0 0.0
      %4078 = vmatpush1.xpose.msra.mxu0 %v2277
      %4079 = vmatprep.subr.mxu0 0.0
      %4080 = vmatpush1.xpose.msra.mxu0 %v2280
      %4081 = vmatprep.subr.mxu0 0.0
      %4082 = vmatpush1.xpose.msra.mxu0 %v2283
      %4083 = vmatprep.subr.mxu0 0.0
      %4084 = vmatpush1.xpose.msra.mxu0 %v2286
      %4085 = vmatprep.subr.mxu0 0.0
      %4086 = vmatpush1.xpose.msra.mxu0 %v2289
      %4087 = vmatprep.subr.mxu0 0.0
      %4088 = vmatpush1.xpose.msra.mxu0 %v2292
      %4089 = vmatprep.subr.mxu0 0.0
      %4090 = vmatpush1.xpose.msra.mxu0 %v2295
      %4091 = vmatprep.subr.mxu0 0.0
      %4092 = vmatpush1.xpose.msra.mxu0 %v2298
      %4093 = vmatprep.subr.mxu0 0.0
      %4094 = vmatpush1.xpose.msra.mxu0 %v2301
      %4095 = vmatprep.subr.mxu0 0.0
      %4096 = vmatpush1.xpose.msra.mxu0 %v2304
      %4097 = vmatprep.subr.mxu0 0.0
      %4098 = vmatpush1.xpose.msra.mxu0 %v2307
      %4099 = vmatprep.subr.mxu0 0.0
      %4100 = vmatpush1.xpose.msra.mxu0 %v2310
      %4101 = vmatprep.subr.mxu0 0.0
      %4102 = vmatpush1.xpose.msra.mxu0 %v2313
      %4103 = vmatprep.subr.mxu0 0.0
      %4104 = vmatpush1.xpose.msra.mxu0 %v2316
      %4105 = vmatprep.subr.mxu0 0.0
      %4106 = vmatpush1.xpose.msra.mxu0 %v2319
      %4107 = vmatprep.subr.mxu0 0.0
      %4108 = vmatpush1.xpose.msra.mxu0 %v2322
      %4109 = vmatprep.subr.mxu0 0.0
      %4110 = vmatpush1.xpose.msra.mxu0 %v2325
      %4111 = vmatprep.subr.mxu0 0.0
      %4112 = vmatpush1.xpose.msra.mxu0 %v2328
      %4113 = vmatprep.subr.mxu0 0.0
      %4114 = vmatpush1.xpose.msra.mxu0 %v2331
      %4115 = vmatprep.subr.mxu0 0.0
      %4116 = vmatpush1.xpose.msra.mxu0 %v2334
      %4117 = vmatprep.subr.mxu0 0.0
      %4118 = vmatpush1.xpose.msra.mxu0 %v2337
      %4119 = vmatprep.subr.mxu0 0.0
      %4120 = vmatpush1.xpose.msra.mxu0 %v2340
      %4121 = vmatprep.subr.mxu0 0.0
      %4122 = vmatpush1.xpose.msra.mxu0 %v2343
      %4123 = vmatprep.mubr.f32.mxu0 0.0
      %4124 = vmatmul.mubr.f32.gmra.mrb[0].mxu0 %v903
      %v4125 = vpop.f32.mrb[0].mxu0
      %v4126 = vadd.f32 %v899, %v4125
      %v4127 = vpop.f32.mrb[0].mxu0
      %v4128 = vadd.f32 %v899, %v4127
      %4129 = vdwg.mxu0
      %4130 = vmatprep.subr.mxu0 0.0
      %4131 = vmatpush1.xpose.msra.mxu0 %v2346
      %4132 = vmatprep.subr.mxu0 0.0
      %4133 = vmatpush1.xpose.msra.mxu0 %v2349
      %4134 = vmatprep.subr.mxu0 0.0
      %4135 = vmatpush1.xpose.msra.mxu0 %v2352
      %4136 = vmatprep.subr.mxu0 0.0
      %4137 = vmatpush1.xpose.msra.mxu0 %v2355
      %4138 = vmatprep.subr.mxu0 0.0
      %4139 = vmatpush1.xpose.msra.mxu0 %v2358
      %4140 = vmatprep.subr.mxu0 0.0
      %4141 = vmatpush1.xpose.msra.mxu0 %v2361
      %4142 = vmatprep.subr.mxu0 0.0
      %4143 = vmatpush1.xpose.msra.mxu0 %v2364
      %4144 = vmatprep.subr.mxu0 0.0
      %4145 = vmatpush1.xpose.msra.mxu0 %v2367
      %4146 = vmatprep.subr.mxu0 0.0
      %4147 = vmatpush1.xpose.msra.mxu0 %v2370
      %4148 = vmatprep.subr.mxu0 0.0
      %4149 = vmatpush1.xpose.msra.mxu0 %v2373
      %4150 = vmatprep.subr.mxu0 0.0
      %4151 = vmatpush1.xpose.msra.mxu0 %v2376
      %4152 = vmatprep.subr.mxu0 0.0
      %4153 = vmatpush1.xpose.msra.mxu0 %v2379
      %4154 = vmatprep.subr.mxu0 0.0
      %4155 = vmatpush1.xpose.msra.mxu0 %v2382
      %4156 = vmatprep.subr.mxu0 0.0
      %4157 = vmatpush1.xpose.msra.mxu0 %v2385
      %4158 = vmatprep.subr.mxu0 0.0
      %4159 = vmatpush1.xpose.msra.mxu0 %v2388
      %4160 = vmatprep.subr.mxu0 0.0
      %4161 = vmatpush1.xpose.msra.mxu0 %v2391
      %4162 = vmatprep.subr.mxu0 0.0
      %4163 = vmatpush1.xpose.msra.mxu0 %v2394
      %4164 = vmatprep.subr.mxu0 0.0
      %4165 = vmatpush1.xpose.msra.mxu0 %v2397
      %4166 = vmatprep.subr.mxu0 0.0
      %4167 = vmatpush1.xpose.msra.mxu0 %v2400
      %4168 = vmatprep.subr.mxu0 0.0
      %4169 = vmatpush1.xpose.msra.mxu0 %v2403
      %4170 = vmatprep.subr.mxu0 0.0
      %4171 = vmatpush1.xpose.msra.mxu0 %v2406
      %4172 = vmatprep.subr.mxu0 0.0
      %4173 = vmatpush1.xpose.msra.mxu0 %v2409
      %4174 = vmatprep.subr.mxu0 0.0
      %4175 = vmatpush1.xpose.msra.mxu0 %v2412
      %4176 = vmatprep.subr.mxu0 0.0
      %4177 = vmatpush1.xpose.msra.mxu0 %v2415
      %4178 = vmatprep.subr.mxu0 0.0
      %4179 = vmatpush1.xpose.msra.mxu0 %v2418
      %4180 = vmatprep.subr.mxu0 0.0
      %4181 = vmatpush1.xpose.msra.mxu0 %v2421
      %4182 = vmatprep.subr.mxu0 0.0
      %4183 = vmatpush1.xpose.msra.mxu0 %v2424
      %4184 = vmatprep.subr.mxu0 0.0
      %4185 = vmatpush1.xpose.msra.mxu0 %v2427
      %4186 = vmatprep.subr.mxu0 0.0
      %4187 = vmatpush1.xpose.msra.mxu0 %v2430
      %4188 = vmatprep.subr.mxu0 0.0
      %4189 = vmatpush1.xpose.msra.mxu0 %v2433
      %4190 = vmatprep.subr.mxu0 0.0
      %4191 = vmatpush1.xpose.msra.mxu0 %v2436
      %4192 = vmatprep.subr.mxu0 0.0
      %4193 = vmatpush1.xpose.msra.mxu0 %v2439
      %4194 = vmatprep.mubr.f32.mxu0 0.0
      %4195 = vmatmul.mubr.f32.gmra.mrb[0].mxu0 %v903
      %v4196 = vpop.f32.mrb[0].mxu0
      %v4197 = vadd.f32 %v899, %v4196
      %v4198 = vpop.f32.mrb[0].mxu0
      %v4199 = vadd.f32 %v899, %v4198
      %4200 = vdwg.mxu0
      %4201 = vmatprep.subr.mxu0 0.0
      %4202 = vmatpush1.xpose.msra.mxu0 %v2442
      %4203 = vmatprep.subr.mxu0 0.0
      %4204 = vmatpush1.xpose.msra.mxu0 %v2445
      %4205 = vmatprep.subr.mxu0 0.0
      %4206 = vmatpush1.xpose.msra.mxu0 %v2448
      %4207 = vmatprep.subr.mxu0 0.0
      %4208 = vmatpush1.xpose.msra.mxu0 %v2451
      %4209 = vmatprep.subr.mxu0 0.0
      %4210 = vmatpush1.xpose.msra.mxu0 %v2454
      %4211 = vmatprep.subr.mxu0 0.0
      %4212 = vmatpush1.xpose.msra.mxu0 %v2457
      %4213 = vmatprep.subr.mxu0 0.0
      %4214 = vmatpush1.xpose.msra.mxu0 %v2460
      %4215 = vmatprep.subr.mxu0 0.0
      %4216 = vmatpush1.xpose.msra.mxu0 %v2463
      %4217 = vmatprep.subr.mxu0 0.0
      %4218 = vmatpush1.xpose.msra.mxu0 %v2466
      %4219 = vmatprep.subr.mxu0 0.0
      %4220 = vmatpush1.xpose.msra.mxu0 %v2469
      %4221 = vmatprep.subr.mxu0 0.0
      %4222 = vmatpush1.xpose.msra.mxu0 %v2472
      %4223 = vmatprep.subr.mxu0 0.0
      %4224 = vmatpush1.xpose.msra.mxu0 %v2475
      %4225 = vmatprep.subr.mxu0 0.0
      %4226 = vmatpush1.xpose.msra.mxu0 %v2478
      %4227 = vmatprep.subr.mxu0 0.0
      %4228 = vmatpush1.xpose.msra.mxu0 %v2481
      %4229 = vmatprep.subr.mxu0 0.0
      %4230 = vmatpush1.xpose.msra.mxu0 %v2484
      %4231 = vmatprep.subr.mxu0 0.0
      %4232 = vmatpush1.xpose.msra.mxu0 %v2487
      %4233 = vmatprep.subr.mxu0 0.0
      %4234 = vmatpush1.xpose.msra.mxu0 %v2490
      %4235 = vmatprep.subr.mxu0 0.0
      %4236 = vmatpush1.xpose.msra.mxu0 %v2493
      %4237 = vmatprep.subr.mxu0 0.0
      %4238 = vmatpush1.xpose.msra.mxu0 %v2496
      %4239 = vmatprep.subr.mxu0 0.0
      %4240 = vmatpush1.xpose.msra.mxu0 %v2499
      %4241 = vmatprep.subr.mxu0 0.0
      %4242 = vmatpush1.xpose.msra.mxu0 %v2502
      %4243 = vmatprep.subr.mxu0 0.0
      %4244 = vmatpush1.xpose.msra.mxu0 %v2505
      %4245 = vmatprep.subr.mxu0 0.0
      %4246 = vmatpush1.xpose.msra.mxu0 %v2508
      %4247 = vmatprep.subr.mxu0 0.0
      %4248 = vmatpush1.xpose.msra.mxu0 %v2511
      %4249 = vmatprep.subr.mxu0 0.0
      %4250 = vmatpush1.xpose.msra.mxu0 %v2514
      %4251 = vmatprep.subr.mxu0 0.0
      %4252 = vmatpush1.xpose.msra.mxu0 %v2517
      %4253 = vmatprep.subr.mxu0 0.0
      %4254 = vmatpush1.xpose.msra.mxu0 %v2520
      %4255 = vmatprep.subr.mxu0 0.0
      %4256 = vmatpush1.xpose.msra.mxu0 %v2523
      %4257 = vmatprep.subr.mxu0 0.0
      %4258 = vmatpush1.xpose.msra.mxu0 %v2526
      %4259 = vmatprep.subr.mxu0 0.0
      %4260 = vmatpush1.xpose.msra.mxu0 %v2529
      %4261 = vmatprep.subr.mxu0 0.0
      %4262 = vmatpush1.xpose.msra.mxu0 %v2532
      %4263 = vmatprep.subr.mxu0 0.0
      %4264 = vmatpush1.xpose.msra.mxu0 %v2535
      %4265 = vmatprep.mubr.f32.mxu0 0.0
      %4266 = vmatmul.mubr.f32.gmra.mrb[0].mxu0 %v903
      %v4267 = vpop.f32.mrb[0].mxu0
      %v4268 = vadd.f32 %v899, %v4267
      %v4269 = vpop.f32.mrb[0].mxu0
      %v4270 = vadd.f32 %v899, %v4269
      %4271 = vdwg.mxu0
      %4272 = vmatprep.subr.mxu0 0.0
      %4273 = vmatpush1.xpose.msra.mxu0 %v2538
      %4274 = vmatprep.subr.mxu0 0.0
      %4275 = vmatpush1.xpose.msra.mxu0 %v2541
      %4276 = vmatprep.subr.mxu0 0.0
      %4277 = vmatpush1.xpose.msra.mxu0 %v2544
      %4278 = vmatprep.subr.mxu0 0.0
      %4279 = vmatpush1.xpose.msra.mxu0 %v2547
      %4280 = vmatprep.subr.mxu0 0.0
      %4281 = vmatpush1.xpose.msra.mxu0 %v2550
      %4282 = vmatprep.subr.mxu0 0.0
      %4283 = vmatpush1.xpose.msra.mxu0 %v2553
      %4284 = vmatprep.subr.mxu0 0.0
      %4285 = vmatpush1.xpose.msra.mxu0 %v2556
      %4286 = vmatprep.subr.mxu0 0.0
      %4287 = vmatpush1.xpose.msra.mxu0 %v2559
      %4288 = vmatprep.subr.mxu0 0.0
      %4289 = vmatpush1.xpose.msra.mxu0 %v2562
      %4290 = vmatprep.subr.mxu0 0.0
      %4291 = vmatpush1.xpose.msra.mxu0 %v2565
      %4292 = vmatprep.subr.mxu0 0.0
      %4293 = vmatpush1.xpose.msra.mxu0 %v2568
      %4294 = vmatprep.subr.mxu0 0.0
      %4295 = vmatpush1.xpose.msra.mxu0 %v2571
      %4296 = vmatprep.subr.mxu0 0.0
      %4297 = vmatpush1.xpose.msra.mxu0 %v2574
      %4298 = vmatprep.subr.mxu0 0.0
      %4299 = vmatpush1.xpose.msra.mxu0 %v2577
      %4300 = vmatprep.subr.mxu0 0.0
      %4301 = vmatpush1.xpose.msra.mxu0 %v2580
      %4302 = vmatprep.subr.mxu0 0.0
      %4303 = vmatpush1.xpose.msra.mxu0 %v2583
      %4304 = vmatprep.subr.mxu0 0.0
      %4305 = vmatpush1.xpose.msra.mxu0 %v2586
      %4306 = vmatprep.subr.mxu0 0.0
      %4307 = vmatpush1.xpose.msra.mxu0 %v2589
      %4308 = vmatprep.subr.mxu0 0.0
      %4309 = vmatpush1.xpose.msra.mxu0 %v2592
      %4310 = vmatprep.subr.mxu0 0.0
      %4311 = vmatpush1.xpose.msra.mxu0 %v2595
      %4312 = vmatprep.subr.mxu0 0.0
      %4313 = vmatpush1.xpose.msra.mxu0 %v2598
      %4314 = vmatprep.subr.mxu0 0.0
      %4315 = vmatpush1.xpose.msra.mxu0 %v2601
      %4316 = vmatprep.subr.mxu0 0.0
      %4317 = vmatpush1.xpose.msra.mxu0 %v2604
      %4318 = vmatprep.subr.mxu0 0.0
      %4319 = vmatpush1.xpose.msra.mxu0 %v2607
      %4320 = vmatprep.subr.mxu0 0.0
      %4321 = vmatpush1.xpose.msra.mxu0 %v2610
      %4322 = vmatprep.subr.mxu0 0.0
      %4323 = vmatpush1.xpose.msra.mxu0 %v2613
      %4324 = vmatprep.subr.mxu0 0.0
      %4325 = vmatpush1.xpose.msra.mxu0 %v2616
      %4326 = vmatprep.subr.mxu0 0.0
      %4327 = vmatpush1.xpose.msra.mxu0 %v2619
      %4328 = vmatprep.subr.mxu0 0.0
      %4329 = vmatpush1.xpose.msra.mxu0 %v2622
      %4330 = vmatprep.subr.mxu0 0.0
      %4331 = vmatpush1.xpose.msra.mxu0 %v2625
      %4332 = vmatprep.subr.mxu0 0.0
      %4333 = vmatpush1.xpose.msra.mxu0 %v2628
      %4334 = vmatprep.subr.mxu0 0.0
      %4335 = vmatpush1.xpose.msra.mxu0 %v2631
      %4336 = vmatprep.mubr.f32.mxu0 0.0
      %4337 = vmatmul.mubr.f32.gmra.mrb[0].mxu0 %v903
      %v4338 = vpop.f32.mrb[0].mxu0
      %v4339 = vadd.f32 %v899, %v4338
      %v4340 = vpop.f32.mrb[0].mxu0
      %v4341 = vadd.f32 %v899, %v4340
      %4342 = vdwg.mxu0
      %4343 = vmatprep.subr.mxu0 0.0
      %4344 = vmatpush1.xpose.msra.mxu0 %v2634
      %4345 = vmatprep.subr.mxu0 0.0
      %4346 = vmatpush1.xpose.msra.mxu0 %v2637
      %4347 = vmatprep.subr.mxu0 0.0
      %4348 = vmatpush1.xpose.msra.mxu0 %v2640
      %4349 = vmatprep.subr.mxu0 0.0
      %4350 = vmatpush1.xpose.msra.mxu0 %v2643
      %4351 = vmatprep.subr.mxu0 0.0
      %4352 = vmatpush1.xpose.msra.mxu0 %v2646
      %4353 = vmatprep.subr.mxu0 0.0
      %4354 = vmatpush1.xpose.msra.mxu0 %v2649
      %4355 = vmatprep.subr.mxu0 0.0
      %4356 = vmatpush1.xpose.msra.mxu0 %v2652
      %4357 = vmatprep.subr.mxu0 0.0
      %4358 = vmatpush1.xpose.msra.mxu0 %v2655
      %4359 = vmatprep.subr.mxu0 0.0
      %4360 = vmatpush1.xpose.msra.mxu0 %v2658
      %4361 = vmatprep.subr.mxu0 0.0
      %4362 = vmatpush1.xpose.msra.mxu0 %v2661
      %4363 = vmatprep.subr.mxu0 0.0
      %4364 = vmatpush1.xpose.msra.mxu0 %v2664
      %4365 = vmatprep.subr.mxu0 0.0
      %4366 = vmatpush1.xpose.msra.mxu0 %v2667
      %4367 = vmatprep.subr.mxu0 0.0
      %4368 = vmatpush1.xpose.msra.mxu0 %v2670
      %4369 = vmatprep.subr.mxu0 0.0
      %4370 = vmatpush1.xpose.msra.mxu0 %v2673
      %4371 = vmatprep.subr.mxu0 0.0
      %4372 = vmatpush1.xpose.msra.mxu0 %v2676
      %4373 = vmatprep.subr.mxu0 0.0
      %4374 = vmatpush1.xpose.msra.mxu0 %v2679
      %4375 = vmatprep.subr.mxu0 0.0
      %4376 = vmatpush1.xpose.msra.mxu0 %v2682
      %4377 = vmatprep.subr.mxu0 0.0
      %4378 = vmatpush1.xpose.msra.mxu0 %v2685
      %4379 = vmatprep.subr.mxu0 0.0
      %4380 = vmatpush1.xpose.msra.mxu0 %v2688
      %4381 = vmatprep.subr.mxu0 0.0
      %4382 = vmatpush1.xpose.msra.mxu0 %v2691
      %4383 = vmatprep.subr.mxu0 0.0
      %4384 = vmatpush1.xpose.msra.mxu0 %v2694
      %4385 = vmatprep.subr.mxu0 0.0
      %4386 = vmatpush1.xpose.msra.mxu0 %v2697
      %4387 = vmatprep.subr.mxu0 0.0
      %4388 = vmatpush1.xpose.msra.mxu0 %v2700
      %4389 = vmatprep.subr.mxu0 0.0
      %4390 = vmatpush1.xpose.msra.mxu0 %v2703
      %4391 = vmatprep.subr.mxu0 0.0
      %4392 = vmatpush1.xpose.msra.mxu0 %v2706
      %4393 = vmatprep.subr.mxu0 0.0
      %4394 = vmatpush1.xpose.msra.mxu0 %v2709
      %4395 = vmatprep.subr.mxu0 0.0
      %4396 = vmatpush1.xpose.msra.mxu0 %v2712
      %4397 = vmatprep.subr.mxu0 0.0
      %4398 = vmatpush1.xpose.msra.mxu0 %v2715
      %4399 = vmatprep.subr.mxu0 0.0
      %4400 = vmatpush1.xpose.msra.mxu0 %v2718
      %4401 = vmatprep.subr.mxu0 0.0
      %4402 = vmatpush1.xpose.msra.mxu0 %v2721
      %4403 = vmatprep.subr.mxu0 0.0
      %4404 = vmatpush1.xpose.msra.mxu0 %v2724
      %4405 = vmatprep.subr.mxu0 0.0
      %4406 = vmatpush1.xpose.msra.mxu0 %v2727
      %4407 = vmatprep.mubr.f32.mxu0 0.0
      %4408 = vmatmul.mubr.f32.gmra.mrb[0].mxu0 %v903
      %v4409 = vpop.f32.mrb[0].mxu0
      %v4410 = vadd.f32 %v899, %v4409
      %v4411 = vpop.f32.mrb[0].mxu0
      %v4412 = vadd.f32 %v899, %v4411
      %4413 = vdwg.mxu0
      %4414 = vmatprep.subr.mxu0 0.0
      %4415 = vmatpush1.xpose.msra.mxu0 %v2730
      %4416 = vmatprep.subr.mxu0 0.0
      %4417 = vmatpush1.xpose.msra.mxu0 %v2733
      %4418 = vmatprep.subr.mxu0 0.0
      %4419 = vmatpush1.xpose.msra.mxu0 %v2736
      %4420 = vmatprep.subr.mxu0 0.0
      %4421 = vmatpush1.xpose.msra.mxu0 %v2739
      %4422 = vmatprep.subr.mxu0 0.0
      %4423 = vmatpush1.xpose.msra.mxu0 %v2742
      %4424 = vmatprep.subr.mxu0 0.0
      %4425 = vmatpush1.xpose.msra.mxu0 %v2745
      %4426 = vmatprep.subr.mxu0 0.0
      %4427 = vmatpush1.xpose.msra.mxu0 %v2748
      %4428 = vmatprep.subr.mxu0 0.0
      %4429 = vmatpush1.xpose.msra.mxu0 %v2751
      %4430 = vmatprep.subr.mxu0 0.0
      %4431 = vmatpush1.xpose.msra.mxu0 %v2754
      %4432 = vmatprep.subr.mxu0 0.0
      %4433 = vmatpush1.xpose.msra.mxu0 %v2757
      %4434 = vmatprep.subr.mxu0 0.0
      %4435 = vmatpush1.xpose.msra.mxu0 %v2760
      %4436 = vmatprep.subr.mxu0 0.0
      %4437 = vmatpush1.xpose.msra.mxu0 %v2763
      %4438 = vmatprep.subr.mxu0 0.0
      %4439 = vmatpush1.xpose.msra.mxu0 %v2766
      %4440 = vmatprep.subr.mxu0 0.0
      %4441 = vmatpush1.xpose.msra.mxu0 %v2769
      %4442 = vmatprep.subr.mxu0 0.0
      %4443 = vmatpush1.xpose.msra.mxu0 %v2772
      %4444 = vmatprep.subr.mxu0 0.0
      %4445 = vmatpush1.xpose.msra.mxu0 %v2775
      %4446 = vmatprep.subr.mxu0 0.0
      %4447 = vmatpush1.xpose.msra.mxu0 %v2778
      %4448 = vmatprep.subr.mxu0 0.0
      %4449 = vmatpush1.xpose.msra.mxu0 %v2781
      %4450 = vmatprep.subr.mxu0 0.0
      %4451 = vmatpush1.xpose.msra.mxu0 %v2784
      %4452 = vmatprep.subr.mxu0 0.0
      %4453 = vmatpush1.xpose.msra.mxu0 %v2787
      %4454 = vmatprep.subr.mxu0 0.0
      %4455 = vmatpush1.xpose.msra.mxu0 %v2790
      %4456 = vmatprep.subr.mxu0 0.0
      %4457 = vmatpush1.xpose.msra.mxu0 %v2793
      %4458 = vmatprep.subr.mxu0 0.0
      %4459 = vmatpush1.xpose.msra.mxu0 %v2796
      %4460 = vmatprep.subr.mxu0 0.0
      %4461 = vmatpush1.xpose.msra.mxu0 %v2799
      %4462 = vmatprep.subr.mxu0 0.0
      %4463 = vmatpush1.xpose.msra.mxu0 %v2802
      %4464 = vmatprep.subr.mxu0 0.0
      %4465 = vmatpush1.xpose.msra.mxu0 %v2805
      %4466 = vmatprep.subr.mxu0 0.0
      %4467 = vmatpush1.xpose.msra.mxu0 %v2808
      %4468 = vmatprep.subr.mxu0 0.0
      %4469 = vmatpush1.xpose.msra.mxu0 %v2811
      %4470 = vmatprep.subr.mxu0 0.0
      %4471 = vmatpush1.xpose.msra.mxu0 %v2814
      %4472 = vmatprep.subr.mxu0 0.0
      %4473 = vmatpush1.xpose.msra.mxu0 %v2817
      %4474 = vmatprep.subr.mxu0 0.0
      %4475 = vmatpush1.xpose.msra.mxu0 %v2820
      %4476 = vmatprep.subr.mxu0 0.0
      %4477 = vmatpush1.xpose.msra.mxu0 %v2823
      %4478 = vmatprep.mubr.f32.mxu0 0.0
      %4479 = vmatmul.mubr.f32.gmra.mrb[0].mxu0 %v903
      %v4480 = vpop.f32.mrb[0].mxu0
      %v4481 = vadd.f32 %v899, %v4480
      %v4482 = vpop.f32.mrb[0].mxu0
      %v4483 = vadd.f32 %v899, %v4482
      %4484 = vdwg.mxu0
      %4485 = vmatprep.subr.mxu0 0.0
      %4486 = vmatpush1.xpose.msra.mxu0 %v2826
      %4487 = vmatprep.subr.mxu0 0.0
      %4488 = vmatpush1.xpose.msra.mxu0 %v2829
      %4489 = vmatprep.subr.mxu0 0.0
      %4490 = vmatpush1.xpose.msra.mxu0 %v2832
      %4491 = vmatprep.subr.mxu0 0.0
      %4492 = vmatpush1.xpose.msra.mxu0 %v2835
      %4493 = vmatprep.subr.mxu0 0.0
      %4494 = vmatpush1.xpose.msra.mxu0 %v2838
      %4495 = vmatprep.subr.mxu0 0.0
      %4496 = vmatpush1.xpose.msra.mxu0 %v2841
      %4497 = vmatprep.subr.mxu0 0.0
      %4498 = vmatpush1.xpose.msra.mxu0 %v2844
      %4499 = vmatprep.subr.mxu0 0.0
      %4500 = vmatpush1.xpose.msra.mxu0 %v2847
      %4501 = vmatprep.subr.mxu0 0.0
      %4502 = vmatpush1.xpose.msra.mxu0 %v2850
      %4503 = vmatprep.subr.mxu0 0.0
      %4504 = vmatpush1.xpose.msra.mxu0 %v2853
      %4505 = vmatprep.subr.mxu0 0.0
      %4506 = vmatpush1.xpose.msra.mxu0 %v2856
      %4507 = vmatprep.subr.mxu0 0.0
      %4508 = vmatpush1.xpose.msra.mxu0 %v2859
      %4509 = vmatprep.subr.mxu0 0.0
      %4510 = vmatpush1.xpose.msra.mxu0 %v2862
      %4511 = vmatprep.subr.mxu0 0.0
      %4512 = vmatpush1.xpose.msra.mxu0 %v2865
      %4513 = vmatprep.subr.mxu0 0.0
      %4514 = vmatpush1.xpose.msra.mxu0 %v2868
      %4515 = vmatprep.subr.mxu0 0.0
      %4516 = vmatpush1.xpose.msra.mxu0 %v2871
      %4517 = vmatprep.subr.mxu0 0.0
      %4518 = vmatpush1.xpose.msra.mxu0 %v2874
      %4519 = vmatprep.subr.mxu0 0.0
      %4520 = vmatpush1.xpose.msra.mxu0 %v2877
      %4521 = vmatprep.subr.mxu0 0.0
      %4522 = vmatpush1.xpose.msra.mxu0 %v2880
      %4523 = vmatprep.subr.mxu0 0.0
      %4524 = vmatpush1.xpose.msra.mxu0 %v2883
      %4525 = vmatprep.subr.mxu0 0.0
      %4526 = vmatpush1.xpose.msra.mxu0 %v2886
      %4527 = vmatprep.subr.mxu0 0.0
      %4528 = vmatpush1.xpose.msra.mxu0 %v2889
      %4529 = vmatprep.subr.mxu0 0.0
      %4530 = vmatpush1.xpose.msra.mxu0 %v2892
      %4531 = vmatprep.subr.mxu0 0.0
      %4532 = vmatpush1.xpose.msra.mxu0 %v2895
      %4533 = vmatprep.subr.mxu0 0.0
      %4534 = vmatpush1.xpose.msra.mxu0 %v2898
      %4535 = vmatprep.subr.mxu0 0.0
      %4536 = vmatpush1.xpose.msra.mxu0 %v2901
      %4537 = vmatprep.subr.mxu0 0.0
      %4538 = vmatpush1.xpose.msra.mxu0 %v2904
      %4539 = vmatprep.subr.mxu0 0.0
      %4540 = vmatpush1.xpose.msra.mxu0 %v2907
      %4541 = vmatprep.subr.mxu0 0.0
      %4542 = vmatpush1.xpose.msra.mxu0 %v2910
      %4543 = vmatprep.subr.mxu0 0.0
      %4544 = vmatpush1.xpose.msra.mxu0 %v2913
      %4545 = vmatprep.subr.mxu0 0.0
      %4546 = vmatpush1.xpose.msra.mxu0 %v2916
      %4547 = vmatprep.subr.mxu0 0.0
      %4548 = vmatpush1.xpose.msra.mxu0 %v2919
      %4549 = vmatprep.mubr.f32.mxu0 0.0
      %4550 = vmatmul.mubr.f32.gmra.mrb[0].mxu0 %v903
      %v4551 = vpop.f32.mrb[0].mxu0
      %v4552 = vadd.f32 %v899, %v4551
      %v4553 = vpop.f32.mrb[0].mxu0
      %v4554 = vadd.f32 %v899, %v4553
      %4555 = vdwg.mxu0
      %4556 = vmatprep.subr.mxu0 0.0
      %4557 = vmatpush1.xpose.msra.mxu0 %v2922
      %4558 = vmatprep.subr.mxu0 0.0
      %4559 = vmatpush1.xpose.msra.mxu0 %v2925
      %4560 = vmatprep.subr.mxu0 0.0
      %4561 = vmatpush1.xpose.msra.mxu0 %v2928
      %4562 = vmatprep.subr.mxu0 0.0
      %4563 = vmatpush1.xpose.msra.mxu0 %v2931
      %4564 = vmatprep.subr.mxu0 0.0
      %4565 = vmatpush1.xpose.msra.mxu0 %v2934
      %4566 = vmatprep.subr.mxu0 0.0
      %4567 = vmatpush1.xpose.msra.mxu0 %v2937
      %4568 = vmatprep.subr.mxu0 0.0
      %4569 = vmatpush1.xpose.msra.mxu0 %v2940
      %4570 = vmatprep.subr.mxu0 0.0
      %4571 = vmatpush1.xpose.msra.mxu0 %v2943
      %4572 = vmatprep.subr.mxu0 0.0
      %4573 = vmatpush1.xpose.msra.mxu0 %v2946
      %4574 = vmatprep.subr.mxu0 0.0
      %4575 = vmatpush1.xpose.msra.mxu0 %v2949
      %4576 = vmatprep.subr.mxu0 0.0
      %4577 = vmatpush1.xpose.msra.mxu0 %v2952
      %4578 = vmatprep.subr.mxu0 0.0
      %4579 = vmatpush1.xpose.msra.mxu0 %v2955
      %4580 = vmatprep.subr.mxu0 0.0
      %4581 = vmatpush1.xpose.msra.mxu0 %v2958
      %4582 = vmatprep.subr.mxu0 0.0
      %4583 = vmatpush1.xpose.msra.mxu0 %v2961
      %4584 = vmatprep.subr.mxu0 0.0
      %4585 = vmatpush1.xpose.msra.mxu0 %v2964
      %4586 = vmatprep.subr.mxu0 0.0
      %4587 = vmatpush1.xpose.msra.mxu0 %v2967
      %4588 = vmatprep.subr.mxu0 0.0
      %4589 = vmatpush1.xpose.msra.mxu0 %v2970
      %4590 = vmatprep.subr.mxu0 0.0
      %4591 = vmatpush1.xpose.msra.mxu0 %v2973
      %4592 = vmatprep.subr.mxu0 0.0
      %4593 = vmatpush1.xpose.msra.mxu0 %v2976
      %4594 = vmatprep.subr.mxu0 0.0
      %4595 = vmatpush1.xpose.msra.mxu0 %v2979
      %4596 = vmatprep.subr.mxu0 0.0
      %4597 = vmatpush1.xpose.msra.mxu0 %v2982
      %4598 = vmatprep.subr.mxu0 0.0
      %4599 = vmatpush1.xpose.msra.mxu0 %v2985
      %4600 = vmatprep.subr.mxu0 0.0
      %4601 = vmatpush1.xpose.msra.mxu0 %v2988
      %4602 = vmatprep.subr.mxu0 0.0
      %4603 = vmatpush1.xpose.msra.mxu0 %v2991
      %4604 = vmatprep.subr.mxu0 0.0
      %4605 = vmatpush1.xpose.msra.mxu0 %v2994
      %4606 = vmatprep.subr.mxu0 0.0
      %4607 = vmatpush1.xpose.msra.mxu0 %v2997
      %4608 = vmatprep.subr.mxu0 0.0
      %4609 = vmatpush1.xpose.msra.mxu0 %v3000
      %4610 = vmatprep.subr.mxu0 0.0
      %4611 = vmatpush1.xpose.msra.mxu0 %v3003
      %4612 = vmatprep.subr.mxu0 0.0
      %4613 = vmatpush1.xpose.msra.mxu0 %v3006
      %4614 = vmatprep.subr.mxu0 0.0
      %4615 = vmatpush1.xpose.msra.mxu0 %v3009
      %4616 = vmatprep.subr.mxu0 0.0
      %4617 = vmatpush1.xpose.msra.mxu0 %v3012
      %4618 = vmatprep.subr.mxu0 0.0
      %4619 = vmatpush1.xpose.msra.mxu0 %v3015
      %4620 = vmatprep.mubr.f32.mxu0 0.0
      %4621 = vmatmul.mubr.f32.gmra.mrb[0].mxu0 %v903
      %v4622 = vpop.f32.mrb[0].mxu0
      %v4623 = vadd.f32 %v899, %v4622
      %v4624 = vpop.f32.mrb[0].mxu0
      %v4625 = vadd.f32 %v899, %v4624
      %4626 = vdwg.mxu0
      %4627 = vmatprep.subr.mxu0 0.0
      %4628 = vmatpush1.xpose.msra.mxu0 %v3018
      %4629 = vmatprep.subr.mxu0 0.0
      %4630 = vmatpush1.xpose.msra.mxu0 %v3021
      %4631 = vmatprep.subr.mxu0 0.0
      %4632 = vmatpush1.xpose.msra.mxu0 %v3024
      %4633 = vmatprep.subr.mxu0 0.0
      %4634 = vmatpush1.xpose.msra.mxu0 %v3027
      %4635 = vmatprep.subr.mxu0 0.0
      %4636 = vmatpush1.xpose.msra.mxu0 %v3030
      %4637 = vmatprep.subr.mxu0 0.0
      %4638 = vmatpush1.xpose.msra.mxu0 %v3033
      %4639 = vmatprep.subr.mxu0 0.0
      %4640 = vmatpush1.xpose.msra.mxu0 %v3036
      %4641 = vmatprep.subr.mxu0 0.0
      %4642 = vmatpush1.xpose.msra.mxu0 %v3039
      %4643 = vmatprep.subr.mxu0 0.0
      %4644 = vmatpush1.xpose.msra.mxu0 %v3042
      %4645 = vmatprep.subr.mxu0 0.0
      %4646 = vmatpush1.xpose.msra.mxu0 %v3045
      %4647 = vmatprep.subr.mxu0 0.0
      %4648 = vmatpush1.xpose.msra.mxu0 %v3048
      %4649 = vmatprep.subr.mxu0 0.0
      %4650 = vmatpush1.xpose.msra.mxu0 %v3051
      %4651 = vmatprep.subr.mxu0 0.0
      %4652 = vmatpush1.xpose.msra.mxu0 %v3054
      %4653 = vmatprep.subr.mxu0 0.0
      %4654 = vmatpush1.xpose.msra.mxu0 %v3057
      %4655 = vmatprep.subr.mxu0 0.0
      %4656 = vmatpush1.xpose.msra.mxu0 %v3060
      %4657 = vmatprep.subr.mxu0 0.0
      %4658 = vmatpush1.xpose.msra.mxu0 %v3063
      %4659 = vmatprep.subr.mxu0 0.0
      %4660 = vmatpush1.xpose.msra.mxu0 0.0
      %4661 = vmatprep.subr.mxu0 0.0
      %4662 = vmatpush1.xpose.msra.mxu0 0.0
      %4663 = vmatprep.subr.mxu0 0.0
      %4664 = vmatpush1.xpose.msra.mxu0 0.0
      %4665 = vmatprep.subr.mxu0 0.0
      %4666 = vmatpush1.xpose.msra.mxu0 0.0
      %4667 = vmatprep.subr.mxu0 0.0
      %4668 = vmatpush1.xpose.msra.mxu0 0.0
      %4669 = vmatprep.subr.mxu0 0.0
      %4670 = vmatpush1.xpose.msra.mxu0 0.0
      %4671 = vmatprep.subr.mxu0 0.0
      %4672 = vmatpush1.xpose.msra.mxu0 0.0
      %4673 = vmatprep.subr.mxu0 0.0
      %4674 = vmatpush1.xpose.msra.mxu0 0.0
      %4675 = vmatprep.subr.mxu0 0.0
      %4676 = vmatpush1.xpose.msra.mxu0 0.0
      %4677 = vmatprep.subr.mxu0 0.0
      %4678 = vmatpush1.xpose.msra.mxu0 0.0
      %4679 = vmatprep.subr.mxu0 0.0
      %4680 = vmatpush1.xpose.msra.mxu0 0.0
      %4681 = vmatprep.subr.mxu0 0.0
      %4682 = vmatpush1.xpose.msra.mxu0 0.0
      %4683 = vmatprep.subr.mxu0 0.0
      %4684 = vmatpush1.xpose.msra.mxu0 0.0
      %4685 = vmatprep.subr.mxu0 0.0
      %4686 = vmatpush1.xpose.msra.mxu0 0.0
      %4687 = vmatprep.subr.mxu0 0.0
      %4688 = vmatpush1.xpose.msra.mxu0 0.0
      %4689 = vmatprep.subr.mxu0 0.0
      %4690 = vmatpush1.xpose.msra.mxu0 0.0
      %4691 = vmatprep.mubr.f32.mxu0 0.0
      %4692 = vmatmul.mubr.f32.gmra.mrb[0].mxu0 %v903
      %v4693 = vpop.f32.mrb[0].mxu0
      %v4694 = vadd.f32 %v899, %v4693
      %v4695 = vpop.f32.mrb[0].mxu0
      %4696 = vdwg.mxu0
      %v4697 = vrot.slane %v3132, 4
      %v4698 = vmax.f32 %v3132, %v4697
      %v4699 = vrot.slane %v4698, 2
      %v4700 = vmax.f32 %v4698, %v4699
      %v4701 = vrot.slane %v4700, 1
      %v4702 = vmax.f32 %v4700, %v4701
      %v4703 = vrot.slane %v3134, 4
      %v4704 = vmax.f32 %v3134, %v4703
      %v4705 = vrot.slane %v4704, 2
      %v4706 = vmax.f32 %v4704, %v4705
      %v4707 = vrot.slane %v4706, 1
      %v4708 = vmax.f32 %v4706, %v4707
      %v4709 = vrot.slane %v3203, 4
      %v4710 = vmax.f32 %v3203, %v4709
      %v4711 = vrot.slane %v4710, 2
      %v4712 = vmax.f32 %v4710, %v4711
      %v4713 = vrot.slane %v4712, 1
      %v4714 = vmax.f32 %v4712, %v4713
      %v4715 = vrot.slane %v3205, 4
      %v4716 = vmax.f32 %v3205, %v4715
      %v4717 = vrot.slane %v4716, 2
      %v4718 = vmax.f32 %v4716, %v4717
      %v4719 = vrot.slane %v4718, 1
      %v4720 = vmax.f32 %v4718, %v4719
      %v4721 = vrot.slane %v3274, 4
      %v4722 = vmax.f32 %v3274, %v4721
      %v4723 = vrot.slane %v4722, 2
      %v4724 = vmax.f32 %v4722, %v4723
      %v4725 = vrot.slane %v4724, 1
      %v4726 = vmax.f32 %v4724, %v4725
      %v4727 = vrot.slane %v3276, 4
      %v4728 = vmax.f32 %v3276, %v4727
      %v4729 = vrot.slane %v4728, 2
      %v4730 = vmax.f32 %v4728, %v4729
      %v4731 = vrot.slane %v4730, 1
      %v4732 = vmax.f32 %v4730, %v4731
      %v4733 = vrot.slane %v3345, 4
      %v4734 = vmax.f32 %v3345, %v4733
      %v4735 = vrot.slane %v4734, 2
      %v4736 = vmax.f32 %v4734, %v4735
      %v4737 = vrot.slane %v4736, 1
      %v4738 = vmax.f32 %v4736, %v4737
      %v4739 = vrot.slane %v3347, 4
      %v4740 = vmax.f32 %v3347, %v4739
      %v4741 = vrot.slane %v4740, 2
      %v4742 = vmax.f32 %v4740, %v4741
      %v4743 = vrot.slane %v4742, 1
      %v4744 = vmax.f32 %v4742, %v4743
      %v4745 = vrot.slane %v3416, 4
      %v4746 = vmax.f32 %v3416, %v4745
      %v4747 = vrot.slane %v4746, 2
      %v4748 = vmax.f32 %v4746, %v4747
      %v4749 = vrot.slane %v4748, 1
      %v4750 = vmax.f32 %v4748, %v4749
      %v4751 = vrot.slane %v3418, 4
      %v4752 = vmax.f32 %v3418, %v4751
      %v4753 = vrot.slane %v4752, 2
      %v4754 = vmax.f32 %v4752, %v4753
      %v4755 = vrot.slane %v4754, 1
      %v4756 = vmax.f32 %v4754, %v4755
      %v4757 = vrot.slane %v3487, 4
      %v4758 = vmax.f32 %v3487, %v4757
      %v4759 = vrot.slane %v4758, 2
      %v4760 = vmax.f32 %v4758, %v4759
      %v4761 = vrot.slane %v4760, 1
      %v4762 = vmax.f32 %v4760, %v4761
      %v4763 = vrot.slane %v3489, 4
      %v4764 = vmax.f32 %v3489, %v4763
      %v4765 = vrot.slane %v4764, 2
      %v4766 = vmax.f32 %v4764, %v4765
      %v4767 = vrot.slane %v4766, 1
      %v4768 = vmax.f32 %v4766, %v4767
      %v4769 = vrot.slane %v3558, 4
      %v4770 = vmax.f32 %v3558, %v4769
      %v4771 = vrot.slane %v4770, 2
      %v4772 = vmax.f32 %v4770, %v4771
      %v4773 = vrot.slane %v4772, 1
      %v4774 = vmax.f32 %v4772, %v4773
      %v4775 = vrot.slane %v3560, 4
      %v4776 = vmax.f32 %v3560, %v4775
      %v4777 = vrot.slane %v4776, 2
      %v4778 = vmax.f32 %v4776, %v4777
      %v4779 = vrot.slane %v4778, 1
      %v4780 = vmax.f32 %v4778, %v4779
      %v4781 = vrot.slane %v3629, 4
      %v4782 = vmax.f32 %v3629, %v4781
      %v4783 = vrot.slane %v4782, 2
      %v4784 = vmax.f32 %v4782, %v4783
      %v4785 = vrot.slane %v4784, 1
      %v4786 = vmax.f32 %v4784, %v4785
      %v4787 = vrot.slane %v3631, 4
      %v4788 = vmax.f32 %v3631, %v4787
      %v4789 = vrot.slane %v4788, 2
      %v4790 = vmax.f32 %v4788, %v4789
      %v4791 = vrot.slane %v4790, 1
      %v4792 = vmax.f32 %v4790, %v4791
      %v4793 = vrot.slane %v3700, 4
      %v4794 = vmax.f32 %v3700, %v4793
      %v4795 = vrot.slane %v4794, 2
      %v4796 = vmax.f32 %v4794, %v4795
      %v4797 = vrot.slane %v4796, 1
      %v4798 = vmax.f32 %v4796, %v4797
      %v4799 = vrot.slane %v3702, 4
      %v4800 = vmax.f32 %v3702, %v4799
      %v4801 = vrot.slane %v4800, 2
      %v4802 = vmax.f32 %v4800, %v4801
      %v4803 = vrot.slane %v4802, 1
      %v4804 = vmax.f32 %v4802, %v4803
      %v4805 = vrot.slane %v3771, 4
      %v4806 = vmax.f32 %v3771, %v4805
      %v4807 = vrot.slane %v4806, 2
      %v4808 = vmax.f32 %v4806, %v4807
      %v4809 = vrot.slane %v4808, 1
      %v4810 = vmax.f32 %v4808, %v4809
      %v4811 = vrot.slane %v3773, 4
      %v4812 = vmax.f32 %v3773, %v4811
      %v4813 = vrot.slane %v4812, 2
      %v4814 = vmax.f32 %v4812, %v4813
      %v4815 = vrot.slane %v4814, 1
      %v4816 = vmax.f32 %v4814, %v4815
      %v4817 = vrot.slane %v3842, 4
      %v4818 = vmax.f32 %v3842, %v4817
      %v4819 = vrot.slane %v4818, 2
      %v4820 = vmax.f32 %v4818, %v4819
      %v4821 = vrot.slane %v4820, 1
      %v4822 = vmax.f32 %v4820, %v4821
      %v4823 = vrot.slane %v3844, 4
      %v4824 = vmax.f32 %v3844, %v4823
      %v4825 = vrot.slane %v4824, 2
      %v4826 = vmax.f32 %v4824, %v4825
      %v4827 = vrot.slane %v4826, 1
      %v4828 = vmax.f32 %v4826, %v4827
      %v4829 = vrot.slane %v3913, 4
      %v4830 = vmax.f32 %v3913, %v4829
      %v4831 = vrot.slane %v4830, 2
      %v4832 = vmax.f32 %v4830, %v4831
      %v4833 = vrot.slane %v4832, 1
      %v4834 = vmax.f32 %v4832, %v4833
      %v4835 = vrot.slane %v3915, 4
      %v4836 = vmax.f32 %v3915, %v4835
      %v4837 = vrot.slane %v4836, 2
      %v4838 = vmax.f32 %v4836, %v4837
      %v4839 = vrot.slane %v4838, 1
      %v4840 = vmax.f32 %v4838, %v4839
      %v4841 = vrot.slane %v3984, 4
      %v4842 = vmax.f32 %v3984, %v4841
      %v4843 = vrot.slane %v4842, 2
      %v4844 = vmax.f32 %v4842, %v4843
      %v4845 = vrot.slane %v4844, 1
      %v4846 = vmax.f32 %v4844, %v4845
      %v4847 = vrot.slane %v3986, 4
      %v4848 = vmax.f32 %v3986, %v4847
      %v4849 = vrot.slane %v4848, 2
      %v4850 = vmax.f32 %v4848, %v4849
      %v4851 = vrot.slane %v4850, 1
      %v4852 = vmax.f32 %v4850, %v4851
      %v4853 = vrot.slane %v4055, 4
      %v4854 = vmax.f32 %v4055, %v4853
      %v4855 = vrot.slane %v4854, 2
      %v4856 = vmax.f32 %v4854, %v4855
      %v4857 = vrot.slane %v4856, 1
      %v4858 = vmax.f32 %v4856, %v4857
      %v4859 = vrot.slane %v4057, 4
      %v4860 = vmax.f32 %v4057, %v4859
      %v4861 = vrot.slane %v4860, 2
      %v4862 = vmax.f32 %v4860, %v4861
      %v4863 = vrot.slane %v4862, 1
      %v4864 = vmax.f32 %v4862, %v4863
      %v4865 = vrot.slane %v4126, 4
      %v4866 = vmax.f32 %v4126, %v4865
      %v4867 = vrot.slane %v4866, 2
      %v4868 = vmax.f32 %v4866, %v4867
      %v4869 = vrot.slane %v4868, 1
      %v4870 = vmax.f32 %v4868, %v4869
      %v4871 = vrot.slane %v4128, 4
      %v4872 = vmax.f32 %v4128, %v4871
      %v4873 = vrot.slane %v4872, 2
      %v4874 = vmax.f32 %v4872, %v4873
      %v4875 = vrot.slane %v4874, 1
      %v4876 = vmax.f32 %v4874, %v4875
      %v4877 = vrot.slane %v4197, 4
      %v4878 = vmax.f32 %v4197, %v4877
      %v4879 = vrot.slane %v4878, 2
      %v4880 = vmax.f32 %v4878, %v4879
      %v4881 = vrot.slane %v4880, 1
      %v4882 = vmax.f32 %v4880, %v4881
      %v4883 = vrot.slane %v4199, 4
      %v4884 = vmax.f32 %v4199, %v4883
      %v4885 = vrot.slane %v4884, 2
      %v4886 = vmax.f32 %v4884, %v4885
      %v4887 = vrot.slane %v4886, 1
      %v4888 = vmax.f32 %v4886, %v4887
      %v4889 = vrot.slane %v4268, 4
      %v4890 = vmax.f32 %v4268, %v4889
      %v4891 = vrot.slane %v4890, 2
      %v4892 = vmax.f32 %v4890, %v4891
      %v4893 = vrot.slane %v4892, 1
      %v4894 = vmax.f32 %v4892, %v4893
      %v4895 = vrot.slane %v4270, 4
      %v4896 = vmax.f32 %v4270, %v4895
      %v4897 = vrot.slane %v4896, 2
      %v4898 = vmax.f32 %v4896, %v4897
      %v4899 = vrot.slane %v4898, 1
      %v4900 = vmax.f32 %v4898, %v4899
      %v4901 = vrot.slane %v4339, 4
      %v4902 = vmax.f32 %v4339, %v4901
      %v4903 = vrot.slane %v4902, 2
      %v4904 = vmax.f32 %v4902, %v4903
      %v4905 = vrot.slane %v4904, 1
      %v4906 = vmax.f32 %v4904, %v4905
      %v4907 = vrot.slane %v4341, 4
      %v4908 = vmax.f32 %v4341, %v4907
      %v4909 = vrot.slane %v4908, 2
      %v4910 = vmax.f32 %v4908, %v4909
      %v4911 = vrot.slane %v4910, 1
      %v4912 = vmax.f32 %v4910, %v4911
      %v4913 = vrot.slane %v4410, 4
      %v4914 = vmax.f32 %v4410, %v4913
      %v4915 = vrot.slane %v4914, 2
      %v4916 = vmax.f32 %v4914, %v4915
      %v4917 = vrot.slane %v4916, 1
      %v4918 = vmax.f32 %v4916, %v4917
      %v4919 = vrot.slane %v4412, 4
      %v4920 = vmax.f32 %v4412, %v4919
      %v4921 = vrot.slane %v4920, 2
      %v4922 = vmax.f32 %v4920, %v4921
      %v4923 = vrot.slane %v4922, 1
      %v4924 = vmax.f32 %v4922, %v4923
      %v4925 = vrot.slane %v4481, 4
      %v4926 = vmax.f32 %v4481, %v4925
      %v4927 = vrot.slane %v4926, 2
      %v4928 = vmax.f32 %v4926, %v4927
      %v4929 = vrot.slane %v4928, 1
      %v4930 = vmax.f32 %v4928, %v4929
      %v4931 = vrot.slane %v4483, 4
      %v4932 = vmax.f32 %v4483, %v4931
      %v4933 = vrot.slane %v4932, 2
      %v4934 = vmax.f32 %v4932, %v4933
      %v4935 = vrot.slane %v4934, 1
      %v4936 = vmax.f32 %v4934, %v4935
      %v4937 = vrot.slane %v4552, 4
      %v4938 = vmax.f32 %v4552, %v4937
      %v4939 = vrot.slane %v4938, 2
      %v4940 = vmax.f32 %v4938, %v4939
      %v4941 = vrot.slane %v4940, 1
      %v4942 = vmax.f32 %v4940, %v4941
      %v4943 = vrot.slane %v4554, 4
      %v4944 = vmax.f32 %v4554, %v4943
      %v4945 = vrot.slane %v4944, 2
      %v4946 = vmax.f32 %v4944, %v4945
      %v4947 = vrot.slane %v4946, 1
      %v4948 = vmax.f32 %v4946, %v4947
      %v4949 = vrot.slane %v4623, 4
      %v4950 = vmax.f32 %v4623, %v4949
      %v4951 = vrot.slane %v4950, 2
      %v4952 = vmax.f32 %v4950, %v4951
      %v4953 = vrot.slane %v4952, 1
      %v4954 = vmax.f32 %v4952, %v4953
      %v4955 = vrot.slane %v4625, 4
      %v4956 = vmax.f32 %v4625, %v4955
      %v4957 = vrot.slane %v4956, 2
      %v4958 = vmax.f32 %v4956, %v4957
      %v4959 = vrot.slane %v4958, 1
      %v4960 = vmax.f32 %v4958, %v4959
      %v4961 = vrot.slane %v4694, 4
      %v4962 = vmax.f32 %v4694, %v4961
      %v4963 = vrot.slane %v4962, 2
      %v4964 = vmax.f32 %v4962, %v4963
      %v4965 = vrot.slane %v4964, 1
      %v4966 = vmax.f32 %v4964, %v4965
      %v4967 = vsub.f32 %v3132, %v4702
      %v4968 = vsub.f32 %v3134, %v4708
      %v4969 = vsub.f32 %v3203, %v4714
      %v4970 = vsub.f32 %v3205, %v4720
      %v4971 = vsub.f32 %v3274, %v4726
      %v4972 = vsub.f32 %v3276, %v4732
      %v4973 = vsub.f32 %v3345, %v4738
      %v4974 = vsub.f32 %v3347, %v4744
      %v4975 = vsub.f32 %v3416, %v4750
      %v4976 = vsub.f32 %v3418, %v4756
      %v4977 = vsub.f32 %v3487, %v4762
      %v4978 = vsub.f32 %v3489, %v4768
      %v4979 = vsub.f32 %v3558, %v4774
      %v4980 = vsub.f32 %v3560, %v4780
      %v4981 = vsub.f32 %v3629, %v4786
      %v4982 = vsub.f32 %v3631, %v4792
      %v4983 = vsub.f32 %v3700, %v4798
      %v4984 = vsub.f32 %v3702, %v4804
      %v4985 = vsub.f32 %v3771, %v4810
      %v4986 = vsub.f32 %v3773, %v4816
      %v4987 = vsub.f32 %v3842, %v4822
      %v4988 = vsub.f32 %v3844, %v4828
      %v4989 = vsub.f32 %v3913, %v4834
      %v4990 = vsub.f32 %v3915, %v4840
      %v4991 = vsub.f32 %v3984, %v4846
      %v4992 = vsub.f32 %v3986, %v4852
      %v4993 = vsub.f32 %v4055, %v4858
      %v4994 = vsub.f32 %v4057, %v4864
      %v4995 = vsub.f32 %v4126, %v4870
      %v4996 = vsub.f32 %v4128, %v4876
      %v4997 = vsub.f32 %v4197, %v4882
      %v4998 = vsub.f32 %v4199, %v4888
      %v4999 = vsub.f32 %v4268, %v4894
      %v5000 = vsub.f32 %v4270, %v4900
      %v5001 = vsub.f32 %v4339, %v4906
      %v5002 = vsub.f32 %v4341, %v4912
      %v5003 = vsub.f32 %v4410, %v4918
      %v5004 = vsub.f32 %v4412, %v4924
      %v5005 = vsub.f32 %v4481, %v4930
      %v5006 = vsub.f32 %v4483, %v4936
      %v5007 = vsub.f32 %v4552, %v4942
      %v5008 = vsub.f32 %v4554, %v4948
      %v5009 = vsub.f32 %v4623, %v4954
      %v5010 = vsub.f32 %v4625, %v4960
      %v5011 = vsub.f32 %v4694, %v4966
      %v5012 = vmul.f32 %v4967, 1.442695
      %v5013 = vpow.pop %v5012
      %v5014 = vmul.f32 %v4968, 1.442695
      %v5015 = vpow.pop %v5014
      %v5016 = vmul.f32 %v4969, 1.442695
      %v5017 = vpow.pop %v5016
      %v5018 = vmul.f32 %v4970, 1.442695
      %v5019 = vpow.pop %v5018
      %v5020 = vmul.f32 %v4971, 1.442695
      %v5021 = vpow.pop %v5020
      %v5022 = vmul.f32 %v4972, 1.442695
      %v5023 = vpow.pop %v5022
      %v5024 = vmul.f32 %v4973, 1.442695
      %v5025 = vpow.pop %v5024
      %v5026 = vmul.f32 %v4974, 1.442695
      %v5027 = vpow.pop %v5026
      %v5028 = vmul.f32 %v4975, 1.442695
      %v5029 = vpow.pop %v5028
      %v5030 = vmul.f32 %v4976, 1.442695
      %v5031 = vpow.pop %v5030
      %v5032 = vmul.f32 %v4977, 1.442695
      %v5033 = vpow.pop %v5032
      %v5034 = vmul.f32 %v4978, 1.442695
      %v5035 = vpow.pop %v5034
      %v5036 = vmul.f32 %v4979, 1.442695
      %v5037 = vpow.pop %v5036
      %v5038 = vmul.f32 %v4980, 1.442695
      %v5039 = vpow.pop %v5038
      %v5040 = vmul.f32 %v4981, 1.442695
      %v5041 = vpow.pop %v5040
      %v5042 = vmul.f32 %v4982, 1.442695
      %v5043 = vpow.pop %v5042
      %v5044 = vmul.f32 %v4983, 1.442695
      %v5045 = vpow.pop %v5044
      %v5046 = vmul.f32 %v4984, 1.442695
      %v5047 = vpow.pop %v5046
      %v5048 = vmul.f32 %v4985, 1.442695
      %v5049 = vpow.pop %v5048
      %v5050 = vmul.f32 %v4986, 1.442695
      %v5051 = vpow.pop %v5050
      %v5052 = vmul.f32 %v4987, 1.442695
      %v5053 = vpow.pop %v5052
      %v5054 = vmul.f32 %v4988, 1.442695
      %v5055 = vpow.pop %v5054
      %v5056 = vmul.f32 %v4989, 1.442695
      %v5057 = vpow.pop %v5056
      %v5058 = vmul.f32 %v4990, 1.442695
      %v5059 = vpow.pop %v5058
      %v5060 = vmul.f32 %v4991, 1.442695
      %v5061 = vpow.pop %v5060
      %v5062 = vmul.f32 %v4992, 1.442695
      %v5063 = vpow.pop %v5062
      %v5064 = vmul.f32 %v4993, 1.442695
      %v5065 = vpow.pop %v5064
      %v5066 = vmul.f32 %v4994, 1.442695
      %v5067 = vpow.pop %v5066
      %v5068 = vmul.f32 %v4995, 1.442695
      %v5069 = vpow.pop %v5068
      %v5070 = vmul.f32 %v4996, 1.442695
      %v5071 = vpow.pop %v5070
      %v5072 = vmul.f32 %v4997, 1.442695
      %v5073 = vpow.pop %v5072
      %v5074 = vmul.f32 %v4998, 1.442695
      %v5075 = vpow.pop %v5074
      %v5076 = vmul.f32 %v4999, 1.442695
      %v5077 = vpow.pop %v5076
      %v5078 = vmul.f32 %v5000, 1.442695
      %v5079 = vpow.pop %v5078
      %v5080 = vmul.f32 %v5001, 1.442695
      %v5081 = vpow.pop %v5080
      %v5082 = vmul.f32 %v5002, 1.442695
      %v5083 = vpow.pop %v5082
      %v5084 = vmul.f32 %v5003, 1.442695
      %v5085 = vpow.pop %v5084
      %v5086 = vmul.f32 %v5004, 1.442695
      %v5087 = vpow.pop %v5086
      %v5088 = vmul.f32 %v5005, 1.442695
      %v5089 = vpow.pop %v5088
      %v5090 = vmul.f32 %v5006, 1.442695
      %v5091 = vpow.pop %v5090
      %v5092 = vmul.f32 %v5007, 1.442695
      %v5093 = vpow.pop %v5092
      %v5094 = vmul.f32 %v5008, 1.442695
      %v5095 = vpow.pop %v5094
      %v5096 = vmul.f32 %v5009, 1.442695
      %v5097 = vpow.pop %v5096
      %v5098 = vmul.f32 %v5010, 1.442695
      %v5099 = vpow.pop %v5098
      %v5100 = vmul.f32 %v5011, 1.442695
      %v5101 = vpow.pop %v5100
      %v5102 = vrot.slane %v5013, 4
      %v5103 = vadd.f32 %v5013, %v5102
      %v5104 = vrot.slane %v5103, 2
      %v5105 = vadd.f32 %v5103, %v5104
      %v5106 = vrot.slane %v5105, 1
      %v5107 = vadd.f32 %v5105, %v5106
      %v5108 = vrot.slane %v5015, 4
      %v5109 = vadd.f32 %v5015, %v5108
      %v5110 = vrot.slane %v5109, 2
      %v5111 = vadd.f32 %v5109, %v5110
      %v5112 = vrot.slane %v5111, 1
      %v5113 = vadd.f32 %v5111, %v5112
      %v5114 = vrot.slane %v5017, 4
      %v5115 = vadd.f32 %v5017, %v5114
      %v5116 = vrot.slane %v5115, 2
      %v5117 = vadd.f32 %v5115, %v5116
      %v5118 = vrot.slane %v5117, 1
      %v5119 = vadd.f32 %v5117, %v5118
      %v5120 = vrot.slane %v5019, 4
      %v5121 = vadd.f32 %v5019, %v5120
      %v5122 = vrot.slane %v5121, 2
      %v5123 = vadd.f32 %v5121, %v5122
      %v5124 = vrot.slane %v5123, 1
      %v5125 = vadd.f32 %v5123, %v5124
      %v5126 = vrot.slane %v5021, 4
      %v5127 = vadd.f32 %v5021, %v5126
      %v5128 = vrot.slane %v5127, 2
      %v5129 = vadd.f32 %v5127, %v5128
      %v5130 = vrot.slane %v5129, 1
      %v5131 = vadd.f32 %v5129, %v5130
      %v5132 = vrot.slane %v5023, 4
      %v5133 = vadd.f32 %v5023, %v5132
      %v5134 = vrot.slane %v5133, 2
      %v5135 = vadd.f32 %v5133, %v5134
      %v5136 = vrot.slane %v5135, 1
      %v5137 = vadd.f32 %v5135, %v5136
      %v5138 = vrot.slane %v5025, 4
      %v5139 = vadd.f32 %v5025, %v5138
      %v5140 = vrot.slane %v5139, 2
      %v5141 = vadd.f32 %v5139, %v5140
      %v5142 = vrot.slane %v5141, 1
      %v5143 = vadd.f32 %v5141, %v5142
      %v5144 = vrot.slane %v5027, 4
      %v5145 = vadd.f32 %v5027, %v5144
      %v5146 = vrot.slane %v5145, 2
      %v5147 = vadd.f32 %v5145, %v5146
      %v5148 = vrot.slane %v5147, 1
      %v5149 = vadd.f32 %v5147, %v5148
      %v5150 = vrot.slane %v5029, 4
      %v5151 = vadd.f32 %v5029, %v5150
      %v5152 = vrot.slane %v5151, 2
      %v5153 = vadd.f32 %v5151, %v5152
      %v5154 = vrot.slane %v5153, 1
      %v5155 = vadd.f32 %v5153, %v5154
      %v5156 = vrot.slane %v5031, 4
      %v5157 = vadd.f32 %v5031, %v5156
      %v5158 = vrot.slane %v5157, 2
      %v5159 = vadd.f32 %v5157, %v5158
      %v5160 = vrot.slane %v5159, 1
      %v5161 = vadd.f32 %v5159, %v5160
      %v5162 = vrot.slane %v5033, 4
      %v5163 = vadd.f32 %v5033, %v5162
      %v5164 = vrot.slane %v5163, 2
      %v5165 = vadd.f32 %v5163, %v5164
      %v5166 = vrot.slane %v5165, 1
      %v5167 = vadd.f32 %v5165, %v5166
      %v5168 = vrot.slane %v5035, 4
      %v5169 = vadd.f32 %v5035, %v5168
      %v5170 = vrot.slane %v5169, 2
      %v5171 = vadd.f32 %v5169, %v5170
      %v5172 = vrot.slane %v5171, 1
      %v5173 = vadd.f32 %v5171, %v5172
      %v5174 = vrot.slane %v5037, 4
      %v5175 = vadd.f32 %v5037, %v5174
      %v5176 = vrot.slane %v5175, 2
      %v5177 = vadd.f32 %v5175, %v5176
      %v5178 = vrot.slane %v5177, 1
      %v5179 = vadd.f32 %v5177, %v5178
      %v5180 = vrot.slane %v5039, 4
      %v5181 = vadd.f32 %v5039, %v5180
      %v5182 = vrot.slane %v5181, 2
      %v5183 = vadd.f32 %v5181, %v5182
      %v5184 = vrot.slane %v5183, 1
      %v5185 = vadd.f32 %v5183, %v5184
      %v5186 = vrot.slane %v5041, 4
      %v5187 = vadd.f32 %v5041, %v5186
      %v5188 = vrot.slane %v5187, 2
      %v5189 = vadd.f32 %v5187, %v5188
      %v5190 = vrot.slane %v5189, 1
      %v5191 = vadd.f32 %v5189, %v5190
      %v5192 = vrot.slane %v5043, 4
      %v5193 = vadd.f32 %v5043, %v5192
      %v5194 = vrot.slane %v5193, 2
      %v5195 = vadd.f32 %v5193, %v5194
      %v5196 = vrot.slane %v5195, 1
      %v5197 = vadd.f32 %v5195, %v5196
      %v5198 = vrot.slane %v5045, 4
      %v5199 = vadd.f32 %v5045, %v5198
      %v5200 = vrot.slane %v5199, 2
      %v5201 = vadd.f32 %v5199, %v5200
      %v5202 = vrot.slane %v5201, 1
      %v5203 = vadd.f32 %v5201, %v5202
      %v5204 = vrot.slane %v5047, 4
      %v5205 = vadd.f32 %v5047, %v5204
      %v5206 = vrot.slane %v5205, 2
      %v5207 = vadd.f32 %v5205, %v5206
      %v5208 = vrot.slane %v5207, 1
      %v5209 = vadd.f32 %v5207, %v5208
      %v5210 = vrot.slane %v5049, 4
      %v5211 = vadd.f32 %v5049, %v5210
      %v5212 = vrot.slane %v5211, 2
      %v5213 = vadd.f32 %v5211, %v5212
      %v5214 = vrot.slane %v5213, 1
      %v5215 = vadd.f32 %v5213, %v5214
      %v5216 = vrot.slane %v5051, 4
      %v5217 = vadd.f32 %v5051, %v5216
      %v5218 = vrot.slane %v5217, 2
      %v5219 = vadd.f32 %v5217, %v5218
      %v5220 = vrot.slane %v5219, 1
      %v5221 = vadd.f32 %v5219, %v5220
      %v5222 = vrot.slane %v5053, 4
      %v5223 = vadd.f32 %v5053, %v5222
      %v5224 = vrot.slane %v5223, 2
      %v5225 = vadd.f32 %v5223, %v5224
      %v5226 = vrot.slane %v5225, 1
      %v5227 = vadd.f32 %v5225, %v5226
      %v5228 = vrot.slane %v5055, 4
      %v5229 = vadd.f32 %v5055, %v5228
      %v5230 = vrot.slane %v5229, 2
      %v5231 = vadd.f32 %v5229, %v5230
      %v5232 = vrot.slane %v5231, 1
      %v5233 = vadd.f32 %v5231, %v5232
      %v5234 = vrot.slane %v5057, 4
      %v5235 = vadd.f32 %v5057, %v5234
      %v5236 = vrot.slane %v5235, 2
      %v5237 = vadd.f32 %v5235, %v5236
      %v5238 = vrot.slane %v5237, 1
      %v5239 = vadd.f32 %v5237, %v5238
      %v5240 = vrot.slane %v5059, 4
      %v5241 = vadd.f32 %v5059, %v5240
      %v5242 = vrot.slane %v5241, 2
      %v5243 = vadd.f32 %v5241, %v5242
      %v5244 = vrot.slane %v5243, 1
      %v5245 = vadd.f32 %v5243, %v5244
      %v5246 = vrot.slane %v5061, 4
      %v5247 = vadd.f32 %v5061, %v5246
      %v5248 = vrot.slane %v5247, 2
      %v5249 = vadd.f32 %v5247, %v5248
      %v5250 = vrot.slane %v5249, 1
      %v5251 = vadd.f32 %v5249, %v5250
      %v5252 = vrot.slane %v5063, 4
      %v5253 = vadd.f32 %v5063, %v5252
      %v5254 = vrot.slane %v5253, 2
      %v5255 = vadd.f32 %v5253, %v5254
      %v5256 = vrot.slane %v5255, 1
      %v5257 = vadd.f32 %v5255, %v5256
      %v5258 = vrot.slane %v5065, 4
      %v5259 = vadd.f32 %v5065, %v5258
      %v5260 = vrot.slane %v5259, 2
      %v5261 = vadd.f32 %v5259, %v5260
      %v5262 = vrot.slane %v5261, 1
      %v5263 = vadd.f32 %v5261, %v5262
      %v5264 = vrot.slane %v5067, 4
      %v5265 = vadd.f32 %v5067, %v5264
      %v5266 = vrot.slane %v5265, 2
      %v5267 = vadd.f32 %v5265, %v5266
      %v5268 = vrot.slane %v5267, 1
      %v5269 = vadd.f32 %v5267, %v5268
      %v5270 = vrot.slane %v5069, 4
      %v5271 = vadd.f32 %v5069, %v5270
      %v5272 = vrot.slane %v5271, 2
      %v5273 = vadd.f32 %v5271, %v5272
      %v5274 = vrot.slane %v5273, 1
      %v5275 = vadd.f32 %v5273, %v5274
      %v5276 = vrot.slane %v5071, 4
      %v5277 = vadd.f32 %v5071, %v5276
      %v5278 = vrot.slane %v5277, 2
      %v5279 = vadd.f32 %v5277, %v5278
      %v5280 = vrot.slane %v5279, 1
      %v5281 = vadd.f32 %v5279, %v5280
      %v5282 = vrot.slane %v5073, 4
      %v5283 = vadd.f32 %v5073, %v5282
      %v5284 = vrot.slane %v5283, 2
      %v5285 = vadd.f32 %v5283, %v5284
      %v5286 = vrot.slane %v5285, 1
      %v5287 = vadd.f32 %v5285, %v5286
      %v5288 = vrot.slane %v5075, 4
      %v5289 = vadd.f32 %v5075, %v5288
      %v5290 = vrot.slane %v5289, 2
      %v5291 = vadd.f32 %v5289, %v5290
      %v5292 = vrot.slane %v5291, 1
      %v5293 = vadd.f32 %v5291, %v5292
      %v5294 = vrot.slane %v5077, 4
      %v5295 = vadd.f32 %v5077, %v5294
      %v5296 = vrot.slane %v5295, 2
      %v5297 = vadd.f32 %v5295, %v5296
      %v5298 = vrot.slane %v5297, 1
      %v5299 = vadd.f32 %v5297, %v5298
      %v5300 = vrot.slane %v5079, 4
      %v5301 = vadd.f32 %v5079, %v5300
      %v5302 = vrot.slane %v5301, 2
      %v5303 = vadd.f32 %v5301, %v5302
      %v5304 = vrot.slane %v5303, 1
      %v5305 = vadd.f32 %v5303, %v5304
      %v5306 = vrot.slane %v5081, 4
      %v5307 = vadd.f32 %v5081, %v5306
      %v5308 = vrot.slane %v5307, 2
      %v5309 = vadd.f32 %v5307, %v5308
      %v5310 = vrot.slane %v5309, 1
      %v5311 = vadd.f32 %v5309, %v5310
      %v5312 = vrot.slane %v5083, 4
      %v5313 = vadd.f32 %v5083, %v5312
      %v5314 = vrot.slane %v5313, 2
      %v5315 = vadd.f32 %v5313, %v5314
      %v5316 = vrot.slane %v5315, 1
      %v5317 = vadd.f32 %v5315, %v5316
      %v5318 = vrot.slane %v5085, 4
      %v5319 = vadd.f32 %v5085, %v5318
      %v5320 = vrot.slane %v5319, 2
      %v5321 = vadd.f32 %v5319, %v5320
      %v5322 = vrot.slane %v5321, 1
      %v5323 = vadd.f32 %v5321, %v5322
      %v5324 = vrot.slane %v5087, 4
      %v5325 = vadd.f32 %v5087, %v5324
      %v5326 = vrot.slane %v5325, 2
      %v5327 = vadd.f32 %v5325, %v5326
      %v5328 = vrot.slane %v5327, 1
      %v5329 = vadd.f32 %v5327, %v5328
      %v5330 = vrot.slane %v5089, 4
      %v5331 = vadd.f32 %v5089, %v5330
      %v5332 = vrot.slane %v5331, 2
      %v5333 = vadd.f32 %v5331, %v5332
      %v5334 = vrot.slane %v5333, 1
      %v5335 = vadd.f32 %v5333, %v5334
      %v5336 = vrot.slane %v5091, 4
      %v5337 = vadd.f32 %v5091, %v5336
      %v5338 = vrot.slane %v5337, 2
      %v5339 = vadd.f32 %v5337, %v5338
      %v5340 = vrot.slane %v5339, 1
      %v5341 = vadd.f32 %v5339, %v5340
      %v5342 = vrot.slane %v5093, 4
      %v5343 = vadd.f32 %v5093, %v5342
      %v5344 = vrot.slane %v5343, 2
      %v5345 = vadd.f32 %v5343, %v5344
      %v5346 = vrot.slane %v5345, 1
      %v5347 = vadd.f32 %v5345, %v5346
      %v5348 = vrot.slane %v5095, 4
      %v5349 = vadd.f32 %v5095, %v5348
      %v5350 = vrot.slane %v5349, 2
      %v5351 = vadd.f32 %v5349, %v5350
      %v5352 = vrot.slane %v5351, 1
      %v5353 = vadd.f32 %v5351, %v5352
      %v5354 = vrot.slane %v5097, 4
      %v5355 = vadd.f32 %v5097, %v5354
      %v5356 = vrot.slane %v5355, 2
      %v5357 = vadd.f32 %v5355, %v5356
      %v5358 = vrot.slane %v5357, 1
      %v5359 = vadd.f32 %v5357, %v5358
      %v5360 = vrot.slane %v5099, 4
      %v5361 = vadd.f32 %v5099, %v5360
      %v5362 = vrot.slane %v5361, 2
      %v5363 = vadd.f32 %v5361, %v5362
      %v5364 = vrot.slane %v5363, 1
      %v5365 = vadd.f32 %v5363, %v5364
      %v5366 = vrot.slane %v5101, 4
      %v5367 = vadd.f32 %v5101, %v5366
      %v5368 = vrot.slane %v5367, 2
      %v5369 = vadd.f32 %v5367, %v5368
      %v5370 = vrot.slane %v5369, 1
      %v5371 = vadd.f32 %v5369, %v5370
      %v5372 = vlog2.pop %v5107
      %v5373 = vmul.f32 %v5372, 0.6931472
      %v5374 = vlog2.pop %v5113
      %v5375 = vmul.f32 %v5374, 0.6931472
      %v5376 = vlog2.pop %v5119
      %v5377 = vmul.f32 %v5376, 0.6931472
      %v5378 = vlog2.pop %v5125
      %v5379 = vmul.f32 %v5378, 0.6931472
      %v5380 = vlog2.pop %v5131
      %v5381 = vmul.f32 %v5380, 0.6931472
      %v5382 = vlog2.pop %v5137
      %v5383 = vmul.f32 %v5382, 0.6931472
      %v5384 = vlog2.pop %v5143
      %v5385 = vmul.f32 %v5384, 0.6931472
      %v5386 = vlog2.pop %v5149
      %v5387 = vmul.f32 %v5386, 0.6931472
      %v5388 = vlog2.pop %v5155
      %v5389 = vmul.f32 %v5388, 0.6931472
      %v5390 = vlog2.pop %v5161
      %v5391 = vmul.f32 %v5390, 0.6931472
      %v5392 = vlog2.pop %v5167
      %v5393 = vmul.f32 %v5392, 0.6931472
      %v5394 = vlog2.pop %v5173
      %v5395 = vmul.f32 %v5394, 0.6931472
      %v5396 = vlog2.pop %v5179
      %v5397 = vmul.f32 %v5396, 0.6931472
      %v5398 = vlog2.pop %v5185
      %v5399 = vmul.f32 %v5398, 0.6931472
      %v5400 = vlog2.pop %v5191
      %v5401 = vmul.f32 %v5400, 0.6931472
      %v5402 = vlog2.pop %v5197
      %v5403 = vmul.f32 %v5402, 0.6931472
      %v5404 = vlog2.pop %v5203
      %v5405 = vmul.f32 %v5404, 0.6931472
      %v5406 = vlog2.pop %v5209
      %v5407 = vmul.f32 %v5406, 0.6931472
      %v5408 = vlog2.pop %v5215
      %v5409 = vmul.f32 %v5408, 0.6931472
      %v5410 = vlog2.pop %v5221
      %v5411 = vmul.f32 %v5410, 0.6931472
      %v5412 = vlog2.pop %v5227
      %v5413 = vmul.f32 %v5412, 0.6931472
      %v5414 = vlog2.pop %v5233
      %v5415 = vmul.f32 %v5414, 0.6931472
      %v5416 = vlog2.pop %v5239
      %v5417 = vmul.f32 %v5416, 0.6931472
      %v5418 = vlog2.pop %v5245
      %v5419 = vmul.f32 %v5418, 0.6931472
      %v5420 = vlog2.pop %v5251
      %v5421 = vmul.f32 %v5420, 0.6931472
      %v5422 = vlog2.pop %v5257
      %v5423 = vmul.f32 %v5422, 0.6931472
      %v5424 = vlog2.pop %v5263
      %v5425 = vmul.f32 %v5424, 0.6931472
      %v5426 = vlog2.pop %v5269
      %v5427 = vmul.f32 %v5426, 0.6931472
      %v5428 = vlog2.pop %v5275
      %v5429 = vmul.f32 %v5428, 0.6931472
      %v5430 = vlog2.pop %v5281
      %v5431 = vmul.f32 %v5430, 0.6931472
      %v5432 = vlog2.pop %v5287
      %v5433 = vmul.f32 %v5432, 0.6931472
      %v5434 = vlog2.pop %v5293
      %v5435 = vmul.f32 %v5434, 0.6931472
      %v5436 = vlog2.pop %v5299
      %v5437 = vmul.f32 %v5436, 0.6931472
      %v5438 = vlog2.pop %v5305
      %v5439 = vmul.f32 %v5438, 0.6931472
      %v5440 = vlog2.pop %v5311
      %v5441 = vmul.f32 %v5440, 0.6931472
      %v5442 = vlog2.pop %v5317
      %v5443 = vmul.f32 %v5442, 0.6931472
      %v5444 = vlog2.pop %v5323
      %v5445 = vmul.f32 %v5444, 0.6931472
      %v5446 = vlog2.pop %v5329
      %v5447 = vmul.f32 %v5446, 0.6931472
      %v5448 = vlog2.pop %v5335
      %v5449 = vmul.f32 %v5448, 0.6931472
      %v5450 = vlog2.pop %v5341
      %v5451 = vmul.f32 %v5450, 0.6931472
      %v5452 = vlog2.pop %v5347
      %v5453 = vmul.f32 %v5452, 0.6931472
      %v5454 = vlog2.pop %v5353
      %v5455 = vmul.f32 %v5454, 0.6931472
      %v5456 = vlog2.pop %v5359
      %v5457 = vmul.f32 %v5456, 0.6931472
      %v5458 = vlog2.pop %v5365
      %v5459 = vmul.f32 %v5458, 0.6931472
      %v5460 = vlog2.pop %v5371
      %v5461 = vmul.f32 %v5460, 0.6931472
      %v5462 = vsub.f32 %v4967, %v5373
      %v5463 = vsub.f32 %v4968, %v5375
      %v5464 = vsub.f32 %v4969, %v5377
      %v5465 = vsub.f32 %v4970, %v5379
      %v5466 = vsub.f32 %v4971, %v5381
      %v5467 = vsub.f32 %v4972, %v5383
      %v5468 = vsub.f32 %v4973, %v5385
      %v5469 = vsub.f32 %v4974, %v5387
      %v5470 = vsub.f32 %v4975, %v5389
      %v5471 = vsub.f32 %v4976, %v5391
      %v5472 = vsub.f32 %v4977, %v5393
      %v5473 = vsub.f32 %v4978, %v5395
      %v5474 = vsub.f32 %v4979, %v5397
      %v5475 = vsub.f32 %v4980, %v5399
      %v5476 = vsub.f32 %v4981, %v5401
      %v5477 = vsub.f32 %v4982, %v5403
      %v5478 = vsub.f32 %v4983, %v5405
      %v5479 = vsub.f32 %v4984, %v5407
      %v5480 = vsub.f32 %v4985, %v5409
      %v5481 = vsub.f32 %v4986, %v5411
      %v5482 = vsub.f32 %v4987, %v5413
      %v5483 = vsub.f32 %v4988, %v5415
      %v5484 = vsub.f32 %v4989, %v5417
      %v5485 = vsub.f32 %v4990, %v5419
      %v5486 = vsub.f32 %v4991, %v5421
      %v5487 = vsub.f32 %v4992, %v5423
      %v5488 = vsub.f32 %v4993, %v5425
      %v5489 = vsub.f32 %v4994, %v5427
      %v5490 = vsub.f32 %v4995, %v5429
      %v5491 = vsub.f32 %v4996, %v5431
      %v5492 = vsub.f32 %v4997, %v5433
      %v5493 = vsub.f32 %v4998, %v5435
      %v5494 = vsub.f32 %v4999, %v5437
      %v5495 = vsub.f32 %v5000, %v5439
      %v5496 = vsub.f32 %v5001, %v5441
      %v5497 = vsub.f32 %v5002, %v5443
      %v5498 = vsub.f32 %v5003, %v5445
      %v5499 = vsub.f32 %v5004, %v5447
      %v5500 = vsub.f32 %v5005, %v5449
      %v5501 = vsub.f32 %v5006, %v5451
      %v5502 = vsub.f32 %v5007, %v5453
      %v5503 = vsub.f32 %v5008, %v5455
      %v5504 = vsub.f32 %v5009, %v5457
      %v5505 = vsub.f32 %v5010, %v5459
      %v5506 = vsub.f32 %v5011, %v5461
      %5507 = vst [vmem:[%s172] sm:$0xff] %v5462
      %5508 = vst [vmem:[%s172 + $0x8] sm:$0xff] %v5463
      %5509 = vst [vmem:[%s172 + $0x10] sm:$0xff] %v5464
      %5510 = vst [vmem:[%s172 + $0x18] sm:$0xff] %v5465
      %5511 = vst [vmem:[%s172 + $0x20] sm:$0xff] %v5466
      %5512 = vst [vmem:[%s172 + $0x28] sm:$0xff] %v5467
      %5513 = vst [vmem:[%s172 + $0x30] sm:$0xff] %v5468
      %5514 = vst [vmem:[%s172 + $0x38] sm:$0xff] %v5469
      %5515 = vst [vmem:[%s172 + $0x40] sm:$0xff] %v5470
      %5516 = vst [vmem:[%s172 + $0x48] sm:$0xff] %v5471
      %5517 = vst [vmem:[%s172 + $0x50] sm:$0xff] %v5472
      %5518 = vst [vmem:[%s172 + $0x58] sm:$0xff] %v5473
      %5519 = vst [vmem:[%s172 + $0x60] sm:$0xff] %v5474
      %5520 = vst [vmem:[%s172 + $0x68] sm:$0xff] %v5475
      %5521 = vst [vmem:[%s172 + $0x70] sm:$0xff] %v5476
      %5522 = vst [vmem:[%s172 + $0x78] sm:$0xff] %v5477
      %5523 = vst [vmem:[%s172 + $0x80] sm:$0xff] %v5478
      %5524 = vst [vmem:[%s172 + $0x88] sm:$0xff] %v5479
      %5525 = vst [vmem:[%s172 + $0x90] sm:$0xff] %v5480
      %5526 = vst [vmem:[%s172 + $0x98] sm:$0xff] %v5481
      %5527 = vst [vmem:[%s172 + $0xa0] sm:$0xff] %v5482
      %5528 = vst [vmem:[%s172 + $0xa8] sm:$0xff] %v5483
      %5529 = vst [vmem:[%s172 + $0xb0] sm:$0xff] %v5484
      %5530 = vst [vmem:[%s172 + $0xb8] sm:$0xff] %v5485
      %5531 = vst [vmem:[%s172 + $0xc0] sm:$0xff] %v5486
      %5532 = vst [vmem:[%s172 + $0xc8] sm:$0xff] %v5487
      %5533 = vst [vmem:[%s172 + $0xd0] sm:$0xff] %v5488
      %5534 = vst [vmem:[%s172 + $0xd8] sm:$0xff] %v5489
      %5535 = vst [vmem:[%s172 + $0xe0] sm:$0xff] %v5490
      %5536 = vst [vmem:[%s172 + $0xe8] sm:$0xff] %v5491
      %5537 = vst [vmem:[%s172 + $0xf0] sm:$0xff] %v5492
      %5538 = vst [vmem:[%s172 + $0xf8] sm:$0xff] %v5493
      %5539 = vst [vmem:[%s172 + $0x100] sm:$0xff] %v5494
      %5540 = vst [vmem:[%s172 + $0x108] sm:$0xff] %v5495
      %5541 = vst [vmem:[%s172 + $0x110] sm:$0xff] %v5496
      %5542 = vst [vmem:[%s172 + $0x118] sm:$0xff] %v5497
      %5543 = vst [vmem:[%s172 + $0x120] sm:$0xff] %v5498
      %5544 = vst [vmem:[%s172 + $0x128] sm:$0xff] %v5499
      %5545 = vst [vmem:[%s172 + $0x130] sm:$0xff] %v5500
      %5546 = vst [vmem:[%s172 + $0x138] sm:$0xff] %v5501
      %5547 = vst [vmem:[%s172 + $0x140] sm:$0xff] %v5502
      %5548 = vst [vmem:[%s172 + $0x148] sm:$0xff] %v5503
      %5549 = vst [vmem:[%s172 + $0x150] sm:$0xff] %v5504
      %5550 = vst [vmem:[%s172 + $0x158] sm:$0xff] %v5505
      %5551 = vst [vmem:[%s172 + $0x160] sm:$0xff] %v5506
      %s5552 = smul.u32 45, %s14
      %p5553 = scmp.lt.s32.totalorder %s5552, 134
      %s5554 = scalar_select %p5553, %s5552, 134
      %s5555 = smul.addr %s5554, 8
      %s5556 = scalar_lea.vmem %s3, %s5555
      // Predicated region
      $region33: #{neural_network_forward.3} parent=31 // pred_check
        %p5557 = pneg %p100
      $region34: #{neural_network_forward.3} parent=31 // pred_check_branch
        %5559 = sbr.rel (%p5557) target = $region36
      $region35: #{neural_network_forward.3} parent=31 // pred_region
        %s5560 = smul.u32 45, %s14
      $region36: #{neural_network_forward.3} parent=31 // pred_fallthru
        _
    $region32: #{neural_network_forward.3} parent=5 // pred_fallthru
      _
    %p5561 = scmp.le.s32.totalorder 2, %s9
    // Predicated region
    $region37: #{neural_network_forward.3} parent=5 // pred_check
      %p5562 = pneg %p5561
    $region38: #{neural_network_forward.3} parent=5 // pred_check_branch
      %5564 = sbr.rel (%p5562) target = $region40
    $region39: #{neural_network_forward.3} parent=5 // pred_region
      %s5565 = ssub.s32 %s9, 2
      // Predicated region
      $region41: #{neural_network_forward.3} parent=39 // pred_check
        %p5566 = pneg %p106
      $region42: #{neural_network_forward.3} parent=39 // pred_check_branch
        %5568 = sbr.rel (%p5566) target = $region44
      $region43: #{neural_network_forward.3} parent=39 // pred_region
        %s5569 = smul.u32 45, %s15
        %p5570 = scmp.lt.s32.totalorder %s5569, 134
        %s5571 = scalar_select %p5570, %s5569, 134
        %s5572 = smul.addr %s5571, 8
        %s5573 = scalar_lea.vmem %s3, %s5572
      $region44: #{neural_network_forward.3} parent=39 // pred_fallthru
        _
    $region40: #{neural_network_forward.3} parent=5 // pred_fallthru
      _
  $region6: #{neural_network_forward.3} parent=0 // loop_footer
    %s13 = sadd.s32 1, %s9
  $region7: #{neural_network_forward.3} parent=0 // loop_footer_branch
    %8 = sbr.rel target = $region3
  $region8: #{neural_network_forward.3} parent=0 // loop_exit
    _

// kernel: neural_network_forward.4
$region0: #{neural_network_forward.4}
  #allocation0 [shape = 'u32[]', space=smem, size = 0x4, offset = 0x4, fixed_abs, tag = 'smem constant byte address 0x4 - core index']
  #allocation1 [shape = 'u32[144,128]{1,0:T(1,128)}', space=vmem, size = 0x12000, scoped, tag = 'internal scratch']
  %s0 = inlined_call_operand.vmem [shape: f32[768,180], index: 0, kind: input, shape index: {}]
  %s1 = inlined_call_operand.vmem [shape: f32[180,4], index: 1, kind: input, shape index: {}]
  %s2 = inlined_call_operand.vmem [shape: f32[180,4], index: 2, kind: input, shape index: {}]
  %s3 = inlined_call_operand.vmem [shape: f32[1,4], index: 3, kind: input, shape index: {}]
  %s4 = inlined_call_operand.vmem [shape: f32[1,4], index: 4, kind: input, shape index: {}]
  %s5 = inlined_call_operand.vmem [shape: f32[2,2], index: 5, kind: input, shape index: {}]
  %s6 = inlined_call_operand.vmem [shape: f32[1,2], index: 6, kind: input, shape index: {}]
  %s7 = inlined_call_operand.vmem [shape: f32[2,768,4], index: 7, kind: output, shape index: {}]
  %s8 = sld [smem:[#allocation0]]
  $region46: #{neural_network_forward.4} parent=0
    _
  %s10 = ssub.s32 1, %s8
  %s11 = scalar_select 0, %s10, %s8
  $region1: #{neural_network_forward.4} parent=0
    #allocation2 [shape = 'u8[1024]{0}', space=smem, size = 0x400, scoped, tag = 'input window, operand 5, single buffered']
    #allocation3 [shape = 's32[1]{0}', space=sflag, size = 0x4, scoped, tag = 'scoped memory for neural_network_forward.4']
    #allocation4 [shape = 'u8[512]{0}', space=smem, size = 0x200, scoped, tag = 'input window, operand 6, single buffered']
    #allocation5 [shape = 's32[1]{0}', space=sflag, size = 0x4, scoped, tag = 'scoped memory for neural_network_forward.4']
    %12 = vsyncpa [#allocation3], 0
    %13 = vsyncpa [#allocation5], 0
    // Predicated region
    $region2: #{neural_network_forward.4} parent=1 // pred_check
      _
    $region3: #{neural_network_forward.4} parent=1 // pred_check_branch
      %15 = sbr.rel (0) target = $region5
    $region4: #{neural_network_forward.4} parent=1 // pred_region
      _
    $region5: #{neural_network_forward.4} parent=1 // pred_fallthru
      _
    // Predicated region
    $region6: #{neural_network_forward.4} parent=1 // pred_check
      _
    $region7: #{neural_network_forward.4} parent=1 // pred_check_branch
      %17 = sbr.rel (0) target = $region9
    $region8: #{neural_network_forward.4} parent=1 // pred_region
      _
    $region9: #{neural_network_forward.4} parent=1 // pred_fallthru
      _
    // Predicated region
    $region10: #{neural_network_forward.4} parent=1 // pred_check
      _
    $region11: #{neural_network_forward.4} parent=1 // pred_check_branch
      %19 = sbr.rel (0) target = $region13
    $region12: #{neural_network_forward.4} parent=1 // pred_region
      _
    $region13: #{neural_network_forward.4} parent=1 // pred_fallthru
      _
    // Predicated region
    $region14: #{neural_network_forward.4} parent=1 // pred_check
      _
    $region15: #{neural_network_forward.4} parent=1 // pred_check_branch
      %21 = sbr.rel (0) target = $region17
    $region16: #{neural_network_forward.4} parent=1 // pred_region
      _
    $region17: #{neural_network_forward.4} parent=1 // pred_fallthru
      _
    // Predicated region
    $region18: #{neural_network_forward.4} parent=1 // pred_check
      _
    $region19: #{neural_network_forward.4} parent=1 // pred_check_branch
      %23 = sbr.rel (0) target = $region21
    $region20: #{neural_network_forward.4} parent=1 // pred_region
      _
    $region21: #{neural_network_forward.4} parent=1 // pred_fallthru
      _
    // Predicated region
    $region22: #{neural_network_forward.4} parent=1 // pred_check
      _
    $region23: #{neural_network_forward.4} parent=1 // pred_check_branch
      %25 = sbr.rel (0) target = $region25
    $region24: #{neural_network_forward.4} parent=1 // pred_region
      %s27 = ssub.s32 32, 32
      %28 = vsyncadd [#allocation3], %s27
      %s30 = sshll.u32 %s5, 4
      %s31 = int_to_ptr.vmem [resolvable:$true] %s30
      %33 = dma.vmem_to_smem %s31, 32, [#allocation2], [#allocation3]
    $region25: #{neural_network_forward.4} parent=1 // pred_fallthru
      _
    // Predicated region
    $region26: #{neural_network_forward.4} parent=1 // pred_check
      _
    $region27: #{neural_network_forward.4} parent=1 // pred_check_branch
      %35 = sbr.rel (0) target = $region29
    $region28: #{neural_network_forward.4} parent=1 // pred_region
      %s37 = ssub.s32 16, 16
      %38 = vsyncadd [#allocation5], %s37
      %s40 = sshll.u32 %s6, 4
      %s41 = int_to_ptr.vmem [resolvable:$true] %s40
      %43 = dma.vmem_to_smem %s41, 16, [#allocation4], [#allocation5]
    $region29: #{neural_network_forward.4} parent=1 // pred_fallthru
      _
    // Predicated region
    $region30: #{neural_network_forward.4} parent=1 // pred_check
      _
    $region31: #{neural_network_forward.4} parent=1 // pred_check_branch
      %45 = sbr.rel (0) target = $region33
    $region32: #{neural_network_forward.4} parent=1 // pred_region
      %46 = dma.done [#allocation3], 32
    $region33: #{neural_network_forward.4} parent=1 // pred_fallthru
      _
    // Predicated region
    $region34: #{neural_network_forward.4} parent=1 // pred_check
      _
    $region35: #{neural_network_forward.4} parent=1 // pred_check_branch
      %48 = sbr.rel (0) target = $region37
    $region36: #{neural_network_forward.4} parent=1 // pred_region
      %49 = dma.done [#allocation5], 16
    $region37: #{neural_network_forward.4} parent=1 // pred_fallthru
      _
    %50 = sfence
    %v51 = vld [vmem:[%s0] sm:$0xff]
    %v52 = vld [vmem:[%s0 + $0x8] sm:$0xff]
    %v53 = vld [vmem:[%s0 + $0x10] sm:$0xff]
    %v54 = vld [vmem:[%s0 + $0x18] sm:$0xff]
    %v55 = vld [vmem:[%s0 + $0x20] sm:$0xff]
    %v56 = vld [vmem:[%s0 + $0x28] sm:$0xff]
    %v57 = vld [vmem:[%s0 + $0x30] sm:$0xff]
    %v58 = vld [vmem:[%s0 + $0x38] sm:$0xff]
    %v59 = vld [vmem:[%s0 + $0x40] sm:$0xff]
    %v60 = vld [vmem:[%s0 + $0x48] sm:$0xff]
    %v61 = vld [vmem:[%s0 + $0x50] sm:$0xff]
    %v62 = vld [vmem:[%s0 + $0x58] sm:$0xff]
    %v63 = vld [vmem:[%s0 + $0x60] sm:$0xff]
    %v64 = vld [vmem:[%s0 + $0x68] sm:$0xff]
    %v65 = vld [vmem:[%s0 + $0x70] sm:$0xff]
    %v66 = vld [vmem:[%s0 + $0x78] sm:$0xff]
    %v67 = vld [vmem:[%s0 + $0x80] sm:$0xff]
    %v68 = vld [vmem:[%s0 + $0x88] sm:$0xff]
    %v69 = vld [vmem:[%s0 + $0x90] sm:$0xff]
    %v70 = vld [vmem:[%s0 + $0x98] sm:$0xff]
    %v71 = vld [vmem:[%s0 + $0xa0] sm:$0xff]
    %v72 = vld [vmem:[%s0 + $0xa8] sm:$0xff]
    %v73 = vld [vmem:[%s0 + $0xb0] sm:$0xff]
    %v74 = vld [vmem:[%s0 + $0xb8] sm:$0xff]
    %v75 = vld [vmem:[%s0 + $0xc0] sm:$0xff]
    %v76 = vld [vmem:[%s0 + $0xc8] sm:$0xff]
    %v77 = vld [vmem:[%s0 + $0xd0] sm:$0xff]
    %v78 = vld [vmem:[%s0 + $0xd8] sm:$0xff]
    %v79 = vld [vmem:[%s0 + $0xe0] sm:$0xff]
    %v80 = vld [vmem:[%s0 + $0xe8] sm:$0xff]
    %v81 = vld [vmem:[%s0 + $0xf0] sm:$0xff]
    %v82 = vld [vmem:[%s0 + $0xf8] sm:$0xff]
    %v83 = vld [vmem:[%s0 + $0x100] sm:$0xff]
    %v84 = vld [vmem:[%s0 + $0x108] sm:$0xff]
    %v85 = vld [vmem:[%s0 + $0x110] sm:$0xff]
    %v86 = vld [vmem:[%s0 + $0x118] sm:$0xff]
    %v87 = vld [vmem:[%s0 + $0x120] sm:$0xff]
    %v88 = vld [vmem:[%s0 + $0x128] sm:$0xff]
    %v89 = vld [vmem:[%s0 + $0x130] sm:$0xff]
    %v90 = vld [vmem:[%s0 + $0x138] sm:$0xff]
    %v91 = vld [vmem:[%s0 + $0x140] sm:$0xff]
    %v92 = vld [vmem:[%s0 + $0x148] sm:$0xff]
    %v93 = vld [vmem:[%s0 + $0x150] sm:$0xff]
    %v94 = vld [vmem:[%s0 + $0x158] sm:$0xff]
    %v95 = vld [vmem:[%s0 + $0x160] sm:$0xff]
    %v96 = vld [vmem:[%s0 + $0x168] sm:$0xff]
    %v97 = vld [vmem:[%s0 + $0x170] sm:$0xff]
    %v98 = vld [vmem:[%s0 + $0x178] sm:$0xff]
    %v99 = vld [vmem:[%s0 + $0x180] sm:$0xff]
    %v100 = vld [vmem:[%s0 + $0x188] sm:$0xff]
    %v101 = vld [vmem:[%s0 + $0x190] sm:$0xff]
    %v102 = vld [vmem:[%s0 + $0x198] sm:$0xff]
    %v103 = vld [vmem:[%s0 + $0x1a0] sm:$0xff]
    %v104 = vld [vmem:[%s0 + $0x1a8] sm:$0xff]
    %v105 = vld [vmem:[%s0 + $0x1b0] sm:$0xff]
    %v106 = vld [vmem:[%s0 + $0x1b8] sm:$0xff]
    %v107 = vld [vmem:[%s0 + $0x1c0] sm:$0xff]
    %v108 = vld [vmem:[%s0 + $0x1c8] sm:$0xff]
    %v109 = vld [vmem:[%s0 + $0x1d0] sm:$0xff]
    %v110 = vld [vmem:[%s0 + $0x1d8] sm:$0xff]
    %v111 = vld [vmem:[%s0 + $0x1e0] sm:$0xff]
    %v112 = vld [vmem:[%s0 + $0x1e8] sm:$0xff]
    %v113 = vld [vmem:[%s0 + $0x1f0] sm:$0xff]
    %v114 = vld [vmem:[%s0 + $0x1f8] sm:$0xff]
    %v115 = vld [vmem:[%s0 + $0x200] sm:$0xff]
    %v116 = vld [vmem:[%s0 + $0x208] sm:$0xff]
    %v117 = vld [vmem:[%s0 + $0x210] sm:$0xff]
    %v118 = vld [vmem:[%s0 + $0x218] sm:$0xff]
    %v119 = vld [vmem:[%s0 + $0x220] sm:$0xff]
    %v120 = vld [vmem:[%s0 + $0x228] sm:$0xff]
    %v121 = vld [vmem:[%s0 + $0x230] sm:$0xff]
    %v122 = vld [vmem:[%s0 + $0x238] sm:$0xff]
    %v123 = vld [vmem:[%s0 + $0x240] sm:$0xff]
    %v124 = vld [vmem:[%s0 + $0x248] sm:$0xff]
    %v125 = vld [vmem:[%s0 + $0x250] sm:$0xff]
    %v126 = vld [vmem:[%s0 + $0x258] sm:$0xff]
    %v127 = vld [vmem:[%s0 + $0x260] sm:$0xff]
    %v128 = vld [vmem:[%s0 + $0x268] sm:$0xff]
    %v129 = vld [vmem:[%s0 + $0x270] sm:$0xff]
    %v130 = vld [vmem:[%s0 + $0x278] sm:$0xff]
    %v131 = vld [vmem:[%s0 + $0x280] sm:$0xff]
    %v132 = vld [vmem:[%s0 + $0x288] sm:$0xff]
    %v133 = vld [vmem:[%s0 + $0x290] sm:$0xff]
    %v134 = vld [vmem:[%s0 + $0x298] sm:$0xff]
    %v135 = vld [vmem:[%s0 + $0x2a0] sm:$0xff]
    %v136 = vld [vmem:[%s0 + $0x2a8] sm:$0xff]
    %v137 = vld [vmem:[%s0 + $0x2b0] sm:$0xff]
    %v138 = vld [vmem:[%s0 + $0x2b8] sm:$0xff]
    %v139 = vld [vmem:[%s0 + $0x2c0] sm:$0xff]
    %v140 = vld [vmem:[%s0 + $0x2c8] sm:$0xff]
    %v141 = vld [vmem:[%s0 + $0x2d0] sm:$0xff]
    %v142 = vld [vmem:[%s0 + $0x2d8] sm:$0xff]
    %v143 = vld [vmem:[%s0 + $0x2e0] sm:$0xff]
    %v144 = vld [vmem:[%s0 + $0x2e8] sm:$0xff]
    %v145 = vld [vmem:[%s0 + $0x2f0] sm:$0xff]
    %v146 = vld [vmem:[%s0 + $0x2f8] sm:$0xff]
    %v147 = vld [vmem:[%s0 + $0x300] sm:$0xff]
    %v148 = vld [vmem:[%s0 + $0x308] sm:$0xff]
    %v149 = vld [vmem:[%s0 + $0x310] sm:$0xff]
    %v150 = vld [vmem:[%s0 + $0x318] sm:$0xff]
    %v151 = vld [vmem:[%s0 + $0x320] sm:$0xff]
    %v152 = vld [vmem:[%s0 + $0x328] sm:$0xff]
    %v153 = vld [vmem:[%s0 + $0x330] sm:$0xff]
    %v154 = vld [vmem:[%s0 + $0x338] sm:$0xff]
    %v155 = vld [vmem:[%s0 + $0x340] sm:$0xff]
    %v156 = vld [vmem:[%s0 + $0x348] sm:$0xff]
    %v157 = vld [vmem:[%s0 + $0x350] sm:$0xff]
    %v158 = vld [vmem:[%s0 + $0x358] sm:$0xff]
    %v159 = vld [vmem:[%s0 + $0x360] sm:$0xff]
    %v160 = vld [vmem:[%s0 + $0x368] sm:$0xff]
    %v161 = vld [vmem:[%s0 + $0x370] sm:$0xff]
    %v162 = vld [vmem:[%s0 + $0x378] sm:$0xff]
    %v163 = vld [vmem:[%s0 + $0x380] sm:$0xff]
    %v164 = vld [vmem:[%s0 + $0x388] sm:$0xff]
    %v165 = vld [vmem:[%s0 + $0x390] sm:$0xff]
    %v166 = vld [vmem:[%s0 + $0x398] sm:$0xff]
    %v167 = vld [vmem:[%s0 + $0x3a0] sm:$0xff]
    %v168 = vld [vmem:[%s0 + $0x3a8] sm:$0xff]
    %v169 = vld [vmem:[%s0 + $0x3b0] sm:$0xff]
    %v170 = vld [vmem:[%s0 + $0x3b8] sm:$0xff]
    %v171 = vld [vmem:[%s0 + $0x3c0] sm:$0xff]
    %v172 = vld [vmem:[%s0 + $0x3c8] sm:$0xff]
    %v173 = vld [vmem:[%s0 + $0x3d0] sm:$0xff]
    %v174 = vld [vmem:[%s0 + $0x3d8] sm:$0xff]
    %v175 = vld [vmem:[%s0 + $0x3e0] sm:$0xff]
    %v176 = vld [vmem:[%s0 + $0x3e8] sm:$0xff]
    %v177 = vld [vmem:[%s0 + $0x3f0] sm:$0xff]
    %v178 = vld [vmem:[%s0 + $0x3f8] sm:$0xff]
    %v179 = vld [vmem:[%s0 + $0x400] sm:$0xff]
    %v180 = vld [vmem:[%s0 + $0x408] sm:$0xff]
    %v181 = vld [vmem:[%s0 + $0x410] sm:$0xff]
    %v182 = vld [vmem:[%s0 + $0x418] sm:$0xff]
    %v183 = vld [vmem:[%s0 + $0x420] sm:$0xff]
    %v184 = vld [vmem:[%s0 + $0x428] sm:$0xff]
    %v185 = vld [vmem:[%s0 + $0x430] sm:$0xff]
    %v186 = vld [vmem:[%s0 + $0x438] sm:$0xff]
    %v187 = vld [vmem:[%s0 + $0x440] sm:$0xff]
    %v188 = vld [vmem:[%s0 + $0x448] sm:$0xff]
    %v189 = vld [vmem:[%s0 + $0x450] sm:$0xff]
    %v190 = vld [vmem:[%s0 + $0x458] sm:$0xff]
    %v191 = vld [vmem:[%s0 + $0x460] sm:$0xff]
    %v192 = vld [vmem:[%s0 + $0x468] sm:$0xff]
    %v193 = vld [vmem:[%s0 + $0x470] sm:$0xff]
    %v194 = vld [vmem:[%s0 + $0x478] sm:$0xff]
    %v195 = vld [vmem:[%s0 + $0x480] sm:$0xff]
    %v196 = vld [vmem:[%s0 + $0x488] sm:$0xff]
    %v197 = vld [vmem:[%s0 + $0x490] sm:$0xff]
    %v198 = vld [vmem:[%s0 + $0x498] sm:$0xff]
    %v199 = vld [vmem:[%s0 + $0x4a0] sm:$0xff]
    %v200 = vld [vmem:[%s0 + $0x4a8] sm:$0xff]
    %v201 = vld [vmem:[%s0 + $0x4b0] sm:$0xff]
    %v202 = vld [vmem:[%s0 + $0x4b8] sm:$0xff]
    %v203 = vld [vmem:[%s0 + $0x4c0] sm:$0xff]
    %v204 = vld [vmem:[%s0 + $0x4c8] sm:$0xff]
    %v205 = vld [vmem:[%s0 + $0x4d0] sm:$0xff]
    %v206 = vld [vmem:[%s0 + $0x4d8] sm:$0xff]
    %v207 = vld [vmem:[%s0 + $0x4e0] sm:$0xff]
    %v208 = vld [vmem:[%s0 + $0x4e8] sm:$0xff]
    %v209 = vld [vmem:[%s0 + $0x4f0] sm:$0xff]
    %v210 = vld [vmem:[%s0 + $0x4f8] sm:$0xff]
    %v211 = vld [vmem:[%s0 + $0x500] sm:$0xff]
    %v212 = vld [vmem:[%s0 + $0x508] sm:$0xff]
    %v213 = vld [vmem:[%s0 + $0x510] sm:$0xff]
    %v214 = vld [vmem:[%s0 + $0x518] sm:$0xff]
    %v215 = vld [vmem:[%s0 + $0x520] sm:$0xff]
    %v216 = vld [vmem:[%s0 + $0x528] sm:$0xff]
    %v217 = vld [vmem:[%s0 + $0x530] sm:$0xff]
    %v218 = vld [vmem:[%s0 + $0x538] sm:$0xff]
    %v219 = vld [vmem:[%s0 + $0x540] sm:$0xff]
    %v220 = vld [vmem:[%s0 + $0x548] sm:$0xff]
    %v221 = vld [vmem:[%s0 + $0x550] sm:$0xff]
    %v222 = vld [vmem:[%s0 + $0x558] sm:$0xff]
    %v223 = vld [vmem:[%s0 + $0x560] sm:$0xff]
    %v224 = vld [vmem:[%s0 + $0x568] sm:$0xff]
    %v225 = vld [vmem:[%s0 + $0x570] sm:$0xff]
    %v226 = vld [vmem:[%s0 + $0x578] sm:$0xff]
    %v227 = vld [vmem:[%s0 + $0x580] sm:$0xff]
    %v228 = vld [vmem:[%s0 + $0x588] sm:$0xff]
    %v229 = vld [vmem:[%s0 + $0x590] sm:$0xff]
    %v230 = vld [vmem:[%s0 + $0x598] sm:$0xff]
    %v231 = vld [vmem:[%s0 + $0x5a0] sm:$0xff]
    %v232 = vld [vmem:[%s0 + $0x5a8] sm:$0xff]
    %v233 = vld [vmem:[%s0 + $0x5b0] sm:$0xff]
    %v234 = vld [vmem:[%s0 + $0x5b8] sm:$0xff]
    %v235 = vld [vmem:[%s0 + $0x5c0] sm:$0xff]
    %v236 = vld [vmem:[%s0 + $0x5c8] sm:$0xff]
    %v237 = vld [vmem:[%s0 + $0x5d0] sm:$0xff]
    %v238 = vld [vmem:[%s0 + $0x5d8] sm:$0xff]
    %v239 = vld [vmem:[%s0 + $0x5e0] sm:$0xff]
    %v240 = vld [vmem:[%s0 + $0x5e8] sm:$0xff]
    %v241 = vld [vmem:[%s0 + $0x5f0] sm:$0xff]
    %v242 = vld [vmem:[%s0 + $0x5f8] sm:$0xff]
    %v243 = vld [vmem:[%s1] sm:$0xff]
    %v244 = vld [vmem:[%s1 + $0x8] sm:$0xff]
    %v245 = vld [vmem:[%s1 + $0x10] sm:$0xff]
    %v246 = vld [vmem:[%s1 + $0x18] sm:$0xff]
    %v247 = vld [vmem:[%s1 + $0x20] sm:$0xff]
    %v248 = vld [vmem:[%s1 + $0x28] sm:$0xff]
    %v249 = vld [vmem:[%s1 + $0x30] sm:$0xff]
    %v250 = vld [vmem:[%s1 + $0x38] sm:$0xff]
    %v251 = vld [vmem:[%s1 + $0x40] sm:$0xff]
    %v252 = vld [vmem:[%s1 + $0x48] sm:$0xff]
    %v253 = vld [vmem:[%s1 + $0x50] sm:$0xff]
    %v254 = vld [vmem:[%s1 + $0x58] sm:$0xff]
    %v255 = vld [vmem:[%s1 + $0x60] sm:$0xff]
    %v256 = vld [vmem:[%s1 + $0x68] sm:$0xff]
    %v257 = vld [vmem:[%s1 + $0x70] sm:$0xff]
    %v258 = vld [vmem:[%s1 + $0x78] sm:$0xff]
    %v259 = vld [vmem:[%s1 + $0x80] sm:$0xff]
    %v260 = vld [vmem:[%s1 + $0x88] sm:$0xff]
    %v261 = vld [vmem:[%s1 + $0x90] sm:$0xff]
    %v262 = vld [vmem:[%s1 + $0x98] sm:$0xff]
    %v263 = vld [vmem:[%s1 + $0xa0] sm:$0xff]
    %v264 = vld [vmem:[%s1 + $0xa8] sm:$0xff]
    %v265 = vld [vmem:[%s1 + $0xb0] sm:$0xf]
    %v266 = vld [vmem:[%s3] sm:$0x1]
    %v268 = vlaneseq
    %v269 = vshrl.u32 %v268, 7
    %v270 = vsub.s32 0, %v269
    %v271 = vrot.slane %v266, %v270
    %vm273 = vcmask 424960
    %v275 = vsel %vm273, %v52, 0
    %v278 = vsel %vm273, %v54, 0
    %v281 = vsel %vm273, %v56, 0
    %v284 = vsel %vm273, %v58, 0
    %v287 = vsel %vm273, %v60, 0
    %v290 = vsel %vm273, %v62, 0
    %v293 = vsel %vm273, %v64, 0
    %v296 = vsel %vm273, %v66, 0
    %v299 = vsel %vm273, %v68, 0
    %v302 = vsel %vm273, %v70, 0
    %v305 = vsel %vm273, %v72, 0
    %v308 = vsel %vm273, %v74, 0
    %v311 = vsel %vm273, %v76, 0
    %v314 = vsel %vm273, %v78, 0
    %v317 = vsel %vm273, %v80, 0
    %v320 = vsel %vm273, %v82, 0
    %v323 = vsel %vm273, %v84, 0
    %v326 = vsel %vm273, %v86, 0
    %v329 = vsel %vm273, %v88, 0
    %v332 = vsel %vm273, %v90, 0
    %v335 = vsel %vm273, %v92, 0
    %v338 = vsel %vm273, %v94, 0
    %v341 = vsel %vm273, %v96, 0
    %v344 = vsel %vm273, %v98, 0
    %v347 = vsel %vm273, %v100, 0
    %v350 = vsel %vm273, %v102, 0
    %v353 = vsel %vm273, %v104, 0
    %v356 = vsel %vm273, %v106, 0
    %v359 = vsel %vm273, %v108, 0
    %v362 = vsel %vm273, %v110, 0
    %v365 = vsel %vm273, %v112, 0
    %v368 = vsel %vm273, %v114, 0
    %v371 = vsel %vm273, %v116, 0
    %v374 = vsel %vm273, %v118, 0
    %v377 = vsel %vm273, %v120, 0
    %v380 = vsel %vm273, %v122, 0
    %v383 = vsel %vm273, %v124, 0
    %v386 = vsel %vm273, %v126, 0
    %v389 = vsel %vm273, %v128, 0
    %v392 = vsel %vm273, %v130, 0
    %v395 = vsel %vm273, %v132, 0
    %v398 = vsel %vm273, %v134, 0
    %v401 = vsel %vm273, %v136, 0
    %v404 = vsel %vm273, %v138, 0
    %v407 = vsel %vm273, %v140, 0
    %v410 = vsel %vm273, %v142, 0
    %v413 = vsel %vm273, %v144, 0
    %v416 = vsel %vm273, %v146, 0
    %v419 = vsel %vm273, %v148, 0
    %v422 = vsel %vm273, %v150, 0
    %v425 = vsel %vm273, %v152, 0
    %v428 = vsel %vm273, %v154, 0
    %v431 = vsel %vm273, %v156, 0
    %v434 = vsel %vm273, %v158, 0
    %v437 = vsel %vm273, %v160, 0
    %v440 = vsel %vm273, %v162, 0
    %v443 = vsel %vm273, %v164, 0
    %v446 = vsel %vm273, %v166, 0
    %v449 = vsel %vm273, %v168, 0
    %v452 = vsel %vm273, %v170, 0
    %v455 = vsel %vm273, %v172, 0
    %v458 = vsel %vm273, %v174, 0
    %v461 = vsel %vm273, %v176, 0
    %v464 = vsel %vm273, %v178, 0
    %v467 = vsel %vm273, %v180, 0
    %v470 = vsel %vm273, %v182, 0
    %v473 = vsel %vm273, %v184, 0
    %v476 = vsel %vm273, %v186, 0
    %v479 = vsel %vm273, %v188, 0
    %v482 = vsel %vm273, %v190, 0
    %v485 = vsel %vm273, %v192, 0
    %v488 = vsel %vm273, %v194, 0
    %v491 = vsel %vm273, %v196, 0
    %v494 = vsel %vm273, %v198, 0
    %v497 = vsel %vm273, %v200, 0
    %v500 = vsel %vm273, %v202, 0
    %v503 = vsel %vm273, %v204, 0
    %v506 = vsel %vm273, %v206, 0
    %v509 = vsel %vm273, %v208, 0
    %v512 = vsel %vm273, %v210, 0
    %v515 = vsel %vm273, %v212, 0
    %v518 = vsel %vm273, %v214, 0
    %v521 = vsel %vm273, %v216, 0
    %v524 = vsel %vm273, %v218, 0
    %v527 = vsel %vm273, %v220, 0
    %v530 = vsel %vm273, %v222, 0
    %v533 = vsel %vm273, %v224, 0
    %v536 = vsel %vm273, %v226, 0
    %v539 = vsel %vm273, %v228, 0
    %v542 = vsel %vm273, %v230, 0
    %v545 = vsel %vm273, %v232, 0
    %v548 = vsel %vm273, %v234, 0
    %v551 = vsel %vm273, %v236, 0
    %v554 = vsel %vm273, %v238, 0
    %v557 = vsel %vm273, %v240, 0
    %v560 = vsel %vm273, %v242, 0
    %vm562 = vcmask 1043456
    %v564 = vsel %vm562, %v265, 0
    %566 = vmatprep.subr.mxu0 0.0
    %567 = vmatpush1.msra.mxu0 %v243
    %568 = vmatprep.subr.mxu0 0.0
    %569 = vmatpush1.msra.mxu0 %v244
    %570 = vmatprep.subr.mxu0 0.0
    %571 = vmatpush1.msra.mxu0 %v245
    %572 = vmatprep.subr.mxu0 0.0
    %573 = vmatpush1.msra.mxu0 %v246
    %574 = vmatprep.subr.mxu0 0.0
    %575 = vmatpush1.msra.mxu0 %v247
    %576 = vmatprep.subr.mxu0 0.0
    %577 = vmatpush1.msra.mxu0 %v248
    %578 = vmatprep.subr.mxu0 0.0
    %579 = vmatpush1.msra.mxu0 %v249
    %580 = vmatprep.subr.mxu0 0.0
    %581 = vmatpush1.msra.mxu0 %v250
    %582 = vmatprep.subr.mxu0 0.0
    %583 = vmatpush1.msra.mxu0 %v251
    %584 = vmatprep.subr.mxu0 0.0
    %585 = vmatpush1.msra.mxu0 %v252
    %586 = vmatprep.subr.mxu0 0.0
    %587 = vmatpush1.msra.mxu0 %v253
    %588 = vmatprep.subr.mxu0 0.0
    %589 = vmatpush1.msra.mxu0 %v254
    %590 = vmatprep.subr.mxu0 0.0
    %591 = vmatpush1.msra.mxu0 %v255
    %592 = vmatprep.subr.mxu0 0.0
    %593 = vmatpush1.msra.mxu0 %v256
    %594 = vmatprep.subr.mxu0 0.0
    %595 = vmatpush1.msra.mxu0 %v257
    %596 = vmatprep.subr.mxu0 0.0
    %597 = vmatpush1.msra.mxu0 %v258
    %598 = vmatprep.subr.mxu0 0.0
    %599 = vmatpush1.msra.mxu0 %v259
    %600 = vmatprep.subr.mxu0 0.0
    %601 = vmatpush1.msra.mxu0 %v260
    %602 = vmatprep.subr.mxu0 0.0
    %603 = vmatpush1.msra.mxu0 %v261
    %604 = vmatprep.subr.mxu0 0.0
    %605 = vmatpush1.msra.mxu0 %v262
    %606 = vmatprep.subr.mxu0 0.0
    %607 = vmatpush1.msra.mxu0 %v263
    %608 = vmatprep.subr.mxu0 0.0
    %609 = vmatpush1.msra.mxu0 %v264
    %610 = vmatprep.subr.mxu0 0.0
    %611 = vmatpush1.msra.mxu0 %v564
    %612 = vmatprep.subr.mxu0 0.0
    %613 = vmatpush1.msra.mxu0 0.0
    %614 = vmatprep.subr.mxu0 0.0
    %615 = vmatpush1.msra.mxu0 0.0
    %616 = vmatprep.subr.mxu0 0.0
    %617 = vmatpush1.msra.mxu0 0.0
    %618 = vmatprep.subr.mxu0 0.0
    %619 = vmatpush1.msra.mxu0 0.0
    %620 = vmatprep.subr.mxu0 0.0
    %621 = vmatpush1.msra.mxu0 0.0
    %622 = vmatprep.subr.mxu0 0.0
    %623 = vmatpush1.msra.mxu0 0.0
    %624 = vmatprep.subr.mxu0 0.0
    %625 = vmatpush1.msra.mxu0 0.0
    %626 = vmatprep.subr.mxu0 0.0
    %627 = vmatpush1.msra.mxu0 0.0
    %628 = vmatprep.subr.mxu0 0.0
    %629 = vmatpush1.msra.mxu0 0.0
    %630 = vmatprep.mubr.f32.mxu0 %v275
    %631 = vmatmul.mubr.f32.gmra.mrb[0].mxu0 %v51
    %v632 = vpop.f32.mrb[0].mxu0
    %v633 = vadd.f32 %v271, %v632
    %v634 = vpop.f32.mrb[0].mxu0
    %635 = vmatprep.mubr.f32.mxu0 %v278
    %636 = vmatmul.mubr.f32.gmra.mrb[0].mxu0 %v53
    %v637 = vpop.f32.mrb[0].mxu0
    %v638 = vadd.f32 %v271, %v637
    %v639 = vpop.f32.mrb[0].mxu0
    %640 = vmatprep.mubr.f32.mxu0 %v281
    %641 = vmatmul.mubr.f32.gmra.mrb[0].mxu0 %v55
    %v642 = vpop.f32.mrb[0].mxu0
    %v643 = vadd.f32 %v271, %v642
    %v644 = vpop.f32.mrb[0].mxu0
    %645 = vmatprep.mubr.f32.mxu0 %v284
    %646 = vmatmul.mubr.f32.gmra.mrb[0].mxu0 %v57
    %v647 = vpop.f32.mrb[0].mxu0
    %v648 = vadd.f32 %v271, %v647
    %v649 = vpop.f32.mrb[0].mxu0
    %650 = vmatprep.mubr.f32.mxu0 %v287
    %651 = vmatmul.mubr.f32.gmra.mrb[0].mxu0 %v59
    %v652 = vpop.f32.mrb[0].mxu0
    %v653 = vadd.f32 %v271, %v652
    %v654 = vpop.f32.mrb[0].mxu0
    %655 = vmatprep.mubr.f32.mxu0 %v290
    %656 = vmatmul.mubr.f32.gmra.mrb[0].mxu0 %v61
    %v657 = vpop.f32.mrb[0].mxu0
    %v658 = vadd.f32 %v271, %v657
    %v659 = vpop.f32.mrb[0].mxu0
    %660 = vmatprep.mubr.f32.mxu0 %v293
    %661 = vmatmul.mubr.f32.gmra.mrb[0].mxu0 %v63
    %v662 = vpop.f32.mrb[0].mxu0
    %v663 = vadd.f32 %v271, %v662
    %v664 = vpop.f32.mrb[0].mxu0
    %665 = vmatprep.mubr.f32.mxu0 %v296
    %666 = vmatmul.mubr.f32.gmra.mrb[0].mxu0 %v65
    %v667 = vpop.f32.mrb[0].mxu0
    %v668 = vadd.f32 %v271, %v667
    %v669 = vpop.f32.mrb[0].mxu0
    %670 = vmatprep.mubr.f32.mxu0 %v299
    %671 = vmatmul.mubr.f32.gmra.mrb[0].mxu0 %v67
    %v672 = vpop.f32.mrb[0].mxu0
    %v673 = vadd.f32 %v271, %v672
    %v674 = vpop.f32.mrb[0].mxu0
    %675 = vmatprep.mubr.f32.mxu0 %v302
    %676 = vmatmul.mubr.f32.gmra.mrb[0].mxu0 %v69
    %v677 = vpop.f32.mrb[0].mxu0
    %v678 = vadd.f32 %v271, %v677
    %v679 = vpop.f32.mrb[0].mxu0
    %680 = vmatprep.mubr.f32.mxu0 %v305
    %681 = vmatmul.mubr.f32.gmra.mrb[0].mxu0 %v71
    %v682 = vpop.f32.mrb[0].mxu0
    %v683 = vadd.f32 %v271, %v682
    %v684 = vpop.f32.mrb[0].mxu0
    %685 = vmatprep.mubr.f32.mxu0 %v308
    %686 = vmatmul.mubr.f32.gmra.mrb[0].mxu0 %v73
    %v687 = vpop.f32.mrb[0].mxu0
    %v688 = vadd.f32 %v271, %v687
    %v689 = vpop.f32.mrb[0].mxu0
    %690 = vmatprep.mubr.f32.mxu0 %v311
    %691 = vmatmul.mubr.f32.gmra.mrb[0].mxu0 %v75
    %v692 = vpop.f32.mrb[0].mxu0
    %v693 = vadd.f32 %v271, %v692
    %v694 = vpop.f32.mrb[0].mxu0
    %695 = vmatprep.mubr.f32.mxu0 %v314
    %696 = vmatmul.mubr.f32.gmra.mrb[0].mxu0 %v77
    %v697 = vpop.f32.mrb[0].mxu0
    %v698 = vadd.f32 %v271, %v697
    %v699 = vpop.f32.mrb[0].mxu0
    %700 = vmatprep.mubr.f32.mxu0 %v317
    %701 = vmatmul.mubr.f32.gmra.mrb[0].mxu0 %v79
    %v702 = vpop.f32.mrb[0].mxu0
    %v703 = vadd.f32 %v271, %v702
    %v704 = vpop.f32.mrb[0].mxu0
    %705 = vmatprep.mubr.f32.mxu0 %v320
    %706 = vmatmul.mubr.f32.gmra.mrb[0].mxu0 %v81
    %v707 = vpop.f32.mrb[0].mxu0
    %v708 = vadd.f32 %v271, %v707
    %v709 = vpop.f32.mrb[0].mxu0
    %710 = vmatprep.mubr.f32.mxu0 %v323
    %711 = vmatmul.mubr.f32.gmra.mrb[0].mxu0 %v83
    %v712 = vpop.f32.mrb[0].mxu0
    %v713 = vadd.f32 %v271, %v712
    %v714 = vpop.f32.mrb[0].mxu0
    %715 = vmatprep.mubr.f32.mxu0 %v326
    %716 = vmatmul.mubr.f32.gmra.mrb[0].mxu0 %v85
    %v717 = vpop.f32.mrb[0].mxu0
    %v718 = vadd.f32 %v271, %v717
    %v719 = vpop.f32.mrb[0].mxu0
    %720 = vmatprep.mubr.f32.mxu0 %v329
    %721 = vmatmul.mubr.f32.gmra.mrb[0].mxu0 %v87
    %v722 = vpop.f32.mrb[0].mxu0
    %v723 = vadd.f32 %v271, %v722
    %v724 = vpop.f32.mrb[0].mxu0
    %725 = vmatprep.mubr.f32.mxu0 %v332
    %726 = vmatmul.mubr.f32.gmra.mrb[0].mxu0 %v89
    %v727 = vpop.f32.mrb[0].mxu0
    %v728 = vadd.f32 %v271, %v727
    %v729 = vpop.f32.mrb[0].mxu0
    %730 = vmatprep.mubr.f32.mxu0 %v335
    %731 = vmatmul.mubr.f32.gmra.mrb[0].mxu0 %v91
    %v732 = vpop.f32.mrb[0].mxu0
    %v733 = vadd.f32 %v271, %v732
    %v734 = vpop.f32.mrb[0].mxu0
    %735 = vmatprep.mubr.f32.mxu0 %v338
    %736 = vmatmul.mubr.f32.gmra.mrb[0].mxu0 %v93
    %v737 = vpop.f32.mrb[0].mxu0
    %v738 = vadd.f32 %v271, %v737
    %v739 = vpop.f32.mrb[0].mxu0
    %740 = vmatprep.mubr.f32.mxu0 %v341
    %741 = vmatmul.mubr.f32.gmra.mrb[0].mxu0 %v95
    %v742 = vpop.f32.mrb[0].mxu0
    %v743 = vadd.f32 %v271, %v742
    %v744 = vpop.f32.mrb[0].mxu0
    %745 = vmatprep.mubr.f32.mxu0 %v344
    %746 = vmatmul.mubr.f32.gmra.mrb[0].mxu0 %v97
    %v747 = vpop.f32.mrb[0].mxu0
    %v748 = vadd.f32 %v271, %v747
    %v749 = vpop.f32.mrb[0].mxu0
    %750 = vmatprep.mubr.f32.mxu0 %v347
    %751 = vmatmul.mubr.f32.gmra.mrb[0].mxu0 %v99
    %v752 = vpop.f32.mrb[0].mxu0
    %v753 = vadd.f32 %v271, %v752
    %v754 = vpop.f32.mrb[0].mxu0
    %755 = vmatprep.mubr.f32.mxu0 %v350
    %756 = vmatmul.mubr.f32.gmra.mrb[0].mxu0 %v101
    %v757 = vpop.f32.mrb[0].mxu0
    %v758 = vadd.f32 %v271, %v757
    %v759 = vpop.f32.mrb[0].mxu0
    %760 = vmatprep.mubr.f32.mxu0 %v353
    %761 = vmatmul.mubr.f32.gmra.mrb[0].mxu0 %v103
    %v762 = vpop.f32.mrb[0].mxu0
    %v763 = vadd.f32 %v271, %v762
    %v764 = vpop.f32.mrb[0].mxu0
    %765 = vmatprep.mubr.f32.mxu0 %v356
    %766 = vmatmul.mubr.f32.gmra.mrb[0].mxu0 %v105
    %v767 = vpop.f32.mrb[0].mxu0
    %v768 = vadd.f32 %v271, %v767
    %v769 = vpop.f32.mrb[0].mxu0
    %770 = vmatprep.mubr.f32.mxu0 %v359
    %771 = vmatmul.mubr.f32.gmra.mrb[0].mxu0 %v107
    %v772 = vpop.f32.mrb[0].mxu0
    %v773 = vadd.f32 %v271, %v772
    %v774 = vpop.f32.mrb[0].mxu0
    %775 = vmatprep.mubr.f32.mxu0 %v362
    %776 = vmatmul.mubr.f32.gmra.mrb[0].mxu0 %v109
    %v777 = vpop.f32.mrb[0].mxu0
    %v778 = vadd.f32 %v271, %v777
    %v779 = vpop.f32.mrb[0].mxu0
    %780 = vmatprep.mubr.f32.mxu0 %v365
    %781 = vmatmul.mubr.f32.gmra.mrb[0].mxu0 %v111
    %v782 = vpop.f32.mrb[0].mxu0
    %v783 = vadd.f32 %v271, %v782
    %v784 = vpop.f32.mrb[0].mxu0
    %785 = vmatprep.mubr.f32.mxu0 %v368
    %786 = vmatmul.mubr.f32.gmra.mrb[0].mxu0 %v113
    %v787 = vpop.f32.mrb[0].mxu0
    %v788 = vadd.f32 %v271, %v787
    %v789 = vpop.f32.mrb[0].mxu0
    %790 = vmatprep.mubr.f32.mxu0 %v371
    %791 = vmatmul.mubr.f32.gmra.mrb[0].mxu0 %v115
    %v792 = vpop.f32.mrb[0].mxu0
    %v793 = vadd.f32 %v271, %v792
    %v794 = vpop.f32.mrb[0].mxu0
    %795 = vmatprep.mubr.f32.mxu0 %v374
    %796 = vmatmul.mubr.f32.gmra.mrb[0].mxu0 %v117
    %v797 = vpop.f32.mrb[0].mxu0
    %v798 = vadd.f32 %v271, %v797
    %v799 = vpop.f32.mrb[0].mxu0
    %800 = vmatprep.mubr.f32.mxu0 %v377
    %801 = vmatmul.mubr.f32.gmra.mrb[0].mxu0 %v119
    %v802 = vpop.f32.mrb[0].mxu0
    %v803 = vadd.f32 %v271, %v802
    %v804 = vpop.f32.mrb[0].mxu0
    %805 = vmatprep.mubr.f32.mxu0 %v380
    %806 = vmatmul.mubr.f32.gmra.mrb[0].mxu0 %v121
    %v807 = vpop.f32.mrb[0].mxu0
    %v808 = vadd.f32 %v271, %v807
    %v809 = vpop.f32.mrb[0].mxu0
    %810 = vmatprep.mubr.f32.mxu0 %v383
    %811 = vmatmul.mubr.f32.gmra.mrb[0].mxu0 %v123
    %v812 = vpop.f32.mrb[0].mxu0
    %v813 = vadd.f32 %v271, %v812
    %v814 = vpop.f32.mrb[0].mxu0
    %815 = vmatprep.mubr.f32.mxu0 %v386
    %816 = vmatmul.mubr.f32.gmra.mrb[0].mxu0 %v125
    %v817 = vpop.f32.mrb[0].mxu0
    %v818 = vadd.f32 %v271, %v817
    %v819 = vpop.f32.mrb[0].mxu0
    %820 = vmatprep.mubr.f32.mxu0 %v389
    %821 = vmatmul.mubr.f32.gmra.mrb[0].mxu0 %v127
    %v822 = vpop.f32.mrb[0].mxu0
    %v823 = vadd.f32 %v271, %v822
    %v824 = vpop.f32.mrb[0].mxu0
    %825 = vmatprep.mubr.f32.mxu0 %v392
    %826 = vmatmul.mubr.f32.gmra.mrb[0].mxu0 %v129
    %v827 = vpop.f32.mrb[0].mxu0
    %v828 = vadd.f32 %v271, %v827
    %v829 = vpop.f32.mrb[0].mxu0
    %830 = vmatprep.mubr.f32.mxu0 %v395
    %831 = vmatmul.mubr.f32.gmra.mrb[0].mxu0 %v131
    %v832 = vpop.f32.mrb[0].mxu0
    %v833 = vadd.f32 %v271, %v832
    %v834 = vpop.f32.mrb[0].mxu0
    %835 = vmatprep.mubr.f32.mxu0 %v398
    %836 = vmatmul.mubr.f32.gmra.mrb[0].mxu0 %v133
    %v837 = vpop.f32.mrb[0].mxu0
    %v838 = vadd.f32 %v271, %v837
    %v839 = vpop.f32.mrb[0].mxu0
    %840 = vmatprep.mubr.f32.mxu0 %v401
    %841 = vmatmul.mubr.f32.gmra.mrb[0].mxu0 %v135
    %v842 = vpop.f32.mrb[0].mxu0
    %v843 = vadd.f32 %v271, %v842
    %v844 = vpop.f32.mrb[0].mxu0
    %845 = vmatprep.mubr.f32.mxu0 %v404
    %846 = vmatmul.mubr.f32.gmra.mrb[0].mxu0 %v137
    %v847 = vpop.f32.mrb[0].mxu0
    %v848 = vadd.f32 %v271, %v847
    %v849 = vpop.f32.mrb[0].mxu0
    %850 = vmatprep.mubr.f32.mxu0 %v407
    %851 = vmatmul.mubr.f32.gmra.mrb[0].mxu0 %v139
    %v852 = vpop.f32.mrb[0].mxu0
    %v853 = vadd.f32 %v271, %v852
    %v854 = vpop.f32.mrb[0].mxu0
    %855 = vmatprep.mubr.f32.mxu0 %v410
    %856 = vmatmul.mubr.f32.gmra.mrb[0].mxu0 %v141
    %v857 = vpop.f32.mrb[0].mxu0
    %v858 = vadd.f32 %v271, %v857
    %v859 = vpop.f32.mrb[0].mxu0
    %860 = vmatprep.mubr.f32.mxu0 %v413
    %861 = vmatmul.mubr.f32.gmra.mrb[0].mxu0 %v143
    %v862 = vpop.f32.mrb[0].mxu0
    %v863 = vadd.f32 %v271, %v862
    %v864 = vpop.f32.mrb[0].mxu0
    %865 = vmatprep.mubr.f32.mxu0 %v416
    %866 = vmatmul.mubr.f32.gmra.mrb[0].mxu0 %v145
    %v867 = vpop.f32.mrb[0].mxu0
    %v868 = vadd.f32 %v271, %v867
    %v869 = vpop.f32.mrb[0].mxu0
    %870 = vmatprep.mubr.f32.mxu0 %v419
    %871 = vmatmul.mubr.f32.gmra.mrb[0].mxu0 %v147
    %v872 = vpop.f32.mrb[0].mxu0
    %v873 = vadd.f32 %v271, %v872
    %v874 = vpop.f32.mrb[0].mxu0
    %875 = vmatprep.mubr.f32.mxu0 %v422
    %876 = vmatmul.mubr.f32.gmra.mrb[0].mxu0 %v149
    %v877 = vpop.f32.mrb[0].mxu0
    %v878 = vadd.f32 %v271, %v877
    %v879 = vpop.f32.mrb[0].mxu0
    %880 = vmatprep.mubr.f32.mxu0 %v425
    %881 = vmatmul.mubr.f32.gmra.mrb[0].mxu0 %v151
    %v882 = vpop.f32.mrb[0].mxu0
    %v883 = vadd.f32 %v271, %v882
    %v884 = vpop.f32.mrb[0].mxu0
    %885 = vmatprep.mubr.f32.mxu0 %v428
    %886 = vmatmul.mubr.f32.gmra.mrb[0].mxu0 %v153
    %v887 = vpop.f32.mrb[0].mxu0
    %v888 = vadd.f32 %v271, %v887
    %v889 = vpop.f32.mrb[0].mxu0
    %890 = vmatprep.mubr.f32.mxu0 %v431
    %891 = vmatmul.mubr.f32.gmra.mrb[0].mxu0 %v155
    %v892 = vpop.f32.mrb[0].mxu0
    %v893 = vadd.f32 %v271, %v892
    %v894 = vpop.f32.mrb[0].mxu0
    %895 = vmatprep.mubr.f32.mxu0 %v434
    %896 = vmatmul.mubr.f32.gmra.mrb[0].mxu0 %v157
    %v897 = vpop.f32.mrb[0].mxu0
    %v898 = vadd.f32 %v271, %v897
    %v899 = vpop.f32.mrb[0].mxu0
    %900 = vmatprep.mubr.f32.mxu0 %v437
    %901 = vmatmul.mubr.f32.gmra.mrb[0].mxu0 %v159
    %v902 = vpop.f32.mrb[0].mxu0
    %v903 = vadd.f32 %v271, %v902
    %v904 = vpop.f32.mrb[0].mxu0
    %905 = vmatprep.mubr.f32.mxu0 %v440
    %906 = vmatmul.mubr.f32.gmra.mrb[0].mxu0 %v161
    %v907 = vpop.f32.mrb[0].mxu0
    %v908 = vadd.f32 %v271, %v907
    %v909 = vpop.f32.mrb[0].mxu0
    %910 = vmatprep.mubr.f32.mxu0 %v443
    %911 = vmatmul.mubr.f32.gmra.mrb[0].mxu0 %v163
    %v912 = vpop.f32.mrb[0].mxu0
    %v913 = vadd.f32 %v271, %v912
    %v914 = vpop.f32.mrb[0].mxu0
    %915 = vmatprep.mubr.f32.mxu0 %v446
    %916 = vmatmul.mubr.f32.gmra.mrb[0].mxu0 %v165
    %v917 = vpop.f32.mrb[0].mxu0
    %v918 = vadd.f32 %v271, %v917
    %v919 = vpop.f32.mrb[0].mxu0
    %920 = vmatprep.mubr.f32.mxu0 %v449
    %921 = vmatmul.mubr.f32.gmra.mrb[0].mxu0 %v167
    %v922 = vpop.f32.mrb[0].mxu0
    %v923 = vadd.f32 %v271, %v922
    %v924 = vpop.f32.mrb[0].mxu0
    %925 = vmatprep.mubr.f32.mxu0 %v452
    %926 = vmatmul.mubr.f32.gmra.mrb[0].mxu0 %v169
    %v927 = vpop.f32.mrb[0].mxu0
    %v928 = vadd.f32 %v271, %v927
    %v929 = vpop.f32.mrb[0].mxu0
    %930 = vmatprep.mubr.f32.mxu0 %v455
    %931 = vmatmul.mubr.f32.gmra.mrb[0].mxu0 %v171
    %v932 = vpop.f32.mrb[0].mxu0
    %v933 = vadd.f32 %v271, %v932
    %v934 = vpop.f32.mrb[0].mxu0
    %935 = vmatprep.mubr.f32.mxu0 %v458
    %936 = vmatmul.mubr.f32.gmra.mrb[0].mxu0 %v173
    %v937 = vpop.f32.mrb[0].mxu0
    %v938 = vadd.f32 %v271, %v937
    %v939 = vpop.f32.mrb[0].mxu0
    %940 = vmatprep.mubr.f32.mxu0 %v461
    %941 = vmatmul.mubr.f32.gmra.mrb[0].mxu0 %v175
    %v942 = vpop.f32.mrb[0].mxu0
    %v943 = vadd.f32 %v271, %v942
    %v944 = vpop.f32.mrb[0].mxu0
    %945 = vmatprep.mubr.f32.mxu0 %v464
    %946 = vmatmul.mubr.f32.gmra.mrb[0].mxu0 %v177
    %v947 = vpop.f32.mrb[0].mxu0
    %v948 = vadd.f32 %v271, %v947
    %v949 = vpop.f32.mrb[0].mxu0
    %950 = vmatprep.mubr.f32.mxu0 %v467
    %951 = vmatmul.mubr.f32.gmra.mrb[0].mxu0 %v179
    %v952 = vpop.f32.mrb[0].mxu0
    %v953 = vadd.f32 %v271, %v952
    %v954 = vpop.f32.mrb[0].mxu0
    %955 = vmatprep.mubr.f32.mxu0 %v470
    %956 = vmatmul.mubr.f32.gmra.mrb[0].mxu0 %v181
    %v957 = vpop.f32.mrb[0].mxu0
    %v958 = vadd.f32 %v271, %v957
    %v959 = vpop.f32.mrb[0].mxu0
    %960 = vmatprep.mubr.f32.mxu0 %v473
    %961 = vmatmul.mubr.f32.gmra.mrb[0].mxu0 %v183
    %v962 = vpop.f32.mrb[0].mxu0
    %v963 = vadd.f32 %v271, %v962
    %v964 = vpop.f32.mrb[0].mxu0
    %965 = vmatprep.mubr.f32.mxu0 %v476
    %966 = vmatmul.mubr.f32.gmra.mrb[0].mxu0 %v185
    %v967 = vpop.f32.mrb[0].mxu0
    %v968 = vadd.f32 %v271, %v967
    %v969 = vpop.f32.mrb[0].mxu0
    %970 = vmatprep.mubr.f32.mxu0 %v479
    %971 = vmatmul.mubr.f32.gmra.mrb[0].mxu0 %v187
    %v972 = vpop.f32.mrb[0].mxu0
    %v973 = vadd.f32 %v271, %v972
    %v974 = vpop.f32.mrb[0].mxu0
    %975 = vmatprep.mubr.f32.mxu0 %v482
    %976 = vmatmul.mubr.f32.gmra.mrb[0].mxu0 %v189
    %v977 = vpop.f32.mrb[0].mxu0
    %v978 = vadd.f32 %v271, %v977
    %v979 = vpop.f32.mrb[0].mxu0
    %980 = vmatprep.mubr.f32.mxu0 %v485
    %981 = vmatmul.mubr.f32.gmra.mrb[0].mxu0 %v191
    %v982 = vpop.f32.mrb[0].mxu0
    %v983 = vadd.f32 %v271, %v982
    %v984 = vpop.f32.mrb[0].mxu0
    %985 = vmatprep.mubr.f32.mxu0 %v488
    %986 = vmatmul.mubr.f32.gmra.mrb[0].mxu0 %v193
    %v987 = vpop.f32.mrb[0].mxu0
    %v988 = vadd.f32 %v271, %v987
    %v989 = vpop.f32.mrb[0].mxu0
    %990 = vmatprep.mubr.f32.mxu0 %v491
    %991 = vmatmul.mubr.f32.gmra.mrb[0].mxu0 %v195
    %v992 = vpop.f32.mrb[0].mxu0
    %v993 = vadd.f32 %v271, %v992
    %v994 = vpop.f32.mrb[0].mxu0
    %995 = vmatprep.mubr.f32.mxu0 %v494
    %996 = vmatmul.mubr.f32.gmra.mrb[0].mxu0 %v197
    %v997 = vpop.f32.mrb[0].mxu0
    %v998 = vadd.f32 %v271, %v997
    %v999 = vpop.f32.mrb[0].mxu0
    %1000 = vmatprep.mubr.f32.mxu0 %v497
    %1001 = vmatmul.mubr.f32.gmra.mrb[0].mxu0 %v199
    %v1002 = vpop.f32.mrb[0].mxu0
    %v1003 = vadd.f32 %v271, %v1002
    %v1004 = vpop.f32.mrb[0].mxu0
    %1005 = vmatprep.mubr.f32.mxu0 %v500
    %1006 = vmatmul.mubr.f32.gmra.mrb[0].mxu0 %v201
    %v1007 = vpop.f32.mrb[0].mxu0
    %v1008 = vadd.f32 %v271, %v1007
    %v1009 = vpop.f32.mrb[0].mxu0
    %1010 = vmatprep.mubr.f32.mxu0 %v503
    %1011 = vmatmul.mubr.f32.gmra.mrb[0].mxu0 %v203
    %v1012 = vpop.f32.mrb[0].mxu0
    %v1013 = vadd.f32 %v271, %v1012
    %v1014 = vpop.f32.mrb[0].mxu0
    %1015 = vmatprep.mubr.f32.mxu0 %v506
    %1016 = vmatmul.mubr.f32.gmra.mrb[0].mxu0 %v205
    %v1017 = vpop.f32.mrb[0].mxu0
    %v1018 = vadd.f32 %v271, %v1017
    %v1019 = vpop.f32.mrb[0].mxu0
    %1020 = vmatprep.mubr.f32.mxu0 %v509
    %1021 = vmatmul.mubr.f32.gmra.mrb[0].mxu0 %v207
    %v1022 = vpop.f32.mrb[0].mxu0
    %v1023 = vadd.f32 %v271, %v1022
    %v1024 = vpop.f32.mrb[0].mxu0
    %1025 = vmatprep.mubr.f32.mxu0 %v512
    %1026 = vmatmul.mubr.f32.gmra.mrb[0].mxu0 %v209
    %v1027 = vpop.f32.mrb[0].mxu0
    %v1028 = vadd.f32 %v271, %v1027
    %v1029 = vpop.f32.mrb[0].mxu0
    %1030 = vmatprep.mubr.f32.mxu0 %v515
    %1031 = vmatmul.mubr.f32.gmra.mrb[0].mxu0 %v211
    %v1032 = vpop.f32.mrb[0].mxu0
    %v1033 = vadd.f32 %v271, %v1032
    %v1034 = vpop.f32.mrb[0].mxu0
    %1035 = vmatprep.mubr.f32.mxu0 %v518
    %1036 = vmatmul.mubr.f32.gmra.mrb[0].mxu0 %v213
    %v1037 = vpop.f32.mrb[0].mxu0
    %v1038 = vadd.f32 %v271, %v1037
    %v1039 = vpop.f32.mrb[0].mxu0
    %1040 = vmatprep.mubr.f32.mxu0 %v521
    %1041 = vmatmul.mubr.f32.gmra.mrb[0].mxu0 %v215
    %v1042 = vpop.f32.mrb[0].mxu0
    %v1043 = vadd.f32 %v271, %v1042
    %v1044 = vpop.f32.mrb[0].mxu0
    %1045 = vmatprep.mubr.f32.mxu0 %v524
    %1046 = vmatmul.mubr.f32.gmra.mrb[0].mxu0 %v217
    %v1047 = vpop.f32.mrb[0].mxu0
    %v1048 = vadd.f32 %v271, %v1047
    %v1049 = vpop.f32.mrb[0].mxu0
    %1050 = vmatprep.mubr.f32.mxu0 %v527
    %1051 = vmatmul.mubr.f32.gmra.mrb[0].mxu0 %v219
    %v1052 = vpop.f32.mrb[0].mxu0
    %v1053 = vadd.f32 %v271, %v1052
    %v1054 = vpop.f32.mrb[0].mxu0
    %1055 = vmatprep.mubr.f32.mxu0 %v530
    %1056 = vmatmul.mubr.f32.gmra.mrb[0].mxu0 %v221
    %v1057 = vpop.f32.mrb[0].mxu0
    %v1058 = vadd.f32 %v271, %v1057
    %v1059 = vpop.f32.mrb[0].mxu0
    %1060 = vmatprep.mubr.f32.mxu0 %v533
    %1061 = vmatmul.mubr.f32.gmra.mrb[0].mxu0 %v223
    %v1062 = vpop.f32.mrb[0].mxu0
    %v1063 = vadd.f32 %v271, %v1062
    %v1064 = vpop.f32.mrb[0].mxu0
    %1065 = vmatprep.mubr.f32.mxu0 %v536
    %1066 = vmatmul.mubr.f32.gmra.mrb[0].mxu0 %v225
    %v1067 = vpop.f32.mrb[0].mxu0
    %v1068 = vadd.f32 %v271, %v1067
    %v1069 = vpop.f32.mrb[0].mxu0
    %1070 = vmatprep.mubr.f32.mxu0 %v539
    %1071 = vmatmul.mubr.f32.gmra.mrb[0].mxu0 %v227
    %v1072 = vpop.f32.mrb[0].mxu0
    %v1073 = vadd.f32 %v271, %v1072
    %v1074 = vpop.f32.mrb[0].mxu0
    %1075 = vmatprep.mubr.f32.mxu0 %v542
    %1076 = vmatmul.mubr.f32.gmra.mrb[0].mxu0 %v229
    %v1077 = vpop.f32.mrb[0].mxu0
    %v1078 = vadd.f32 %v271, %v1077
    %v1079 = vpop.f32.mrb[0].mxu0
    %1080 = vmatprep.mubr.f32.mxu0 %v545
    %1081 = vmatmul.mubr.f32.gmra.mrb[0].mxu0 %v231
    %v1082 = vpop.f32.mrb[0].mxu0
    %v1083 = vadd.f32 %v271, %v1082
    %v1084 = vpop.f32.mrb[0].mxu0
    %1085 = vmatprep.mubr.f32.mxu0 %v548
    %1086 = vmatmul.mubr.f32.gmra.mrb[0].mxu0 %v233
    %v1087 = vpop.f32.mrb[0].mxu0
    %v1088 = vadd.f32 %v271, %v1087
    %v1089 = vpop.f32.mrb[0].mxu0
    %1090 = vmatprep.mubr.f32.mxu0 %v551
    %1091 = vmatmul.mubr.f32.gmra.mrb[0].mxu0 %v235
    %v1092 = vpop.f32.mrb[0].mxu0
    %v1093 = vadd.f32 %v271, %v1092
    %v1094 = vpop.f32.mrb[0].mxu0
    %1095 = vmatprep.mubr.f32.mxu0 %v554
    %1096 = vmatmul.mubr.f32.gmra.mrb[0].mxu0 %v237
    %v1097 = vpop.f32.mrb[0].mxu0
    %v1098 = vadd.f32 %v271, %v1097
    %v1099 = vpop.f32.mrb[0].mxu0
    %1100 = vmatprep.mubr.f32.mxu0 %v557
    %1101 = vmatmul.mubr.f32.gmra.mrb[0].mxu0 %v239
    %v1102 = vpop.f32.mrb[0].mxu0
    %v1103 = vadd.f32 %v271, %v1102
    %v1104 = vpop.f32.mrb[0].mxu0
    %1105 = vmatprep.mubr.f32.mxu0 %v560
    %1106 = vmatmul.mubr.f32.gmra.mrb[0].mxu0 %v241
    %v1107 = vpop.f32.mrb[0].mxu0
    %v1108 = vadd.f32 %v271, %v1107
    %v1109 = vpop.f32.mrb[0].mxu0
    %1110 = vdwg.mxu0
    %v1111 = vld [vmem:[%s2] sm:$0xff]
    %v1112 = vld [vmem:[%s2 + $0x8] sm:$0xff]
    %v1113 = vld [vmem:[%s2 + $0x10] sm:$0xff]
    %v1114 = vld [vmem:[%s2 + $0x18] sm:$0xff]
    %v1115 = vld [vmem:[%s2 + $0x20] sm:$0xff]
    %v1116 = vld [vmem:[%s2 + $0x28] sm:$0xff]
    %v1117 = vld [vmem:[%s2 + $0x30] sm:$0xff]
    %v1118 = vld [vmem:[%s2 + $0x38] sm:$0xff]
    %v1119 = vld [vmem:[%s2 + $0x40] sm:$0xff]
    %v1120 = vld [vmem:[%s2 + $0x48] sm:$0xff]
    %v1121 = vld [vmem:[%s2 + $0x50] sm:$0xff]
    %v1122 = vld [vmem:[%s2 + $0x58] sm:$0xff]
    %v1123 = vld [vmem:[%s2 + $0x60] sm:$0xff]
    %v1124 = vld [vmem:[%s2 + $0x68] sm:$0xff]
    %v1125 = vld [vmem:[%s2 + $0x70] sm:$0xff]
    %v1126 = vld [vmem:[%s2 + $0x78] sm:$0xff]
    %v1127 = vld [vmem:[%s2 + $0x80] sm:$0xff]
    %v1128 = vld [vmem:[%s2 + $0x88] sm:$0xff]
    %v1129 = vld [vmem:[%s2 + $0x90] sm:$0xff]
    %v1130 = vld [vmem:[%s2 + $0x98] sm:$0xff]
    %v1131 = vld [vmem:[%s2 + $0xa0] sm:$0xff]
    %v1132 = vld [vmem:[%s2 + $0xa8] sm:$0xff]
    %v1133 = vld [vmem:[%s2 + $0xb0] sm:$0xf]
    %v1134 = vld [vmem:[%s4] sm:$0x1]
    %v1136 = vlaneseq
    %v1137 = vshrl.u32 %v1136, 7
    %v1138 = vsub.s32 0, %v1137
    %v1139 = vrot.slane %v1134, %v1138
    %v1142 = vsel %vm562, %v1133, 0
    %1144 = vmatprep.subr.mxu0 0.0
    %1145 = vmatpush1.msra.mxu0 %v1111
    %1146 = vmatprep.subr.mxu0 0.0
    %1147 = vmatpush1.msra.mxu0 %v1112
    %1148 = vmatprep.subr.mxu0 0.0
    %1149 = vmatpush1.msra.mxu0 %v1113
    %1150 = vmatprep.subr.mxu0 0.0
    %1151 = vmatpush1.msra.mxu0 %v1114
    %1152 = vmatprep.subr.mxu0 0.0
    %1153 = vmatpush1.msra.mxu0 %v1115
    %1154 = vmatprep.subr.mxu0 0.0
    %1155 = vmatpush1.msra.mxu0 %v1116
    %1156 = vmatprep.subr.mxu0 0.0
    %1157 = vmatpush1.msra.mxu0 %v1117
    %1158 = vmatprep.subr.mxu0 0.0
    %1159 = vmatpush1.msra.mxu0 %v1118
    %1160 = vmatprep.subr.mxu0 0.0
    %1161 = vmatpush1.msra.mxu0 %v1119
    %1162 = vmatprep.subr.mxu0 0.0
    %1163 = vmatpush1.msra.mxu0 %v1120
    %1164 = vmatprep.subr.mxu0 0.0
    %1165 = vmatpush1.msra.mxu0 %v1121
    %1166 = vmatprep.subr.mxu0 0.0
    %1167 = vmatpush1.msra.mxu0 %v1122
    %1168 = vmatprep.subr.mxu0 0.0
    %1169 = vmatpush1.msra.mxu0 %v1123
    %1170 = vmatprep.subr.mxu0 0.0
    %1171 = vmatpush1.msra.mxu0 %v1124
    %1172 = vmatprep.subr.mxu0 0.0
    %1173 = vmatpush1.msra.mxu0 %v1125
    %1174 = vmatprep.subr.mxu0 0.0
    %1175 = vmatpush1.msra.mxu0 %v1126
    %1176 = vmatprep.subr.mxu0 0.0
    %1177 = vmatpush1.msra.mxu0 %v1127
    %1178 = vmatprep.subr.mxu0 0.0
    %1179 = vmatpush1.msra.mxu0 %v1128
    %1180 = vmatprep.subr.mxu0 0.0
    %1181 = vmatpush1.msra.mxu0 %v1129
    %1182 = vmatprep.subr.mxu0 0.0
    %1183 = vmatpush1.msra.mxu0 %v1130
    %1184 = vmatprep.subr.mxu0 0.0
    %1185 = vmatpush1.msra.mxu0 %v1131
    %1186 = vmatprep.subr.mxu0 0.0
    %1187 = vmatpush1.msra.mxu0 %v1132
    %1188 = vmatprep.subr.mxu0 0.0
    %1189 = vmatpush1.msra.mxu0 %v1142
    %1190 = vmatprep.subr.mxu0 0.0
    %1191 = vmatpush1.msra.mxu0 0.0
    %1192 = vmatprep.subr.mxu0 0.0
    %1193 = vmatpush1.msra.mxu0 0.0
    %1194 = vmatprep.subr.mxu0 0.0
    %1195 = vmatpush1.msra.mxu0 0.0
    %1196 = vmatprep.subr.mxu0 0.0
    %1197 = vmatpush1.msra.mxu0 0.0
    %1198 = vmatprep.subr.mxu0 0.0
    %1199 = vmatpush1.msra.mxu0 0.0
    %1200 = vmatprep.subr.mxu0 0.0
    %1201 = vmatpush1.msra.mxu0 0.0
    %1202 = vmatprep.subr.mxu0 0.0
    %1203 = vmatpush1.msra.mxu0 0.0
    %1204 = vmatprep.subr.mxu0 0.0
    %1205 = vmatpush1.msra.mxu0 0.0
    %1206 = vmatprep.subr.mxu0 0.0
    %1207 = vmatpush1.msra.mxu0 0.0
    %1208 = vmatprep.mubr.f32.mxu0 %v275
    %1209 = vmatmul.mubr.f32.gmra.mrb[0].mxu0 %v51
    %v1210 = vpop.f32.mrb[0].mxu0
    %v1211 = vadd.f32 %v1139, %v1210
    %v1212 = vpop.f32.mrb[0].mxu0
    %1213 = vmatprep.mubr.f32.mxu0 %v278
    %1214 = vmatmul.mubr.f32.gmra.mrb[0].mxu0 %v53
    %v1215 = vpop.f32.mrb[0].mxu0
    %v1216 = vadd.f32 %v1139, %v1215
    %v1217 = vpop.f32.mrb[0].mxu0
    %1218 = vmatprep.mubr.f32.mxu0 %v281
    %1219 = vmatmul.mubr.f32.gmra.mrb[0].mxu0 %v55
    %v1220 = vpop.f32.mrb[0].mxu0
    %v1221 = vadd.f32 %v1139, %v1220
    %v1222 = vpop.f32.mrb[0].mxu0
    %1223 = vmatprep.mubr.f32.mxu0 %v284
    %1224 = vmatmul.mubr.f32.gmra.mrb[0].mxu0 %v57
    %v1225 = vpop.f32.mrb[0].mxu0
    %v1226 = vadd.f32 %v1139, %v1225
    %v1227 = vpop.f32.mrb[0].mxu0
    %1228 = vmatprep.mubr.f32.mxu0 %v287
    %1229 = vmatmul.mubr.f32.gmra.mrb[0].mxu0 %v59
    %v1230 = vpop.f32.mrb[0].mxu0
    %v1231 = vadd.f32 %v1139, %v1230
    %v1232 = vpop.f32.mrb[0].mxu0
    %1233 = vmatprep.mubr.f32.mxu0 %v290
    %1234 = vmatmul.mubr.f32.gmra.mrb[0].mxu0 %v61
    %v1235 = vpop.f32.mrb[0].mxu0
    %v1236 = vadd.f32 %v1139, %v1235
    %v1237 = vpop.f32.mrb[0].mxu0
    %1238 = vmatprep.mubr.f32.mxu0 %v293
    %1239 = vmatmul.mubr.f32.gmra.mrb[0].mxu0 %v63
    %v1240 = vpop.f32.mrb[0].mxu0
    %v1241 = vadd.f32 %v1139, %v1240
    %v1242 = vpop.f32.mrb[0].mxu0
    %1243 = vmatprep.mubr.f32.mxu0 %v296
    %1244 = vmatmul.mubr.f32.gmra.mrb[0].mxu0 %v65
    %v1245 = vpop.f32.mrb[0].mxu0
    %v1246 = vadd.f32 %v1139, %v1245
    %v1247 = vpop.f32.mrb[0].mxu0
    %1248 = vmatprep.mubr.f32.mxu0 %v299
    %1249 = vmatmul.mubr.f32.gmra.mrb[0].mxu0 %v67
    %v1250 = vpop.f32.mrb[0].mxu0
    %v1251 = vadd.f32 %v1139, %v1250
    %v1252 = vpop.f32.mrb[0].mxu0
    %1253 = vmatprep.mubr.f32.mxu0 %v302
    %1254 = vmatmul.mubr.f32.gmra.mrb[0].mxu0 %v69
    %v1255 = vpop.f32.mrb[0].mxu0
    %v1256 = vadd.f32 %v1139, %v1255
    %v1257 = vpop.f32.mrb[0].mxu0
    %1258 = vmatprep.mubr.f32.mxu0 %v305
    %1259 = vmatmul.mubr.f32.gmra.mrb[0].mxu0 %v71
    %v1260 = vpop.f32.mrb[0].mxu0
    %v1261 = vadd.f32 %v1139, %v1260
    %v1262 = vpop.f32.mrb[0].mxu0
    %1263 = vmatprep.mubr.f32.mxu0 %v308
    %1264 = vmatmul.mubr.f32.gmra.mrb[0].mxu0 %v73
    %v1265 = vpop.f32.mrb[0].mxu0
    %v1266 = vadd.f32 %v1139, %v1265
    %v1267 = vpop.f32.mrb[0].mxu0
    %1268 = vmatprep.mubr.f32.mxu0 %v311
    %1269 = vmatmul.mubr.f32.gmra.mrb[0].mxu0 %v75
    %v1270 = vpop.f32.mrb[0].mxu0
    %v1271 = vadd.f32 %v1139, %v1270
    %v1272 = vpop.f32.mrb[0].mxu0
    %1273 = vmatprep.mubr.f32.mxu0 %v314
    %1274 = vmatmul.mubr.f32.gmra.mrb[0].mxu0 %v77
    %v1275 = vpop.f32.mrb[0].mxu0
    %v1276 = vadd.f32 %v1139, %v1275
    %v1277 = vpop.f32.mrb[0].mxu0
    %1278 = vmatprep.mubr.f32.mxu0 %v317
    %1279 = vmatmul.mubr.f32.gmra.mrb[0].mxu0 %v79
    %v1280 = vpop.f32.mrb[0].mxu0
    %v1281 = vadd.f32 %v1139, %v1280
    %v1282 = vpop.f32.mrb[0].mxu0
    %1283 = vmatprep.mubr.f32.mxu0 %v320
    %1284 = vmatmul.mubr.f32.gmra.mrb[0].mxu0 %v81
    %v1285 = vpop.f32.mrb[0].mxu0
    %v1286 = vadd.f32 %v1139, %v1285
    %v1287 = vpop.f32.mrb[0].mxu0
    %1288 = vmatprep.mubr.f32.mxu0 %v323
    %1289 = vmatmul.mubr.f32.gmra.mrb[0].mxu0 %v83
    %v1290 = vpop.f32.mrb[0].mxu0
    %v1291 = vadd.f32 %v1139, %v1290
    %v1292 = vpop.f32.mrb[0].mxu0
    %1293 = vmatprep.mubr.f32.mxu0 %v326
    %1294 = vmatmul.mubr.f32.gmra.mrb[0].mxu0 %v85
    %v1295 = vpop.f32.mrb[0].mxu0
    %v1296 = vadd.f32 %v1139, %v1295
    %v1297 = vpop.f32.mrb[0].mxu0
    %1298 = vmatprep.mubr.f32.mxu0 %v329
    %1299 = vmatmul.mubr.f32.gmra.mrb[0].mxu0 %v87
    %v1300 = vpop.f32.mrb[0].mxu0
    %v1301 = vadd.f32 %v1139, %v1300
    %v1302 = vpop.f32.mrb[0].mxu0
    %1303 = vmatprep.mubr.f32.mxu0 %v332
    %1304 = vmatmul.mubr.f32.gmra.mrb[0].mxu0 %v89
    %v1305 = vpop.f32.mrb[0].mxu0
    %v1306 = vadd.f32 %v1139, %v1305
    %v1307 = vpop.f32.mrb[0].mxu0
    %1308 = vmatprep.mubr.f32.mxu0 %v335
    %1309 = vmatmul.mubr.f32.gmra.mrb[0].mxu0 %v91
    %v1310 = vpop.f32.mrb[0].mxu0
    %v1311 = vadd.f32 %v1139, %v1310
    %v1312 = vpop.f32.mrb[0].mxu0
    %1313 = vmatprep.mubr.f32.mxu0 %v338
    %1314 = vmatmul.mubr.f32.gmra.mrb[0].mxu0 %v93
    %v1315 = vpop.f32.mrb[0].mxu0
    %v1316 = vadd.f32 %v1139, %v1315
    %v1317 = vpop.f32.mrb[0].mxu0
    %1318 = vmatprep.mubr.f32.mxu0 %v341
    %1319 = vmatmul.mubr.f32.gmra.mrb[0].mxu0 %v95
    %v1320 = vpop.f32.mrb[0].mxu0
    %v1321 = vadd.f32 %v1139, %v1320
    %v1322 = vpop.f32.mrb[0].mxu0
    %1323 = vmatprep.mubr.f32.mxu0 %v344
    %1324 = vmatmul.mubr.f32.gmra.mrb[0].mxu0 %v97
    %v1325 = vpop.f32.mrb[0].mxu0
    %v1326 = vadd.f32 %v1139, %v1325
    %v1327 = vpop.f32.mrb[0].mxu0
    %1328 = vmatprep.mubr.f32.mxu0 %v347
    %1329 = vmatmul.mubr.f32.gmra.mrb[0].mxu0 %v99
    %v1330 = vpop.f32.mrb[0].mxu0
    %v1331 = vadd.f32 %v1139, %v1330
    %v1332 = vpop.f32.mrb[0].mxu0
    %1333 = vmatprep.mubr.f32.mxu0 %v350
    %1334 = vmatmul.mubr.f32.gmra.mrb[0].mxu0 %v101
    %v1335 = vpop.f32.mrb[0].mxu0
    %v1336 = vadd.f32 %v1139, %v1335
    %v1337 = vpop.f32.mrb[0].mxu0
    %1338 = vmatprep.mubr.f32.mxu0 %v353
    %1339 = vmatmul.mubr.f32.gmra.mrb[0].mxu0 %v103
    %v1340 = vpop.f32.mrb[0].mxu0
    %v1341 = vadd.f32 %v1139, %v1340
    %v1342 = vpop.f32.mrb[0].mxu0
    %1343 = vmatprep.mubr.f32.mxu0 %v356
    %1344 = vmatmul.mubr.f32.gmra.mrb[0].mxu0 %v105
    %v1345 = vpop.f32.mrb[0].mxu0
    %v1346 = vadd.f32 %v1139, %v1345
    %v1347 = vpop.f32.mrb[0].mxu0
    %1348 = vmatprep.mubr.f32.mxu0 %v359
    %1349 = vmatmul.mubr.f32.gmra.mrb[0].mxu0 %v107
    %v1350 = vpop.f32.mrb[0].mxu0
    %v1351 = vadd.f32 %v1139, %v1350
    %v1352 = vpop.f32.mrb[0].mxu0
    %1353 = vmatprep.mubr.f32.mxu0 %v362
    %1354 = vmatmul.mubr.f32.gmra.mrb[0].mxu0 %v109
    %v1355 = vpop.f32.mrb[0].mxu0
    %v1356 = vadd.f32 %v1139, %v1355
    %v1357 = vpop.f32.mrb[0].mxu0
    %1358 = vmatprep.mubr.f32.mxu0 %v365
    %1359 = vmatmul.mubr.f32.gmra.mrb[0].mxu0 %v111
    %v1360 = vpop.f32.mrb[0].mxu0
    %v1361 = vadd.f32 %v1139, %v1360
    %v1362 = vpop.f32.mrb[0].mxu0
    %1363 = vmatprep.mubr.f32.mxu0 %v368
    %1364 = vmatmul.mubr.f32.gmra.mrb[0].mxu0 %v113
    %v1365 = vpop.f32.mrb[0].mxu0
    %v1366 = vadd.f32 %v1139, %v1365
    %v1367 = vpop.f32.mrb[0].mxu0
    %1368 = vmatprep.mubr.f32.mxu0 %v371
    %1369 = vmatmul.mubr.f32.gmra.mrb[0].mxu0 %v115
    %v1370 = vpop.f32.mrb[0].mxu0
    %v1371 = vadd.f32 %v1139, %v1370
    %v1372 = vpop.f32.mrb[0].mxu0
    %1373 = vmatprep.mubr.f32.mxu0 %v374
    %1374 = vmatmul.mubr.f32.gmra.mrb[0].mxu0 %v117
    %v1375 = vpop.f32.mrb[0].mxu0
    %v1376 = vadd.f32 %v1139, %v1375
    %v1377 = vpop.f32.mrb[0].mxu0
    %1378 = vmatprep.mubr.f32.mxu0 %v377
    %1379 = vmatmul.mubr.f32.gmra.mrb[0].mxu0 %v119
    %v1380 = vpop.f32.mrb[0].mxu0
    %v1381 = vadd.f32 %v1139, %v1380
    %v1382 = vpop.f32.mrb[0].mxu0
    %1383 = vmatprep.mubr.f32.mxu0 %v380
    %1384 = vmatmul.mubr.f32.gmra.mrb[0].mxu0 %v121
    %v1385 = vpop.f32.mrb[0].mxu0
    %v1386 = vadd.f32 %v1139, %v1385
    %v1387 = vpop.f32.mrb[0].mxu0
    %1388 = vmatprep.mubr.f32.mxu0 %v383
    %1389 = vmatmul.mubr.f32.gmra.mrb[0].mxu0 %v123
    %v1390 = vpop.f32.mrb[0].mxu0
    %v1391 = vadd.f32 %v1139, %v1390
    %v1392 = vpop.f32.mrb[0].mxu0
    %1393 = vmatprep.mubr.f32.mxu0 %v386
    %1394 = vmatmul.mubr.f32.gmra.mrb[0].mxu0 %v125
    %v1395 = vpop.f32.mrb[0].mxu0
    %v1396 = vadd.f32 %v1139, %v1395
    %v1397 = vpop.f32.mrb[0].mxu0
    %1398 = vmatprep.mubr.f32.mxu0 %v389
    %1399 = vmatmul.mubr.f32.gmra.mrb[0].mxu0 %v127
    %v1400 = vpop.f32.mrb[0].mxu0
    %v1401 = vadd.f32 %v1139, %v1400
    %v1402 = vpop.f32.mrb[0].mxu0
    %1403 = vmatprep.mubr.f32.mxu0 %v392
    %1404 = vmatmul.mubr.f32.gmra.mrb[0].mxu0 %v129
    %v1405 = vpop.f32.mrb[0].mxu0
    %v1406 = vadd.f32 %v1139, %v1405
    %v1407 = vpop.f32.mrb[0].mxu0
    %1408 = vmatprep.mubr.f32.mxu0 %v395
    %1409 = vmatmul.mubr.f32.gmra.mrb[0].mxu0 %v131
    %v1410 = vpop.f32.mrb[0].mxu0
    %v1411 = vadd.f32 %v1139, %v1410
    %v1412 = vpop.f32.mrb[0].mxu0
    %1413 = vmatprep.mubr.f32.mxu0 %v398
    %1414 = vmatmul.mubr.f32.gmra.mrb[0].mxu0 %v133
    %v1415 = vpop.f32.mrb[0].mxu0
    %v1416 = vadd.f32 %v1139, %v1415
    %v1417 = vpop.f32.mrb[0].mxu0
    %1418 = vmatprep.mubr.f32.mxu0 %v401
    %1419 = vmatmul.mubr.f32.gmra.mrb[0].mxu0 %v135
    %v1420 = vpop.f32.mrb[0].mxu0
    %v1421 = vadd.f32 %v1139, %v1420
    %v1422 = vpop.f32.mrb[0].mxu0
    %1423 = vmatprep.mubr.f32.mxu0 %v404
    %1424 = vmatmul.mubr.f32.gmra.mrb[0].mxu0 %v137
    %v1425 = vpop.f32.mrb[0].mxu0
    %v1426 = vadd.f32 %v1139, %v1425
    %v1427 = vpop.f32.mrb[0].mxu0
    %1428 = vmatprep.mubr.f32.mxu0 %v407
    %1429 = vmatmul.mubr.f32.gmra.mrb[0].mxu0 %v139
    %v1430 = vpop.f32.mrb[0].mxu0
    %v1431 = vadd.f32 %v1139, %v1430
    %v1432 = vpop.f32.mrb[0].mxu0
    %1433 = vmatprep.mubr.f32.mxu0 %v410
    %1434 = vmatmul.mubr.f32.gmra.mrb[0].mxu0 %v141
    %v1435 = vpop.f32.mrb[0].mxu0
    %v1436 = vadd.f32 %v1139, %v1435
    %v1437 = vpop.f32.mrb[0].mxu0
    %1438 = vmatprep.mubr.f32.mxu0 %v413
    %1439 = vmatmul.mubr.f32.gmra.mrb[0].mxu0 %v143
    %v1440 = vpop.f32.mrb[0].mxu0
    %v1441 = vadd.f32 %v1139, %v1440
    %v1442 = vpop.f32.mrb[0].mxu0
    %1443 = vmatprep.mubr.f32.mxu0 %v416
    %1444 = vmatmul.mubr.f32.gmra.mrb[0].mxu0 %v145
    %v1445 = vpop.f32.mrb[0].mxu0
    %v1446 = vadd.f32 %v1139, %v1445
    %v1447 = vpop.f32.mrb[0].mxu0
    %1448 = vmatprep.mubr.f32.mxu0 %v419
    %1449 = vmatmul.mubr.f32.gmra.mrb[0].mxu0 %v147
    %v1450 = vpop.f32.mrb[0].mxu0
    %v1451 = vadd.f32 %v1139, %v1450
    %v1452 = vpop.f32.mrb[0].mxu0
    %1453 = vmatprep.mubr.f32.mxu0 %v422
    %1454 = vmatmul.mubr.f32.gmra.mrb[0].mxu0 %v149
    %v1455 = vpop.f32.mrb[0].mxu0
    %v1456 = vadd.f32 %v1139, %v1455
    %v1457 = vpop.f32.mrb[0].mxu0
    %1458 = vmatprep.mubr.f32.mxu0 %v425
    %1459 = vmatmul.mubr.f32.gmra.mrb[0].mxu0 %v151
    %v1460 = vpop.f32.mrb[0].mxu0
    %v1461 = vadd.f32 %v1139, %v1460
    %v1462 = vpop.f32.mrb[0].mxu0
    %1463 = vmatprep.mubr.f32.mxu0 %v428
    %1464 = vmatmul.mubr.f32.gmra.mrb[0].mxu0 %v153
    %v1465 = vpop.f32.mrb[0].mxu0
    %v1466 = vadd.f32 %v1139, %v1465
    %v1467 = vpop.f32.mrb[0].mxu0
    %1468 = vmatprep.mubr.f32.mxu0 %v431
    %1469 = vmatmul.mubr.f32.gmra.mrb[0].mxu0 %v155
    %v1470 = vpop.f32.mrb[0].mxu0
    %v1471 = vadd.f32 %v1139, %v1470
    %v1472 = vpop.f32.mrb[0].mxu0
    %1473 = vmatprep.mubr.f32.mxu0 %v434
    %1474 = vmatmul.mubr.f32.gmra.mrb[0].mxu0 %v157
    %v1475 = vpop.f32.mrb[0].mxu0
    %v1476 = vadd.f32 %v1139, %v1475
    %v1477 = vpop.f32.mrb[0].mxu0
    %1478 = vmatprep.mubr.f32.mxu0 %v437
    %1479 = vmatmul.mubr.f32.gmra.mrb[0].mxu0 %v159
    %v1480 = vpop.f32.mrb[0].mxu0
    %v1481 = vadd.f32 %v1139, %v1480
    %v1482 = vpop.f32.mrb[0].mxu0
    %1483 = vmatprep.mubr.f32.mxu0 %v440
    %1484 = vmatmul.mubr.f32.gmra.mrb[0].mxu0 %v161
    %v1485 = vpop.f32.mrb[0].mxu0
    %v1486 = vadd.f32 %v1139, %v1485
    %v1487 = vpop.f32.mrb[0].mxu0
    %1488 = vmatprep.mubr.f32.mxu0 %v443
    %1489 = vmatmul.mubr.f32.gmra.mrb[0].mxu0 %v163
    %v1490 = vpop.f32.mrb[0].mxu0
    %v1491 = vadd.f32 %v1139, %v1490
    %v1492 = vpop.f32.mrb[0].mxu0
    %1493 = vmatprep.mubr.f32.mxu0 %v446
    %1494 = vmatmul.mubr.f32.gmra.mrb[0].mxu0 %v165
    %v1495 = vpop.f32.mrb[0].mxu0
    %v1496 = vadd.f32 %v1139, %v1495
    %v1497 = vpop.f32.mrb[0].mxu0
    %1498 = vmatprep.mubr.f32.mxu0 %v449
    %1499 = vmatmul.mubr.f32.gmra.mrb[0].mxu0 %v167
    %v1500 = vpop.f32.mrb[0].mxu0
    %v1501 = vadd.f32 %v1139, %v1500
    %v1502 = vpop.f32.mrb[0].mxu0
    %1503 = vmatprep.mubr.f32.mxu0 %v452
    %1504 = vmatmul.mubr.f32.gmra.mrb[0].mxu0 %v169
    %v1505 = vpop.f32.mrb[0].mxu0
    %v1506 = vadd.f32 %v1139, %v1505
    %v1507 = vpop.f32.mrb[0].mxu0
    %1508 = vmatprep.mubr.f32.mxu0 %v455
    %1509 = vmatmul.mubr.f32.gmra.mrb[0].mxu0 %v171
    %v1510 = vpop.f32.mrb[0].mxu0
    %v1511 = vadd.f32 %v1139, %v1510
    %v1512 = vpop.f32.mrb[0].mxu0
    %1513 = vmatprep.mubr.f32.mxu0 %v458
    %1514 = vmatmul.mubr.f32.gmra.mrb[0].mxu0 %v173
    %v1515 = vpop.f32.mrb[0].mxu0
    %v1516 = vadd.f32 %v1139, %v1515
    %v1517 = vpop.f32.mrb[0].mxu0
    %1518 = vmatprep.mubr.f32.mxu0 %v461
    %1519 = vmatmul.mubr.f32.gmra.mrb[0].mxu0 %v175
    %v1520 = vpop.f32.mrb[0].mxu0
    %v1521 = vadd.f32 %v1139, %v1520
    %v1522 = vpop.f32.mrb[0].mxu0
    %1523 = vmatprep.mubr.f32.mxu0 %v464
    %1524 = vmatmul.mubr.f32.gmra.mrb[0].mxu0 %v177
    %v1525 = vpop.f32.mrb[0].mxu0
    %v1526 = vadd.f32 %v1139, %v1525
    %v1527 = vpop.f32.mrb[0].mxu0
    %1528 = vmatprep.mubr.f32.mxu0 %v467
    %1529 = vmatmul.mubr.f32.gmra.mrb[0].mxu0 %v179
    %v1530 = vpop.f32.mrb[0].mxu0
    %v1531 = vadd.f32 %v1139, %v1530
    %v1532 = vpop.f32.mrb[0].mxu0
    %1533 = vmatprep.mubr.f32.mxu0 %v470
    %1534 = vmatmul.mubr.f32.gmra.mrb[0].mxu0 %v181
    %v1535 = vpop.f32.mrb[0].mxu0
    %v1536 = vadd.f32 %v1139, %v1535
    %v1537 = vpop.f32.mrb[0].mxu0
    %1538 = vmatprep.mubr.f32.mxu0 %v473
    %1539 = vmatmul.mubr.f32.gmra.mrb[0].mxu0 %v183
    %v1540 = vpop.f32.mrb[0].mxu0
    %v1541 = vadd.f32 %v1139, %v1540
    %v1542 = vpop.f32.mrb[0].mxu0
    %1543 = vmatprep.mubr.f32.mxu0 %v476
    %1544 = vmatmul.mubr.f32.gmra.mrb[0].mxu0 %v185
    %v1545 = vpop.f32.mrb[0].mxu0
    %v1546 = vadd.f32 %v1139, %v1545
    %v1547 = vpop.f32.mrb[0].mxu0
    %1548 = vmatprep.mubr.f32.mxu0 %v479
    %1549 = vmatmul.mubr.f32.gmra.mrb[0].mxu0 %v187
    %v1550 = vpop.f32.mrb[0].mxu0
    %v1551 = vadd.f32 %v1139, %v1550
    %v1552 = vpop.f32.mrb[0].mxu0
    %1553 = vmatprep.mubr.f32.mxu0 %v482
    %1554 = vmatmul.mubr.f32.gmra.mrb[0].mxu0 %v189
    %v1555 = vpop.f32.mrb[0].mxu0
    %v1556 = vadd.f32 %v1139, %v1555
    %v1557 = vpop.f32.mrb[0].mxu0
    %1558 = vmatprep.mubr.f32.mxu0 %v485
    %1559 = vmatmul.mubr.f32.gmra.mrb[0].mxu0 %v191
    %v1560 = vpop.f32.mrb[0].mxu0
    %v1561 = vadd.f32 %v1139, %v1560
    %v1562 = vpop.f32.mrb[0].mxu0
    %1563 = vmatprep.mubr.f32.mxu0 %v488
    %1564 = vmatmul.mubr.f32.gmra.mrb[0].mxu0 %v193
    %v1565 = vpop.f32.mrb[0].mxu0
    %v1566 = vadd.f32 %v1139, %v1565
    %v1567 = vpop.f32.mrb[0].mxu0
    %1568 = vmatprep.mubr.f32.mxu0 %v491
    %1569 = vmatmul.mubr.f32.gmra.mrb[0].mxu0 %v195
    %v1570 = vpop.f32.mrb[0].mxu0
    %v1571 = vadd.f32 %v1139, %v1570
    %v1572 = vpop.f32.mrb[0].mxu0
    %1573 = vmatprep.mubr.f32.mxu0 %v494
    %1574 = vmatmul.mubr.f32.gmra.mrb[0].mxu0 %v197
    %v1575 = vpop.f32.mrb[0].mxu0
    %v1576 = vadd.f32 %v1139, %v1575
    %v1577 = vpop.f32.mrb[0].mxu0
    %1578 = vmatprep.mubr.f32.mxu0 %v497
    %1579 = vmatmul.mubr.f32.gmra.mrb[0].mxu0 %v199
    %v1580 = vpop.f32.mrb[0].mxu0
    %v1581 = vadd.f32 %v1139, %v1580
    %v1582 = vpop.f32.mrb[0].mxu0
    %1583 = vmatprep.mubr.f32.mxu0 %v500
    %1584 = vmatmul.mubr.f32.gmra.mrb[0].mxu0 %v201
    %v1585 = vpop.f32.mrb[0].mxu0
    %v1586 = vadd.f32 %v1139, %v1585
    %v1587 = vpop.f32.mrb[0].mxu0
    %1588 = vmatprep.mubr.f32.mxu0 %v503
    %1589 = vmatmul.mubr.f32.gmra.mrb[0].mxu0 %v203
    %v1590 = vpop.f32.mrb[0].mxu0
    %v1591 = vadd.f32 %v1139, %v1590
    %v1592 = vpop.f32.mrb[0].mxu0
    %1593 = vmatprep.mubr.f32.mxu0 %v506
    %1594 = vmatmul.mubr.f32.gmra.mrb[0].mxu0 %v205
    %v1595 = vpop.f32.mrb[0].mxu0
    %v1596 = vadd.f32 %v1139, %v1595
    %v1597 = vpop.f32.mrb[0].mxu0
    %1598 = vmatprep.mubr.f32.mxu0 %v509
    %1599 = vmatmul.mubr.f32.gmra.mrb[0].mxu0 %v207
    %v1600 = vpop.f32.mrb[0].mxu0
    %v1601 = vadd.f32 %v1139, %v1600
    %v1602 = vpop.f32.mrb[0].mxu0
    %1603 = vmatprep.mubr.f32.mxu0 %v512
    %1604 = vmatmul.mubr.f32.gmra.mrb[0].mxu0 %v209
    %v1605 = vpop.f32.mrb[0].mxu0
    %v1606 = vadd.f32 %v1139, %v1605
    %v1607 = vpop.f32.mrb[0].mxu0
    %1608 = vmatprep.mubr.f32.mxu0 %v515
    %1609 = vmatmul.mubr.f32.gmra.mrb[0].mxu0 %v211
    %v1610 = vpop.f32.mrb[0].mxu0
    %v1611 = vadd.f32 %v1139, %v1610
    %v1612 = vpop.f32.mrb[0].mxu0
    %1613 = vmatprep.mubr.f32.mxu0 %v518
    %1614 = vmatmul.mubr.f32.gmra.mrb[0].mxu0 %v213
    %v1615 = vpop.f32.mrb[0].mxu0
    %v1616 = vadd.f32 %v1139, %v1615
    %v1617 = vpop.f32.mrb[0].mxu0
    %1618 = vmatprep.mubr.f32.mxu0 %v521
    %1619 = vmatmul.mubr.f32.gmra.mrb[0].mxu0 %v215
    %v1620 = vpop.f32.mrb[0].mxu0
    %v1621 = vadd.f32 %v1139, %v1620
    %v1622 = vpop.f32.mrb[0].mxu0
    %1623 = vmatprep.mubr.f32.mxu0 %v524
    %1624 = vmatmul.mubr.f32.gmra.mrb[0].mxu0 %v217
    %v1625 = vpop.f32.mrb[0].mxu0
    %v1626 = vadd.f32 %v1139, %v1625
    %v1627 = vpop.f32.mrb[0].mxu0
    %1628 = vmatprep.mubr.f32.mxu0 %v527
    %1629 = vmatmul.mubr.f32.gmra.mrb[0].mxu0 %v219
    %v1630 = vpop.f32.mrb[0].mxu0
    %v1631 = vadd.f32 %v1139, %v1630
    %v1632 = vpop.f32.mrb[0].mxu0
    %1633 = vmatprep.mubr.f32.mxu0 %v530
    %1634 = vmatmul.mubr.f32.gmra.mrb[0].mxu0 %v221
    %v1635 = vpop.f32.mrb[0].mxu0
    %v1636 = vadd.f32 %v1139, %v1635
    %v1637 = vpop.f32.mrb[0].mxu0
    %1638 = vmatprep.mubr.f32.mxu0 %v533
    %1639 = vmatmul.mubr.f32.gmra.mrb[0].mxu0 %v223
    %v1640 = vpop.f32.mrb[0].mxu0
    %v1641 = vadd.f32 %v1139, %v1640
    %v1642 = vpop.f32.mrb[0].mxu0
    %1643 = vmatprep.mubr.f32.mxu0 %v536
    %1644 = vmatmul.mubr.f32.gmra.mrb[0].mxu0 %v225
    %v1645 = vpop.f32.mrb[0].mxu0
    %v1646 = vadd.f32 %v1139, %v1645
    %v1647 = vpop.f32.mrb[0].mxu0
    %1648 = vmatprep.mubr.f32.mxu0 %v539
    %1649 = vmatmul.mubr.f32.gmra.mrb[0].mxu0 %v227
    %v1650 = vpop.f32.mrb[0].mxu0
    %v1651 = vadd.f32 %v1139, %v1650
    %v1652 = vpop.f32.mrb[0].mxu0
    %1653 = vmatprep.mubr.f32.mxu0 %v542
    %1654 = vmatmul.mubr.f32.gmra.mrb[0].mxu0 %v229
    %v1655 = vpop.f32.mrb[0].mxu0
    %v1656 = vadd.f32 %v1139, %v1655
    %v1657 = vpop.f32.mrb[0].mxu0
    %1658 = vmatprep.mubr.f32.mxu0 %v545
    %1659 = vmatmul.mubr.f32.gmra.mrb[0].mxu0 %v231
    %v1660 = vpop.f32.mrb[0].mxu0
    %v1661 = vadd.f32 %v1139, %v1660
    %v1662 = vpop.f32.mrb[0].mxu0
    %1663 = vmatprep.mubr.f32.mxu0 %v548
    %1664 = vmatmul.mubr.f32.gmra.mrb[0].mxu0 %v233
    %v1665 = vpop.f32.mrb[0].mxu0
    %v1666 = vadd.f32 %v1139, %v1665
    %v1667 = vpop.f32.mrb[0].mxu0
    %1668 = vmatprep.mubr.f32.mxu0 %v551
    %1669 = vmatmul.mubr.f32.gmra.mrb[0].mxu0 %v235
    %v1670 = vpop.f32.mrb[0].mxu0
    %v1671 = vadd.f32 %v1139, %v1670
    %v1672 = vpop.f32.mrb[0].mxu0
    %1673 = vmatprep.mubr.f32.mxu0 %v554
    %1674 = vmatmul.mubr.f32.gmra.mrb[0].mxu0 %v237
    %v1675 = vpop.f32.mrb[0].mxu0
    %v1676 = vadd.f32 %v1139, %v1675
    %v1677 = vpop.f32.mrb[0].mxu0
    %1678 = vmatprep.mubr.f32.mxu0 %v557
    %1679 = vmatmul.mubr.f32.gmra.mrb[0].mxu0 %v239
    %v1680 = vpop.f32.mrb[0].mxu0
    %v1681 = vadd.f32 %v1139, %v1680
    %v1682 = vpop.f32.mrb[0].mxu0
    %1683 = vmatprep.mubr.f32.mxu0 %v560
    %1684 = vmatmul.mubr.f32.gmra.mrb[0].mxu0 %v241
    %v1685 = vpop.f32.mrb[0].mxu0
    %v1686 = vadd.f32 %v1139, %v1685
    %v1687 = vpop.f32.mrb[0].mxu0
    %1688 = vdwg.mxu0
    %vm1689 = vcmask 31744
    %v1690 = vsel %vm1689, %v633, -inf
    %1691 = vmax.xlane.f32.xlu0 %v1690
    %v1692 = vpop.xlane.xlu0 %1691
    %v1693 = vsel %vm1689, %v638, -inf
    %1694 = vmax.xlane.f32.xlu0 %v1693
    %v1695 = vpop.xlane.xlu0 %1694
    %v1696 = vsel %vm1689, %v643, -inf
    %1697 = vmax.xlane.f32.xlu0 %v1696
    %v1698 = vpop.xlane.xlu0 %1697
    %v1699 = vsel %vm1689, %v648, -inf
    %1700 = vmax.xlane.f32.xlu0 %v1699
    %v1701 = vpop.xlane.xlu0 %1700
    %v1702 = vsel %vm1689, %v653, -inf
    %1703 = vmax.xlane.f32.xlu0 %v1702
    %v1704 = vpop.xlane.xlu0 %1703
    %v1705 = vsel %vm1689, %v658, -inf
    %1706 = vmax.xlane.f32.xlu0 %v1705
    %v1707 = vpop.xlane.xlu0 %1706
    %v1708 = vsel %vm1689, %v663, -inf
    %1709 = vmax.xlane.f32.xlu0 %v1708
    %v1710 = vpop.xlane.xlu0 %1709
    %v1711 = vsel %vm1689, %v668, -inf
    %1712 = vmax.xlane.f32.xlu0 %v1711
    %v1713 = vpop.xlane.xlu0 %1712
    %v1714 = vsel %vm1689, %v673, -inf
    %1715 = vmax.xlane.f32.xlu0 %v1714
    %v1716 = vpop.xlane.xlu0 %1715
    %v1717 = vsel %vm1689, %v678, -inf
    %1718 = vmax.xlane.f32.xlu0 %v1717
    %v1719 = vpop.xlane.xlu0 %1718
    %v1720 = vsel %vm1689, %v683, -inf
    %1721 = vmax.xlane.f32.xlu0 %v1720
    %v1722 = vpop.xlane.xlu0 %1721
    %v1723 = vsel %vm1689, %v688, -inf
    %1724 = vmax.xlane.f32.xlu0 %v1723
    %v1725 = vpop.xlane.xlu0 %1724
    %v1726 = vsel %vm1689, %v693, -inf
    %1727 = vmax.xlane.f32.xlu0 %v1726
    %v1728 = vpop.xlane.xlu0 %1727
    %v1729 = vsel %vm1689, %v698, -inf
    %1730 = vmax.xlane.f32.xlu0 %v1729
    %v1731 = vpop.xlane.xlu0 %1730
    %v1732 = vsel %vm1689, %v703, -inf
    %1733 = vmax.xlane.f32.xlu0 %v1732
    %v1734 = vpop.xlane.xlu0 %1733
    %v1735 = vsel %vm1689, %v708, -inf
    %1736 = vmax.xlane.f32.xlu0 %v1735
    %v1737 = vpop.xlane.xlu0 %1736
    %v1738 = vsel %vm1689, %v713, -inf
    %1739 = vmax.xlane.f32.xlu0 %v1738
    %v1740 = vpop.xlane.xlu0 %1739
    %v1741 = vsel %vm1689, %v718, -inf
    %1742 = vmax.xlane.f32.xlu0 %v1741
    %v1743 = vpop.xlane.xlu0 %1742
    %v1744 = vsel %vm1689, %v723, -inf
    %1745 = vmax.xlane.f32.xlu0 %v1744
    %v1746 = vpop.xlane.xlu0 %1745
    %v1747 = vsel %vm1689, %v728, -inf
    %1748 = vmax.xlane.f32.xlu0 %v1747
    %v1749 = vpop.xlane.xlu0 %1748
    %v1750 = vsel %vm1689, %v733, -inf
    %1751 = vmax.xlane.f32.xlu0 %v1750
    %v1752 = vpop.xlane.xlu0 %1751
    %v1753 = vsel %vm1689, %v738, -inf
    %1754 = vmax.xlane.f32.xlu0 %v1753
    %v1755 = vpop.xlane.xlu0 %1754
    %v1756 = vsel %vm1689, %v743, -inf
    %1757 = vmax.xlane.f32.xlu0 %v1756
    %v1758 = vpop.xlane.xlu0 %1757
    %v1759 = vsel %vm1689, %v748, -inf
    %1760 = vmax.xlane.f32.xlu0 %v1759
    %v1761 = vpop.xlane.xlu0 %1760
    %v1762 = vsel %vm1689, %v753, -inf
    %1763 = vmax.xlane.f32.xlu0 %v1762
    %v1764 = vpop.xlane.xlu0 %1763
    %v1765 = vsel %vm1689, %v758, -inf
    %1766 = vmax.xlane.f32.xlu0 %v1765
    %v1767 = vpop.xlane.xlu0 %1766
    %v1768 = vsel %vm1689, %v763, -inf
    %1769 = vmax.xlane.f32.xlu0 %v1768
    %v1770 = vpop.xlane.xlu0 %1769
    %v1771 = vsel %vm1689, %v768, -inf
    %1772 = vmax.xlane.f32.xlu0 %v1771
    %v1773 = vpop.xlane.xlu0 %1772
    %v1774 = vsel %vm1689, %v773, -inf
    %1775 = vmax.xlane.f32.xlu0 %v1774
    %v1776 = vpop.xlane.xlu0 %1775
    %v1777 = vsel %vm1689, %v778, -inf
    %1778 = vmax.xlane.f32.xlu0 %v1777
    %v1779 = vpop.xlane.xlu0 %1778
    %v1780 = vsel %vm1689, %v783, -inf
    %1781 = vmax.xlane.f32.xlu0 %v1780
    %v1782 = vpop.xlane.xlu0 %1781
    %v1783 = vsel %vm1689, %v788, -inf
    %1784 = vmax.xlane.f32.xlu0 %v1783
    %v1785 = vpop.xlane.xlu0 %1784
    %v1786 = vsel %vm1689, %v793, -inf
    %1787 = vmax.xlane.f32.xlu0 %v1786
    %v1788 = vpop.xlane.xlu0 %1787
    %v1789 = vsel %vm1689, %v798, -inf
    %1790 = vmax.xlane.f32.xlu0 %v1789
    %v1791 = vpop.xlane.xlu0 %1790
    %v1792 = vsel %vm1689, %v803, -inf
    %1793 = vmax.xlane.f32.xlu0 %v1792
    %v1794 = vpop.xlane.xlu0 %1793
    %v1795 = vsel %vm1689, %v808, -inf
    %1796 = vmax.xlane.f32.xlu0 %v1795
    %v1797 = vpop.xlane.xlu0 %1796
    %v1798 = vsel %vm1689, %v813, -inf
    %1799 = vmax.xlane.f32.xlu0 %v1798
    %v1800 = vpop.xlane.xlu0 %1799
    %v1801 = vsel %vm1689, %v818, -inf
    %1802 = vmax.xlane.f32.xlu0 %v1801
    %v1803 = vpop.xlane.xlu0 %1802
    %v1804 = vsel %vm1689, %v823, -inf
    %1805 = vmax.xlane.f32.xlu0 %v1804
    %v1806 = vpop.xlane.xlu0 %1805
    %v1807 = vsel %vm1689, %v828, -inf
    %1808 = vmax.xlane.f32.xlu0 %v1807
    %v1809 = vpop.xlane.xlu0 %1808
    %v1810 = vsel %vm1689, %v833, -inf
    %1811 = vmax.xlane.f32.xlu0 %v1810
    %v1812 = vpop.xlane.xlu0 %1811
    %v1813 = vsel %vm1689, %v838, -inf
    %1814 = vmax.xlane.f32.xlu0 %v1813
    %v1815 = vpop.xlane.xlu0 %1814
    %v1816 = vsel %vm1689, %v843, -inf
    %1817 = vmax.xlane.f32.xlu0 %v1816
    %v1818 = vpop.xlane.xlu0 %1817
    %v1819 = vsel %vm1689, %v848, -inf
    %1820 = vmax.xlane.f32.xlu0 %v1819
    %v1821 = vpop.xlane.xlu0 %1820
    %v1822 = vsel %vm1689, %v853, -inf
    %1823 = vmax.xlane.f32.xlu0 %v1822
    %v1824 = vpop.xlane.xlu0 %1823
    %v1825 = vsel %vm1689, %v858, -inf
    %1826 = vmax.xlane.f32.xlu0 %v1825
    %v1827 = vpop.xlane.xlu0 %1826
    %v1828 = vsel %vm1689, %v863, -inf
    %1829 = vmax.xlane.f32.xlu0 %v1828
    %v1830 = vpop.xlane.xlu0 %1829
    %v1831 = vsel %vm1689, %v868, -inf
    %1832 = vmax.xlane.f32.xlu0 %v1831
    %v1833 = vpop.xlane.xlu0 %1832
    %v1834 = vsel %vm1689, %v873, -inf
    %1835 = vmax.xlane.f32.xlu0 %v1834
    %v1836 = vpop.xlane.xlu0 %1835
    %v1837 = vsel %vm1689, %v878, -inf
    %1838 = vmax.xlane.f32.xlu0 %v1837
    %v1839 = vpop.xlane.xlu0 %1838
    %v1840 = vsel %vm1689, %v883, -inf
    %1841 = vmax.xlane.f32.xlu0 %v1840
    %v1842 = vpop.xlane.xlu0 %1841
    %v1843 = vsel %vm1689, %v888, -inf
    %1844 = vmax.xlane.f32.xlu0 %v1843
    %v1845 = vpop.xlane.xlu0 %1844
    %v1846 = vsel %vm1689, %v893, -inf
    %1847 = vmax.xlane.f32.xlu0 %v1846
    %v1848 = vpop.xlane.xlu0 %1847
    %v1849 = vsel %vm1689, %v898, -inf
    %1850 = vmax.xlane.f32.xlu0 %v1849
    %v1851 = vpop.xlane.xlu0 %1850
    %v1852 = vsel %vm1689, %v903, -inf
    %1853 = vmax.xlane.f32.xlu0 %v1852
    %v1854 = vpop.xlane.xlu0 %1853
    %v1855 = vsel %vm1689, %v908, -inf
    %1856 = vmax.xlane.f32.xlu0 %v1855
    %v1857 = vpop.xlane.xlu0 %1856
    %v1858 = vsel %vm1689, %v913, -inf
    %1859 = vmax.xlane.f32.xlu0 %v1858
    %v1860 = vpop.xlane.xlu0 %1859
    %v1861 = vsel %vm1689, %v918, -inf
    %1862 = vmax.xlane.f32.xlu0 %v1861
    %v1863 = vpop.xlane.xlu0 %1862
    %v1864 = vsel %vm1689, %v923, -inf
    %1865 = vmax.xlane.f32.xlu0 %v1864
    %v1866 = vpop.xlane.xlu0 %1865
    %v1867 = vsel %vm1689, %v928, -inf
    %1868 = vmax.xlane.f32.xlu0 %v1867
    %v1869 = vpop.xlane.xlu0 %1868
    %v1870 = vsel %vm1689, %v933, -inf
    %1871 = vmax.xlane.f32.xlu0 %v1870
    %v1872 = vpop.xlane.xlu0 %1871
    %v1873 = vsel %vm1689, %v938, -inf
    %1874 = vmax.xlane.f32.xlu0 %v1873
    %v1875 = vpop.xlane.xlu0 %1874
    %v1876 = vsel %vm1689, %v943, -inf
    %1877 = vmax.xlane.f32.xlu0 %v1876
    %v1878 = vpop.xlane.xlu0 %1877
    %v1879 = vsel %vm1689, %v948, -inf
    %1880 = vmax.xlane.f32.xlu0 %v1879
    %v1881 = vpop.xlane.xlu0 %1880
    %v1882 = vsel %vm1689, %v953, -inf
    %1883 = vmax.xlane.f32.xlu0 %v1882
    %v1884 = vpop.xlane.xlu0 %1883
    %v1885 = vsel %vm1689, %v958, -inf
    %1886 = vmax.xlane.f32.xlu0 %v1885
    %v1887 = vpop.xlane.xlu0 %1886
    %v1888 = vsel %vm1689, %v963, -inf
    %1889 = vmax.xlane.f32.xlu0 %v1888
    %v1890 = vpop.xlane.xlu0 %1889
    %v1891 = vsel %vm1689, %v968, -inf
    %1892 = vmax.xlane.f32.xlu0 %v1891
    %v1893 = vpop.xlane.xlu0 %1892
    %v1894 = vsel %vm1689, %v973, -inf
    %1895 = vmax.xlane.f32.xlu0 %v1894
    %v1896 = vpop.xlane.xlu0 %1895
    %v1897 = vsel %vm1689, %v978, -inf
    %1898 = vmax.xlane.f32.xlu0 %v1897
    %v1899 = vpop.xlane.xlu0 %1898
    %v1900 = vsel %vm1689, %v983, -inf
    %1901 = vmax.xlane.f32.xlu0 %v1900
    %v1902 = vpop.xlane.xlu0 %1901
    %v1903 = vsel %vm1689, %v988, -inf
    %1904 = vmax.xlane.f32.xlu0 %v1903
    %v1905 = vpop.xlane.xlu0 %1904
    %v1906 = vsel %vm1689, %v993, -inf
    %1907 = vmax.xlane.f32.xlu0 %v1906
    %v1908 = vpop.xlane.xlu0 %1907
    %v1909 = vsel %vm1689, %v998, -inf
    %1910 = vmax.xlane.f32.xlu0 %v1909
    %v1911 = vpop.xlane.xlu0 %1910
    %v1912 = vsel %vm1689, %v1003, -inf
    %1913 = vmax.xlane.f32.xlu0 %v1912
    %v1914 = vpop.xlane.xlu0 %1913
    %v1915 = vsel %vm1689, %v1008, -inf
    %1916 = vmax.xlane.f32.xlu0 %v1915
    %v1917 = vpop.xlane.xlu0 %1916
    %v1918 = vsel %vm1689, %v1013, -inf
    %1919 = vmax.xlane.f32.xlu0 %v1918
    %v1920 = vpop.xlane.xlu0 %1919
    %v1921 = vsel %vm1689, %v1018, -inf
    %1922 = vmax.xlane.f32.xlu0 %v1921
    %v1923 = vpop.xlane.xlu0 %1922
    %v1924 = vsel %vm1689, %v1023, -inf
    %1925 = vmax.xlane.f32.xlu0 %v1924
    %v1926 = vpop.xlane.xlu0 %1925
    %v1927 = vsel %vm1689, %v1028, -inf
    %1928 = vmax.xlane.f32.xlu0 %v1927
    %v1929 = vpop.xlane.xlu0 %1928
    %v1930 = vsel %vm1689, %v1033, -inf
    %1931 = vmax.xlane.f32.xlu0 %v1930
    %v1932 = vpop.xlane.xlu0 %1931
    %v1933 = vsel %vm1689, %v1038, -inf
    %1934 = vmax.xlane.f32.xlu0 %v1933
    %v1935 = vpop.xlane.xlu0 %1934
    %v1936 = vsel %vm1689, %v1043, -inf
    %1937 = vmax.xlane.f32.xlu0 %v1936
    %v1938 = vpop.xlane.xlu0 %1937
    %v1939 = vsel %vm1689, %v1048, -inf
    %1940 = vmax.xlane.f32.xlu0 %v1939
    %v1941 = vpop.xlane.xlu0 %1940
    %v1942 = vsel %vm1689, %v1053, -inf
    %1943 = vmax.xlane.f32.xlu0 %v1942
    %v1944 = vpop.xlane.xlu0 %1943
    %v1945 = vsel %vm1689, %v1058, -inf
    %1946 = vmax.xlane.f32.xlu0 %v1945
    %v1947 = vpop.xlane.xlu0 %1946
    %v1948 = vsel %vm1689, %v1063, -inf
    %1949 = vmax.xlane.f32.xlu0 %v1948
    %v1950 = vpop.xlane.xlu0 %1949
    %v1951 = vsel %vm1689, %v1068, -inf
    %1952 = vmax.xlane.f32.xlu0 %v1951
    %v1953 = vpop.xlane.xlu0 %1952
    %v1954 = vsel %vm1689, %v1073, -inf
    %1955 = vmax.xlane.f32.xlu0 %v1954
    %v1956 = vpop.xlane.xlu0 %1955
    %v1957 = vsel %vm1689, %v1078, -inf
    %1958 = vmax.xlane.f32.xlu0 %v1957
    %v1959 = vpop.xlane.xlu0 %1958
    %v1960 = vsel %vm1689, %v1083, -inf
    %1961 = vmax.xlane.f32.xlu0 %v1960
    %v1962 = vpop.xlane.xlu0 %1961
    %v1963 = vsel %vm1689, %v1088, -inf
    %1964 = vmax.xlane.f32.xlu0 %v1963
    %v1965 = vpop.xlane.xlu0 %1964
    %v1966 = vsel %vm1689, %v1093, -inf
    %1967 = vmax.xlane.f32.xlu0 %v1966
    %v1968 = vpop.xlane.xlu0 %1967
    %v1969 = vsel %vm1689, %v1098, -inf
    %1970 = vmax.xlane.f32.xlu0 %v1969
    %v1971 = vpop.xlane.xlu0 %1970
    %v1972 = vsel %vm1689, %v1103, -inf
    %1973 = vmax.xlane.f32.xlu0 %v1972
    %v1974 = vpop.xlane.xlu0 %1973
    %v1975 = vsel %vm1689, %v1108, -inf
    %1976 = vmax.xlane.f32.xlu0 %v1975
    %v1977 = vpop.xlane.xlu0 %1976
    %v1978 = vsel %vm1689, %v1211, -inf
    %1979 = vmax.xlane.f32.xlu0 %v1978
    %v1980 = vpop.xlane.xlu0 %1979
    %v1981 = vsel %vm1689, %v1216, -inf
    %1982 = vmax.xlane.f32.xlu0 %v1981
    %v1983 = vpop.xlane.xlu0 %1982
    %v1984 = vsel %vm1689, %v1221, -inf
    %1985 = vmax.xlane.f32.xlu0 %v1984
    %v1986 = vpop.xlane.xlu0 %1985
    %v1987 = vsel %vm1689, %v1226, -inf
    %1988 = vmax.xlane.f32.xlu0 %v1987
    %v1989 = vpop.xlane.xlu0 %1988
    %v1990 = vsel %vm1689, %v1231, -inf
    %1991 = vmax.xlane.f32.xlu0 %v1990
    %v1992 = vpop.xlane.xlu0 %1991
    %v1993 = vsel %vm1689, %v1236, -inf
    %1994 = vmax.xlane.f32.xlu0 %v1993
    %v1995 = vpop.xlane.xlu0 %1994
    %v1996 = vsel %vm1689, %v1241, -inf
    %1997 = vmax.xlane.f32.xlu0 %v1996
    %v1998 = vpop.xlane.xlu0 %1997
    %v1999 = vsel %vm1689, %v1246, -inf
    %2000 = vmax.xlane.f32.xlu0 %v1999
    %v2001 = vpop.xlane.xlu0 %2000
    %v2002 = vsel %vm1689, %v1251, -inf
    %2003 = vmax.xlane.f32.xlu0 %v2002
    %v2004 = vpop.xlane.xlu0 %2003
    %v2005 = vsel %vm1689, %v1256, -inf
    %2006 = vmax.xlane.f32.xlu0 %v2005
    %v2007 = vpop.xlane.xlu0 %2006
    %v2008 = vsel %vm1689, %v1261, -inf
    %2009 = vmax.xlane.f32.xlu0 %v2008
    %v2010 = vpop.xlane.xlu0 %2009
    %v2011 = vsel %vm1689, %v1266, -inf
    %2012 = vmax.xlane.f32.xlu0 %v2011
    %v2013 = vpop.xlane.xlu0 %2012
    %v2014 = vsel %vm1689, %v1271, -inf
    %2015 = vmax.xlane.f32.xlu0 %v2014
    %v2016 = vpop.xlane.xlu0 %2015
    %v2017 = vsel %vm1689, %v1276, -inf
    %2018 = vmax.xlane.f32.xlu0 %v2017
    %v2019 = vpop.xlane.xlu0 %2018
    %v2020 = vsel %vm1689, %v1281, -inf
    %2021 = vmax.xlane.f32.xlu0 %v2020
    %v2022 = vpop.xlane.xlu0 %2021
    %v2023 = vsel %vm1689, %v1286, -inf
    %2024 = vmax.xlane.f32.xlu0 %v2023
    %v2025 = vpop.xlane.xlu0 %2024
    %v2026 = vsel %vm1689, %v1291, -inf
    %2027 = vmax.xlane.f32.xlu0 %v2026
    %v2028 = vpop.xlane.xlu0 %2027
    %v2029 = vsel %vm1689, %v1296, -inf
    %2030 = vmax.xlane.f32.xlu0 %v2029
    %v2031 = vpop.xlane.xlu0 %2030
    %v2032 = vsel %vm1689, %v1301, -inf
    %2033 = vmax.xlane.f32.xlu0 %v2032
    %v2034 = vpop.xlane.xlu0 %2033
    %v2035 = vsel %vm1689, %v1306, -inf
    %2036 = vmax.xlane.f32.xlu0 %v2035
    %v2037 = vpop.xlane.xlu0 %2036
    %v2038 = vsel %vm1689, %v1311, -inf
    %2039 = vmax.xlane.f32.xlu0 %v2038
    %v2040 = vpop.xlane.xlu0 %2039
    %v2041 = vsel %vm1689, %v1316, -inf
    %2042 = vmax.xlane.f32.xlu0 %v2041
    %v2043 = vpop.xlane.xlu0 %2042
    %v2044 = vsel %vm1689, %v1321, -inf
    %2045 = vmax.xlane.f32.xlu0 %v2044
    %v2046 = vpop.xlane.xlu0 %2045
    %v2047 = vsel %vm1689, %v1326, -inf
    %2048 = vmax.xlane.f32.xlu0 %v2047
    %v2049 = vpop.xlane.xlu0 %2048
    %v2050 = vsel %vm1689, %v1331, -inf
    %2051 = vmax.xlane.f32.xlu0 %v2050
    %v2052 = vpop.xlane.xlu0 %2051
    %v2053 = vsel %vm1689, %v1336, -inf
    %2054 = vmax.xlane.f32.xlu0 %v2053
    %v2055 = vpop.xlane.xlu0 %2054
    %v2056 = vsel %vm1689, %v1341, -inf
    %2057 = vmax.xlane.f32.xlu0 %v2056
    %v2058 = vpop.xlane.xlu0 %2057
    %v2059 = vsel %vm1689, %v1346, -inf
    %2060 = vmax.xlane.f32.xlu0 %v2059
    %v2061 = vpop.xlane.xlu0 %2060
    %v2062 = vsel %vm1689, %v1351, -inf
    %2063 = vmax.xlane.f32.xlu0 %v2062
    %v2064 = vpop.xlane.xlu0 %2063
    %v2065 = vsel %vm1689, %v1356, -inf
    %2066 = vmax.xlane.f32.xlu0 %v2065
    %v2067 = vpop.xlane.xlu0 %2066
    %v2068 = vsel %vm1689, %v1361, -inf
    %2069 = vmax.xlane.f32.xlu0 %v2068
    %v2070 = vpop.xlane.xlu0 %2069
    %v2071 = vsel %vm1689, %v1366, -inf
    %2072 = vmax.xlane.f32.xlu0 %v2071
    %v2073 = vpop.xlane.xlu0 %2072
    %v2074 = vsel %vm1689, %v1371, -inf
    %2075 = vmax.xlane.f32.xlu0 %v2074
    %v2076 = vpop.xlane.xlu0 %2075
    %v2077 = vsel %vm1689, %v1376, -inf
    %2078 = vmax.xlane.f32.xlu0 %v2077
    %v2079 = vpop.xlane.xlu0 %2078
    %v2080 = vsel %vm1689, %v1381, -inf
    %2081 = vmax.xlane.f32.xlu0 %v2080
    %v2082 = vpop.xlane.xlu0 %2081
    %v2083 = vsel %vm1689, %v1386, -inf
    %2084 = vmax.xlane.f32.xlu0 %v2083
    %v2085 = vpop.xlane.xlu0 %2084
    %v2086 = vsel %vm1689, %v1391, -inf
    %2087 = vmax.xlane.f32.xlu0 %v2086
    %v2088 = vpop.xlane.xlu0 %2087
    %v2089 = vsel %vm1689, %v1396, -inf
    %2090 = vmax.xlane.f32.xlu0 %v2089
    %v2091 = vpop.xlane.xlu0 %2090
    %v2092 = vsel %vm1689, %v1401, -inf
    %2093 = vmax.xlane.f32.xlu0 %v2092
    %v2094 = vpop.xlane.xlu0 %2093
    %v2095 = vsel %vm1689, %v1406, -inf
    %2096 = vmax.xlane.f32.xlu0 %v2095
    %v2097 = vpop.xlane.xlu0 %2096
    %v2098 = vsel %vm1689, %v1411, -inf
    %2099 = vmax.xlane.f32.xlu0 %v2098
    %v2100 = vpop.xlane.xlu0 %2099
    %v2101 = vsel %vm1689, %v1416, -inf
    %2102 = vmax.xlane.f32.xlu0 %v2101
    %v2103 = vpop.xlane.xlu0 %2102
    %v2104 = vsel %vm1689, %v1421, -inf
    %2105 = vmax.xlane.f32.xlu0 %v2104
    %v2106 = vpop.xlane.xlu0 %2105
    %v2107 = vsel %vm1689, %v1426, -inf
    %2108 = vmax.xlane.f32.xlu0 %v2107
    %v2109 = vpop.xlane.xlu0 %2108
    %v2110 = vsel %vm1689, %v1431, -inf
    %2111 = vmax.xlane.f32.xlu0 %v2110
    %v2112 = vpop.xlane.xlu0 %2111
    %v2113 = vsel %vm1689, %v1436, -inf
    %2114 = vmax.xlane.f32.xlu0 %v2113
    %v2115 = vpop.xlane.xlu0 %2114
    %v2116 = vsel %vm1689, %v1441, -inf
    %2117 = vmax.xlane.f32.xlu0 %v2116
    %v2118 = vpop.xlane.xlu0 %2117
    %v2119 = vsel %vm1689, %v1446, -inf
    %2120 = vmax.xlane.f32.xlu0 %v2119
    %v2121 = vpop.xlane.xlu0 %2120
    %v2122 = vsel %vm1689, %v1451, -inf
    %2123 = vmax.xlane.f32.xlu0 %v2122
    %v2124 = vpop.xlane.xlu0 %2123
    %v2125 = vsel %vm1689, %v1456, -inf
    %2126 = vmax.xlane.f32.xlu0 %v2125
    %v2127 = vpop.xlane.xlu0 %2126
    %v2128 = vsel %vm1689, %v1461, -inf
    %2129 = vmax.xlane.f32.xlu0 %v2128
    %v2130 = vpop.xlane.xlu0 %2129
    %v2131 = vsel %vm1689, %v1466, -inf
    %2132 = vmax.xlane.f32.xlu0 %v2131
    %v2133 = vpop.xlane.xlu0 %2132
    %v2134 = vsel %vm1689, %v1471, -inf
    %2135 = vmax.xlane.f32.xlu0 %v2134
    %v2136 = vpop.xlane.xlu0 %2135
    %v2137 = vsel %vm1689, %v1476, -inf
    %2138 = vmax.xlane.f32.xlu0 %v2137
    %v2139 = vpop.xlane.xlu0 %2138
    %v2140 = vsel %vm1689, %v1481, -inf
    %2141 = vmax.xlane.f32.xlu0 %v2140
    %v2142 = vpop.xlane.xlu0 %2141
    %v2143 = vsel %vm1689, %v1486, -inf
    %2144 = vmax.xlane.f32.xlu0 %v2143
    %v2145 = vpop.xlane.xlu0 %2144
    %v2146 = vsel %vm1689, %v1491, -inf
    %2147 = vmax.xlane.f32.xlu0 %v2146
    %v2148 = vpop.xlane.xlu0 %2147
    %v2149 = vsel %vm1689, %v1496, -inf
    %2150 = vmax.xlane.f32.xlu0 %v2149
    %v2151 = vpop.xlane.xlu0 %2150
    %v2152 = vsel %vm1689, %v1501, -inf
    %2153 = vmax.xlane.f32.xlu0 %v2152
    %v2154 = vpop.xlane.xlu0 %2153
    %v2155 = vsel %vm1689, %v1506, -inf
    %2156 = vmax.xlane.f32.xlu0 %v2155
    %v2157 = vpop.xlane.xlu0 %2156
    %v2158 = vsel %vm1689, %v1511, -inf
    %2159 = vmax.xlane.f32.xlu0 %v2158
    %v2160 = vpop.xlane.xlu0 %2159
    %v2161 = vsel %vm1689, %v1516, -inf
    %2162 = vmax.xlane.f32.xlu0 %v2161
    %v2163 = vpop.xlane.xlu0 %2162
    %v2164 = vsel %vm1689, %v1521, -inf
    %2165 = vmax.xlane.f32.xlu0 %v2164
    %v2166 = vpop.xlane.xlu0 %2165
    %v2167 = vsel %vm1689, %v1526, -inf
    %2168 = vmax.xlane.f32.xlu0 %v2167
    %v2169 = vpop.xlane.xlu0 %2168
    %v2170 = vsel %vm1689, %v1531, -inf
    %2171 = vmax.xlane.f32.xlu0 %v2170
    %v2172 = vpop.xlane.xlu0 %2171
    %v2173 = vsel %vm1689, %v1536, -inf
    %2174 = vmax.xlane.f32.xlu0 %v2173
    %v2175 = vpop.xlane.xlu0 %2174
    %v2176 = vsel %vm1689, %v1541, -inf
    %2177 = vmax.xlane.f32.xlu0 %v2176
    %v2178 = vpop.xlane.xlu0 %2177
    %v2179 = vsel %vm1689, %v1546, -inf
    %2180 = vmax.xlane.f32.xlu0 %v2179
    %v2181 = vpop.xlane.xlu0 %2180
    %v2182 = vsel %vm1689, %v1551, -inf
    %2183 = vmax.xlane.f32.xlu0 %v2182
    %v2184 = vpop.xlane.xlu0 %2183
    %v2185 = vsel %vm1689, %v1556, -inf
    %2186 = vmax.xlane.f32.xlu0 %v2185
    %v2187 = vpop.xlane.xlu0 %2186
    %v2188 = vsel %vm1689, %v1561, -inf
    %2189 = vmax.xlane.f32.xlu0 %v2188
    %v2190 = vpop.xlane.xlu0 %2189
    %v2191 = vsel %vm1689, %v1566, -inf
    %2192 = vmax.xlane.f32.xlu0 %v2191
    %v2193 = vpop.xlane.xlu0 %2192
    %v2194 = vsel %vm1689, %v1571, -inf
    %2195 = vmax.xlane.f32.xlu0 %v2194
    %v2196 = vpop.xlane.xlu0 %2195
    %v2197 = vsel %vm1689, %v1576, -inf
    %2198 = vmax.xlane.f32.xlu0 %v2197
    %v2199 = vpop.xlane.xlu0 %2198
    %v2200 = vsel %vm1689, %v1581, -inf
    %2201 = vmax.xlane.f32.xlu0 %v2200
    %v2202 = vpop.xlane.xlu0 %2201
    %v2203 = vsel %vm1689, %v1586, -inf
    %2204 = vmax.xlane.f32.xlu0 %v2203
    %v2205 = vpop.xlane.xlu0 %2204
    %v2206 = vsel %vm1689, %v1591, -inf
    %2207 = vmax.xlane.f32.xlu0 %v2206
    %v2208 = vpop.xlane.xlu0 %2207
    %v2209 = vsel %vm1689, %v1596, -inf
    %2210 = vmax.xlane.f32.xlu0 %v2209
    %v2211 = vpop.xlane.xlu0 %2210
    %v2212 = vsel %vm1689, %v1601, -inf
    %2213 = vmax.xlane.f32.xlu0 %v2212
    %v2214 = vpop.xlane.xlu0 %2213
    %v2215 = vsel %vm1689, %v1606, -inf
    %2216 = vmax.xlane.f32.xlu0 %v2215
    %v2217 = vpop.xlane.xlu0 %2216
    %v2218 = vsel %vm1689, %v1611, -inf
    %2219 = vmax.xlane.f32.xlu0 %v2218
    %v2220 = vpop.xlane.xlu0 %2219
    %v2221 = vsel %vm1689, %v1616, -inf
    %2222 = vmax.xlane.f32.xlu0 %v2221
    %v2223 = vpop.xlane.xlu0 %2222
    %v2224 = vsel %vm1689, %v1621, -inf
    %2225 = vmax.xlane.f32.xlu0 %v2224
    %v2226 = vpop.xlane.xlu0 %2225
    %v2227 = vsel %vm1689, %v1626, -inf
    %2228 = vmax.xlane.f32.xlu0 %v2227
    %v2229 = vpop.xlane.xlu0 %2228
    %v2230 = vsel %vm1689, %v1631, -inf
    %2231 = vmax.xlane.f32.xlu0 %v2230
    %v2232 = vpop.xlane.xlu0 %2231
    %v2233 = vsel %vm1689, %v1636, -inf
    %2234 = vmax.xlane.f32.xlu0 %v2233
    %v2235 = vpop.xlane.xlu0 %2234
    %v2236 = vsel %vm1689, %v1641, -inf
    %2237 = vmax.xlane.f32.xlu0 %v2236
    %v2238 = vpop.xlane.xlu0 %2237
    %v2239 = vsel %vm1689, %v1646, -inf
    %2240 = vmax.xlane.f32.xlu0 %v2239
    %v2241 = vpop.xlane.xlu0 %2240
    %v2242 = vsel %vm1689, %v1651, -inf
    %2243 = vmax.xlane.f32.xlu0 %v2242
    %v2244 = vpop.xlane.xlu0 %2243
    %v2245 = vsel %vm1689, %v1656, -inf
    %2246 = vmax.xlane.f32.xlu0 %v2245
    %v2247 = vpop.xlane.xlu0 %2246
    %v2248 = vsel %vm1689, %v1661, -inf
    %2249 = vmax.xlane.f32.xlu0 %v2248
    %v2250 = vpop.xlane.xlu0 %2249
    %v2251 = vsel %vm1689, %v1666, -inf
    %2252 = vmax.xlane.f32.xlu0 %v2251
    %v2253 = vpop.xlane.xlu0 %2252
    %v2254 = vsel %vm1689, %v1671, -inf
    %2255 = vmax.xlane.f32.xlu0 %v2254
    %v2256 = vpop.xlane.xlu0 %2255
    %v2257 = vsel %vm1689, %v1676, -inf
    %2258 = vmax.xlane.f32.xlu0 %v2257
    %v2259 = vpop.xlane.xlu0 %2258
    %v2260 = vsel %vm1689, %v1681, -inf
    %2261 = vmax.xlane.f32.xlu0 %v2260
    %v2262 = vpop.xlane.xlu0 %2261
    %v2263 = vsel %vm1689, %v1686, -inf
    %2264 = vmax.xlane.f32.xlu0 %v2263
    %v2265 = vpop.xlane.xlu0 %2264
    %v2266 = vmax.f32 %v1692, %v1980
    %v2267 = vmax.f32 %v1695, %v1983
    %v2268 = vmax.f32 %v1698, %v1986
    %v2269 = vmax.f32 %v1701, %v1989
    %v2270 = vmax.f32 %v1704, %v1992
    %v2271 = vmax.f32 %v1707, %v1995
    %v2272 = vmax.f32 %v1710, %v1998
    %v2273 = vmax.f32 %v1713, %v2001
    %v2274 = vmax.f32 %v1716, %v2004
    %v2275 = vmax.f32 %v1719, %v2007
    %v2276 = vmax.f32 %v1722, %v2010
    %v2277 = vmax.f32 %v1725, %v2013
    %v2278 = vmax.f32 %v1728, %v2016
    %v2279 = vmax.f32 %v1731, %v2019
    %v2280 = vmax.f32 %v1734, %v2022
    %v2281 = vmax.f32 %v1737, %v2025
    %v2282 = vmax.f32 %v1740, %v2028
    %v2283 = vmax.f32 %v1743, %v2031
    %v2284 = vmax.f32 %v1746, %v2034
    %v2285 = vmax.f32 %v1749, %v2037
    %v2286 = vmax.f32 %v1752, %v2040
    %v2287 = vmax.f32 %v1755, %v2043
    %v2288 = vmax.f32 %v1758, %v2046
    %v2289 = vmax.f32 %v1761, %v2049
    %v2290 = vmax.f32 %v1764, %v2052
    %v2291 = vmax.f32 %v1767, %v2055
    %v2292 = vmax.f32 %v1770, %v2058
    %v2293 = vmax.f32 %v1773, %v2061
    %v2294 = vmax.f32 %v1776, %v2064
    %v2295 = vmax.f32 %v1779, %v2067
    %v2296 = vmax.f32 %v1782, %v2070
    %v2297 = vmax.f32 %v1785, %v2073
    %v2298 = vmax.f32 %v1788, %v2076
    %v2299 = vmax.f32 %v1791, %v2079
    %v2300 = vmax.f32 %v1794, %v2082
    %v2301 = vmax.f32 %v1797, %v2085
    %v2302 = vmax.f32 %v1800, %v2088
    %v2303 = vmax.f32 %v1803, %v2091
    %v2304 = vmax.f32 %v1806, %v2094
    %v2305 = vmax.f32 %v1809, %v2097
    %v2306 = vmax.f32 %v1812, %v2100
    %v2307 = vmax.f32 %v1815, %v2103
    %v2308 = vmax.f32 %v1818, %v2106
    %v2309 = vmax.f32 %v1821, %v2109
    %v2310 = vmax.f32 %v1824, %v2112
    %v2311 = vmax.f32 %v1827, %v2115
    %v2312 = vmax.f32 %v1830, %v2118
    %v2313 = vmax.f32 %v1833, %v2121
    %v2314 = vmax.f32 %v1836, %v2124
    %v2315 = vmax.f32 %v1839, %v2127
    %v2316 = vmax.f32 %v1842, %v2130
    %v2317 = vmax.f32 %v1845, %v2133
    %v2318 = vmax.f32 %v1848, %v2136
    %v2319 = vmax.f32 %v1851, %v2139
    %v2320 = vmax.f32 %v1854, %v2142
    %v2321 = vmax.f32 %v1857, %v2145
    %v2322 = vmax.f32 %v1860, %v2148
    %v2323 = vmax.f32 %v1863, %v2151
    %v2324 = vmax.f32 %v1866, %v2154
    %v2325 = vmax.f32 %v1869, %v2157
    %v2326 = vmax.f32 %v1872, %v2160
    %v2327 = vmax.f32 %v1875, %v2163
    %v2328 = vmax.f32 %v1878, %v2166
    %v2329 = vmax.f32 %v1881, %v2169
    %v2330 = vmax.f32 %v1884, %v2172
    %v2331 = vmax.f32 %v1887, %v2175
    %v2332 = vmax.f32 %v1890, %v2178
    %v2333 = vmax.f32 %v1893, %v2181
    %v2334 = vmax.f32 %v1896, %v2184
    %v2335 = vmax.f32 %v1899, %v2187
    %v2336 = vmax.f32 %v1902, %v2190
    %v2337 = vmax.f32 %v1905, %v2193
    %v2338 = vmax.f32 %v1908, %v2196
    %v2339 = vmax.f32 %v1911, %v2199
    %v2340 = vmax.f32 %v1914, %v2202
    %v2341 = vmax.f32 %v1917, %v2205
    %v2342 = vmax.f32 %v1920, %v2208
    %v2343 = vmax.f32 %v1923, %v2211
    %v2344 = vmax.f32 %v1926, %v2214
    %v2345 = vmax.f32 %v1929, %v2217
    %v2346 = vmax.f32 %v1932, %v2220
    %v2347 = vmax.f32 %v1935, %v2223
    %v2348 = vmax.f32 %v1938, %v2226
    %v2349 = vmax.f32 %v1941, %v2229
    %v2350 = vmax.f32 %v1944, %v2232
    %v2351 = vmax.f32 %v1947, %v2235
    %v2352 = vmax.f32 %v1950, %v2238
    %v2353 = vmax.f32 %v1953, %v2241
    %v2354 = vmax.f32 %v1956, %v2244
    %v2355 = vmax.f32 %v1959, %v2247
    %v2356 = vmax.f32 %v1962, %v2250
    %v2357 = vmax.f32 %v1965, %v2253
    %v2358 = vmax.f32 %v1968, %v2256
    %v2359 = vmax.f32 %v1971, %v2259
    %v2360 = vmax.f32 %v1974, %v2262
    %v2361 = vmax.f32 %v1977, %v2265
    %v2362 = vsub.f32 %v633, %v2266
    %v2363 = vsub.f32 %v638, %v2267
    %v2364 = vsub.f32 %v643, %v2268
    %v2365 = vsub.f32 %v648, %v2269
    %v2366 = vsub.f32 %v653, %v2270
    %v2367 = vsub.f32 %v658, %v2271
    %v2368 = vsub.f32 %v663, %v2272
    %v2369 = vsub.f32 %v668, %v2273
    %v2370 = vsub.f32 %v673, %v2274
    %v2371 = vsub.f32 %v678, %v2275
    %v2372 = vsub.f32 %v683, %v2276
    %v2373 = vsub.f32 %v688, %v2277
    %v2374 = vsub.f32 %v693, %v2278
    %v2375 = vsub.f32 %v698, %v2279
    %v2376 = vsub.f32 %v703, %v2280
    %v2377 = vsub.f32 %v708, %v2281
    %v2378 = vsub.f32 %v713, %v2282
    %v2379 = vsub.f32 %v718, %v2283
    %v2380 = vsub.f32 %v723, %v2284
    %v2381 = vsub.f32 %v728, %v2285
    %v2382 = vsub.f32 %v733, %v2286
    %v2383 = vsub.f32 %v738, %v2287
    %v2384 = vsub.f32 %v743, %v2288
    %v2385 = vsub.f32 %v748, %v2289
    %v2386 = vsub.f32 %v753, %v2290
    %v2387 = vsub.f32 %v758, %v2291
    %v2388 = vsub.f32 %v763, %v2292
    %v2389 = vsub.f32 %v768, %v2293
    %v2390 = vsub.f32 %v773, %v2294
    %v2391 = vsub.f32 %v778, %v2295
    %v2392 = vsub.f32 %v783, %v2296
    %v2393 = vsub.f32 %v788, %v2297
    %v2394 = vsub.f32 %v793, %v2298
    %v2395 = vsub.f32 %v798, %v2299
    %v2396 = vsub.f32 %v803, %v2300
    %v2397 = vsub.f32 %v808, %v2301
    %v2398 = vsub.f32 %v813, %v2302
    %v2399 = vsub.f32 %v818, %v2303
    %v2400 = vsub.f32 %v823, %v2304
    %v2401 = vsub.f32 %v828, %v2305
    %v2402 = vsub.f32 %v833, %v2306
    %v2403 = vsub.f32 %v838, %v2307
    %v2404 = vsub.f32 %v843, %v2308
    %v2405 = vsub.f32 %v848, %v2309
    %v2406 = vsub.f32 %v853, %v2310
    %v2407 = vsub.f32 %v858, %v2311
    %v2408 = vsub.f32 %v863, %v2312
    %v2409 = vsub.f32 %v868, %v2313
    %v2410 = vsub.f32 %v873, %v2314
    %v2411 = vsub.f32 %v878, %v2315
    %v2412 = vsub.f32 %v883, %v2316
    %v2413 = vsub.f32 %v888, %v2317
    %v2414 = vsub.f32 %v893, %v2318
    %v2415 = vsub.f32 %v898, %v2319
    %v2416 = vsub.f32 %v903, %v2320
    %v2417 = vsub.f32 %v908, %v2321
    %v2418 = vsub.f32 %v913, %v2322
    %v2419 = vsub.f32 %v918, %v2323
    %v2420 = vsub.f32 %v923, %v2324
    %v2421 = vsub.f32 %v928, %v2325
    %v2422 = vsub.f32 %v933, %v2326
    %v2423 = vsub.f32 %v938, %v2327
    %v2424 = vsub.f32 %v943, %v2328
    %v2425 = vsub.f32 %v948, %v2329
    %v2426 = vsub.f32 %v953, %v2330
    %v2427 = vsub.f32 %v958, %v2331
    %v2428 = vsub.f32 %v963, %v2332
    %v2429 = vsub.f32 %v968, %v2333
    %v2430 = vsub.f32 %v973, %v2334
    %v2431 = vsub.f32 %v978, %v2335
    %v2432 = vsub.f32 %v983, %v2336
    %v2433 = vsub.f32 %v988, %v2337
    %v2434 = vsub.f32 %v993, %v2338
    %v2435 = vsub.f32 %v998, %v2339
    %v2436 = vsub.f32 %v1003, %v2340
    %v2437 = vsub.f32 %v1008, %v2341
    %v2438 = vsub.f32 %v1013, %v2342
    %v2439 = vsub.f32 %v1018, %v2343
    %v2440 = vsub.f32 %v1023, %v2344
    %v2441 = vsub.f32 %v1028, %v2345
    %v2442 = vsub.f32 %v1033, %v2346
    %v2443 = vsub.f32 %v1038, %v2347
    %v2444 = vsub.f32 %v1043, %v2348
    %v2445 = vsub.f32 %v1048, %v2349
    %v2446 = vsub.f32 %v1053, %v2350
    %v2447 = vsub.f32 %v1058, %v2351
    %v2448 = vsub.f32 %v1063, %v2352
    %v2449 = vsub.f32 %v1068, %v2353
    %v2450 = vsub.f32 %v1073, %v2354
    %v2451 = vsub.f32 %v1078, %v2355
    %v2452 = vsub.f32 %v1083, %v2356
    %v2453 = vsub.f32 %v1088, %v2357
    %v2454 = vsub.f32 %v1093, %v2358
    %v2455 = vsub.f32 %v1098, %v2359
    %v2456 = vsub.f32 %v1103, %v2360
    %v2457 = vsub.f32 %v1108, %v2361
    %v2458 = vmul.f32 %v2362, 1.442695
    %v2459 = vpow.pop %v2458
    %v2460 = vmul.f32 %v2363, 1.442695
    %v2461 = vpow.pop %v2460
    %v2462 = vmul.f32 %v2364, 1.442695
    %v2463 = vpow.pop %v2462
    %v2464 = vmul.f32 %v2365, 1.442695
    %v2465 = vpow.pop %v2464
    %v2466 = vmul.f32 %v2366, 1.442695
    %v2467 = vpow.pop %v2466
    %v2468 = vmul.f32 %v2367, 1.442695
    %v2469 = vpow.pop %v2468
    %v2470 = vmul.f32 %v2368, 1.442695
    %v2471 = vpow.pop %v2470
    %v2472 = vmul.f32 %v2369, 1.442695
    %v2473 = vpow.pop %v2472
    %v2474 = vmul.f32 %v2370, 1.442695
    %v2475 = vpow.pop %v2474
    %v2476 = vmul.f32 %v2371, 1.442695
    %v2477 = vpow.pop %v2476
    %v2478 = vmul.f32 %v2372, 1.442695
    %v2479 = vpow.pop %v2478
    %v2480 = vmul.f32 %v2373, 1.442695
    %v2481 = vpow.pop %v2480
    %v2482 = vmul.f32 %v2374, 1.442695
    %v2483 = vpow.pop %v2482
    %v2484 = vmul.f32 %v2375, 1.442695
    %v2485 = vpow.pop %v2484
    %v2486 = vmul.f32 %v2376, 1.442695
    %v2487 = vpow.pop %v2486
    %v2488 = vmul.f32 %v2377, 1.442695
    %v2489 = vpow.pop %v2488
    %v2490 = vmul.f32 %v2378, 1.442695
    %v2491 = vpow.pop %v2490
    %v2492 = vmul.f32 %v2379, 1.442695
    %v2493 = vpow.pop %v2492
    %v2494 = vmul.f32 %v2380, 1.442695
    %v2495 = vpow.pop %v2494
    %v2496 = vmul.f32 %v2381, 1.442695
    %v2497 = vpow.pop %v2496
    %v2498 = vmul.f32 %v2382, 1.442695
    %v2499 = vpow.pop %v2498
    %v2500 = vmul.f32 %v2383, 1.442695
    %v2501 = vpow.pop %v2500
    %v2502 = vmul.f32 %v2384, 1.442695
    %v2503 = vpow.pop %v2502
    %v2504 = vmul.f32 %v2385, 1.442695
    %v2505 = vpow.pop %v2504
    %v2506 = vmul.f32 %v2386, 1.442695
    %v2507 = vpow.pop %v2506
    %v2508 = vmul.f32 %v2387, 1.442695
    %v2509 = vpow.pop %v2508
    %v2510 = vmul.f32 %v2388, 1.442695
    %v2511 = vpow.pop %v2510
    %v2512 = vmul.f32 %v2389, 1.442695
    %v2513 = vpow.pop %v2512
    %v2514 = vmul.f32 %v2390, 1.442695
    %v2515 = vpow.pop %v2514
    %v2516 = vmul.f32 %v2391, 1.442695
    %v2517 = vpow.pop %v2516
    %v2518 = vmul.f32 %v2392, 1.442695
    %v2519 = vpow.pop %v2518
    %v2520 = vmul.f32 %v2393, 1.442695
    %v2521 = vpow.pop %v2520
    %v2522 = vmul.f32 %v2394, 1.442695
    %v2523 = vpow.pop %v2522
    %v2524 = vmul.f32 %v2395, 1.442695
    %v2525 = vpow.pop %v2524
    %v2526 = vmul.f32 %v2396, 1.442695
    %v2527 = vpow.pop %v2526
    %v2528 = vmul.f32 %v2397, 1.442695
    %v2529 = vpow.pop %v2528
    %v2530 = vmul.f32 %v2398, 1.442695
    %v2531 = vpow.pop %v2530
    %v2532 = vmul.f32 %v2399, 1.442695
    %v2533 = vpow.pop %v2532
    %v2534 = vmul.f32 %v2400, 1.442695
    %v2535 = vpow.pop %v2534
    %v2536 = vmul.f32 %v2401, 1.442695
    %v2537 = vpow.pop %v2536
    %v2538 = vmul.f32 %v2402, 1.442695
    %v2539 = vpow.pop %v2538
    %v2540 = vmul.f32 %v2403, 1.442695
    %v2541 = vpow.pop %v2540
    %v2542 = vmul.f32 %v2404, 1.442695
    %v2543 = vpow.pop %v2542
    %v2544 = vmul.f32 %v2405, 1.442695
    %v2545 = vpow.pop %v2544
    %v2546 = vmul.f32 %v2406, 1.442695
    %v2547 = vpow.pop %v2546
    %v2548 = vmul.f32 %v2407, 1.442695
    %v2549 = vpow.pop %v2548
    %v2550 = vmul.f32 %v2408, 1.442695
    %v2551 = vpow.pop %v2550
    %v2552 = vmul.f32 %v2409, 1.442695
    %v2553 = vpow.pop %v2552
    %v2554 = vmul.f32 %v2410, 1.442695
    %v2555 = vpow.pop %v2554
    %v2556 = vmul.f32 %v2411, 1.442695
    %v2557 = vpow.pop %v2556
    %v2558 = vmul.f32 %v2412, 1.442695
    %v2559 = vpow.pop %v2558
    %v2560 = vmul.f32 %v2413, 1.442695
    %v2561 = vpow.pop %v2560
    %v2562 = vmul.f32 %v2414, 1.442695
    %v2563 = vpow.pop %v2562
    %v2564 = vmul.f32 %v2415, 1.442695
    %v2565 = vpow.pop %v2564
    %v2566 = vmul.f32 %v2416, 1.442695
    %v2567 = vpow.pop %v2566
    %v2568 = vmul.f32 %v2417, 1.442695
    %v2569 = vpow.pop %v2568
    %v2570 = vmul.f32 %v2418, 1.442695
    %v2571 = vpow.pop %v2570
    %v2572 = vmul.f32 %v2419, 1.442695
    %v2573 = vpow.pop %v2572
    %v2574 = vmul.f32 %v2420, 1.442695
    %v2575 = vpow.pop %v2574
    %v2576 = vmul.f32 %v2421, 1.442695
    %v2577 = vpow.pop %v2576
    %v2578 = vmul.f32 %v2422, 1.442695
    %v2579 = vpow.pop %v2578
    %v2580 = vmul.f32 %v2423, 1.442695
    %v2581 = vpow.pop %v2580
    %v2582 = vmul.f32 %v2424, 1.442695
    %v2583 = vpow.pop %v2582
    %v2584 = vmul.f32 %v2425, 1.442695
    %v2585 = vpow.pop %v2584
    %v2586 = vmul.f32 %v2426, 1.442695
    %v2587 = vpow.pop %v2586
    %v2588 = vmul.f32 %v2427, 1.442695
    %v2589 = vpow.pop %v2588
    %v2590 = vmul.f32 %v2428, 1.442695
    %v2591 = vpow.pop %v2590
    %v2592 = vmul.f32 %v2429, 1.442695
    %v2593 = vpow.pop %v2592
    %v2594 = vmul.f32 %v2430, 1.442695
    %v2595 = vpow.pop %v2594
    %v2596 = vmul.f32 %v2431, 1.442695
    %v2597 = vpow.pop %v2596
    %v2598 = vmul.f32 %v2432, 1.442695
    %v2599 = vpow.pop %v2598
    %v2600 = vmul.f32 %v2433, 1.442695
    %v2601 = vpow.pop %v2600
    %v2602 = vmul.f32 %v2434, 1.442695
    %v2603 = vpow.pop %v2602
    %v2604 = vmul.f32 %v2435, 1.442695
    %v2605 = vpow.pop %v2604
    %v2606 = vmul.f32 %v2436, 1.442695
    %v2607 = vpow.pop %v2606
    %v2608 = vmul.f32 %v2437, 1.442695
    %v2609 = vpow.pop %v2608
    %v2610 = vmul.f32 %v2438, 1.442695
    %v2611 = vpow.pop %v2610
    %v2612 = vmul.f32 %v2439, 1.442695
    %v2613 = vpow.pop %v2612
    %v2614 = vmul.f32 %v2440, 1.442695
    %v2615 = vpow.pop %v2614
    %v2616 = vmul.f32 %v2441, 1.442695
    %v2617 = vpow.pop %v2616
    %v2618 = vmul.f32 %v2442, 1.442695
    %v2619 = vpow.pop %v2618
    %v2620 = vmul.f32 %v2443, 1.442695
    %v2621 = vpow.pop %v2620
    %v2622 = vmul.f32 %v2444, 1.442695
    %v2623 = vpow.pop %v2622
    %v2624 = vmul.f32 %v2445, 1.442695
    %v2625 = vpow.pop %v2624
    %v2626 = vmul.f32 %v2446, 1.442695
    %v2627 = vpow.pop %v2626
    %v2628 = vmul.f32 %v2447, 1.442695
    %v2629 = vpow.pop %v2628
    %v2630 = vmul.f32 %v2448, 1.442695
    %v2631 = vpow.pop %v2630
    %v2632 = vmul.f32 %v2449, 1.442695
    %v2633 = vpow.pop %v2632
    %v2634 = vmul.f32 %v2450, 1.442695
    %v2635 = vpow.pop %v2634
    %v2636 = vmul.f32 %v2451, 1.442695
    %v2637 = vpow.pop %v2636
    %v2638 = vmul.f32 %v2452, 1.442695
    %v2639 = vpow.pop %v2638
    %v2640 = vmul.f32 %v2453, 1.442695
    %v2641 = vpow.pop %v2640
    %v2642 = vmul.f32 %v2454, 1.442695
    %v2643 = vpow.pop %v2642
    %v2644 = vmul.f32 %v2455, 1.442695
    %v2645 = vpow.pop %v2644
    %v2646 = vmul.f32 %v2456, 1.442695
    %v2647 = vpow.pop %v2646
    %v2648 = vmul.f32 %v2457, 1.442695
    %v2649 = vpow.pop %v2648
    %v2650 = vsel %vm1689, %v2459, 0.0
    %2651 = vadd.xlane.f32.xlu0 %v2650
    %v2652 = vpop.xlane.xlu0 %2651
    %v2653 = vsel %vm1689, %v2461, 0.0
    %2654 = vadd.xlane.f32.xlu0 %v2653
    %v2655 = vpop.xlane.xlu0 %2654
    %v2656 = vsel %vm1689, %v2463, 0.0
    %2657 = vadd.xlane.f32.xlu0 %v2656
    %v2658 = vpop.xlane.xlu0 %2657
    %v2659 = vsel %vm1689, %v2465, 0.0
    %2660 = vadd.xlane.f32.xlu0 %v2659
    %v2661 = vpop.xlane.xlu0 %2660
    %v2662 = vsel %vm1689, %v2467, 0.0
    %2663 = vadd.xlane.f32.xlu0 %v2662
    %v2664 = vpop.xlane.xlu0 %2663
    %v2665 = vsel %vm1689, %v2469, 0.0
    %2666 = vadd.xlane.f32.xlu0 %v2665
    %v2667 = vpop.xlane.xlu0 %2666
    %v2668 = vsel %vm1689, %v2471, 0.0
    %2669 = vadd.xlane.f32.xlu0 %v2668
    %v2670 = vpop.xlane.xlu0 %2669
    %v2671 = vsel %vm1689, %v2473, 0.0
    %2672 = vadd.xlane.f32.xlu0 %v2671
    %v2673 = vpop.xlane.xlu0 %2672
    %v2674 = vsel %vm1689, %v2475, 0.0
    %2675 = vadd.xlane.f32.xlu0 %v2674
    %v2676 = vpop.xlane.xlu0 %2675
    %v2677 = vsel %vm1689, %v2477, 0.0
    %2678 = vadd.xlane.f32.xlu0 %v2677
    %v2679 = vpop.xlane.xlu0 %2678
    %v2680 = vsel %vm1689, %v2479, 0.0
    %2681 = vadd.xlane.f32.xlu0 %v2680
    %v2682 = vpop.xlane.xlu0 %2681
    %v2683 = vsel %vm1689, %v2481, 0.0
    %2684 = vadd.xlane.f32.xlu0 %v2683
    %v2685 = vpop.xlane.xlu0 %2684
    %v2686 = vsel %vm1689, %v2483, 0.0
    %2687 = vadd.xlane.f32.xlu0 %v2686
    %v2688 = vpop.xlane.xlu0 %2687
    %v2689 = vsel %vm1689, %v2485, 0.0
    %2690 = vadd.xlane.f32.xlu0 %v2689
    %v2691 = vpop.xlane.xlu0 %2690
    %v2692 = vsel %vm1689, %v2487, 0.0
    %2693 = vadd.xlane.f32.xlu0 %v2692
    %v2694 = vpop.xlane.xlu0 %2693
    %v2695 = vsel %vm1689, %v2489, 0.0
    %2696 = vadd.xlane.f32.xlu0 %v2695
    %v2697 = vpop.xlane.xlu0 %2696
    %v2698 = vsel %vm1689, %v2491, 0.0
    %2699 = vadd.xlane.f32.xlu0 %v2698
    %v2700 = vpop.xlane.xlu0 %2699
    %v2701 = vsel %vm1689, %v2493, 0.0
    %2702 = vadd.xlane.f32.xlu0 %v2701
    %v2703 = vpop.xlane.xlu0 %2702
    %v2704 = vsel %vm1689, %v2495, 0.0
    %2705 = vadd.xlane.f32.xlu0 %v2704
    %v2706 = vpop.xlane.xlu0 %2705
    %v2707 = vsel %vm1689, %v2497, 0.0
    %2708 = vadd.xlane.f32.xlu0 %v2707
    %v2709 = vpop.xlane.xlu0 %2708
    %v2710 = vsel %vm1689, %v2499, 0.0
    %2711 = vadd.xlane.f32.xlu0 %v2710
    %v2712 = vpop.xlane.xlu0 %2711
    %v2713 = vsel %vm1689, %v2501, 0.0
    %2714 = vadd.xlane.f32.xlu0 %v2713
    %v2715 = vpop.xlane.xlu0 %2714
    %v2716 = vsel %vm1689, %v2503, 0.0
    %2717 = vadd.xlane.f32.xlu0 %v2716
    %v2718 = vpop.xlane.xlu0 %2717
    %v2719 = vsel %vm1689, %v2505, 0.0
    %2720 = vadd.xlane.f32.xlu0 %v2719
    %v2721 = vpop.xlane.xlu0 %2720
    %v2722 = vsel %vm1689, %v2507, 0.0
    %2723 = vadd.xlane.f32.xlu0 %v2722
    %v2724 = vpop.xlane.xlu0 %2723
    %v2725 = vsel %vm1689, %v2509, 0.0
    %2726 = vadd.xlane.f32.xlu0 %v2725
    %v2727 = vpop.xlane.xlu0 %2726
    %v2728 = vsel %vm1689, %v2511, 0.0
    %2729 = vadd.xlane.f32.xlu0 %v2728
    %v2730 = vpop.xlane.xlu0 %2729
    %v2731 = vsel %vm1689, %v2513, 0.0
    %2732 = vadd.xlane.f32.xlu0 %v2731
    %v2733 = vpop.xlane.xlu0 %2732
    %v2734 = vsel %vm1689, %v2515, 0.0
    %2735 = vadd.xlane.f32.xlu0 %v2734
    %v2736 = vpop.xlane.xlu0 %2735
    %v2737 = vsel %vm1689, %v2517, 0.0
    %2738 = vadd.xlane.f32.xlu0 %v2737
    %v2739 = vpop.xlane.xlu0 %2738
    %v2740 = vsel %vm1689, %v2519, 0.0
    %2741 = vadd.xlane.f32.xlu0 %v2740
    %v2742 = vpop.xlane.xlu0 %2741
    %v2743 = vsel %vm1689, %v2521, 0.0
    %2744 = vadd.xlane.f32.xlu0 %v2743
    %v2745 = vpop.xlane.xlu0 %2744
    %v2746 = vsel %vm1689, %v2523, 0.0
    %2747 = vadd.xlane.f32.xlu0 %v2746
    %v2748 = vpop.xlane.xlu0 %2747
    %v2749 = vsel %vm1689, %v2525, 0.0
    %2750 = vadd.xlane.f32.xlu0 %v2749
    %v2751 = vpop.xlane.xlu0 %2750
    %v2752 = vsel %vm1689, %v2527, 0.0
    %2753 = vadd.xlane.f32.xlu0 %v2752
    %v2754 = vpop.xlane.xlu0 %2753
    %v2755 = vsel %vm1689, %v2529, 0.0
    %2756 = vadd.xlane.f32.xlu0 %v2755
    %v2757 = vpop.xlane.xlu0 %2756
    %v2758 = vsel %vm1689, %v2531, 0.0
    %2759 = vadd.xlane.f32.xlu0 %v2758
    %v2760 = vpop.xlane.xlu0 %2759
    %v2761 = vsel %vm1689, %v2533, 0.0
    %2762 = vadd.xlane.f32.xlu0 %v2761
    %v2763 = vpop.xlane.xlu0 %2762
    %v2764 = vsel %vm1689, %v2535, 0.0
    %2765 = vadd.xlane.f32.xlu0 %v2764
    %v2766 = vpop.xlane.xlu0 %2765
    %v2767 = vsel %vm1689, %v2537, 0.0
    %2768 = vadd.xlane.f32.xlu0 %v2767
    %v2769 = vpop.xlane.xlu0 %2768
    %v2770 = vsel %vm1689, %v2539, 0.0
    %2771 = vadd.xlane.f32.xlu0 %v2770
    %v2772 = vpop.xlane.xlu0 %2771
    %v2773 = vsel %vm1689, %v2541, 0.0
    %2774 = vadd.xlane.f32.xlu0 %v2773
    %v2775 = vpop.xlane.xlu0 %2774
    %v2776 = vsel %vm1689, %v2543, 0.0
    %2777 = vadd.xlane.f32.xlu0 %v2776
    %v2778 = vpop.xlane.xlu0 %2777
    %v2779 = vsel %vm1689, %v2545, 0.0
    %2780 = vadd.xlane.f32.xlu0 %v2779
    %v2781 = vpop.xlane.xlu0 %2780
    %v2782 = vsel %vm1689, %v2547, 0.0
    %2783 = vadd.xlane.f32.xlu0 %v2782
    %v2784 = vpop.xlane.xlu0 %2783
    %v2785 = vsel %vm1689, %v2549, 0.0
    %2786 = vadd.xlane.f32.xlu0 %v2785
    %v2787 = vpop.xlane.xlu0 %2786
    %v2788 = vsel %vm1689, %v2551, 0.0
    %2789 = vadd.xlane.f32.xlu0 %v2788
    %v2790 = vpop.xlane.xlu0 %2789
    %v2791 = vsel %vm1689, %v2553, 0.0
    %2792 = vadd.xlane.f32.xlu0 %v2791
    %v2793 = vpop.xlane.xlu0 %2792
    %v2794 = vsel %vm1689, %v2555, 0.0
    %2795 = vadd.xlane.f32.xlu0 %v2794
    %v2796 = vpop.xlane.xlu0 %2795
    %v2797 = vsel %vm1689, %v2557, 0.0
    %2798 = vadd.xlane.f32.xlu0 %v2797
    %v2799 = vpop.xlane.xlu0 %2798
    %v2800 = vsel %vm1689, %v2559, 0.0
    %2801 = vadd.xlane.f32.xlu0 %v2800
    %v2802 = vpop.xlane.xlu0 %2801
    %v2803 = vsel %vm1689, %v2561, 0.0
    %2804 = vadd.xlane.f32.xlu0 %v2803
    %v2805 = vpop.xlane.xlu0 %2804
    %v2806 = vsel %vm1689, %v2563, 0.0
    %2807 = vadd.xlane.f32.xlu0 %v2806
    %v2808 = vpop.xlane.xlu0 %2807
    %v2809 = vsel %vm1689, %v2565, 0.0
    %2810 = vadd.xlane.f32.xlu0 %v2809
    %v2811 = vpop.xlane.xlu0 %2810
    %v2812 = vsel %vm1689, %v2567, 0.0
    %2813 = vadd.xlane.f32.xlu0 %v2812
    %v2814 = vpop.xlane.xlu0 %2813
    %v2815 = vsel %vm1689, %v2569, 0.0
    %2816 = vadd.xlane.f32.xlu0 %v2815
    %v2817 = vpop.xlane.xlu0 %2816
    %v2818 = vsel %vm1689, %v2571, 0.0
    %2819 = vadd.xlane.f32.xlu0 %v2818
    %v2820 = vpop.xlane.xlu0 %2819
    %v2821 = vsel %vm1689, %v2573, 0.0
    %2822 = vadd.xlane.f32.xlu0 %v2821
    %v2823 = vpop.xlane.xlu0 %2822
    %v2824 = vsel %vm1689, %v2575, 0.0
    %2825 = vadd.xlane.f32.xlu0 %v2824
    %v2826 = vpop.xlane.xlu0 %2825
    %v2827 = vsel %vm1689, %v2577, 0.0
    %2828 = vadd.xlane.f32.xlu0 %v2827
    %v2829 = vpop.xlane.xlu0 %2828
    %v2830 = vsel %vm1689, %v2579, 0.0
    %2831 = vadd.xlane.f32.xlu0 %v2830
    %v2832 = vpop.xlane.xlu0 %2831
    %v2833 = vsel %vm1689, %v2581, 0.0
    %2834 = vadd.xlane.f32.xlu0 %v2833
    %v2835 = vpop.xlane.xlu0 %2834
    %v2836 = vsel %vm1689, %v2583, 0.0
    %2837 = vadd.xlane.f32.xlu0 %v2836
    %v2838 = vpop.xlane.xlu0 %2837
    %v2839 = vsel %vm1689, %v2585, 0.0
    %2840 = vadd.xlane.f32.xlu0 %v2839
    %v2841 = vpop.xlane.xlu0 %2840
    %v2842 = vsel %vm1689, %v2587, 0.0
    %2843 = vadd.xlane.f32.xlu0 %v2842
    %v2844 = vpop.xlane.xlu0 %2843
    %v2845 = vsel %vm1689, %v2589, 0.0
    %2846 = vadd.xlane.f32.xlu0 %v2845
    %v2847 = vpop.xlane.xlu0 %2846
    %v2848 = vsel %vm1689, %v2591, 0.0
    %2849 = vadd.xlane.f32.xlu0 %v2848
    %v2850 = vpop.xlane.xlu0 %2849
    %v2851 = vsel %vm1689, %v2593, 0.0
    %2852 = vadd.xlane.f32.xlu0 %v2851
    %v2853 = vpop.xlane.xlu0 %2852
    %v2854 = vsel %vm1689, %v2595, 0.0
    %2855 = vadd.xlane.f32.xlu0 %v2854
    %v2856 = vpop.xlane.xlu0 %2855
    %v2857 = vsel %vm1689, %v2597, 0.0
    %2858 = vadd.xlane.f32.xlu0 %v2857
    %v2859 = vpop.xlane.xlu0 %2858
    %v2860 = vsel %vm1689, %v2599, 0.0
    %2861 = vadd.xlane.f32.xlu0 %v2860
    %v2862 = vpop.xlane.xlu0 %2861
    %v2863 = vsel %vm1689, %v2601, 0.0
    %2864 = vadd.xlane.f32.xlu0 %v2863
    %v2865 = vpop.xlane.xlu0 %2864
    %v2866 = vsel %vm1689, %v2603, 0.0
    %2867 = vadd.xlane.f32.xlu0 %v2866
    %v2868 = vpop.xlane.xlu0 %2867
    %v2869 = vsel %vm1689, %v2605, 0.0
    %2870 = vadd.xlane.f32.xlu0 %v2869
    %v2871 = vpop.xlane.xlu0 %2870
    %v2872 = vsel %vm1689, %v2607, 0.0
    %2873 = vadd.xlane.f32.xlu0 %v2872
    %v2874 = vpop.xlane.xlu0 %2873
    %v2875 = vsel %vm1689, %v2609, 0.0
    %2876 = vadd.xlane.f32.xlu0 %v2875
    %v2877 = vpop.xlane.xlu0 %2876
    %v2878 = vsel %vm1689, %v2611, 0.0
    %2879 = vadd.xlane.f32.xlu0 %v2878
    %v2880 = vpop.xlane.xlu0 %2879
    %v2881 = vsel %vm1689, %v2613, 0.0
    %2882 = vadd.xlane.f32.xlu0 %v2881
    %v2883 = vpop.xlane.xlu0 %2882
    %v2884 = vsel %vm1689, %v2615, 0.0
    %2885 = vadd.xlane.f32.xlu0 %v2884
    %v2886 = vpop.xlane.xlu0 %2885
    %v2887 = vsel %vm1689, %v2617, 0.0
    %2888 = vadd.xlane.f32.xlu0 %v2887
    %v2889 = vpop.xlane.xlu0 %2888
    %v2890 = vsel %vm1689, %v2619, 0.0
    %2891 = vadd.xlane.f32.xlu0 %v2890
    %v2892 = vpop.xlane.xlu0 %2891
    %v2893 = vsel %vm1689, %v2621, 0.0
    %2894 = vadd.xlane.f32.xlu0 %v2893
    %v2895 = vpop.xlane.xlu0 %2894
    %v2896 = vsel %vm1689, %v2623, 0.0
    %2897 = vadd.xlane.f32.xlu0 %v2896
    %v2898 = vpop.xlane.xlu0 %2897
    %v2899 = vsel %vm1689, %v2625, 0.0
    %2900 = vadd.xlane.f32.xlu0 %v2899
    %v2901 = vpop.xlane.xlu0 %2900
    %v2902 = vsel %vm1689, %v2627, 0.0
    %2903 = vadd.xlane.f32.xlu0 %v2902
    %v2904 = vpop.xlane.xlu0 %2903
    %v2905 = vsel %vm1689, %v2629, 0.0
    %2906 = vadd.xlane.f32.xlu0 %v2905
    %v2907 = vpop.xlane.xlu0 %2906
    %v2908 = vsel %vm1689, %v2631, 0.0
    %2909 = vadd.xlane.f32.xlu0 %v2908
    %v2910 = vpop.xlane.xlu0 %2909
    %v2911 = vsel %vm1689, %v2633, 0.0
    %2912 = vadd.xlane.f32.xlu0 %v2911
    %v2913 = vpop.xlane.xlu0 %2912
    %v2914 = vsel %vm1689, %v2635, 0.0
    %2915 = vadd.xlane.f32.xlu0 %v2914
    %v2916 = vpop.xlane.xlu0 %2915
    %v2917 = vsel %vm1689, %v2637, 0.0
    %2918 = vadd.xlane.f32.xlu0 %v2917
    %v2919 = vpop.xlane.xlu0 %2918
    %v2920 = vsel %vm1689, %v2639, 0.0
    %2921 = vadd.xlane.f32.xlu0 %v2920
    %v2922 = vpop.xlane.xlu0 %2921
    %v2923 = vsel %vm1689, %v2641, 0.0
    %2924 = vadd.xlane.f32.xlu0 %v2923
    %v2925 = vpop.xlane.xlu0 %2924
    %v2926 = vsel %vm1689, %v2643, 0.0
    %2927 = vadd.xlane.f32.xlu0 %v2926
    %v2928 = vpop.xlane.xlu0 %2927
    %v2929 = vsel %vm1689, %v2645, 0.0
    %2930 = vadd.xlane.f32.xlu0 %v2929
    %v2931 = vpop.xlane.xlu0 %2930
    %v2932 = vsel %vm1689, %v2647, 0.0
    %2933 = vadd.xlane.f32.xlu0 %v2932
    %v2934 = vpop.xlane.xlu0 %2933
    %v2935 = vsel %vm1689, %v2649, 0.0
    %2936 = vadd.xlane.f32.xlu0 %v2935
    %v2937 = vpop.xlane.xlu0 %2936
    %v2938 = vsub.f32 %v1211, %v2266
    %v2939 = vsub.f32 %v1216, %v2267
    %v2940 = vsub.f32 %v1221, %v2268
    %v2941 = vsub.f32 %v1226, %v2269
    %v2942 = vsub.f32 %v1231, %v2270
    %v2943 = vsub.f32 %v1236, %v2271
    %v2944 = vsub.f32 %v1241, %v2272
    %v2945 = vsub.f32 %v1246, %v2273
    %v2946 = vsub.f32 %v1251, %v2274
    %v2947 = vsub.f32 %v1256, %v2275
    %v2948 = vsub.f32 %v1261, %v2276
    %v2949 = vsub.f32 %v1266, %v2277
    %v2950 = vsub.f32 %v1271, %v2278
    %v2951 = vsub.f32 %v1276, %v2279
    %v2952 = vsub.f32 %v1281, %v2280
    %v2953 = vsub.f32 %v1286, %v2281
    %v2954 = vsub.f32 %v1291, %v2282
    %v2955 = vsub.f32 %v1296, %v2283
    %v2956 = vsub.f32 %v1301, %v2284
    %v2957 = vsub.f32 %v1306, %v2285
    %v2958 = vsub.f32 %v1311, %v2286
    %v2959 = vsub.f32 %v1316, %v2287
    %v2960 = vsub.f32 %v1321, %v2288
    %v2961 = vsub.f32 %v1326, %v2289
    %v2962 = vsub.f32 %v1331, %v2290
    %v2963 = vsub.f32 %v1336, %v2291
    %v2964 = vsub.f32 %v1341, %v2292
    %v2965 = vsub.f32 %v1346, %v2293
    %v2966 = vsub.f32 %v1351, %v2294
    %v2967 = vsub.f32 %v1356, %v2295
    %v2968 = vsub.f32 %v1361, %v2296
    %v2969 = vsub.f32 %v1366, %v2297
    %v2970 = vsub.f32 %v1371, %v2298
    %v2971 = vsub.f32 %v1376, %v2299
    %v2972 = vsub.f32 %v1381, %v2300
    %v2973 = vsub.f32 %v1386, %v2301
    %v2974 = vsub.f32 %v1391, %v2302
    %v2975 = vsub.f32 %v1396, %v2303
    %v2976 = vsub.f32 %v1401, %v2304
    %v2977 = vsub.f32 %v1406, %v2305
    %v2978 = vsub.f32 %v1411, %v2306
    %v2979 = vsub.f32 %v1416, %v2307
    %v2980 = vsub.f32 %v1421, %v2308
    %v2981 = vsub.f32 %v1426, %v2309
    %v2982 = vsub.f32 %v1431, %v2310
    %v2983 = vsub.f32 %v1436, %v2311
    %v2984 = vsub.f32 %v1441, %v2312
    %v2985 = vsub.f32 %v1446, %v2313
    %v2986 = vsub.f32 %v1451, %v2314
    %v2987 = vsub.f32 %v1456, %v2315
    %v2988 = vsub.f32 %v1461, %v2316
    %v2989 = vsub.f32 %v1466, %v2317
    %v2990 = vsub.f32 %v1471, %v2318
    %v2991 = vsub.f32 %v1476, %v2319
    %v2992 = vsub.f32 %v1481, %v2320
    %v2993 = vsub.f32 %v1486, %v2321
    %v2994 = vsub.f32 %v1491, %v2322
    %v2995 = vsub.f32 %v1496, %v2323
    %v2996 = vsub.f32 %v1501, %v2324
    %v2997 = vsub.f32 %v1506, %v2325
    %v2998 = vsub.f32 %v1511, %v2326
    %v2999 = vsub.f32 %v1516, %v2327
    %v3000 = vsub.f32 %v1521, %v2328
    %v3001 = vsub.f32 %v1526, %v2329
    %v3002 = vsub.f32 %v1531, %v2330
    %v3003 = vsub.f32 %v1536, %v2331
    %v3004 = vsub.f32 %v1541, %v2332
    %v3005 = vsub.f32 %v1546, %v2333
    %v3006 = vsub.f32 %v1551, %v2334
    %v3007 = vsub.f32 %v1556, %v2335
    %v3008 = vsub.f32 %v1561, %v2336
    %v3009 = vsub.f32 %v1566, %v2337
    %v3010 = vsub.f32 %v1571, %v2338
    %v3011 = vsub.f32 %v1576, %v2339
    %v3012 = vsub.f32 %v1581, %v2340
    %v3013 = vsub.f32 %v1586, %v2341
    %v3014 = vsub.f32 %v1591, %v2342
    %v3015 = vsub.f32 %v1596, %v2343
    %v3016 = vsub.f32 %v1601, %v2344
    %v3017 = vsub.f32 %v1606, %v2345
    %v3018 = vsub.f32 %v1611, %v2346
    %v3019 = vsub.f32 %v1616, %v2347
    %v3020 = vsub.f32 %v1621, %v2348
    %v3021 = vsub.f32 %v1626, %v2349
    %v3022 = vsub.f32 %v1631, %v2350
    %v3023 = vsub.f32 %v1636, %v2351
    %v3024 = vsub.f32 %v1641, %v2352
    %v3025 = vsub.f32 %v1646, %v2353
    %v3026 = vsub.f32 %v1651, %v2354
    %v3027 = vsub.f32 %v1656, %v2355
    %v3028 = vsub.f32 %v1661, %v2356
    %v3029 = vsub.f32 %v1666, %v2357
    %v3030 = vsub.f32 %v1671, %v2358
    %v3031 = vsub.f32 %v1676, %v2359
    %v3032 = vsub.f32 %v1681, %v2360
    %v3033 = vsub.f32 %v1686, %v2361
    %v3034 = vmul.f32 %v2938, 1.442695
    %v3035 = vpow.pop %v3034
    %v3036 = vmul.f32 %v2939, 1.442695
    %v3037 = vpow.pop %v3036
    %v3038 = vmul.f32 %v2940, 1.442695
    %v3039 = vpow.pop %v3038
    %v3040 = vmul.f32 %v2941, 1.442695
    %v3041 = vpow.pop %v3040
    %v3042 = vmul.f32 %v2942, 1.442695
    %v3043 = vpow.pop %v3042
    %v3044 = vmul.f32 %v2943, 1.442695
    %v3045 = vpow.pop %v3044
    %v3046 = vmul.f32 %v2944, 1.442695
    %v3047 = vpow.pop %v3046
    %v3048 = vmul.f32 %v2945, 1.442695
    %v3049 = vpow.pop %v3048
    %v3050 = vmul.f32 %v2946, 1.442695
    %v3051 = vpow.pop %v3050
    %v3052 = vmul.f32 %v2947, 1.442695
    %v3053 = vpow.pop %v3052
    %v3054 = vmul.f32 %v2948, 1.442695
    %v3055 = vpow.pop %v3054
    %v3056 = vmul.f32 %v2949, 1.442695
    %v3057 = vpow.pop %v3056
    %v3058 = vmul.f32 %v2950, 1.442695
    %v3059 = vpow.pop %v3058
    %v3060 = vmul.f32 %v2951, 1.442695
    %v3061 = vpow.pop %v3060
    %v3062 = vmul.f32 %v2952, 1.442695
    %v3063 = vpow.pop %v3062
    %v3064 = vmul.f32 %v2953, 1.442695
    %v3065 = vpow.pop %v3064
    %v3066 = vmul.f32 %v2954, 1.442695
    %v3067 = vpow.pop %v3066
    %v3068 = vmul.f32 %v2955, 1.442695
    %v3069 = vpow.pop %v3068
    %v3070 = vmul.f32 %v2956, 1.442695
    %v3071 = vpow.pop %v3070
    %v3072 = vmul.f32 %v2957, 1.442695
    %v3073 = vpow.pop %v3072
    %v3074 = vmul.f32 %v2958, 1.442695
    %v3075 = vpow.pop %v3074
    %v3076 = vmul.f32 %v2959, 1.442695
    %v3077 = vpow.pop %v3076
    %v3078 = vmul.f32 %v2960, 1.442695
    %v3079 = vpow.pop %v3078
    %v3080 = vmul.f32 %v2961, 1.442695
    %v3081 = vpow.pop %v3080
    %v3082 = vmul.f32 %v2962, 1.442695
    %v3083 = vpow.pop %v3082
    %v3084 = vmul.f32 %v2963, 1.442695
    %v3085 = vpow.pop %v3084
    %v3086 = vmul.f32 %v2964, 1.442695
    %v3087 = vpow.pop %v3086
    %v3088 = vmul.f32 %v2965, 1.442695
    %v3089 = vpow.pop %v3088
    %v3090 = vmul.f32 %v2966, 1.442695
    %v3091 = vpow.pop %v3090
    %v3092 = vmul.f32 %v2967, 1.442695
    %v3093 = vpow.pop %v3092
    %v3094 = vmul.f32 %v2968, 1.442695
    %v3095 = vpow.pop %v3094
    %v3096 = vmul.f32 %v2969, 1.442695
    %v3097 = vpow.pop %v3096
    %v3098 = vmul.f32 %v2970, 1.442695
    %v3099 = vpow.pop %v3098
    %v3100 = vmul.f32 %v2971, 1.442695
    %v3101 = vpow.pop %v3100
    %v3102 = vmul.f32 %v2972, 1.442695
    %v3103 = vpow.pop %v3102
    %v3104 = vmul.f32 %v2973, 1.442695
    %v3105 = vpow.pop %v3104
    %v3106 = vmul.f32 %v2974, 1.442695
    %v3107 = vpow.pop %v3106
    %v3108 = vmul.f32 %v2975, 1.442695
    %v3109 = vpow.pop %v3108
    %v3110 = vmul.f32 %v2976, 1.442695
    %v3111 = vpow.pop %v3110
    %v3112 = vmul.f32 %v2977, 1.442695
    %v3113 = vpow.pop %v3112
    %v3114 = vmul.f32 %v2978, 1.442695
    %v3115 = vpow.pop %v3114
    %v3116 = vmul.f32 %v2979, 1.442695
    %v3117 = vpow.pop %v3116
    %v3118 = vmul.f32 %v2980, 1.442695
    %v3119 = vpow.pop %v3118
    %v3120 = vmul.f32 %v2981, 1.442695
    %v3121 = vpow.pop %v3120
    %v3122 = vmul.f32 %v2982, 1.442695
    %v3123 = vpow.pop %v3122
    %v3124 = vmul.f32 %v2983, 1.442695
    %v3125 = vpow.pop %v3124
    %v3126 = vmul.f32 %v2984, 1.442695
    %v3127 = vpow.pop %v3126
    %v3128 = vmul.f32 %v2985, 1.442695
    %v3129 = vpow.pop %v3128
    %v3130 = vmul.f32 %v2986, 1.442695
    %v3131 = vpow.pop %v3130
    %v3132 = vmul.f32 %v2987, 1.442695
    %v3133 = vpow.pop %v3132
    %v3134 = vmul.f32 %v2988, 1.442695
    %v3135 = vpow.pop %v3134
    %v3136 = vmul.f32 %v2989, 1.442695
    %v3137 = vpow.pop %v3136
    %v3138 = vmul.f32 %v2990, 1.442695
    %v3139 = vpow.pop %v3138
    %v3140 = vmul.f32 %v2991, 1.442695
    %v3141 = vpow.pop %v3140
    %v3142 = vmul.f32 %v2992, 1.442695
    %v3143 = vpow.pop %v3142
    %v3144 = vmul.f32 %v2993, 1.442695
    %v3145 = vpow.pop %v3144
    %v3146 = vmul.f32 %v2994, 1.442695
    %v3147 = vpow.pop %v3146
    %v3148 = vmul.f32 %v2995, 1.442695
    %v3149 = vpow.pop %v3148
    %v3150 = vmul.f32 %v2996, 1.442695
    %v3151 = vpow.pop %v3150
    %v3152 = vmul.f32 %v2997, 1.442695
    %v3153 = vpow.pop %v3152
    %v3154 = vmul.f32 %v2998, 1.442695
    %v3155 = vpow.pop %v3154
    %v3156 = vmul.f32 %v2999, 1.442695
    %v3157 = vpow.pop %v3156
    %v3158 = vmul.f32 %v3000, 1.442695
    %v3159 = vpow.pop %v3158
    %v3160 = vmul.f32 %v3001, 1.442695
    %v3161 = vpow.pop %v3160
    %v3162 = vmul.f32 %v3002, 1.442695
    %v3163 = vpow.pop %v3162
    %v3164 = vmul.f32 %v3003, 1.442695
    %v3165 = vpow.pop %v3164
    %v3166 = vmul.f32 %v3004, 1.442695
    %v3167 = vpow.pop %v3166
    %v3168 = vmul.f32 %v3005, 1.442695
    %v3169 = vpow.pop %v3168
    %v3170 = vmul.f32 %v3006, 1.442695
    %v3171 = vpow.pop %v3170
    %v3172 = vmul.f32 %v3007, 1.442695
    %v3173 = vpow.pop %v3172
    %v3174 = vmul.f32 %v3008, 1.442695
    %v3175 = vpow.pop %v3174
    %v3176 = vmul.f32 %v3009, 1.442695
    %v3177 = vpow.pop %v3176
    %v3178 = vmul.f32 %v3010, 1.442695
    %v3179 = vpow.pop %v3178
    %v3180 = vmul.f32 %v3011, 1.442695
    %v3181 = vpow.pop %v3180
    %v3182 = vmul.f32 %v3012, 1.442695
    %v3183 = vpow.pop %v3182
    %v3184 = vmul.f32 %v3013, 1.442695
    %v3185 = vpow.pop %v3184
    %v3186 = vmul.f32 %v3014, 1.442695
    %v3187 = vpow.pop %v3186
    %v3188 = vmul.f32 %v3015, 1.442695
    %v3189 = vpow.pop %v3188
    %v3190 = vmul.f32 %v3016, 1.442695
    %v3191 = vpow.pop %v3190
    %v3192 = vmul.f32 %v3017, 1.442695
    %v3193 = vpow.pop %v3192
    %v3194 = vmul.f32 %v3018, 1.442695
    %v3195 = vpow.pop %v3194
    %v3196 = vmul.f32 %v3019, 1.442695
    %v3197 = vpow.pop %v3196
    %v3198 = vmul.f32 %v3020, 1.442695
    %v3199 = vpow.pop %v3198
    %v3200 = vmul.f32 %v3021, 1.442695
    %v3201 = vpow.pop %v3200
    %v3202 = vmul.f32 %v3022, 1.442695
    %v3203 = vpow.pop %v3202
    %v3204 = vmul.f32 %v3023, 1.442695
    %v3205 = vpow.pop %v3204
    %v3206 = vmul.f32 %v3024, 1.442695
    %v3207 = vpow.pop %v3206
    %v3208 = vmul.f32 %v3025, 1.442695
    %v3209 = vpow.pop %v3208
    %v3210 = vmul.f32 %v3026, 1.442695
    %v3211 = vpow.pop %v3210
    %v3212 = vmul.f32 %v3027, 1.442695
    %v3213 = vpow.pop %v3212
    %v3214 = vmul.f32 %v3028, 1.442695
    %v3215 = vpow.pop %v3214
    %v3216 = vmul.f32 %v3029, 1.442695
    %v3217 = vpow.pop %v3216
    %v3218 = vmul.f32 %v3030, 1.442695
    %v3219 = vpow.pop %v3218
    %v3220 = vmul.f32 %v3031, 1.442695
    %v3221 = vpow.pop %v3220
    %v3222 = vmul.f32 %v3032, 1.442695
    %v3223 = vpow.pop %v3222
    %v3224 = vmul.f32 %v3033, 1.442695
    %v3225 = vpow.pop %v3224
    %v3226 = vsel %vm1689, %v3035, 0.0
    %3227 = vadd.xlane.f32.xlu0 %v3226
    %v3228 = vpop.xlane.xlu0 %3227
    %v3229 = vsel %vm1689, %v3037, 0.0
    %3230 = vadd.xlane.f32.xlu0 %v3229
    %v3231 = vpop.xlane.xlu0 %3230
    %v3232 = vsel %vm1689, %v3039, 0.0
    %3233 = vadd.xlane.f32.xlu0 %v3232
    %v3234 = vpop.xlane.xlu0 %3233
    %v3235 = vsel %vm1689, %v3041, 0.0
    %3236 = vadd.xlane.f32.xlu0 %v3235
    %v3237 = vpop.xlane.xlu0 %3236
    %v3238 = vsel %vm1689, %v3043, 0.0
    %3239 = vadd.xlane.f32.xlu0 %v3238
    %v3240 = vpop.xlane.xlu0 %3239
    %v3241 = vsel %vm1689, %v3045, 0.0
    %3242 = vadd.xlane.f32.xlu0 %v3241
    %v3243 = vpop.xlane.xlu0 %3242
    %v3244 = vsel %vm1689, %v3047, 0.0
    %3245 = vadd.xlane.f32.xlu0 %v3244
    %v3246 = vpop.xlane.xlu0 %3245
    %v3247 = vsel %vm1689, %v3049, 0.0
    %3248 = vadd.xlane.f32.xlu0 %v3247
    %v3249 = vpop.xlane.xlu0 %3248
    %v3250 = vsel %vm1689, %v3051, 0.0
    %3251 = vadd.xlane.f32.xlu0 %v3250
    %v3252 = vpop.xlane.xlu0 %3251
    %v3253 = vsel %vm1689, %v3053, 0.0
    %3254 = vadd.xlane.f32.xlu0 %v3253
    %v3255 = vpop.xlane.xlu0 %3254
    %v3256 = vsel %vm1689, %v3055, 0.0
    %3257 = vadd.xlane.f32.xlu0 %v3256
    %v3258 = vpop.xlane.xlu0 %3257
    %v3259 = vsel %vm1689, %v3057, 0.0
    %3260 = vadd.xlane.f32.xlu0 %v3259
    %v3261 = vpop.xlane.xlu0 %3260
    %v3262 = vsel %vm1689, %v3059, 0.0
    %3263 = vadd.xlane.f32.xlu0 %v3262
    %v3264 = vpop.xlane.xlu0 %3263
    %v3265 = vsel %vm1689, %v3061, 0.0
    %3266 = vadd.xlane.f32.xlu0 %v3265
    %v3267 = vpop.xlane.xlu0 %3266
    %v3268 = vsel %vm1689, %v3063, 0.0
    %3269 = vadd.xlane.f32.xlu0 %v3268
    %v3270 = vpop.xlane.xlu0 %3269
    %v3271 = vsel %vm1689, %v3065, 0.0
    %3272 = vadd.xlane.f32.xlu0 %v3271
    %v3273 = vpop.xlane.xlu0 %3272
    %v3274 = vsel %vm1689, %v3067, 0.0
    %3275 = vadd.xlane.f32.xlu0 %v3274
    %v3276 = vpop.xlane.xlu0 %3275
    %v3277 = vsel %vm1689, %v3069, 0.0
    %3278 = vadd.xlane.f32.xlu0 %v3277
    %v3279 = vpop.xlane.xlu0 %3278
    %v3280 = vsel %vm1689, %v3071, 0.0
    %3281 = vadd.xlane.f32.xlu0 %v3280
    %v3282 = vpop.xlane.xlu0 %3281
    %v3283 = vsel %vm1689, %v3073, 0.0
    %3284 = vadd.xlane.f32.xlu0 %v3283
    %v3285 = vpop.xlane.xlu0 %3284
    %v3286 = vsel %vm1689, %v3075, 0.0
    %3287 = vadd.xlane.f32.xlu0 %v3286
    %v3288 = vpop.xlane.xlu0 %3287
    %v3289 = vsel %vm1689, %v3077, 0.0
    %3290 = vadd.xlane.f32.xlu0 %v3289
    %v3291 = vpop.xlane.xlu0 %3290
    %v3292 = vsel %vm1689, %v3079, 0.0
    %3293 = vadd.xlane.f32.xlu0 %v3292
    %v3294 = vpop.xlane.xlu0 %3293
    %v3295 = vsel %vm1689, %v3081, 0.0
    %3296 = vadd.xlane.f32.xlu0 %v3295
    %v3297 = vpop.xlane.xlu0 %3296
    %v3298 = vsel %vm1689, %v3083, 0.0
    %3299 = vadd.xlane.f32.xlu0 %v3298
    %v3300 = vpop.xlane.xlu0 %3299
    %v3301 = vsel %vm1689, %v3085, 0.0
    %3302 = vadd.xlane.f32.xlu0 %v3301
    %v3303 = vpop.xlane.xlu0 %3302
    %v3304 = vsel %vm1689, %v3087, 0.0
    %3305 = vadd.xlane.f32.xlu0 %v3304
    %v3306 = vpop.xlane.xlu0 %3305
    %v3307 = vsel %vm1689, %v3089, 0.0
    %3308 = vadd.xlane.f32.xlu0 %v3307
    %v3309 = vpop.xlane.xlu0 %3308
    %v3310 = vsel %vm1689, %v3091, 0.0
    %3311 = vadd.xlane.f32.xlu0 %v3310
    %v3312 = vpop.xlane.xlu0 %3311
    %v3313 = vsel %vm1689, %v3093, 0.0
    %3314 = vadd.xlane.f32.xlu0 %v3313
    %v3315 = vpop.xlane.xlu0 %3314
    %v3316 = vsel %vm1689, %v3095, 0.0
    %3317 = vadd.xlane.f32.xlu0 %v3316
    %v3318 = vpop.xlane.xlu0 %3317
    %v3319 = vsel %vm1689, %v3097, 0.0
    %3320 = vadd.xlane.f32.xlu0 %v3319
    %v3321 = vpop.xlane.xlu0 %3320
    %v3322 = vsel %vm1689, %v3099, 0.0
    %3323 = vadd.xlane.f32.xlu0 %v3322
    %v3324 = vpop.xlane.xlu0 %3323
    %v3325 = vsel %vm1689, %v3101, 0.0
    %3326 = vadd.xlane.f32.xlu0 %v3325
    %v3327 = vpop.xlane.xlu0 %3326
    %v3328 = vsel %vm1689, %v3103, 0.0
    %3329 = vadd.xlane.f32.xlu0 %v3328
    %v3330 = vpop.xlane.xlu0 %3329
    %v3331 = vsel %vm1689, %v3105, 0.0
    %3332 = vadd.xlane.f32.xlu0 %v3331
    %v3333 = vpop.xlane.xlu0 %3332
    %v3334 = vsel %vm1689, %v3107, 0.0
    %3335 = vadd.xlane.f32.xlu0 %v3334
    %v3336 = vpop.xlane.xlu0 %3335
    %v3337 = vsel %vm1689, %v3109, 0.0
    %3338 = vadd.xlane.f32.xlu0 %v3337
    %v3339 = vpop.xlane.xlu0 %3338
    %v3340 = vsel %vm1689, %v3111, 0.0
    %3341 = vadd.xlane.f32.xlu0 %v3340
    %v3342 = vpop.xlane.xlu0 %3341
    %v3343 = vsel %vm1689, %v3113, 0.0
    %3344 = vadd.xlane.f32.xlu0 %v3343
    %v3345 = vpop.xlane.xlu0 %3344
    %v3346 = vsel %vm1689, %v3115, 0.0
    %3347 = vadd.xlane.f32.xlu0 %v3346
    %v3348 = vpop.xlane.xlu0 %3347
    %v3349 = vsel %vm1689, %v3117, 0.0
    %3350 = vadd.xlane.f32.xlu0 %v3349
    %v3351 = vpop.xlane.xlu0 %3350
    %v3352 = vsel %vm1689, %v3119, 0.0
    %3353 = vadd.xlane.f32.xlu0 %v3352
    %v3354 = vpop.xlane.xlu0 %3353
    %v3355 = vsel %vm1689, %v3121, 0.0
    %3356 = vadd.xlane.f32.xlu0 %v3355
    %v3357 = vpop.xlane.xlu0 %3356
    %v3358 = vsel %vm1689, %v3123, 0.0
    %3359 = vadd.xlane.f32.xlu0 %v3358
    %v3360 = vpop.xlane.xlu0 %3359
    %v3361 = vsel %vm1689, %v3125, 0.0
    %3362 = vadd.xlane.f32.xlu0 %v3361
    %v3363 = vpop.xlane.xlu0 %3362
    %v3364 = vsel %vm1689, %v3127, 0.0
    %3365 = vadd.xlane.f32.xlu0 %v3364
    %v3366 = vpop.xlane.xlu0 %3365
    %v3367 = vsel %vm1689, %v3129, 0.0
    %3368 = vadd.xlane.f32.xlu0 %v3367
    %v3369 = vpop.xlane.xlu0 %3368
    %v3370 = vsel %vm1689, %v3131, 0.0
    %3371 = vadd.xlane.f32.xlu0 %v3370
    %v3372 = vpop.xlane.xlu0 %3371
    %v3373 = vsel %vm1689, %v3133, 0.0
    %3374 = vadd.xlane.f32.xlu0 %v3373
    %v3375 = vpop.xlane.xlu0 %3374
    %v3376 = vsel %vm1689, %v3135, 0.0
    %3377 = vadd.xlane.f32.xlu0 %v3376
    %v3378 = vpop.xlane.xlu0 %3377
    %v3379 = vsel %vm1689, %v3137, 0.0
    %3380 = vadd.xlane.f32.xlu0 %v3379
    %v3381 = vpop.xlane.xlu0 %3380
    %v3382 = vsel %vm1689, %v3139, 0.0
    %3383 = vadd.xlane.f32.xlu0 %v3382
    %v3384 = vpop.xlane.xlu0 %3383
    %v3385 = vsel %vm1689, %v3141, 0.0
    %3386 = vadd.xlane.f32.xlu0 %v3385
    %v3387 = vpop.xlane.xlu0 %3386
    %v3388 = vsel %vm1689, %v3143, 0.0
    %3389 = vadd.xlane.f32.xlu0 %v3388
    %v3390 = vpop.xlane.xlu0 %3389
    %v3391 = vsel %vm1689, %v3145, 0.0
    %3392 = vadd.xlane.f32.xlu0 %v3391
    %v3393 = vpop.xlane.xlu0 %3392
    %v3394 = vsel %vm1689, %v3147, 0.0
    %3395 = vadd.xlane.f32.xlu0 %v3394
    %v3396 = vpop.xlane.xlu0 %3395
    %v3397 = vsel %vm1689, %v3149, 0.0
    %3398 = vadd.xlane.f32.xlu0 %v3397
    %v3399 = vpop.xlane.xlu0 %3398
    %v3400 = vsel %vm1689, %v3151, 0.0
    %3401 = vadd.xlane.f32.xlu0 %v3400
    %v3402 = vpop.xlane.xlu0 %3401
    %v3403 = vsel %vm1689, %v3153, 0.0
    %3404 = vadd.xlane.f32.xlu0 %v3403
    %v3405 = vpop.xlane.xlu0 %3404
    %v3406 = vsel %vm1689, %v3155, 0.0
    %3407 = vadd.xlane.f32.xlu0 %v3406
    %v3408 = vpop.xlane.xlu0 %3407
    %v3409 = vsel %vm1689, %v3157, 0.0
    %3410 = vadd.xlane.f32.xlu0 %v3409
    %v3411 = vpop.xlane.xlu0 %3410
    %v3412 = vsel %vm1689, %v3159, 0.0
    %3413 = vadd.xlane.f32.xlu0 %v3412
    %v3414 = vpop.xlane.xlu0 %3413
    %v3415 = vsel %vm1689, %v3161, 0.0
    %3416 = vadd.xlane.f32.xlu0 %v3415
    %v3417 = vpop.xlane.xlu0 %3416
    %v3418 = vsel %vm1689, %v3163, 0.0
    %3419 = vadd.xlane.f32.xlu0 %v3418
    %v3420 = vpop.xlane.xlu0 %3419
    %v3421 = vsel %vm1689, %v3165, 0.0
    %3422 = vadd.xlane.f32.xlu0 %v3421
    %v3423 = vpop.xlane.xlu0 %3422
    %v3424 = vsel %vm1689, %v3167, 0.0
    %3425 = vadd.xlane.f32.xlu0 %v3424
    %v3426 = vpop.xlane.xlu0 %3425
    %v3427 = vsel %vm1689, %v3169, 0.0
    %3428 = vadd.xlane.f32.xlu0 %v3427
    %v3429 = vpop.xlane.xlu0 %3428
    %v3430 = vsel %vm1689, %v3171, 0.0
    %3431 = vadd.xlane.f32.xlu0 %v3430
    %v3432 = vpop.xlane.xlu0 %3431
    %v3433 = vsel %vm1689, %v3173, 0.0
    %3434 = vadd.xlane.f32.xlu0 %v3433
    %v3435 = vpop.xlane.xlu0 %3434
    %v3436 = vsel %vm1689, %v3175, 0.0
    %3437 = vadd.xlane.f32.xlu0 %v3436
    %v3438 = vpop.xlane.xlu0 %3437
    %v3439 = vsel %vm1689, %v3177, 0.0
    %3440 = vadd.xlane.f32.xlu0 %v3439
    %v3441 = vpop.xlane.xlu0 %3440
    %v3442 = vsel %vm1689, %v3179, 0.0
    %3443 = vadd.xlane.f32.xlu0 %v3442
    %v3444 = vpop.xlane.xlu0 %3443
    %v3445 = vsel %vm1689, %v3181, 0.0
    %3446 = vadd.xlane.f32.xlu0 %v3445
    %v3447 = vpop.xlane.xlu0 %3446
    %v3448 = vsel %vm1689, %v3183, 0.0
    %3449 = vadd.xlane.f32.xlu0 %v3448
    %v3450 = vpop.xlane.xlu0 %3449
    %v3451 = vsel %vm1689, %v3185, 0.0
    %3452 = vadd.xlane.f32.xlu0 %v3451
    %v3453 = vpop.xlane.xlu0 %3452
    %v3454 = vsel %vm1689, %v3187, 0.0
    %3455 = vadd.xlane.f32.xlu0 %v3454
    %v3456 = vpop.xlane.xlu0 %3455
    %v3457 = vsel %vm1689, %v3189, 0.0
    %3458 = vadd.xlane.f32.xlu0 %v3457
    %v3459 = vpop.xlane.xlu0 %3458
    %v3460 = vsel %vm1689, %v3191, 0.0
    %3461 = vadd.xlane.f32.xlu0 %v3460
    %v3462 = vpop.xlane.xlu0 %3461
    %v3463 = vsel %vm1689, %v3193, 0.0
    %3464 = vadd.xlane.f32.xlu0 %v3463
    %v3465 = vpop.xlane.xlu0 %3464
    %v3466 = vsel %vm1689, %v3195, 0.0
    %3467 = vadd.xlane.f32.xlu0 %v3466
    %v3468 = vpop.xlane.xlu0 %3467
    %v3469 = vsel %vm1689, %v3197, 0.0
    %3470 = vadd.xlane.f32.xlu0 %v3469
    %v3471 = vpop.xlane.xlu0 %3470
    %v3472 = vsel %vm1689, %v3199, 0.0
    %3473 = vadd.xlane.f32.xlu0 %v3472
    %v3474 = vpop.xlane.xlu0 %3473
    %v3475 = vsel %vm1689, %v3201, 0.0
    %3476 = vadd.xlane.f32.xlu0 %v3475
    %v3477 = vpop.xlane.xlu0 %3476
    %v3478 = vsel %vm1689, %v3203, 0.0
    %3479 = vadd.xlane.f32.xlu0 %v3478
    %v3480 = vpop.xlane.xlu0 %3479
    %v3481 = vsel %vm1689, %v3205, 0.0
    %3482 = vadd.xlane.f32.xlu0 %v3481
    %v3483 = vpop.xlane.xlu0 %3482
    %v3484 = vsel %vm1689, %v3207, 0.0
    %3485 = vadd.xlane.f32.xlu0 %v3484
    %v3486 = vpop.xlane.xlu0 %3485
    %v3487 = vsel %vm1689, %v3209, 0.0
    %3488 = vadd.xlane.f32.xlu0 %v3487
    %v3489 = vpop.xlane.xlu0 %3488
    %v3490 = vsel %vm1689, %v3211, 0.0
    %3491 = vadd.xlane.f32.xlu0 %v3490
    %v3492 = vpop.xlane.xlu0 %3491
    %v3493 = vsel %vm1689, %v3213, 0.0
    %3494 = vadd.xlane.f32.xlu0 %v3493
    %v3495 = vpop.xlane.xlu0 %3494
    %v3496 = vsel %vm1689, %v3215, 0.0
    %3497 = vadd.xlane.f32.xlu0 %v3496
    %v3498 = vpop.xlane.xlu0 %3497
    %v3499 = vsel %vm1689, %v3217, 0.0
    %3500 = vadd.xlane.f32.xlu0 %v3499
    %v3501 = vpop.xlane.xlu0 %3500
    %v3502 = vsel %vm1689, %v3219, 0.0
    %3503 = vadd.xlane.f32.xlu0 %v3502
    %v3504 = vpop.xlane.xlu0 %3503
    %v3505 = vsel %vm1689, %v3221, 0.0
    %3506 = vadd.xlane.f32.xlu0 %v3505
    %v3507 = vpop.xlane.xlu0 %3506
    %v3508 = vsel %vm1689, %v3223, 0.0
    %3509 = vadd.xlane.f32.xlu0 %v3508
    %v3510 = vpop.xlane.xlu0 %3509
    %v3511 = vsel %vm1689, %v3225, 0.0
    %3512 = vadd.xlane.f32.xlu0 %v3511
    %v3513 = vpop.xlane.xlu0 %3512
    %v3514 = vadd.f32 %v2652, %v3228
    %v3515 = vadd.f32 %v2655, %v3231
    %v3516 = vadd.f32 %v2658, %v3234
    %v3517 = vadd.f32 %v2661, %v3237
    %v3518 = vadd.f32 %v2664, %v3240
    %v3519 = vadd.f32 %v2667, %v3243
    %v3520 = vadd.f32 %v2670, %v3246
    %v3521 = vadd.f32 %v2673, %v3249
    %v3522 = vadd.f32 %v2676, %v3252
    %v3523 = vadd.f32 %v2679, %v3255
    %v3524 = vadd.f32 %v2682, %v3258
    %v3525 = vadd.f32 %v2685, %v3261
    %v3526 = vadd.f32 %v2688, %v3264
    %v3527 = vadd.f32 %v2691, %v3267
    %v3528 = vadd.f32 %v2694, %v3270
    %v3529 = vadd.f32 %v2697, %v3273
    %v3530 = vadd.f32 %v2700, %v3276
    %v3531 = vadd.f32 %v2703, %v3279
    %v3532 = vadd.f32 %v2706, %v3282
    %v3533 = vadd.f32 %v2709, %v3285
    %v3534 = vadd.f32 %v2712, %v3288
    %v3535 = vadd.f32 %v2715, %v3291
    %v3536 = vadd.f32 %v2718, %v3294
    %v3537 = vadd.f32 %v2721, %v3297
    %v3538 = vadd.f32 %v2724, %v3300
    %v3539 = vadd.f32 %v2727, %v3303
    %v3540 = vadd.f32 %v2730, %v3306
    %v3541 = vadd.f32 %v2733, %v3309
    %v3542 = vadd.f32 %v2736, %v3312
    %v3543 = vadd.f32 %v2739, %v3315
    %v3544 = vadd.f32 %v2742, %v3318
    %v3545 = vadd.f32 %v2745, %v3321
    %v3546 = vadd.f32 %v2748, %v3324
    %v3547 = vadd.f32 %v2751, %v3327
    %v3548 = vadd.f32 %v2754, %v3330
    %v3549 = vadd.f32 %v2757, %v3333
    %v3550 = vadd.f32 %v2760, %v3336
    %v3551 = vadd.f32 %v2763, %v3339
    %v3552 = vadd.f32 %v2766, %v3342
    %v3553 = vadd.f32 %v2769, %v3345
    %v3554 = vadd.f32 %v2772, %v3348
    %v3555 = vadd.f32 %v2775, %v3351
    %v3556 = vadd.f32 %v2778, %v3354
    %v3557 = vadd.f32 %v2781, %v3357
    %v3558 = vadd.f32 %v2784, %v3360
    %v3559 = vadd.f32 %v2787, %v3363
    %v3560 = vadd.f32 %v2790, %v3366
    %v3561 = vadd.f32 %v2793, %v3369
    %v3562 = vadd.f32 %v2796, %v3372
    %v3563 = vadd.f32 %v2799, %v3375
    %v3564 = vadd.f32 %v2802, %v3378
    %v3565 = vadd.f32 %v2805, %v3381
    %v3566 = vadd.f32 %v2808, %v3384
    %v3567 = vadd.f32 %v2811, %v3387
    %v3568 = vadd.f32 %v2814, %v3390
    %v3569 = vadd.f32 %v2817, %v3393
    %v3570 = vadd.f32 %v2820, %v3396
    %v3571 = vadd.f32 %v2823, %v3399
    %v3572 = vadd.f32 %v2826, %v3402
    %v3573 = vadd.f32 %v2829, %v3405
    %v3574 = vadd.f32 %v2832, %v3408
    %v3575 = vadd.f32 %v2835, %v3411
    %v3576 = vadd.f32 %v2838, %v3414
    %v3577 = vadd.f32 %v2841, %v3417
    %v3578 = vadd.f32 %v2844, %v3420
    %v3579 = vadd.f32 %v2847, %v3423
    %v3580 = vadd.f32 %v2850, %v3426
    %v3581 = vadd.f32 %v2853, %v3429
    %v3582 = vadd.f32 %v2856, %v3432
    %v3583 = vadd.f32 %v2859, %v3435
    %v3584 = vadd.f32 %v2862, %v3438
    %v3585 = vadd.f32 %v2865, %v3441
    %v3586 = vadd.f32 %v2868, %v3444
    %v3587 = vadd.f32 %v2871, %v3447
    %v3588 = vadd.f32 %v2874, %v3450
    %v3589 = vadd.f32 %v2877, %v3453
    %v3590 = vadd.f32 %v2880, %v3456
    %v3591 = vadd.f32 %v2883, %v3459
    %v3592 = vadd.f32 %v2886, %v3462
    %v3593 = vadd.f32 %v2889, %v3465
    %v3594 = vadd.f32 %v2892, %v3468
    %v3595 = vadd.f32 %v2895, %v3471
    %v3596 = vadd.f32 %v2898, %v3474
    %v3597 = vadd.f32 %v2901, %v3477
    %v3598 = vadd.f32 %v2904, %v3480
    %v3599 = vadd.f32 %v2907, %v3483
    %v3600 = vadd.f32 %v2910, %v3486
    %v3601 = vadd.f32 %v2913, %v3489
    %v3602 = vadd.f32 %v2916, %v3492
    %v3603 = vadd.f32 %v2919, %v3495
    %v3604 = vadd.f32 %v2922, %v3498
    %v3605 = vadd.f32 %v2925, %v3501
    %v3606 = vadd.f32 %v2928, %v3504
    %v3607 = vadd.f32 %v2931, %v3507
    %v3608 = vadd.f32 %v2934, %v3510
    %v3609 = vadd.f32 %v2937, %v3513
    %v3610 = vlog2.pop %v3514
    %v3611 = vmul.f32 %v3610, 0.6931472
    %v3612 = vlog2.pop %v3515
    %v3613 = vmul.f32 %v3612, 0.6931472
    %v3614 = vlog2.pop %v3516
    %v3615 = vmul.f32 %v3614, 0.6931472
    %v3616 = vlog2.pop %v3517
    %v3617 = vmul.f32 %v3616, 0.6931472
    %v3618 = vlog2.pop %v3518
    %v3619 = vmul.f32 %v3618, 0.6931472
    %v3620 = vlog2.pop %v3519
    %v3621 = vmul.f32 %v3620, 0.6931472
    %v3622 = vlog2.pop %v3520
    %v3623 = vmul.f32 %v3622, 0.6931472
    %v3624 = vlog2.pop %v3521
    %v3625 = vmul.f32 %v3624, 0.6931472
    %v3626 = vlog2.pop %v3522
    %v3627 = vmul.f32 %v3626, 0.6931472
    %v3628 = vlog2.pop %v3523
    %v3629 = vmul.f32 %v3628, 0.6931472
    %v3630 = vlog2.pop %v3524
    %v3631 = vmul.f32 %v3630, 0.6931472
    %v3632 = vlog2.pop %v3525
    %v3633 = vmul.f32 %v3632, 0.6931472
    %v3634 = vlog2.pop %v3526
    %v3635 = vmul.f32 %v3634, 0.6931472
    %v3636 = vlog2.pop %v3527
    %v3637 = vmul.f32 %v3636, 0.6931472
    %v3638 = vlog2.pop %v3528
    %v3639 = vmul.f32 %v3638, 0.6931472
    %v3640 = vlog2.pop %v3529
    %v3641 = vmul.f32 %v3640, 0.6931472
    %v3642 = vlog2.pop %v3530
    %v3643 = vmul.f32 %v3642, 0.6931472
    %v3644 = vlog2.pop %v3531
    %v3645 = vmul.f32 %v3644, 0.6931472
    %v3646 = vlog2.pop %v3532
    %v3647 = vmul.f32 %v3646, 0.6931472
    %v3648 = vlog2.pop %v3533
    %v3649 = vmul.f32 %v3648, 0.6931472
    %v3650 = vlog2.pop %v3534
    %v3651 = vmul.f32 %v3650, 0.6931472
    %v3652 = vlog2.pop %v3535
    %v3653 = vmul.f32 %v3652, 0.6931472
    %v3654 = vlog2.pop %v3536
    %v3655 = vmul.f32 %v3654, 0.6931472
    %v3656 = vlog2.pop %v3537
    %v3657 = vmul.f32 %v3656, 0.6931472
    %v3658 = vlog2.pop %v3538
    %v3659 = vmul.f32 %v3658, 0.6931472
    %v3660 = vlog2.pop %v3539
    %v3661 = vmul.f32 %v3660, 0.6931472
    %v3662 = vlog2.pop %v3540
    %v3663 = vmul.f32 %v3662, 0.6931472
    %v3664 = vlog2.pop %v3541
    %v3665 = vmul.f32 %v3664, 0.6931472
    %v3666 = vlog2.pop %v3542
    %v3667 = vmul.f32 %v3666, 0.6931472
    %v3668 = vlog2.pop %v3543
    %v3669 = vmul.f32 %v3668, 0.6931472
    %v3670 = vlog2.pop %v3544
    %v3671 = vmul.f32 %v3670, 0.6931472
    %v3672 = vlog2.pop %v3545
    %v3673 = vmul.f32 %v3672, 0.6931472
    %v3674 = vlog2.pop %v3546
    %v3675 = vmul.f32 %v3674, 0.6931472
    %v3676 = vlog2.pop %v3547
    %v3677 = vmul.f32 %v3676, 0.6931472
    %v3678 = vlog2.pop %v3548
    %v3679 = vmul.f32 %v3678, 0.6931472
    %v3680 = vlog2.pop %v3549
    %v3681 = vmul.f32 %v3680, 0.6931472
    %v3682 = vlog2.pop %v3550
    %v3683 = vmul.f32 %v3682, 0.6931472
    %v3684 = vlog2.pop %v3551
    %v3685 = vmul.f32 %v3684, 0.6931472
    %v3686 = vlog2.pop %v3552
    %v3687 = vmul.f32 %v3686, 0.6931472
    %v3688 = vlog2.pop %v3553
    %v3689 = vmul.f32 %v3688, 0.6931472
    %v3690 = vlog2.pop %v3554
    %v3691 = vmul.f32 %v3690, 0.6931472
    %v3692 = vlog2.pop %v3555
    %v3693 = vmul.f32 %v3692, 0.6931472
    %v3694 = vlog2.pop %v3556
    %v3695 = vmul.f32 %v3694, 0.6931472
    %v3696 = vlog2.pop %v3557
    %v3697 = vmul.f32 %v3696, 0.6931472
    %v3698 = vlog2.pop %v3558
    %v3699 = vmul.f32 %v3698, 0.6931472
    %v3700 = vlog2.pop %v3559
    %v3701 = vmul.f32 %v3700, 0.6931472
    %v3702 = vlog2.pop %v3560
    %v3703 = vmul.f32 %v3702, 0.6931472
    %v3704 = vlog2.pop %v3561
    %v3705 = vmul.f32 %v3704, 0.6931472
    %v3706 = vlog2.pop %v3562
    %v3707 = vmul.f32 %v3706, 0.6931472
    %v3708 = vlog2.pop %v3563
    %v3709 = vmul.f32 %v3708, 0.6931472
    %v3710 = vlog2.pop %v3564
    %v3711 = vmul.f32 %v3710, 0.6931472
    %v3712 = vlog2.pop %v3565
    %v3713 = vmul.f32 %v3712, 0.6931472
    %v3714 = vlog2.pop %v3566
    %v3715 = vmul.f32 %v3714, 0.6931472
    %v3716 = vlog2.pop %v3567
    %v3717 = vmul.f32 %v3716, 0.6931472
    %v3718 = vlog2.pop %v3568
    %v3719 = vmul.f32 %v3718, 0.6931472
    %v3720 = vlog2.pop %v3569
    %v3721 = vmul.f32 %v3720, 0.6931472
    %v3722 = vlog2.pop %v3570
    %v3723 = vmul.f32 %v3722, 0.6931472
    %v3724 = vlog2.pop %v3571
    %v3725 = vmul.f32 %v3724, 0.6931472
    %v3726 = vlog2.pop %v3572
    %v3727 = vmul.f32 %v3726, 0.6931472
    %v3728 = vlog2.pop %v3573
    %v3729 = vmul.f32 %v3728, 0.6931472
    %v3730 = vlog2.pop %v3574
    %v3731 = vmul.f32 %v3730, 0.6931472
    %v3732 = vlog2.pop %v3575
    %v3733 = vmul.f32 %v3732, 0.6931472
    %v3734 = vlog2.pop %v3576
    %v3735 = vmul.f32 %v3734, 0.6931472
    %v3736 = vlog2.pop %v3577
    %v3737 = vmul.f32 %v3736, 0.6931472
    %v3738 = vlog2.pop %v3578
    %v3739 = vmul.f32 %v3738, 0.6931472
    %v3740 = vlog2.pop %v3579
    %v3741 = vmul.f32 %v3740, 0.6931472
    %v3742 = vlog2.pop %v3580
    %v3743 = vmul.f32 %v3742, 0.6931472
    %v3744 = vlog2.pop %v3581
    %v3745 = vmul.f32 %v3744, 0.6931472
    %v3746 = vlog2.pop %v3582
    %v3747 = vmul.f32 %v3746, 0.6931472
    %v3748 = vlog2.pop %v3583
    %v3749 = vmul.f32 %v3748, 0.6931472
    %v3750 = vlog2.pop %v3584
    %v3751 = vmul.f32 %v3750, 0.6931472
    %v3752 = vlog2.pop %v3585
    %v3753 = vmul.f32 %v3752, 0.6931472
    %v3754 = vlog2.pop %v3586
    %v3755 = vmul.f32 %v3754, 0.6931472
    %v3756 = vlog2.pop %v3587
    %v3757 = vmul.f32 %v3756, 0.6931472
    %v3758 = vlog2.pop %v3588
    %v3759 = vmul.f32 %v3758, 0.6931472
    %v3760 = vlog2.pop %v3589
    %v3761 = vmul.f32 %v3760, 0.6931472
    %v3762 = vlog2.pop %v3590
    %v3763 = vmul.f32 %v3762, 0.6931472
    %v3764 = vlog2.pop %v3591
    %v3765 = vmul.f32 %v3764, 0.6931472
    %v3766 = vlog2.pop %v3592
    %v3767 = vmul.f32 %v3766, 0.6931472
    %v3768 = vlog2.pop %v3593
    %v3769 = vmul.f32 %v3768, 0.6931472
    %v3770 = vlog2.pop %v3594
    %v3771 = vmul.f32 %v3770, 0.6931472
    %v3772 = vlog2.pop %v3595
    %v3773 = vmul.f32 %v3772, 0.6931472
    %v3774 = vlog2.pop %v3596
    %v3775 = vmul.f32 %v3774, 0.6931472
    %v3776 = vlog2.pop %v3597
    %v3777 = vmul.f32 %v3776, 0.6931472
    %v3778 = vlog2.pop %v3598
    %v3779 = vmul.f32 %v3778, 0.6931472
    %v3780 = vlog2.pop %v3599
    %v3781 = vmul.f32 %v3780, 0.6931472
    %v3782 = vlog2.pop %v3600
    %v3783 = vmul.f32 %v3782, 0.6931472
    %v3784 = vlog2.pop %v3601
    %v3785 = vmul.f32 %v3784, 0.6931472
    %v3786 = vlog2.pop %v3602
    %v3787 = vmul.f32 %v3786, 0.6931472
    %v3788 = vlog2.pop %v3603
    %v3789 = vmul.f32 %v3788, 0.6931472
    %v3790 = vlog2.pop %v3604
    %v3791 = vmul.f32 %v3790, 0.6931472
    %v3792 = vlog2.pop %v3605
    %v3793 = vmul.f32 %v3792, 0.6931472
    %v3794 = vlog2.pop %v3606
    %v3795 = vmul.f32 %v3794, 0.6931472
    %v3796 = vlog2.pop %v3607
    %v3797 = vmul.f32 %v3796, 0.6931472
    %v3798 = vlog2.pop %v3608
    %v3799 = vmul.f32 %v3798, 0.6931472
    %v3800 = vlog2.pop %v3609
    %v3801 = vmul.f32 %v3800, 0.6931472
    %v3802 = vsub.f32 %v2362, %v3611
    %v3803 = vsub.f32 %v2363, %v3613
    %v3804 = vsub.f32 %v2364, %v3615
    %v3805 = vsub.f32 %v2365, %v3617
    %v3806 = vsub.f32 %v2366, %v3619
    %v3807 = vsub.f32 %v2367, %v3621
    %v3808 = vsub.f32 %v2368, %v3623
    %v3809 = vsub.f32 %v2369, %v3625
    %v3810 = vsub.f32 %v2370, %v3627
    %v3811 = vsub.f32 %v2371, %v3629
    %v3812 = vsub.f32 %v2372, %v3631
    %v3813 = vsub.f32 %v2373, %v3633
    %v3814 = vsub.f32 %v2374, %v3635
    %v3815 = vsub.f32 %v2375, %v3637
    %v3816 = vsub.f32 %v2376, %v3639
    %v3817 = vsub.f32 %v2377, %v3641
    %v3818 = vsub.f32 %v2378, %v3643
    %v3819 = vsub.f32 %v2379, %v3645
    %v3820 = vsub.f32 %v2380, %v3647
    %v3821 = vsub.f32 %v2381, %v3649
    %v3822 = vsub.f32 %v2382, %v3651
    %v3823 = vsub.f32 %v2383, %v3653
    %v3824 = vsub.f32 %v2384, %v3655
    %v3825 = vsub.f32 %v2385, %v3657
    %v3826 = vsub.f32 %v2386, %v3659
    %v3827 = vsub.f32 %v2387, %v3661
    %v3828 = vsub.f32 %v2388, %v3663
    %v3829 = vsub.f32 %v2389, %v3665
    %v3830 = vsub.f32 %v2390, %v3667
    %v3831 = vsub.f32 %v2391, %v3669
    %v3832 = vsub.f32 %v2392, %v3671
    %v3833 = vsub.f32 %v2393, %v3673
    %v3834 = vsub.f32 %v2394, %v3675
    %v3835 = vsub.f32 %v2395, %v3677
    %v3836 = vsub.f32 %v2396, %v3679
    %v3837 = vsub.f32 %v2397, %v3681
    %v3838 = vsub.f32 %v2398, %v3683
    %v3839 = vsub.f32 %v2399, %v3685
    %v3840 = vsub.f32 %v2400, %v3687
    %v3841 = vsub.f32 %v2401, %v3689
    %v3842 = vsub.f32 %v2402, %v3691
    %v3843 = vsub.f32 %v2403, %v3693
    %v3844 = vsub.f32 %v2404, %v3695
    %v3845 = vsub.f32 %v2405, %v3697
    %v3846 = vsub.f32 %v2406, %v3699
    %v3847 = vsub.f32 %v2407, %v3701
    %v3848 = vsub.f32 %v2408, %v3703
    %v3849 = vsub.f32 %v2409, %v3705
    %v3850 = vsub.f32 %v2410, %v3707
    %v3851 = vsub.f32 %v2411, %v3709
    %v3852 = vsub.f32 %v2412, %v3711
    %v3853 = vsub.f32 %v2413, %v3713
    %v3854 = vsub.f32 %v2414, %v3715
    %v3855 = vsub.f32 %v2415, %v3717
    %v3856 = vsub.f32 %v2416, %v3719
    %v3857 = vsub.f32 %v2417, %v3721
    %v3858 = vsub.f32 %v2418, %v3723
    %v3859 = vsub.f32 %v2419, %v3725
    %v3860 = vsub.f32 %v2420, %v3727
    %v3861 = vsub.f32 %v2421, %v3729
    %v3862 = vsub.f32 %v2422, %v3731
    %v3863 = vsub.f32 %v2423, %v3733
    %v3864 = vsub.f32 %v2424, %v3735
    %v3865 = vsub.f32 %v2425, %v3737
    %v3866 = vsub.f32 %v2426, %v3739
    %v3867 = vsub.f32 %v2427, %v3741
    %v3868 = vsub.f32 %v2428, %v3743
    %v3869 = vsub.f32 %v2429, %v3745
    %v3870 = vsub.f32 %v2430, %v3747
    %v3871 = vsub.f32 %v2431, %v3749
    %v3872 = vsub.f32 %v2432, %v3751
    %v3873 = vsub.f32 %v2433, %v3753
    %v3874 = vsub.f32 %v2434, %v3755
    %v3875 = vsub.f32 %v2435, %v3757
    %v3876 = vsub.f32 %v2436, %v3759
    %v3877 = vsub.f32 %v2437, %v3761
    %v3878 = vsub.f32 %v2438, %v3763
    %v3879 = vsub.f32 %v2439, %v3765
    %v3880 = vsub.f32 %v2440, %v3767
    %v3881 = vsub.f32 %v2441, %v3769
    %v3882 = vsub.f32 %v2442, %v3771
    %v3883 = vsub.f32 %v2443, %v3773
    %v3884 = vsub.f32 %v2444, %v3775
    %v3885 = vsub.f32 %v2445, %v3777
    %v3886 = vsub.f32 %v2446, %v3779
    %v3887 = vsub.f32 %v2447, %v3781
    %v3888 = vsub.f32 %v2448, %v3783
    %v3889 = vsub.f32 %v2449, %v3785
    %v3890 = vsub.f32 %v2450, %v3787
    %v3891 = vsub.f32 %v2451, %v3789
    %v3892 = vsub.f32 %v2452, %v3791
    %v3893 = vsub.f32 %v2453, %v3793
    %v3894 = vsub.f32 %v2454, %v3795
    %v3895 = vsub.f32 %v2455, %v3797
    %v3896 = vsub.f32 %v2456, %v3799
    %v3897 = vsub.f32 %v2457, %v3801
    %v3898 = vsub.f32 %v2938, %v3611
    %v3899 = vsub.f32 %v2939, %v3613
    %v3900 = vsub.f32 %v2940, %v3615
    %v3901 = vsub.f32 %v2941, %v3617
    %v3902 = vsub.f32 %v2942, %v3619
    %v3903 = vsub.f32 %v2943, %v3621
    %v3904 = vsub.f32 %v2944, %v3623
    %v3905 = vsub.f32 %v2945, %v3625
    %v3906 = vsub.f32 %v2946, %v3627
    %v3907 = vsub.f32 %v2947, %v3629
    %v3908 = vsub.f32 %v2948, %v3631
    %v3909 = vsub.f32 %v2949, %v3633
    %v3910 = vsub.f32 %v2950, %v3635
    %v3911 = vsub.f32 %v2951, %v3637
    %v3912 = vsub.f32 %v2952, %v3639
    %v3913 = vsub.f32 %v2953, %v3641
    %v3914 = vsub.f32 %v2954, %v3643
    %v3915 = vsub.f32 %v2955, %v3645
    %v3916 = vsub.f32 %v2956, %v3647
    %v3917 = vsub.f32 %v2957, %v3649
    %v3918 = vsub.f32 %v2958, %v3651
    %v3919 = vsub.f32 %v2959, %v3653
    %v3920 = vsub.f32 %v2960, %v3655
    %v3921 = vsub.f32 %v2961, %v3657
    %v3922 = vsub.f32 %v2962, %v3659
    %v3923 = vsub.f32 %v2963, %v3661
    %v3924 = vsub.f32 %v2964, %v3663
    %v3925 = vsub.f32 %v2965, %v3665
    %v3926 = vsub.f32 %v2966, %v3667
    %v3927 = vsub.f32 %v2967, %v3669
    %v3928 = vsub.f32 %v2968, %v3671
    %v3929 = vsub.f32 %v2969, %v3673
    %v3930 = vsub.f32 %v2970, %v3675
    %v3931 = vsub.f32 %v2971, %v3677
    %v3932 = vsub.f32 %v2972, %v3679
    %v3933 = vsub.f32 %v2973, %v3681
    %v3934 = vsub.f32 %v2974, %v3683
    %v3935 = vsub.f32 %v2975, %v3685
    %v3936 = vsub.f32 %v2976, %v3687
    %v3937 = vsub.f32 %v2977, %v3689
    %v3938 = vsub.f32 %v2978, %v3691
    %v3939 = vsub.f32 %v2979, %v3693
    %v3940 = vsub.f32 %v2980, %v3695
    %v3941 = vsub.f32 %v2981, %v3697
    %v3942 = vsub.f32 %v2982, %v3699
    %v3943 = vsub.f32 %v2983, %v3701
    %v3944 = vsub.f32 %v2984, %v3703
    %v3945 = vsub.f32 %v2985, %v3705
    %v3946 = vsub.f32 %v2986, %v3707
    %v3947 = vsub.f32 %v2987, %v3709
    %v3948 = vsub.f32 %v2988, %v3711
    %v3949 = vsub.f32 %v2989, %v3713
    %v3950 = vsub.f32 %v2990, %v3715
    %v3951 = vsub.f32 %v2991, %v3717
    %v3952 = vsub.f32 %v2992, %v3719
    %v3953 = vsub.f32 %v2993, %v3721
    %v3954 = vsub.f32 %v2994, %v3723
    %v3955 = vsub.f32 %v2995, %v3725
    %v3956 = vsub.f32 %v2996, %v3727
    %v3957 = vsub.f32 %v2997, %v3729
    %v3958 = vsub.f32 %v2998, %v3731
    %v3959 = vsub.f32 %v2999, %v3733
    %v3960 = vsub.f32 %v3000, %v3735
    %v3961 = vsub.f32 %v3001, %v3737
    %v3962 = vsub.f32 %v3002, %v3739
    %v3963 = vsub.f32 %v3003, %v3741
    %v3964 = vsub.f32 %v3004, %v3743
    %v3965 = vsub.f32 %v3005, %v3745
    %v3966 = vsub.f32 %v3006, %v3747
    %v3967 = vsub.f32 %v3007, %v3749
    %v3968 = vsub.f32 %v3008, %v3751
    %v3969 = vsub.f32 %v3009, %v3753
    %v3970 = vsub.f32 %v3010, %v3755
    %v3971 = vsub.f32 %v3011, %v3757
    %v3972 = vsub.f32 %v3012, %v3759
    %v3973 = vsub.f32 %v3013, %v3761
    %v3974 = vsub.f32 %v3014, %v3763
    %v3975 = vsub.f32 %v3015, %v3765
    %v3976 = vsub.f32 %v3016, %v3767
    %v3977 = vsub.f32 %v3017, %v3769
    %v3978 = vsub.f32 %v3018, %v3771
    %v3979 = vsub.f32 %v3019, %v3773
    %v3980 = vsub.f32 %v3020, %v3775
    %v3981 = vsub.f32 %v3021, %v3777
    %v3982 = vsub.f32 %v3022, %v3779
    %v3983 = vsub.f32 %v3023, %v3781
    %v3984 = vsub.f32 %v3024, %v3783
    %v3985 = vsub.f32 %v3025, %v3785
    %v3986 = vsub.f32 %v3026, %v3787
    %v3987 = vsub.f32 %v3027, %v3789
    %v3988 = vsub.f32 %v3028, %v3791
    %v3989 = vsub.f32 %v3029, %v3793
    %v3990 = vsub.f32 %v3030, %v3795
    %v3991 = vsub.f32 %v3031, %v3797
    %v3992 = vsub.f32 %v3032, %v3799
    %v3993 = vsub.f32 %v3033, %v3801
    %s3994 = sld [smem:[#allocation2]]
    %v3995 = vstv %s3994
    %v3996 = vmul.f32 %v3802, %v3995
    %v3997 = vmul.f32 %v3803, %v3995
    %v3998 = vmul.f32 %v3804, %v3995
    %v3999 = vmul.f32 %v3805, %v3995
    %v4000 = vmul.f32 %v3806, %v3995
    %v4001 = vmul.f32 %v3807, %v3995
    %v4002 = vmul.f32 %v3808, %v3995
    %v4003 = vmul.f32 %v3809, %v3995
    %v4004 = vmul.f32 %v3810, %v3995
    %v4005 = vmul.f32 %v3811, %v3995
    %v4006 = vmul.f32 %v3812, %v3995
    %v4007 = vmul.f32 %v3813, %v3995
    %v4008 = vmul.f32 %v3814, %v3995
    %v4009 = vmul.f32 %v3815, %v3995
    %v4010 = vmul.f32 %v3816, %v3995
    %v4011 = vmul.f32 %v3817, %v3995
    %v4012 = vmul.f32 %v3818, %v3995
    %v4013 = vmul.f32 %v3819, %v3995
    %v4014 = vmul.f32 %v3820, %v3995
    %v4015 = vmul.f32 %v3821, %v3995
    %v4016 = vmul.f32 %v3822, %v3995
    %v4017 = vmul.f32 %v3823, %v3995
    %v4018 = vmul.f32 %v3824, %v3995
    %v4019 = vmul.f32 %v3825, %v3995
    %v4020 = vmul.f32 %v3826, %v3995
    %v4021 = vmul.f32 %v3827, %v3995
    %v4022 = vmul.f32 %v3828, %v3995
    %v4023 = vmul.f32 %v3829, %v3995
    %v4024 = vmul.f32 %v3830, %v3995
    %v4025 = vmul.f32 %v3831, %v3995
    %v4026 = vmul.f32 %v3832, %v3995
    %v4027 = vmul.f32 %v3833, %v3995
    %v4028 = vmul.f32 %v3834, %v3995
    %v4029 = vmul.f32 %v3835, %v3995
    %v4030 = vmul.f32 %v3836, %v3995
    %v4031 = vmul.f32 %v3837, %v3995
    %v4032 = vmul.f32 %v3838, %v3995
    %v4033 = vmul.f32 %v3839, %v3995
    %v4034 = vmul.f32 %v3840, %v3995
    %v4035 = vmul.f32 %v3841, %v3995
    %v4036 = vmul.f32 %v3842, %v3995
    %v4037 = vmul.f32 %v3843, %v3995
    %v4038 = vmul.f32 %v3844, %v3995
    %v4039 = vmul.f32 %v3845, %v3995
    %v4040 = vmul.f32 %v3846, %v3995
    %v4041 = vmul.f32 %v3847, %v3995
    %v4042 = vmul.f32 %v3848, %v3995
    %v4043 = vmul.f32 %v3849, %v3995
    %v4044 = vmul.f32 %v3850, %v3995
    %v4045 = vmul.f32 %v3851, %v3995
    %v4046 = vmul.f32 %v3852, %v3995
    %v4047 = vmul.f32 %v3853, %v3995
    %v4048 = vmul.f32 %v3854, %v3995
    %v4049 = vmul.f32 %v3855, %v3995
    %v4050 = vmul.f32 %v3856, %v3995
    %v4051 = vmul.f32 %v3857, %v3995
    %v4052 = vmul.f32 %v3858, %v3995
    %v4053 = vmul.f32 %v3859, %v3995
    %v4054 = vmul.f32 %v3860, %v3995
    %v4055 = vmul.f32 %v3861, %v3995
    %v4056 = vmul.f32 %v3862, %v3995
    %v4057 = vmul.f32 %v3863, %v3995
    %v4058 = vmul.f32 %v3864, %v3995
    %v4059 = vmul.f32 %v3865, %v3995
    %v4060 = vmul.f32 %v3866, %v3995
    %v4061 = vmul.f32 %v3867, %v3995
    %v4062 = vmul.f32 %v3868, %v3995
    %v4063 = vmul.f32 %v3869, %v3995
    %v4064 = vmul.f32 %v3870, %v3995
    %v4065 = vmul.f32 %v3871, %v3995
    %v4066 = vmul.f32 %v3872, %v3995
    %v4067 = vmul.f32 %v3873, %v3995
    %v4068 = vmul.f32 %v3874, %v3995
    %v4069 = vmul.f32 %v3875, %v3995
    %v4070 = vmul.f32 %v3876, %v3995
    %v4071 = vmul.f32 %v3877, %v3995
    %v4072 = vmul.f32 %v3878, %v3995
    %v4073 = vmul.f32 %v3879, %v3995
    %v4074 = vmul.f32 %v3880, %v3995
    %v4075 = vmul.f32 %v3881, %v3995
    %v4076 = vmul.f32 %v3882, %v3995
    %v4077 = vmul.f32 %v3883, %v3995
    %v4078 = vmul.f32 %v3884, %v3995
    %v4079 = vmul.f32 %v3885, %v3995
    %v4080 = vmul.f32 %v3886, %v3995
    %v4081 = vmul.f32 %v3887, %v3995
    %v4082 = vmul.f32 %v3888, %v3995
    %v4083 = vmul.f32 %v3889, %v3995
    %v4084 = vmul.f32 %v3890, %v3995
    %v4085 = vmul.f32 %v3891, %v3995
    %v4086 = vmul.f32 %v3892, %v3995
    %v4087 = vmul.f32 %v3893, %v3995
    %v4088 = vmul.f32 %v3894, %v3995
    %v4089 = vmul.f32 %v3895, %v3995
    %v4090 = vmul.f32 %v3896, %v3995
    %v4091 = vmul.f32 %v3897, %v3995
    %s4092 = sld [smem:[#allocation2 + $0x80]]
    %v4093 = vstv %s4092
    %v4094 = vmul.f32 %v3898, %v4093
    %v4095 = vmul.f32 %v3899, %v4093
    %v4096 = vmul.f32 %v3900, %v4093
    %v4097 = vmul.f32 %v3901, %v4093
    %v4098 = vmul.f32 %v3902, %v4093
    %v4099 = vmul.f32 %v3903, %v4093
    %v4100 = vmul.f32 %v3904, %v4093
    %v4101 = vmul.f32 %v3905, %v4093
    %v4102 = vmul.f32 %v3906, %v4093
    %v4103 = vmul.f32 %v3907, %v4093
    %v4104 = vmul.f32 %v3908, %v4093
    %v4105 = vmul.f32 %v3909, %v4093
    %v4106 = vmul.f32 %v3910, %v4093
    %v4107 = vmul.f32 %v3911, %v4093
    %v4108 = vmul.f32 %v3912, %v4093
    %v4109 = vmul.f32 %v3913, %v4093
    %v4110 = vmul.f32 %v3914, %v4093
    %v4111 = vmul.f32 %v3915, %v4093
    %v4112 = vmul.f32 %v3916, %v4093
    %v4113 = vmul.f32 %v3917, %v4093
    %v4114 = vmul.f32 %v3918, %v4093
    %v4115 = vmul.f32 %v3919, %v4093
    %v4116 = vmul.f32 %v3920, %v4093
    %v4117 = vmul.f32 %v3921, %v4093
    %v4118 = vmul.f32 %v3922, %v4093
    %v4119 = vmul.f32 %v3923, %v4093
    %v4120 = vmul.f32 %v3924, %v4093
    %v4121 = vmul.f32 %v3925, %v4093
    %v4122 = vmul.f32 %v3926, %v4093
    %v4123 = vmul.f32 %v3927, %v4093
    %v4124 = vmul.f32 %v3928, %v4093
    %v4125 = vmul.f32 %v3929, %v4093
    %v4126 = vmul.f32 %v3930, %v4093
    %v4127 = vmul.f32 %v3931, %v4093
    %v4128 = vmul.f32 %v3932, %v4093
    %v4129 = vmul.f32 %v3933, %v4093
    %v4130 = vmul.f32 %v3934, %v4093
    %v4131 = vmul.f32 %v3935, %v4093
    %v4132 = vmul.f32 %v3936, %v4093
    %v4133 = vmul.f32 %v3937, %v4093
    %v4134 = vmul.f32 %v3938, %v4093
    %v4135 = vmul.f32 %v3939, %v4093
    %v4136 = vmul.f32 %v3940, %v4093
    %v4137 = vmul.f32 %v3941, %v4093
    %v4138 = vmul.f32 %v3942, %v4093
    %v4139 = vmul.f32 %v3943, %v4093
    %v4140 = vmul.f32 %v3944, %v4093
    %v4141 = vmul.f32 %v3945, %v4093
    %v4142 = vmul.f32 %v3946, %v4093
    %v4143 = vmul.f32 %v3947, %v4093
    %v4144 = vmul.f32 %v3948, %v4093
    %v4145 = vmul.f32 %v3949, %v4093
    %v4146 = vmul.f32 %v3950, %v4093
    %v4147 = vmul.f32 %v3951, %v4093
    %v4148 = vmul.f32 %v3952, %v4093
    %v4149 = vmul.f32 %v3953, %v4093
    %v4150 = vmul.f32 %v3954, %v4093
    %v4151 = vmul.f32 %v3955, %v4093
    %v4152 = vmul.f32 %v3956, %v4093
    %v4153 = vmul.f32 %v3957, %v4093
    %v4154 = vmul.f32 %v3958, %v4093
    %v4155 = vmul.f32 %v3959, %v4093
    %v4156 = vmul.f32 %v3960, %v4093
    %v4157 = vmul.f32 %v3961, %v4093
    %v4158 = vmul.f32 %v3962, %v4093
    %v4159 = vmul.f32 %v3963, %v4093
    %v4160 = vmul.f32 %v3964, %v4093
    %v4161 = vmul.f32 %v3965, %v4093
    %v4162 = vmul.f32 %v3966, %v4093
    %v4163 = vmul.f32 %v3967, %v4093
    %v4164 = vmul.f32 %v3968, %v4093
    %v4165 = vmul.f32 %v3969, %v4093
    %v4166 = vmul.f32 %v3970, %v4093
    %v4167 = vmul.f32 %v3971, %v4093
    %v4168 = vmul.f32 %v3972, %v4093
    %v4169 = vmul.f32 %v3973, %v4093
    %v4170 = vmul.f32 %v3974, %v4093
    %v4171 = vmul.f32 %v3975, %v4093
    %v4172 = vmul.f32 %v3976, %v4093
    %v4173 = vmul.f32 %v3977, %v4093
    %v4174 = vmul.f32 %v3978, %v4093
    %v4175 = vmul.f32 %v3979, %v4093
    %v4176 = vmul.f32 %v3980, %v4093
    %v4177 = vmul.f32 %v3981, %v4093
    %v4178 = vmul.f32 %v3982, %v4093
    %v4179 = vmul.f32 %v3983, %v4093
    %v4180 = vmul.f32 %v3984, %v4093
    %v4181 = vmul.f32 %v3985, %v4093
    %v4182 = vmul.f32 %v3986, %v4093
    %v4183 = vmul.f32 %v3987, %v4093
    %v4184 = vmul.f32 %v3988, %v4093
    %v4185 = vmul.f32 %v3989, %v4093
    %v4186 = vmul.f32 %v3990, %v4093
    %v4187 = vmul.f32 %v3991, %v4093
    %v4188 = vmul.f32 %v3992, %v4093
    %v4189 = vmul.f32 %v3993, %v4093
    %v4190 = vadd.f32 %v3996, %v4094
    %v4191 = vadd.f32 %v3997, %v4095
    %v4192 = vadd.f32 %v3998, %v4096
    %v4193 = vadd.f32 %v3999, %v4097
    %v4194 = vadd.f32 %v4000, %v4098
    %v4195 = vadd.f32 %v4001, %v4099
    %v4196 = vadd.f32 %v4002, %v4100
    %v4197 = vadd.f32 %v4003, %v4101
    %v4198 = vadd.f32 %v4004, %v4102
    %v4199 = vadd.f32 %v4005, %v4103
    %v4200 = vadd.f32 %v4006, %v4104
    %v4201 = vadd.f32 %v4007, %v4105
    %v4202 = vadd.f32 %v4008, %v4106
    %v4203 = vadd.f32 %v4009, %v4107
    %v4204 = vadd.f32 %v4010, %v4108
    %v4205 = vadd.f32 %v4011, %v4109
    %v4206 = vadd.f32 %v4012, %v4110
    %v4207 = vadd.f32 %v4013, %v4111
    %v4208 = vadd.f32 %v4014, %v4112
    %v4209 = vadd.f32 %v4015, %v4113
    %v4210 = vadd.f32 %v4016, %v4114
    %v4211 = vadd.f32 %v4017, %v4115
    %v4212 = vadd.f32 %v4018, %v4116
    %v4213 = vadd.f32 %v4019, %v4117
    %v4214 = vadd.f32 %v4020, %v4118
    %v4215 = vadd.f32 %v4021, %v4119
    %v4216 = vadd.f32 %v4022, %v4120
    %v4217 = vadd.f32 %v4023, %v4121
    %v4218 = vadd.f32 %v4024, %v4122
    %v4219 = vadd.f32 %v4025, %v4123
    %v4220 = vadd.f32 %v4026, %v4124
    %v4221 = vadd.f32 %v4027, %v4125
    %v4222 = vadd.f32 %v4028, %v4126
    %v4223 = vadd.f32 %v4029, %v4127
    %v4224 = vadd.f32 %v4030, %v4128
    %v4225 = vadd.f32 %v4031, %v4129
    %v4226 = vadd.f32 %v4032, %v4130
    %v4227 = vadd.f32 %v4033, %v4131
    %v4228 = vadd.f32 %v4034, %v4132
    %v4229 = vadd.f32 %v4035, %v4133
    %v4230 = vadd.f32 %v4036, %v4134
    %v4231 = vadd.f32 %v4037, %v4135
    %v4232 = vadd.f32 %v4038, %v4136
    %v4233 = vadd.f32 %v4039, %v4137
    %v4234 = vadd.f32 %v4040, %v4138
    %v4235 = vadd.f32 %v4041, %v4139
    %v4236 = vadd.f32 %v4042, %v4140
    %v4237 = vadd.f32 %v4043, %v4141
    %v4238 = vadd.f32 %v4044, %v4142
    %v4239 = vadd.f32 %v4045, %v4143
    %v4240 = vadd.f32 %v4046, %v4144
    %v4241 = vadd.f32 %v4047, %v4145
    %v4242 = vadd.f32 %v4048, %v4146
    %v4243 = vadd.f32 %v4049, %v4147
    %v4244 = vadd.f32 %v4050, %v4148
    %v4245 = vadd.f32 %v4051, %v4149
    %v4246 = vadd.f32 %v4052, %v4150
    %v4247 = vadd.f32 %v4053, %v4151
    %v4248 = vadd.f32 %v4054, %v4152
    %v4249 = vadd.f32 %v4055, %v4153
    %v4250 = vadd.f32 %v4056, %v4154
    %v4251 = vadd.f32 %v4057, %v4155
    %v4252 = vadd.f32 %v4058, %v4156
    %v4253 = vadd.f32 %v4059, %v4157
    %v4254 = vadd.f32 %v4060, %v4158
    %v4255 = vadd.f32 %v4061, %v4159
    %v4256 = vadd.f32 %v4062, %v4160
    %v4257 = vadd.f32 %v4063, %v4161
    %v4258 = vadd.f32 %v4064, %v4162
    %v4259 = vadd.f32 %v4065, %v4163
    %v4260 = vadd.f32 %v4066, %v4164
    %v4261 = vadd.f32 %v4067, %v4165
    %v4262 = vadd.f32 %v4068, %v4166
    %v4263 = vadd.f32 %v4069, %v4167
    %v4264 = vadd.f32 %v4070, %v4168
    %v4265 = vadd.f32 %v4071, %v4169
    %v4266 = vadd.f32 %v4072, %v4170
    %v4267 = vadd.f32 %v4073, %v4171
    %v4268 = vadd.f32 %v4074, %v4172
    %v4269 = vadd.f32 %v4075, %v4173
    %v4270 = vadd.f32 %v4076, %v4174
    %v4271 = vadd.f32 %v4077, %v4175
    %v4272 = vadd.f32 %v4078, %v4176
    %v4273 = vadd.f32 %v4079, %v4177
    %v4274 = vadd.f32 %v4080, %v4178
    %v4275 = vadd.f32 %v4081, %v4179
    %v4276 = vadd.f32 %v4082, %v4180
    %v4277 = vadd.f32 %v4083, %v4181
    %v4278 = vadd.f32 %v4084, %v4182
    %v4279 = vadd.f32 %v4085, %v4183
    %v4280 = vadd.f32 %v4086, %v4184
    %v4281 = vadd.f32 %v4087, %v4185
    %v4282 = vadd.f32 %v4088, %v4186
    %v4283 = vadd.f32 %v4089, %v4187
    %v4284 = vadd.f32 %v4090, %v4188
    %v4285 = vadd.f32 %v4091, %v4189
    %s4286 = sld [smem:[#allocation4]]
    %v4287 = vstv %s4286
    %v4288 = vadd.f32 %v4190, %v4287
    %v4289 = vadd.f32 %v4191, %v4287
    %v4290 = vadd.f32 %v4192, %v4287
    %v4291 = vadd.f32 %v4193, %v4287
    %v4292 = vadd.f32 %v4194, %v4287
    %v4293 = vadd.f32 %v4195, %v4287
    %v4294 = vadd.f32 %v4196, %v4287
    %v4295 = vadd.f32 %v4197, %v4287
    %v4296 = vadd.f32 %v4198, %v4287
    %v4297 = vadd.f32 %v4199, %v4287
    %v4298 = vadd.f32 %v4200, %v4287
    %v4299 = vadd.f32 %v4201, %v4287
    %v4300 = vadd.f32 %v4202, %v4287
    %v4301 = vadd.f32 %v4203, %v4287
    %v4302 = vadd.f32 %v4204, %v4287
    %v4303 = vadd.f32 %v4205, %v4287
    %v4304 = vadd.f32 %v4206, %v4287
    %v4305 = vadd.f32 %v4207, %v4287
    %v4306 = vadd.f32 %v4208, %v4287
    %v4307 = vadd.f32 %v4209, %v4287
    %v4308 = vadd.f32 %v4210, %v4287
    %v4309 = vadd.f32 %v4211, %v4287
    %v4310 = vadd.f32 %v4212, %v4287
    %v4311 = vadd.f32 %v4213, %v4287
    %v4312 = vadd.f32 %v4214, %v4287
    %v4313 = vadd.f32 %v4215, %v4287
    %v4314 = vadd.f32 %v4216, %v4287
    %v4315 = vadd.f32 %v4217, %v4287
    %v4316 = vadd.f32 %v4218, %v4287
    %v4317 = vadd.f32 %v4219, %v4287
    %v4318 = vadd.f32 %v4220, %v4287
    %v4319 = vadd.f32 %v4221, %v4287
    %v4320 = vadd.f32 %v4222, %v4287
    %v4321 = vadd.f32 %v4223, %v4287
    %v4322 = vadd.f32 %v4224, %v4287
    %v4323 = vadd.f32 %v4225, %v4287
    %v4324 = vadd.f32 %v4226, %v4287
    %v4325 = vadd.f32 %v4227, %v4287
    %v4326 = vadd.f32 %v4228, %v4287
    %v4327 = vadd.f32 %v4229, %v4287
    %v4328 = vadd.f32 %v4230, %v4287
    %v4329 = vadd.f32 %v4231, %v4287
    %v4330 = vadd.f32 %v4232, %v4287
    %v4331 = vadd.f32 %v4233, %v4287
    %v4332 = vadd.f32 %v4234, %v4287
    %v4333 = vadd.f32 %v4235, %v4287
    %v4334 = vadd.f32 %v4236, %v4287
    %v4335 = vadd.f32 %v4237, %v4287
    %v4336 = vadd.f32 %v4238, %v4287
    %v4337 = vadd.f32 %v4239, %v4287
    %v4338 = vadd.f32 %v4240, %v4287
    %v4339 = vadd.f32 %v4241, %v4287
    %v4340 = vadd.f32 %v4242, %v4287
    %v4341 = vadd.f32 %v4243, %v4287
    %v4342 = vadd.f32 %v4244, %v4287
    %v4343 = vadd.f32 %v4245, %v4287
    %v4344 = vadd.f32 %v4246, %v4287
    %v4345 = vadd.f32 %v4247, %v4287
    %v4346 = vadd.f32 %v4248, %v4287
    %v4347 = vadd.f32 %v4249, %v4287
    %v4348 = vadd.f32 %v4250, %v4287
    %v4349 = vadd.f32 %v4251, %v4287
    %v4350 = vadd.f32 %v4252, %v4287
    %v4351 = vadd.f32 %v4253, %v4287
    %v4352 = vadd.f32 %v4254, %v4287
    %v4353 = vadd.f32 %v4255, %v4287
    %v4354 = vadd.f32 %v4256, %v4287
    %v4355 = vadd.f32 %v4257, %v4287
    %v4356 = vadd.f32 %v4258, %v4287
    %v4357 = vadd.f32 %v4259, %v4287
    %v4358 = vadd.f32 %v4260, %v4287
    %v4359 = vadd.f32 %v4261, %v4287
    %v4360 = vadd.f32 %v4262, %v4287
    %v4361 = vadd.f32 %v4263, %v4287
    %v4362 = vadd.f32 %v4264, %v4287
    %v4363 = vadd.f32 %v4265, %v4287
    %v4364 = vadd.f32 %v4266, %v4287
    %v4365 = vadd.f32 %v4267, %v4287
    %v4366 = vadd.f32 %v4268, %v4287
    %v4367 = vadd.f32 %v4269, %v4287
    %v4368 = vadd.f32 %v4270, %v4287
    %v4369 = vadd.f32 %v4271, %v4287
    %v4370 = vadd.f32 %v4272, %v4287
    %v4371 = vadd.f32 %v4273, %v4287
    %v4372 = vadd.f32 %v4274, %v4287
    %v4373 = vadd.f32 %v4275, %v4287
    %v4374 = vadd.f32 %v4276, %v4287
    %v4375 = vadd.f32 %v4277, %v4287
    %v4376 = vadd.f32 %v4278, %v4287
    %v4377 = vadd.f32 %v4279, %v4287
    %v4378 = vadd.f32 %v4280, %v4287
    %v4379 = vadd.f32 %v4281, %v4287
    %v4380 = vadd.f32 %v4282, %v4287
    %v4381 = vadd.f32 %v4283, %v4287
    %v4382 = vadd.f32 %v4284, %v4287
    %v4383 = vadd.f32 %v4285, %v4287
    %s4384 = sld [smem:[#allocation2 + $0x1]]
    %v4385 = vstv %s4384
    %v4386 = vmul.f32 %v3802, %v4385
    %v4387 = vmul.f32 %v3803, %v4385
    %v4388 = vmul.f32 %v3804, %v4385
    %v4389 = vmul.f32 %v3805, %v4385
    %v4390 = vmul.f32 %v3806, %v4385
    %v4391 = vmul.f32 %v3807, %v4385
    %v4392 = vmul.f32 %v3808, %v4385
    %v4393 = vmul.f32 %v3809, %v4385
    %v4394 = vmul.f32 %v3810, %v4385
    %v4395 = vmul.f32 %v3811, %v4385
    %v4396 = vmul.f32 %v3812, %v4385
    %v4397 = vmul.f32 %v3813, %v4385
    %v4398 = vmul.f32 %v3814, %v4385
    %v4399 = vmul.f32 %v3815, %v4385
    %v4400 = vmul.f32 %v3816, %v4385
    %v4401 = vmul.f32 %v3817, %v4385
    %v4402 = vmul.f32 %v3818, %v4385
    %v4403 = vmul.f32 %v3819, %v4385
    %v4404 = vmul.f32 %v3820, %v4385
    %v4405 = vmul.f32 %v3821, %v4385
    %v4406 = vmul.f32 %v3822, %v4385
    %v4407 = vmul.f32 %v3823, %v4385
    %v4408 = vmul.f32 %v3824, %v4385
    %v4409 = vmul.f32 %v3825, %v4385
    %v4410 = vmul.f32 %v3826, %v4385
    %v4411 = vmul.f32 %v3827, %v4385
    %v4412 = vmul.f32 %v3828, %v4385
    %v4413 = vmul.f32 %v3829, %v4385
    %v4414 = vmul.f32 %v3830, %v4385
    %v4415 = vmul.f32 %v3831, %v4385
    %v4416 = vmul.f32 %v3832, %v4385
    %v4417 = vmul.f32 %v3833, %v4385
    %v4418 = vmul.f32 %v3834, %v4385
    %v4419 = vmul.f32 %v3835, %v4385
    %v4420 = vmul.f32 %v3836, %v4385
    %v4421 = vmul.f32 %v3837, %v4385
    %v4422 = vmul.f32 %v3838, %v4385
    %v4423 = vmul.f32 %v3839, %v4385
    %v4424 = vmul.f32 %v3840, %v4385
    %v4425 = vmul.f32 %v3841, %v4385
    %v4426 = vmul.f32 %v3842, %v4385
    %v4427 = vmul.f32 %v3843, %v4385
    %v4428 = vmul.f32 %v3844, %v4385
    %v4429 = vmul.f32 %v3845, %v4385
    %v4430 = vmul.f32 %v3846, %v4385
    %v4431 = vmul.f32 %v3847, %v4385
    %v4432 = vmul.f32 %v3848, %v4385
    %v4433 = vmul.f32 %v3849, %v4385
    %v4434 = vmul.f32 %v3850, %v4385
    %v4435 = vmul.f32 %v3851, %v4385
    %v4436 = vmul.f32 %v3852, %v4385
    %v4437 = vmul.f32 %v3853, %v4385
    %v4438 = vmul.f32 %v3854, %v4385
    %v4439 = vmul.f32 %v3855, %v4385
    %v4440 = vmul.f32 %v3856, %v4385
    %v4441 = vmul.f32 %v3857, %v4385
    %v4442 = vmul.f32 %v3858, %v4385
    %v4443 = vmul.f32 %v3859, %v4385
    %v4444 = vmul.f32 %v3860, %v4385
    %v4445 = vmul.f32 %v3861, %v4385
    %v4446 = vmul.f32 %v3862, %v4385
    %v4447 = vmul.f32 %v3863, %v4385
    %v4448 = vmul.f32 %v3864, %v4385
    %v4449 = vmul.f32 %v3865, %v4385
    %v4450 = vmul.f32 %v3866, %v4385
    %v4451 = vmul.f32 %v3867, %v4385
    %v4452 = vmul.f32 %v3868, %v4385
    %v4453 = vmul.f32 %v3869, %v4385
    %v4454 = vmul.f32 %v3870, %v4385
    %v4455 = vmul.f32 %v3871, %v4385
    %v4456 = vmul.f32 %v3872, %v4385
    %v4457 = vmul.f32 %v3873, %v4385
    %v4458 = vmul.f32 %v3874, %v4385
    %v4459 = vmul.f32 %v3875, %v4385
    %v4460 = vmul.f32 %v3876, %v4385
    %v4461 = vmul.f32 %v3877, %v4385
    %v4462 = vmul.f32 %v3878, %v4385
    %v4463 = vmul.f32 %v3879, %v4385
    %v4464 = vmul.f32 %v3880, %v4385
    %v4465 = vmul.f32 %v3881, %v4385
    %v4466 = vmul.f32 %v3882, %v4385
    %v4467 = vmul.f32 %v3883, %v4385
    %v4468 = vmul.f32 %v3884, %v4385
    %v4469 = vmul.f32 %v3885, %v4385
    %v4470 = vmul.f32 %v3886, %v4385
    %v4471 = vmul.f32 %v3887, %v4385
    %v4472 = vmul.f32 %v3888, %v4385
    %v4473 = vmul.f32 %v3889, %v4385
    %v4474 = vmul.f32 %v3890, %v4385
    %v4475 = vmul.f32 %v3891, %v4385
    %v4476 = vmul.f32 %v3892, %v4385
    %v4477 = vmul.f32 %v3893, %v4385
    %v4478 = vmul.f32 %v3894, %v4385
    %v4479 = vmul.f32 %v3895, %v4385
    %v4480 = vmul.f32 %v3896, %v4385
    %v4481 = vmul.f32 %v3897, %v4385
    %s4482 = sld [smem:[#allocation2 + $0x81]]
    %v4483 = vstv %s4482
    %v4484 = vmul.f32 %v3898, %v4483
    %v4485 = vmul.f32 %v3899, %v4483
    %v4486 = vmul.f32 %v3900, %v4483
    %v4487 = vmul.f32 %v3901, %v4483
    %v4488 = vmul.f32 %v3902, %v4483
    %v4489 = vmul.f32 %v3903, %v4483
    %v4490 = vmul.f32 %v3904, %v4483
    %v4491 = vmul.f32 %v3905, %v4483
    %v4492 = vmul.f32 %v3906, %v4483
    %v4493 = vmul.f32 %v3907, %v4483
    %v4494 = vmul.f32 %v3908, %v4483
    %v4495 = vmul.f32 %v3909, %v4483
    %v4496 = vmul.f32 %v3910, %v4483
    %v4497 = vmul.f32 %v3911, %v4483
    %v4498 = vmul.f32 %v3912, %v4483
    %v4499 = vmul.f32 %v3913, %v4483
    %v4500 = vmul.f32 %v3914, %v4483
    %v4501 = vmul.f32 %v3915, %v4483
    %v4502 = vmul.f32 %v3916, %v4483
    %v4503 = vmul.f32 %v3917, %v4483
    %v4504 = vmul.f32 %v3918, %v4483
    %v4505 = vmul.f32 %v3919, %v4483
    %v4506 = vmul.f32 %v3920, %v4483
    %v4507 = vmul.f32 %v3921, %v4483
    %v4508 = vmul.f32 %v3922, %v4483
    %v4509 = vmul.f32 %v3923, %v4483
    %v4510 = vmul.f32 %v3924, %v4483
    %v4511 = vmul.f32 %v3925, %v4483
    %v4512 = vmul.f32 %v3926, %v4483
    %v4513 = vmul.f32 %v3927, %v4483
    %v4514 = vmul.f32 %v3928, %v4483
    %v4515 = vmul.f32 %v3929, %v4483
    %v4516 = vmul.f32 %v3930, %v4483
    %v4517 = vmul.f32 %v3931, %v4483
    %v4518 = vmul.f32 %v3932, %v4483
    %v4519 = vmul.f32 %v3933, %v4483
    %v4520 = vmul.f32 %v3934, %v4483
    %v4521 = vmul.f32 %v3935, %v4483
    %v4522 = vmul.f32 %v3936, %v4483
    %v4523 = vmul.f32 %v3937, %v4483
    %v4524 = vmul.f32 %v3938, %v4483
    %v4525 = vmul.f32 %v3939, %v4483
    %v4526 = vmul.f32 %v3940, %v4483
    %v4527 = vmul.f32 %v3941, %v4483
    %v4528 = vmul.f32 %v3942, %v4483
    %v4529 = vmul.f32 %v3943, %v4483
    %v4530 = vmul.f32 %v3944, %v4483
    %v4531 = vmul.f32 %v3945, %v4483
    %v4532 = vmul.f32 %v3946, %v4483
    %v4533 = vmul.f32 %v3947, %v4483
    %v4534 = vmul.f32 %v3948, %v4483
    %v4535 = vmul.f32 %v3949, %v4483
    %v4536 = vmul.f32 %v3950, %v4483
    %v4537 = vmul.f32 %v3951, %v4483
    %v4538 = vmul.f32 %v3952, %v4483
    %v4539 = vmul.f32 %v3953, %v4483
    %v4540 = vmul.f32 %v3954, %v4483
    %v4541 = vmul.f32 %v3955, %v4483
    %v4542 = vmul.f32 %v3956, %v4483
    %v4543 = vmul.f32 %v3957, %v4483
    %v4544 = vmul.f32 %v3958, %v4483
    %v4545 = vmul.f32 %v3959, %v4483
    %v4546 = vmul.f32 %v3960, %v4483
    %v4547 = vmul.f32 %v3961, %v4483
    %v4548 = vmul.f32 %v3962, %v4483
    %v4549 = vmul.f32 %v3963, %v4483
    %v4550 = vmul.f32 %v3964, %v4483
    %v4551 = vmul.f32 %v3965, %v4483
    %v4552 = vmul.f32 %v3966, %v4483
    %v4553 = vmul.f32 %v3967, %v4483
    %v4554 = vmul.f32 %v3968, %v4483
    %v4555 = vmul.f32 %v3969, %v4483
    %v4556 = vmul.f32 %v3970, %v4483
    %v4557 = vmul.f32 %v3971, %v4483
    %v4558 = vmul.f32 %v3972, %v4483
    %v4559 = vmul.f32 %v3973, %v4483
    %v4560 = vmul.f32 %v3974, %v4483
    %v4561 = vmul.f32 %v3975, %v4483
    %v4562 = vmul.f32 %v3976, %v4483
    %v4563 = vmul.f32 %v3977, %v4483
    %v4564 = vmul.f32 %v3978, %v4483
    %v4565 = vmul.f32 %v3979, %v4483
    %v4566 = vmul.f32 %v3980, %v4483
    %v4567 = vmul.f32 %v3981, %v4483
    %v4568 = vmul.f32 %v3982, %v4483
    %v4569 = vmul.f32 %v3983, %v4483
    %v4570 = vmul.f32 %v3984, %v4483
    %v4571 = vmul.f32 %v3985, %v4483
    %v4572 = vmul.f32 %v3986, %v4483
    %v4573 = vmul.f32 %v3987, %v4483
    %v4574 = vmul.f32 %v3988, %v4483
    %v4575 = vmul.f32 %v3989, %v4483
    %v4576 = vmul.f32 %v3990, %v4483
    %v4577 = vmul.f32 %v3991, %v4483
    %v4578 = vmul.f32 %v3992, %v4483
    %v4579 = vmul.f32 %v3993, %v4483
    %v4580 = vadd.f32 %v4386, %v4484
    %v4581 = vadd.f32 %v4387, %v4485
    %v4582 = vadd.f32 %v4388, %v4486
    %v4583 = vadd.f32 %v4389, %v4487
    %v4584 = vadd.f32 %v4390, %v4488
    %v4585 = vadd.f32 %v4391, %v4489
    %v4586 = vadd.f32 %v4392, %v4490
    %v4587 = vadd.f32 %v4393, %v4491
    %v4588 = vadd.f32 %v4394, %v4492
    %v4589 = vadd.f32 %v4395, %v4493
    %v4590 = vadd.f32 %v4396, %v4494
    %v4591 = vadd.f32 %v4397, %v4495
    %v4592 = vadd.f32 %v4398, %v4496
    %v4593 = vadd.f32 %v4399, %v4497
    %v4594 = vadd.f32 %v4400, %v4498
    %v4595 = vadd.f32 %v4401, %v4499
    %v4596 = vadd.f32 %v4402, %v4500
    %v4597 = vadd.f32 %v4403, %v4501
    %v4598 = vadd.f32 %v4404, %v4502
    %v4599 = vadd.f32 %v4405, %v4503
    %v4600 = vadd.f32 %v4406, %v4504
    %v4601 = vadd.f32 %v4407, %v4505
    %v4602 = vadd.f32 %v4408, %v4506
    %v4603 = vadd.f32 %v4409, %v4507
    %v4604 = vadd.f32 %v4410, %v4508
    %v4605 = vadd.f32 %v4411, %v4509
    %v4606 = vadd.f32 %v4412, %v4510
    %v4607 = vadd.f32 %v4413, %v4511
    %v4608 = vadd.f32 %v4414, %v4512
    %v4609 = vadd.f32 %v4415, %v4513
    %v4610 = vadd.f32 %v4416, %v4514
    %v4611 = vadd.f32 %v4417, %v4515
    %v4612 = vadd.f32 %v4418, %v4516
    %v4613 = vadd.f32 %v4419, %v4517
    %v4614 = vadd.f32 %v4420, %v4518
    %v4615 = vadd.f32 %v4421, %v4519
    %v4616 = vadd.f32 %v4422, %v4520
    %v4617 = vadd.f32 %v4423, %v4521
    %v4618 = vadd.f32 %v4424, %v4522
    %v4619 = vadd.f32 %v4425, %v4523
    %v4620 = vadd.f32 %v4426, %v4524
    %v4621 = vadd.f32 %v4427, %v4525
    %v4622 = vadd.f32 %v4428, %v4526
    %v4623 = vadd.f32 %v4429, %v4527
    %v4624 = vadd.f32 %v4430, %v4528
    %v4625 = vadd.f32 %v4431, %v4529
    %v4626 = vadd.f32 %v4432, %v4530
    %v4627 = vadd.f32 %v4433, %v4531
    %v4628 = vadd.f32 %v4434, %v4532
    %v4629 = vadd.f32 %v4435, %v4533
    %v4630 = vadd.f32 %v4436, %v4534
    %v4631 = vadd.f32 %v4437, %v4535
    %v4632 = vadd.f32 %v4438, %v4536
    %v4633 = vadd.f32 %v4439, %v4537
    %v4634 = vadd.f32 %v4440, %v4538
    %v4635 = vadd.f32 %v4441, %v4539
    %v4636 = vadd.f32 %v4442, %v4540
    %v4637 = vadd.f32 %v4443, %v4541
    %v4638 = vadd.f32 %v4444, %v4542
    %v4639 = vadd.f32 %v4445, %v4543
    %v4640 = vadd.f32 %v4446, %v4544
    %v4641 = vadd.f32 %v4447, %v4545
    %v4642 = vadd.f32 %v4448, %v4546
    %v4643 = vadd.f32 %v4449, %v4547
    %v4644 = vadd.f32 %v4450, %v4548
    %v4645 = vadd.f32 %v4451, %v4549
    %v4646 = vadd.f32 %v4452, %v4550
    %v4647 = vadd.f32 %v4453, %v4551
    %v4648 = vadd.f32 %v4454, %v4552
    %v4649 = vadd.f32 %v4455, %v4553
    %v4650 = vadd.f32 %v4456, %v4554
    %v4651 = vadd.f32 %v4457, %v4555
    %v4652 = vadd.f32 %v4458, %v4556
    %v4653 = vadd.f32 %v4459, %v4557
    %v4654 = vadd.f32 %v4460, %v4558
    %v4655 = vadd.f32 %v4461, %v4559
    %v4656 = vadd.f32 %v4462, %v4560
    %v4657 = vadd.f32 %v4463, %v4561
    %v4658 = vadd.f32 %v4464, %v4562
    %v4659 = vadd.f32 %v4465, %v4563
    %v4660 = vadd.f32 %v4466, %v4564
    %v4661 = vadd.f32 %v4467, %v4565
    %v4662 = vadd.f32 %v4468, %v4566
    %v4663 = vadd.f32 %v4469, %v4567
    %v4664 = vadd.f32 %v4470, %v4568
    %v4665 = vadd.f32 %v4471, %v4569
    %v4666 = vadd.f32 %v4472, %v4570
    %v4667 = vadd.f32 %v4473, %v4571
    %v4668 = vadd.f32 %v4474, %v4572
    %v4669 = vadd.f32 %v4475, %v4573
    %v4670 = vadd.f32 %v4476, %v4574
    %v4671 = vadd.f32 %v4477, %v4575
    %v4672 = vadd.f32 %v4478, %v4576
    %v4673 = vadd.f32 %v4479, %v4577
    %v4674 = vadd.f32 %v4480, %v4578
    %v4675 = vadd.f32 %v4481, %v4579
    %s4676 = sld [smem:[#allocation4 + $0x1]]
    %v4677 = vstv %s4676
    %v4678 = vadd.f32 %v4580, %v4677
    %v4679 = vadd.f32 %v4581, %v4677
    %v4680 = vadd.f32 %v4582, %v4677
    %v4681 = vadd.f32 %v4583, %v4677
    %v4682 = vadd.f32 %v4584, %v4677
    %v4683 = vadd.f32 %v4585, %v4677
    %v4684 = vadd.f32 %v4586, %v4677
    %v4685 = vadd.f32 %v4587, %v4677
    %v4686 = vadd.f32 %v4588, %v4677
    %v4687 = vadd.f32 %v4589, %v4677
    %v4688 = vadd.f32 %v4590, %v4677
    %v4689 = vadd.f32 %v4591, %v4677
    %v4690 = vadd.f32 %v4592, %v4677
    %v4691 = vadd.f32 %v4593, %v4677
    %v4692 = vadd.f32 %v4594, %v4677
    %v4693 = vadd.f32 %v4595, %v4677
    %v4694 = vadd.f32 %v4596, %v4677
    %v4695 = vadd.f32 %v4597, %v4677
    %v4696 = vadd.f32 %v4598, %v4677
    %v4697 = vadd.f32 %v4599, %v4677
    %v4698 = vadd.f32 %v4600, %v4677
    %v4699 = vadd.f32 %v4601, %v4677
    %v4700 = vadd.f32 %v4602, %v4677
    %v4701 = vadd.f32 %v4603, %v4677
    %v4702 = vadd.f32 %v4604, %v4677
    %v4703 = vadd.f32 %v4605, %v4677
    %v4704 = vadd.f32 %v4606, %v4677
    %v4705 = vadd.f32 %v4607, %v4677
    %v4706 = vadd.f32 %v4608, %v4677
    %v4707 = vadd.f32 %v4609, %v4677
    %v4708 = vadd.f32 %v4610, %v4677
    %v4709 = vadd.f32 %v4611, %v4677
    %v4710 = vadd.f32 %v4612, %v4677
    %v4711 = vadd.f32 %v4613, %v4677
    %v4712 = vadd.f32 %v4614, %v4677
    %v4713 = vadd.f32 %v4615, %v4677
    %v4714 = vadd.f32 %v4616, %v4677
    %v4715 = vadd.f32 %v4617, %v4677
    %v4716 = vadd.f32 %v4618, %v4677
    %v4717 = vadd.f32 %v4619, %v4677
    %v4718 = vadd.f32 %v4620, %v4677
    %v4719 = vadd.f32 %v4621, %v4677
    %v4720 = vadd.f32 %v4622, %v4677
    %v4721 = vadd.f32 %v4623, %v4677
    %v4722 = vadd.f32 %v4624, %v4677
    %v4723 = vadd.f32 %v4625, %v4677
    %v4724 = vadd.f32 %v4626, %v4677
    %v4725 = vadd.f32 %v4627, %v4677
    %v4726 = vadd.f32 %v4628, %v4677
    %v4727 = vadd.f32 %v4629, %v4677
    %v4728 = vadd.f32 %v4630, %v4677
    %v4729 = vadd.f32 %v4631, %v4677
    %v4730 = vadd.f32 %v4632, %v4677
    %v4731 = vadd.f32 %v4633, %v4677
    %v4732 = vadd.f32 %v4634, %v4677
    %v4733 = vadd.f32 %v4635, %v4677
    %v4734 = vadd.f32 %v4636, %v4677
    %v4735 = vadd.f32 %v4637, %v4677
    %v4736 = vadd.f32 %v4638, %v4677
    %v4737 = vadd.f32 %v4639, %v4677
    %v4738 = vadd.f32 %v4640, %v4677
    %v4739 = vadd.f32 %v4641, %v4677
    %v4740 = vadd.f32 %v4642, %v4677
    %v4741 = vadd.f32 %v4643, %v4677
    %v4742 = vadd.f32 %v4644, %v4677
    %v4743 = vadd.f32 %v4645, %v4677
    %v4744 = vadd.f32 %v4646, %v4677
    %v4745 = vadd.f32 %v4647, %v4677
    %v4746 = vadd.f32 %v4648, %v4677
    %v4747 = vadd.f32 %v4649, %v4677
    %v4748 = vadd.f32 %v4650, %v4677
    %v4749 = vadd.f32 %v4651, %v4677
    %v4750 = vadd.f32 %v4652, %v4677
    %v4751 = vadd.f32 %v4653, %v4677
    %v4752 = vadd.f32 %v4654, %v4677
    %v4753 = vadd.f32 %v4655, %v4677
    %v4754 = vadd.f32 %v4656, %v4677
    %v4755 = vadd.f32 %v4657, %v4677
    %v4756 = vadd.f32 %v4658, %v4677
    %v4757 = vadd.f32 %v4659, %v4677
    %v4758 = vadd.f32 %v4660, %v4677
    %v4759 = vadd.f32 %v4661, %v4677
    %v4760 = vadd.f32 %v4662, %v4677
    %v4761 = vadd.f32 %v4663, %v4677
    %v4762 = vadd.f32 %v4664, %v4677
    %v4763 = vadd.f32 %v4665, %v4677
    %v4764 = vadd.f32 %v4666, %v4677
    %v4765 = vadd.f32 %v4667, %v4677
    %v4766 = vadd.f32 %v4668, %v4677
    %v4767 = vadd.f32 %v4669, %v4677
    %v4768 = vadd.f32 %v4670, %v4677
    %v4769 = vadd.f32 %v4671, %v4677
    %v4770 = vadd.f32 %v4672, %v4677
    %v4771 = vadd.f32 %v4673, %v4677
    %v4772 = vadd.f32 %v4674, %v4677
    %v4773 = vadd.f32 %v4675, %v4677
    %v4774 = vmax.f32 %v4288, %v4678
    %v4775 = vmax.f32 %v4289, %v4679
    %v4776 = vmax.f32 %v4290, %v4680
    %v4777 = vmax.f32 %v4291, %v4681
    %v4778 = vmax.f32 %v4292, %v4682
    %v4779 = vmax.f32 %v4293, %v4683
    %v4780 = vmax.f32 %v4294, %v4684
    %v4781 = vmax.f32 %v4295, %v4685
    %v4782 = vmax.f32 %v4296, %v4686
    %v4783 = vmax.f32 %v4297, %v4687
    %v4784 = vmax.f32 %v4298, %v4688
    %v4785 = vmax.f32 %v4299, %v4689
    %v4786 = vmax.f32 %v4300, %v4690
    %v4787 = vmax.f32 %v4301, %v4691
    %v4788 = vmax.f32 %v4302, %v4692
    %v4789 = vmax.f32 %v4303, %v4693
    %v4790 = vmax.f32 %v4304, %v4694
    %v4791 = vmax.f32 %v4305, %v4695
    %v4792 = vmax.f32 %v4306, %v4696
    %v4793 = vmax.f32 %v4307, %v4697
    %v4794 = vmax.f32 %v4308, %v4698
    %v4795 = vmax.f32 %v4309, %v4699
    %v4796 = vmax.f32 %v4310, %v4700
    %v4797 = vmax.f32 %v4311, %v4701
    %v4798 = vmax.f32 %v4312, %v4702
    %v4799 = vmax.f32 %v4313, %v4703
    %v4800 = vmax.f32 %v4314, %v4704
    %v4801 = vmax.f32 %v4315, %v4705
    %v4802 = vmax.f32 %v4316, %v4706
    %v4803 = vmax.f32 %v4317, %v4707
    %v4804 = vmax.f32 %v4318, %v4708
    %v4805 = vmax.f32 %v4319, %v4709
    %v4806 = vmax.f32 %v4320, %v4710
    %v4807 = vmax.f32 %v4321, %v4711
    %v4808 = vmax.f32 %v4322, %v4712
    %v4809 = vmax.f32 %v4323, %v4713
    %v4810 = vmax.f32 %v4324, %v4714
    %v4811 = vmax.f32 %v4325, %v4715
    %v4812 = vmax.f32 %v4326, %v4716
    %v4813 = vmax.f32 %v4327, %v4717
    %v4814 = vmax.f32 %v4328, %v4718
    %v4815 = vmax.f32 %v4329, %v4719
    %v4816 = vmax.f32 %v4330, %v4720
    %v4817 = vmax.f32 %v4331, %v4721
    %v4818 = vmax.f32 %v4332, %v4722
    %v4819 = vmax.f32 %v4333, %v4723
    %v4820 = vmax.f32 %v4334, %v4724
    %v4821 = vmax.f32 %v4335, %v4725
    %v4822 = vmax.f32 %v4336, %v4726
    %v4823 = vmax.f32 %v4337, %v4727
    %v4824 = vmax.f32 %v4338, %v4728
    %v4825 = vmax.f32 %v4339, %v4729
    %v4826 = vmax.f32 %v4340, %v4730
    %v4827 = vmax.f32 %v4341, %v4731
    %v4828 = vmax.f32 %v4342, %v4732
    %v4829 = vmax.f32 %v4343, %v4733
    %v4830 = vmax.f32 %v4344, %v4734
    %v4831 = vmax.f32 %v4345, %v4735
    %v4832 = vmax.f32 %v4346, %v4736
    %v4833 = vmax.f32 %v4347, %v4737
    %v4834 = vmax.f32 %v4348, %v4738
    %v4835 = vmax.f32 %v4349, %v4739
    %v4836 = vmax.f32 %v4350, %v4740
    %v4837 = vmax.f32 %v4351, %v4741
    %v4838 = vmax.f32 %v4352, %v4742
    %v4839 = vmax.f32 %v4353, %v4743
    %v4840 = vmax.f32 %v4354, %v4744
    %v4841 = vmax.f32 %v4355, %v4745
    %v4842 = vmax.f32 %v4356, %v4746
    %v4843 = vmax.f32 %v4357, %v4747
    %v4844 = vmax.f32 %v4358, %v4748
    %v4845 = vmax.f32 %v4359, %v4749
    %v4846 = vmax.f32 %v4360, %v4750
    %v4847 = vmax.f32 %v4361, %v4751
    %v4848 = vmax.f32 %v4362, %v4752
    %v4849 = vmax.f32 %v4363, %v4753
    %v4850 = vmax.f32 %v4364, %v4754
    %v4851 = vmax.f32 %v4365, %v4755
    %v4852 = vmax.f32 %v4366, %v4756
    %v4853 = vmax.f32 %v4367, %v4757
    %v4854 = vmax.f32 %v4368, %v4758
    %v4855 = vmax.f32 %v4369, %v4759
    %v4856 = vmax.f32 %v4370, %v4760
    %v4857 = vmax.f32 %v4371, %v4761
    %v4858 = vmax.f32 %v4372, %v4762
    %v4859 = vmax.f32 %v4373, %v4763
    %v4860 = vmax.f32 %v4374, %v4764
    %v4861 = vmax.f32 %v4375, %v4765
    %v4862 = vmax.f32 %v4376, %v4766
    %v4863 = vmax.f32 %v4377, %v4767
    %v4864 = vmax.f32 %v4378, %v4768
    %v4865 = vmax.f32 %v4379, %v4769
    %v4866 = vmax.f32 %v4380, %v4770
    %v4867 = vmax.f32 %v4381, %v4771
    %v4868 = vmax.f32 %v4382, %v4772
    %v4869 = vmax.f32 %v4383, %v4773
    %v4870 = vsub.f32 %v4288, %v4774
    %v4871 = vsub.f32 %v4289, %v4775
    %v4872 = vsub.f32 %v4290, %v4776
    %v4873 = vsub.f32 %v4291, %v4777
    %v4874 = vsub.f32 %v4292, %v4778
    %v4875 = vsub.f32 %v4293, %v4779
    %v4876 = vsub.f32 %v4294, %v4780
    %v4877 = vsub.f32 %v4295, %v4781
    %v4878 = vsub.f32 %v4296, %v4782
    %v4879 = vsub.f32 %v4297, %v4783
    %v4880 = vsub.f32 %v4298, %v4784
    %v4881 = vsub.f32 %v4299, %v4785
    %v4882 = vsub.f32 %v4300, %v4786
    %v4883 = vsub.f32 %v4301, %v4787
    %v4884 = vsub.f32 %v4302, %v4788
    %v4885 = vsub.f32 %v4303, %v4789
    %v4886 = vsub.f32 %v4304, %v4790
    %v4887 = vsub.f32 %v4305, %v4791
    %v4888 = vsub.f32 %v4306, %v4792
    %v4889 = vsub.f32 %v4307, %v4793
    %v4890 = vsub.f32 %v4308, %v4794
    %v4891 = vsub.f32 %v4309, %v4795
    %v4892 = vsub.f32 %v4310, %v4796
    %v4893 = vsub.f32 %v4311, %v4797
    %v4894 = vsub.f32 %v4312, %v4798
    %v4895 = vsub.f32 %v4313, %v4799
    %v4896 = vsub.f32 %v4314, %v4800
    %v4897 = vsub.f32 %v4315, %v4801
    %v4898 = vsub.f32 %v4316, %v4802
    %v4899 = vsub.f32 %v4317, %v4803
    %v4900 = vsub.f32 %v4318, %v4804
    %v4901 = vsub.f32 %v4319, %v4805
    %v4902 = vsub.f32 %v4320, %v4806
    %v4903 = vsub.f32 %v4321, %v4807
    %v4904 = vsub.f32 %v4322, %v4808
    %v4905 = vsub.f32 %v4323, %v4809
    %v4906 = vsub.f32 %v4324, %v4810
    %v4907 = vsub.f32 %v4325, %v4811
    %v4908 = vsub.f32 %v4326, %v4812
    %v4909 = vsub.f32 %v4327, %v4813
    %v4910 = vsub.f32 %v4328, %v4814
    %v4911 = vsub.f32 %v4329, %v4815
    %v4912 = vsub.f32 %v4330, %v4816
    %v4913 = vsub.f32 %v4331, %v4817
    %v4914 = vsub.f32 %v4332, %v4818
    %v4915 = vsub.f32 %v4333, %v4819
    %v4916 = vsub.f32 %v4334, %v4820
    %v4917 = vsub.f32 %v4335, %v4821
    %v4918 = vsub.f32 %v4336, %v4822
    %v4919 = vsub.f32 %v4337, %v4823
    %v4920 = vsub.f32 %v4338, %v4824
    %v4921 = vsub.f32 %v4339, %v4825
    %v4922 = vsub.f32 %v4340, %v4826
    %v4923 = vsub.f32 %v4341, %v4827
    %v4924 = vsub.f32 %v4342, %v4828
    %v4925 = vsub.f32 %v4343, %v4829
    %v4926 = vsub.f32 %v4344, %v4830
    %v4927 = vsub.f32 %v4345, %v4831
    %v4928 = vsub.f32 %v4346, %v4832
    %v4929 = vsub.f32 %v4347, %v4833
    %v4930 = vsub.f32 %v4348, %v4834
    %v4931 = vsub.f32 %v4349, %v4835
    %v4932 = vsub.f32 %v4350, %v4836
    %v4933 = vsub.f32 %v4351, %v4837
    %v4934 = vsub.f32 %v4352, %v4838
    %v4935 = vsub.f32 %v4353, %v4839
    %v4936 = vsub.f32 %v4354, %v4840
    %v4937 = vsub.f32 %v4355, %v4841
    %v4938 = vsub.f32 %v4356, %v4842
    %v4939 = vsub.f32 %v4357, %v4843
    %v4940 = vsub.f32 %v4358, %v4844
    %v4941 = vsub.f32 %v4359, %v4845
    %v4942 = vsub.f32 %v4360, %v4846
    %v4943 = vsub.f32 %v4361, %v4847
    %v4944 = vsub.f32 %v4362, %v4848
    %v4945 = vsub.f32 %v4363, %v4849
    %v4946 = vsub.f32 %v4364, %v4850
    %v4947 = vsub.f32 %v4365, %v4851
    %v4948 = vsub.f32 %v4366, %v4852
    %v4949 = vsub.f32 %v4367, %v4853
    %v4950 = vsub.f32 %v4368, %v4854
    %v4951 = vsub.f32 %v4369, %v4855
    %v4952 = vsub.f32 %v4370, %v4856
    %v4953 = vsub.f32 %v4371, %v4857
    %v4954 = vsub.f32 %v4372, %v4858
    %v4955 = vsub.f32 %v4373, %v4859
    %v4956 = vsub.f32 %v4374, %v4860
    %v4957 = vsub.f32 %v4375, %v4861
    %v4958 = vsub.f32 %v4376, %v4862
    %v4959 = vsub.f32 %v4377, %v4863
    %v4960 = vsub.f32 %v4378, %v4864
    %v4961 = vsub.f32 %v4379, %v4865
    %v4962 = vsub.f32 %v4380, %v4866
    %v4963 = vsub.f32 %v4381, %v4867
    %v4964 = vsub.f32 %v4382, %v4868
    %v4965 = vsub.f32 %v4383, %v4869
    %v4966 = vmul.f32 %v4870, 1.442695
    %v4967 = vpow.pop %v4966
    %v4968 = vmul.f32 %v4871, 1.442695
    %v4969 = vpow.pop %v4968
    %v4970 = vmul.f32 %v4872, 1.442695
    %v4971 = vpow.pop %v4970
    %v4972 = vmul.f32 %v4873, 1.442695
    %v4973 = vpow.pop %v4972
    %v4974 = vmul.f32 %v4874, 1.442695
    %v4975 = vpow.pop %v4974
    %v4976 = vmul.f32 %v4875, 1.442695
    %v4977 = vpow.pop %v4976
    %v4978 = vmul.f32 %v4876, 1.442695
    %v4979 = vpow.pop %v4978
    %v4980 = vmul.f32 %v4877, 1.442695
    %v4981 = vpow.pop %v4980
    %v4982 = vmul.f32 %v4878, 1.442695
    %v4983 = vpow.pop %v4982
    %v4984 = vmul.f32 %v4879, 1.442695
    %v4985 = vpow.pop %v4984
    %v4986 = vmul.f32 %v4880, 1.442695
    %v4987 = vpow.pop %v4986
    %v4988 = vmul.f32 %v4881, 1.442695
    %v4989 = vpow.pop %v4988
    %v4990 = vmul.f32 %v4882, 1.442695
    %v4991 = vpow.pop %v4990
    %v4992 = vmul.f32 %v4883, 1.442695
    %v4993 = vpow.pop %v4992
    %v4994 = vmul.f32 %v4884, 1.442695
    %v4995 = vpow.pop %v4994
    %v4996 = vmul.f32 %v4885, 1.442695
    %v4997 = vpow.pop %v4996
    %v4998 = vmul.f32 %v4886, 1.442695
    %v4999 = vpow.pop %v4998
    %v5000 = vmul.f32 %v4887, 1.442695
    %v5001 = vpow.pop %v5000
    %v5002 = vmul.f32 %v4888, 1.442695
    %v5003 = vpow.pop %v5002
    %v5004 = vmul.f32 %v4889, 1.442695
    %v5005 = vpow.pop %v5004
    %v5006 = vmul.f32 %v4890, 1.442695
    %v5007 = vpow.pop %v5006
    %v5008 = vmul.f32 %v4891, 1.442695
    %v5009 = vpow.pop %v5008
    %v5010 = vmul.f32 %v4892, 1.442695
    %v5011 = vpow.pop %v5010
    %v5012 = vmul.f32 %v4893, 1.442695
    %v5013 = vpow.pop %v5012
    %v5014 = vmul.f32 %v4894, 1.442695
    %v5015 = vpow.pop %v5014
    %v5016 = vmul.f32 %v4895, 1.442695
    %v5017 = vpow.pop %v5016
    %v5018 = vmul.f32 %v4896, 1.442695
    %v5019 = vpow.pop %v5018
    %v5020 = vmul.f32 %v4897, 1.442695
    %v5021 = vpow.pop %v5020
    %v5022 = vmul.f32 %v4898, 1.442695
    %v5023 = vpow.pop %v5022
    %v5024 = vmul.f32 %v4899, 1.442695
    %v5025 = vpow.pop %v5024
    %v5026 = vmul.f32 %v4900, 1.442695
    %v5027 = vpow.pop %v5026
    %v5028 = vmul.f32 %v4901, 1.442695
    %v5029 = vpow.pop %v5028
    %v5030 = vmul.f32 %v4902, 1.442695
    %v5031 = vpow.pop %v5030
    %v5032 = vmul.f32 %v4903, 1.442695
    %v5033 = vpow.pop %v5032
    %v5034 = vmul.f32 %v4904, 1.442695
    %v5035 = vpow.pop %v5034
    %v5036 = vmul.f32 %v4905, 1.442695
    %v5037 = vpow.pop %v5036
    %v5038 = vmul.f32 %v4906, 1.442695
    %v5039 = vpow.pop %v5038
    %v5040 = vmul.f32 %v4907, 1.442695
    %v5041 = vpow.pop %v5040
    %v5042 = vmul.f32 %v4908, 1.442695
    %v5043 = vpow.pop %v5042
    %v5044 = vmul.f32 %v4909, 1.442695
    %v5045 = vpow.pop %v5044
    %v5046 = vmul.f32 %v4910, 1.442695
    %v5047 = vpow.pop %v5046
    %v5048 = vmul.f32 %v4911, 1.442695
    %v5049 = vpow.pop %v5048
    %v5050 = vmul.f32 %v4912, 1.442695
    %v5051 = vpow.pop %v5050
    %v5052 = vmul.f32 %v4913, 1.442695
    %v5053 = vpow.pop %v5052
    %v5054 = vmul.f32 %v4914, 1.442695
    %v5055 = vpow.pop %v5054
    %v5056 = vmul.f32 %v4915, 1.442695
    %v5057 = vpow.pop %v5056
    %v5058 = vmul.f32 %v4916, 1.442695
    %v5059 = vpow.pop %v5058
    %v5060 = vmul.f32 %v4917, 1.442695
    %v5061 = vpow.pop %v5060
    %v5062 = vmul.f32 %v4918, 1.442695
    %v5063 = vpow.pop %v5062
    %v5064 = vmul.f32 %v4919, 1.442695
    %v5065 = vpow.pop %v5064
    %v5066 = vmul.f32 %v4920, 1.442695
    %v5067 = vpow.pop %v5066
    %v5068 = vmul.f32 %v4921, 1.442695
    %v5069 = vpow.pop %v5068
    %v5070 = vmul.f32 %v4922, 1.442695
    %v5071 = vpow.pop %v5070
    %v5072 = vmul.f32 %v4923, 1.442695
    %v5073 = vpow.pop %v5072
    %v5074 = vmul.f32 %v4924, 1.442695
    %v5075 = vpow.pop %v5074
    %v5076 = vmul.f32 %v4925, 1.442695
    %v5077 = vpow.pop %v5076
    %v5078 = vmul.f32 %v4926, 1.442695
    %v5079 = vpow.pop %v5078
    %v5080 = vmul.f32 %v4927, 1.442695
    %v5081 = vpow.pop %v5080
    %v5082 = vmul.f32 %v4928, 1.442695
    %v5083 = vpow.pop %v5082
    %v5084 = vmul.f32 %v4929, 1.442695
    %v5085 = vpow.pop %v5084
    %v5086 = vmul.f32 %v4930, 1.442695
    %v5087 = vpow.pop %v5086
    %v5088 = vmul.f32 %v4931, 1.442695
    %v5089 = vpow.pop %v5088
    %v5090 = vmul.f32 %v4932, 1.442695
    %v5091 = vpow.pop %v5090
    %v5092 = vmul.f32 %v4933, 1.442695
    %v5093 = vpow.pop %v5092
    %v5094 = vmul.f32 %v4934, 1.442695
    %v5095 = vpow.pop %v5094
    %v5096 = vmul.f32 %v4935, 1.442695
    %v5097 = vpow.pop %v5096
    %v5098 = vmul.f32 %v4936, 1.442695
    %v5099 = vpow.pop %v5098
    %v5100 = vmul.f32 %v4937, 1.442695
    %v5101 = vpow.pop %v5100
    %v5102 = vmul.f32 %v4938, 1.442695
    %v5103 = vpow.pop %v5102
    %v5104 = vmul.f32 %v4939, 1.442695
    %v5105 = vpow.pop %v5104
    %v5106 = vmul.f32 %v4940, 1.442695
    %v5107 = vpow.pop %v5106
    %v5108 = vmul.f32 %v4941, 1.442695
    %v5109 = vpow.pop %v5108
    %v5110 = vmul.f32 %v4942, 1.442695
    %v5111 = vpow.pop %v5110
    %v5112 = vmul.f32 %v4943, 1.442695
    %v5113 = vpow.pop %v5112
    %v5114 = vmul.f32 %v4944, 1.442695
    %v5115 = vpow.pop %v5114
    %v5116 = vmul.f32 %v4945, 1.442695
    %v5117 = vpow.pop %v5116
    %v5118 = vmul.f32 %v4946, 1.442695
    %v5119 = vpow.pop %v5118
    %v5120 = vmul.f32 %v4947, 1.442695
    %v5121 = vpow.pop %v5120
    %v5122 = vmul.f32 %v4948, 1.442695
    %v5123 = vpow.pop %v5122
    %v5124 = vmul.f32 %v4949, 1.442695
    %v5125 = vpow.pop %v5124
    %v5126 = vmul.f32 %v4950, 1.442695
    %v5127 = vpow.pop %v5126
    %v5128 = vmul.f32 %v4951, 1.442695
    %v5129 = vpow.pop %v5128
    %v5130 = vmul.f32 %v4952, 1.442695
    %v5131 = vpow.pop %v5130
    %v5132 = vmul.f32 %v4953, 1.442695
    %v5133 = vpow.pop %v5132
    %v5134 = vmul.f32 %v4954, 1.442695
    %v5135 = vpow.pop %v5134
    %v5136 = vmul.f32 %v4955, 1.442695
    %v5137 = vpow.pop %v5136
    %v5138 = vmul.f32 %v4956, 1.442695
    %v5139 = vpow.pop %v5138
    %v5140 = vmul.f32 %v4957, 1.442695
    %v5141 = vpow.pop %v5140
    %v5142 = vmul.f32 %v4958, 1.442695
    %v5143 = vpow.pop %v5142
    %v5144 = vmul.f32 %v4959, 1.442695
    %v5145 = vpow.pop %v5144
    %v5146 = vmul.f32 %v4960, 1.442695
    %v5147 = vpow.pop %v5146
    %v5148 = vmul.f32 %v4961, 1.442695
    %v5149 = vpow.pop %v5148
    %v5150 = vmul.f32 %v4962, 1.442695
    %v5151 = vpow.pop %v5150
    %v5152 = vmul.f32 %v4963, 1.442695
    %v5153 = vpow.pop %v5152
    %v5154 = vmul.f32 %v4964, 1.442695
    %v5155 = vpow.pop %v5154
    %v5156 = vmul.f32 %v4965, 1.442695
    %v5157 = vpow.pop %v5156
    %v5158 = vsub.f32 %v4678, %v4774
    %v5159 = vsub.f32 %v4679, %v4775
    %v5160 = vsub.f32 %v4680, %v4776
    %v5161 = vsub.f32 %v4681, %v4777
    %v5162 = vsub.f32 %v4682, %v4778
    %v5163 = vsub.f32 %v4683, %v4779
    %v5164 = vsub.f32 %v4684, %v4780
    %v5165 = vsub.f32 %v4685, %v4781
    %v5166 = vsub.f32 %v4686, %v4782
    %v5167 = vsub.f32 %v4687, %v4783
    %v5168 = vsub.f32 %v4688, %v4784
    %v5169 = vsub.f32 %v4689, %v4785
    %v5170 = vsub.f32 %v4690, %v4786
    %v5171 = vsub.f32 %v4691, %v4787
    %v5172 = vsub.f32 %v4692, %v4788
    %v5173 = vsub.f32 %v4693, %v4789
    %v5174 = vsub.f32 %v4694, %v4790
    %v5175 = vsub.f32 %v4695, %v4791
    %v5176 = vsub.f32 %v4696, %v4792
    %v5177 = vsub.f32 %v4697, %v4793
    %v5178 = vsub.f32 %v4698, %v4794
    %v5179 = vsub.f32 %v4699, %v4795
    %v5180 = vsub.f32 %v4700, %v4796
    %v5181 = vsub.f32 %v4701, %v4797
    %v5182 = vsub.f32 %v4702, %v4798
    %v5183 = vsub.f32 %v4703, %v4799
    %v5184 = vsub.f32 %v4704, %v4800
    %v5185 = vsub.f32 %v4705, %v4801
    %v5186 = vsub.f32 %v4706, %v4802
    %v5187 = vsub.f32 %v4707, %v4803
    %v5188 = vsub.f32 %v4708, %v4804
    %v5189 = vsub.f32 %v4709, %v4805
    %v5190 = vsub.f32 %v4710, %v4806
    %v5191 = vsub.f32 %v4711, %v4807
    %v5192 = vsub.f32 %v4712, %v4808
    %v5193 = vsub.f32 %v4713, %v4809
    %v5194 = vsub.f32 %v4714, %v4810
    %v5195 = vsub.f32 %v4715, %v4811
    %v5196 = vsub.f32 %v4716, %v4812
    %v5197 = vsub.f32 %v4717, %v4813
    %v5198 = vsub.f32 %v4718, %v4814
    %v5199 = vsub.f32 %v4719, %v4815
    %v5200 = vsub.f32 %v4720, %v4816
    %v5201 = vsub.f32 %v4721, %v4817
    %v5202 = vsub.f32 %v4722, %v4818
    %v5203 = vsub.f32 %v4723, %v4819
    %v5204 = vsub.f32 %v4724, %v4820
    %v5205 = vsub.f32 %v4725, %v4821
    %v5206 = vsub.f32 %v4726, %v4822
    %v5207 = vsub.f32 %v4727, %v4823
    %v5208 = vsub.f32 %v4728, %v4824
    %v5209 = vsub.f32 %v4729, %v4825
    %v5210 = vsub.f32 %v4730, %v4826
    %v5211 = vsub.f32 %v4731, %v4827
    %v5212 = vsub.f32 %v4732, %v4828
    %v5213 = vsub.f32 %v4733, %v4829
    %v5214 = vsub.f32 %v4734, %v4830
    %v5215 = vsub.f32 %v4735, %v4831
    %v5216 = vsub.f32 %v4736, %v4832
    %v5217 = vsub.f32 %v4737, %v4833
    %v5218 = vsub.f32 %v4738, %v4834
    %v5219 = vsub.f32 %v4739, %v4835
    %v5220 = vsub.f32 %v4740, %v4836
    %v5221 = vsub.f32 %v4741, %v4837
    %v5222 = vsub.f32 %v4742, %v4838
    %v5223 = vsub.f32 %v4743, %v4839
    %v5224 = vsub.f32 %v4744, %v4840
    %v5225 = vsub.f32 %v4745, %v4841
    %v5226 = vsub.f32 %v4746, %v4842
    %v5227 = vsub.f32 %v4747, %v4843
    %v5228 = vsub.f32 %v4748, %v4844
    %v5229 = vsub.f32 %v4749, %v4845
    %v5230 = vsub.f32 %v4750, %v4846
    %v5231 = vsub.f32 %v4751, %v4847
    %v5232 = vsub.f32 %v4752, %v4848
    %v5233 = vsub.f32 %v4753, %v4849
    %v5234 = vsub.f32 %v4754, %v4850
    %v5235 = vsub.f32 %v4755, %v4851
    %v5236 = vsub.f32 %v4756, %v4852
    %v5237 = vsub.f32 %v4757, %v4853
    %v5238 = vsub.f32 %v4758, %v4854
    %v5239 = vsub.f32 %v4759, %v4855
    %v5240 = vsub.f32 %v4760, %v4856
    %v5241 = vsub.f32 %v4761, %v4857
    %v5242 = vsub.f32 %v4762, %v4858
    %v5243 = vsub.f32 %v4763, %v4859
    %v5244 = vsub.f32 %v4764, %v4860
    %v5245 = vsub.f32 %v4765, %v4861
    %v5246 = vsub.f32 %v4766, %v4862
    %v5247 = vsub.f32 %v4767, %v4863
    %v5248 = vsub.f32 %v4768, %v4864
    %v5249 = vsub.f32 %v4769, %v4865
    %v5250 = vsub.f32 %v4770, %v4866
    %v5251 = vsub.f32 %v4771, %v4867
    %v5252 = vsub.f32 %v4772, %v4868
    %v5253 = vsub.f32 %v4773, %v4869
    %v5254 = vmul.f32 %v5158, 1.442695
    %v5255 = vpow.pop %v5254
    %v5256 = vmul.f32 %v5159, 1.442695
    %v5257 = vpow.pop %v5256
    %v5258 = vmul.f32 %v5160, 1.442695
    %v5259 = vpow.pop %v5258
    %v5260 = vmul.f32 %v5161, 1.442695
    %v5261 = vpow.pop %v5260
    %v5262 = vmul.f32 %v5162, 1.442695
    %v5263 = vpow.pop %v5262
    %v5264 = vmul.f32 %v5163, 1.442695
    %v5265 = vpow.pop %v5264
    %v5266 = vmul.f32 %v5164, 1.442695
    %v5267 = vpow.pop %v5266
    %v5268 = vmul.f32 %v5165, 1.442695
    %v5269 = vpow.pop %v5268
    %v5270 = vmul.f32 %v5166, 1.442695
    %v5271 = vpow.pop %v5270
    %v5272 = vmul.f32 %v5167, 1.442695
    %v5273 = vpow.pop %v5272
    %v5274 = vmul.f32 %v5168, 1.442695
    %v5275 = vpow.pop %v5274
    %v5276 = vmul.f32 %v5169, 1.442695
    %v5277 = vpow.pop %v5276
    %v5278 = vmul.f32 %v5170, 1.442695
    %v5279 = vpow.pop %v5278
    %v5280 = vmul.f32 %v5171, 1.442695
    %v5281 = vpow.pop %v5280
    %v5282 = vmul.f32 %v5172, 1.442695
    %v5283 = vpow.pop %v5282
    %v5284 = vmul.f32 %v5173, 1.442695
    %v5285 = vpow.pop %v5284
    %v5286 = vmul.f32 %v5174, 1.442695
    %v5287 = vpow.pop %v5286
    %v5288 = vmul.f32 %v5175, 1.442695
    %v5289 = vpow.pop %v5288
    %v5290 = vmul.f32 %v5176, 1.442695
    %v5291 = vpow.pop %v5290
    %v5292 = vmul.f32 %v5177, 1.442695
    %v5293 = vpow.pop %v5292
    %v5294 = vmul.f32 %v5178, 1.442695
    %v5295 = vpow.pop %v5294
    %v5296 = vmul.f32 %v5179, 1.442695
    %v5297 = vpow.pop %v5296
    %v5298 = vmul.f32 %v5180, 1.442695
    %v5299 = vpow.pop %v5298
    %v5300 = vmul.f32 %v5181, 1.442695
    %v5301 = vpow.pop %v5300
    %v5302 = vmul.f32 %v5182, 1.442695
    %v5303 = vpow.pop %v5302
    %v5304 = vmul.f32 %v5183, 1.442695
    %v5305 = vpow.pop %v5304
    %v5306 = vmul.f32 %v5184, 1.442695
    %v5307 = vpow.pop %v5306
    %v5308 = vmul.f32 %v5185, 1.442695
    %v5309 = vpow.pop %v5308
    %v5310 = vmul.f32 %v5186, 1.442695
    %v5311 = vpow.pop %v5310
    %v5312 = vmul.f32 %v5187, 1.442695
    %v5313 = vpow.pop %v5312
    %v5314 = vmul.f32 %v5188, 1.442695
    %v5315 = vpow.pop %v5314
    %v5316 = vmul.f32 %v5189, 1.442695
    %v5317 = vpow.pop %v5316
    %v5318 = vmul.f32 %v5190, 1.442695
    %v5319 = vpow.pop %v5318
    %v5320 = vmul.f32 %v5191, 1.442695
    %v5321 = vpow.pop %v5320
    %v5322 = vmul.f32 %v5192, 1.442695
    %v5323 = vpow.pop %v5322
    %v5324 = vmul.f32 %v5193, 1.442695
    %v5325 = vpow.pop %v5324
    %v5326 = vmul.f32 %v5194, 1.442695
    %v5327 = vpow.pop %v5326
    %v5328 = vmul.f32 %v5195, 1.442695
    %v5329 = vpow.pop %v5328
    %v5330 = vmul.f32 %v5196, 1.442695
    %v5331 = vpow.pop %v5330
    %v5332 = vmul.f32 %v5197, 1.442695
    %v5333 = vpow.pop %v5332
    %v5334 = vmul.f32 %v5198, 1.442695
    %v5335 = vpow.pop %v5334
    %v5336 = vmul.f32 %v5199, 1.442695
    %v5337 = vpow.pop %v5336
    %v5338 = vmul.f32 %v5200, 1.442695
    %v5339 = vpow.pop %v5338
    %v5340 = vmul.f32 %v5201, 1.442695
    %v5341 = vpow.pop %v5340
    %v5342 = vmul.f32 %v5202, 1.442695
    %v5343 = vpow.pop %v5342
    %v5344 = vmul.f32 %v5203, 1.442695
    %v5345 = vpow.pop %v5344
    %v5346 = vmul.f32 %v5204, 1.442695
    %v5347 = vpow.pop %v5346
    %v5348 = vmul.f32 %v5205, 1.442695
    %v5349 = vpow.pop %v5348
    %v5350 = vmul.f32 %v5206, 1.442695
    %v5351 = vpow.pop %v5350
    %v5352 = vmul.f32 %v5207, 1.442695
    %v5353 = vpow.pop %v5352
    %v5354 = vmul.f32 %v5208, 1.442695
    %v5355 = vpow.pop %v5354
    %v5356 = vmul.f32 %v5209, 1.442695
    %v5357 = vpow.pop %v5356
    %v5358 = vmul.f32 %v5210, 1.442695
    %v5359 = vpow.pop %v5358
    %v5360 = vmul.f32 %v5211, 1.442695
    %v5361 = vpow.pop %v5360
    %v5362 = vmul.f32 %v5212, 1.442695
    %v5363 = vpow.pop %v5362
    %v5364 = vmul.f32 %v5213, 1.442695
    %v5365 = vpow.pop %v5364
    %v5366 = vmul.f32 %v5214, 1.442695
    %v5367 = vpow.pop %v5366
    %v5368 = vmul.f32 %v5215, 1.442695
    %v5369 = vpow.pop %v5368
    %v5370 = vmul.f32 %v5216, 1.442695
    %v5371 = vpow.pop %v5370
    %v5372 = vmul.f32 %v5217, 1.442695
    %v5373 = vpow.pop %v5372
    %v5374 = vmul.f32 %v5218, 1.442695
    %v5375 = vpow.pop %v5374
    %v5376 = vmul.f32 %v5219, 1.442695
    %v5377 = vpow.pop %v5376
    %v5378 = vmul.f32 %v5220, 1.442695
    %v5379 = vpow.pop %v5378
    %v5380 = vmul.f32 %v5221, 1.442695
    %v5381 = vpow.pop %v5380
    %v5382 = vmul.f32 %v5222, 1.442695
    %v5383 = vpow.pop %v5382
    %v5384 = vmul.f32 %v5223, 1.442695
    %v5385 = vpow.pop %v5384
    %v5386 = vmul.f32 %v5224, 1.442695
    %v5387 = vpow.pop %v5386
    %v5388 = vmul.f32 %v5225, 1.442695
    %v5389 = vpow.pop %v5388
    %v5390 = vmul.f32 %v5226, 1.442695
    %v5391 = vpow.pop %v5390
    %v5392 = vmul.f32 %v5227, 1.442695
    %v5393 = vpow.pop %v5392
    %v5394 = vmul.f32 %v5228, 1.442695
    %v5395 = vpow.pop %v5394
    %v5396 = vmul.f32 %v5229, 1.442695
    %v5397 = vpow.pop %v5396
    %v5398 = vmul.f32 %v5230, 1.442695
    %v5399 = vpow.pop %v5398
    %v5400 = vmul.f32 %v5231, 1.442695
    %v5401 = vpow.pop %v5400
    %v5402 = vmul.f32 %v5232, 1.442695
    %v5403 = vpow.pop %v5402
    %v5404 = vmul.f32 %v5233, 1.442695
    %v5405 = vpow.pop %v5404
    %v5406 = vmul.f32 %v5234, 1.442695
    %v5407 = vpow.pop %v5406
    %v5408 = vmul.f32 %v5235, 1.442695
    %v5409 = vpow.pop %v5408
    %v5410 = vmul.f32 %v5236, 1.442695
    %v5411 = vpow.pop %v5410
    %v5412 = vmul.f32 %v5237, 1.442695
    %v5413 = vpow.pop %v5412
    %v5414 = vmul.f32 %v5238, 1.442695
    %v5415 = vpow.pop %v5414
    %v5416 = vmul.f32 %v5239, 1.442695
    %v5417 = vpow.pop %v5416
    %v5418 = vmul.f32 %v5240, 1.442695
    %v5419 = vpow.pop %v5418
    %v5420 = vmul.f32 %v5241, 1.442695
    %v5421 = vpow.pop %v5420
    %v5422 = vmul.f32 %v5242, 1.442695
    %v5423 = vpow.pop %v5422
    %v5424 = vmul.f32 %v5243, 1.442695
    %v5425 = vpow.pop %v5424
    %v5426 = vmul.f32 %v5244, 1.442695
    %v5427 = vpow.pop %v5426
    %v5428 = vmul.f32 %v5245, 1.442695
    %v5429 = vpow.pop %v5428
    %v5430 = vmul.f32 %v5246, 1.442695
    %v5431 = vpow.pop %v5430
    %v5432 = vmul.f32 %v5247, 1.442695
    %v5433 = vpow.pop %v5432
    %v5434 = vmul.f32 %v5248, 1.442695
    %v5435 = vpow.pop %v5434
    %v5436 = vmul.f32 %v5249, 1.442695
    %v5437 = vpow.pop %v5436
    %v5438 = vmul.f32 %v5250, 1.442695
    %v5439 = vpow.pop %v5438
    %v5440 = vmul.f32 %v5251, 1.442695
    %v5441 = vpow.pop %v5440
    %v5442 = vmul.f32 %v5252, 1.442695
    %v5443 = vpow.pop %v5442
    %v5444 = vmul.f32 %v5253, 1.442695
    %v5445 = vpow.pop %v5444
    %v5446 = vadd.f32 %v4967, %v5255
    %v5447 = vadd.f32 %v4969, %v5257
    %v5448 = vadd.f32 %v4971, %v5259
    %v5449 = vadd.f32 %v4973, %v5261
    %v5450 = vadd.f32 %v4975, %v5263
    %v5451 = vadd.f32 %v4977, %v5265
    %v5452 = vadd.f32 %v4979, %v5267
    %v5453 = vadd.f32 %v4981, %v5269
    %v5454 = vadd.f32 %v4983, %v5271
    %v5455 = vadd.f32 %v4985, %v5273
    %v5456 = vadd.f32 %v4987, %v5275
    %v5457 = vadd.f32 %v4989, %v5277
    %v5458 = vadd.f32 %v4991, %v5279
    %v5459 = vadd.f32 %v4993, %v5281
    %v5460 = vadd.f32 %v4995, %v5283
    %v5461 = vadd.f32 %v4997, %v5285
    %v5462 = vadd.f32 %v4999, %v5287
    %v5463 = vadd.f32 %v5001, %v5289
    %v5464 = vadd.f32 %v5003, %v5291
    %v5465 = vadd.f32 %v5005, %v5293
    %v5466 = vadd.f32 %v5007, %v5295
    %v5467 = vadd.f32 %v5009, %v5297
    %v5468 = vadd.f32 %v5011, %v5299
    %v5469 = vadd.f32 %v5013, %v5301
    %v5470 = vadd.f32 %v5015, %v5303
    %v5471 = vadd.f32 %v5017, %v5305
    %v5472 = vadd.f32 %v5019, %v5307
    %v5473 = vadd.f32 %v5021, %v5309
    %v5474 = vadd.f32 %v5023, %v5311
    %v5475 = vadd.f32 %v5025, %v5313
    %v5476 = vadd.f32 %v5027, %v5315
    %v5477 = vadd.f32 %v5029, %v5317
    %v5478 = vadd.f32 %v5031, %v5319
    %v5479 = vadd.f32 %v5033, %v5321
    %v5480 = vadd.f32 %v5035, %v5323
    %v5481 = vadd.f32 %v5037, %v5325
    %v5482 = vadd.f32 %v5039, %v5327
    %v5483 = vadd.f32 %v5041, %v5329
    %v5484 = vadd.f32 %v5043, %v5331
    %v5485 = vadd.f32 %v5045, %v5333
    %v5486 = vadd.f32 %v5047, %v5335
    %v5487 = vadd.f32 %v5049, %v5337
    %v5488 = vadd.f32 %v5051, %v5339
    %v5489 = vadd.f32 %v5053, %v5341
    %v5490 = vadd.f32 %v5055, %v5343
    %v5491 = vadd.f32 %v5057, %v5345
    %v5492 = vadd.f32 %v5059, %v5347
    %v5493 = vadd.f32 %v5061, %v5349
    %v5494 = vadd.f32 %v5063, %v5351
    %v5495 = vadd.f32 %v5065, %v5353
    %v5496 = vadd.f32 %v5067, %v5355
    %v5497 = vadd.f32 %v5069, %v5357
    %v5498 = vadd.f32 %v5071, %v5359
    %v5499 = vadd.f32 %v5073, %v5361
    %v5500 = vadd.f32 %v5075, %v5363
    %v5501 = vadd.f32 %v5077, %v5365
    %v5502 = vadd.f32 %v5079, %v5367
    %v5503 = vadd.f32 %v5081, %v5369
    %v5504 = vadd.f32 %v5083, %v5371
    %v5505 = vadd.f32 %v5085, %v5373
    %v5506 = vadd.f32 %v5087, %v5375
    %v5507 = vadd.f32 %v5089, %v5377
    %v5508 = vadd.f32 %v5091, %v5379
    %v5509 = vadd.f32 %v5093, %v5381
    %v5510 = vadd.f32 %v5095, %v5383
    %v5511 = vadd.f32 %v5097, %v5385
    %v5512 = vadd.f32 %v5099, %v5387
    %v5513 = vadd.f32 %v5101, %v5389
    %v5514 = vadd.f32 %v5103, %v5391
    %v5515 = vadd.f32 %v5105, %v5393
    %v5516 = vadd.f32 %v5107, %v5395
    %v5517 = vadd.f32 %v5109, %v5397
    %v5518 = vadd.f32 %v5111, %v5399
    %v5519 = vadd.f32 %v5113, %v5401
    %v5520 = vadd.f32 %v5115, %v5403
    %v5521 = vadd.f32 %v5117, %v5405
    %v5522 = vadd.f32 %v5119, %v5407
    %v5523 = vadd.f32 %v5121, %v5409
    %v5524 = vadd.f32 %v5123, %v5411
    %v5525 = vadd.f32 %v5125, %v5413
    %v5526 = vadd.f32 %v5127, %v5415
    %v5527 = vadd.f32 %v5129, %v5417
    %v5528 = vadd.f32 %v5131, %v5419
    %v5529 = vadd.f32 %v5133, %v5421
    %v5530 = vadd.f32 %v5135, %v5423
    %v5531 = vadd.f32 %v5137, %v5425
    %v5532 = vadd.f32 %v5139, %v5427
    %v5533 = vadd.f32 %v5141, %v5429
    %v5534 = vadd.f32 %v5143, %v5431
    %v5535 = vadd.f32 %v5145, %v5433
    %v5536 = vadd.f32 %v5147, %v5435
    %v5537 = vadd.f32 %v5149, %v5437
    %v5538 = vadd.f32 %v5151, %v5439
    %v5539 = vadd.f32 %v5153, %v5441
    %v5540 = vadd.f32 %v5155, %v5443
    %v5541 = vadd.f32 %v5157, %v5445
    %v5542 = vlog2.pop %v5446
    %v5543 = vmul.f32 %v5542, 0.6931472
    %v5544 = vlog2.pop %v5447
    %v5545 = vmul.f32 %v5544, 0.6931472
    %v5546 = vlog2.pop %v5448
    %v5547 = vmul.f32 %v5546, 0.6931472
    %v5548 = vlog2.pop %v5449
    %v5549 = vmul.f32 %v5548, 0.6931472
    %v5550 = vlog2.pop %v5450
    %v5551 = vmul.f32 %v5550, 0.6931472
    %v5552 = vlog2.pop %v5451
    %v5553 = vmul.f32 %v5552, 0.6931472
    %v5554 = vlog2.pop %v5452
    %v5555 = vmul.f32 %v5554, 0.6931472
    %v5556 = vlog2.pop %v5453
    %v5557 = vmul.f32 %v5556, 0.6931472
    %v5558 = vlog2.pop %v5454
    %v5559 = vmul.f32 %v5558, 0.6931472
    %v5560 = vlog2.pop %v5455
    %v5561 = vmul.f32 %v5560, 0.6931472
    %v5562 = vlog2.pop %v5456
    %v5563 = vmul.f32 %v5562, 0.6931472
    %v5564 = vlog2.pop %v5457
    %v5565 = vmul.f32 %v5564, 0.6931472
    %v5566 = vlog2.pop %v5458
    %v5567 = vmul.f32 %v5566, 0.6931472
    %v5568 = vlog2.pop %v5459
    %v5569 = vmul.f32 %v5568, 0.6931472
    %v5570 = vlog2.pop %v5460
    %v5571 = vmul.f32 %v5570, 0.6931472
    %v5572 = vlog2.pop %v5461
    %v5573 = vmul.f32 %v5572, 0.6931472
    %v5574 = vlog2.pop %v5462
    %v5575 = vmul.f32 %v5574, 0.6931472
    %v5576 = vlog2.pop %v5463
    %v5577 = vmul.f32 %v5576, 0.6931472
    %v5578 = vlog2.pop %v5464
    %v5579 = vmul.f32 %v5578, 0.6931472
    %v5580 = vlog2.pop %v5465
    %v5581 = vmul.f32 %v5580, 0.6931472
    %v5582 = vlog2.pop %v5466
    %v5583 = vmul.f32 %v5582, 0.6931472
    %v5584 = vlog2.pop %v5467
    %v5585 = vmul.f32 %v5584, 0.6931472
    %v5586 = vlog2.pop %v5468
    %v5587 = vmul.f32 %v5586, 0.6931472
    %v5588 = vlog2.pop %v5469
    %v5589 = vmul.f32 %v5588, 0.6931472
    %v5590 = vlog2.pop %v5470
    %v5591 = vmul.f32 %v5590, 0.6931472
    %v5592 = vlog2.pop %v5471
    %v5593 = vmul.f32 %v5592, 0.6931472
    %v5594 = vlog2.pop %v5472
    %v5595 = vmul.f32 %v5594, 0.6931472
    %v5596 = vlog2.pop %v5473
    %v5597 = vmul.f32 %v5596, 0.6931472
    %v5598 = vlog2.pop %v5474
    %v5599 = vmul.f32 %v5598, 0.6931472
    %v5600 = vlog2.pop %v5475
    %v5601 = vmul.f32 %v5600, 0.6931472
    %v5602 = vlog2.pop %v5476
    %v5603 = vmul.f32 %v5602, 0.6931472
    %v5604 = vlog2.pop %v5477
    %v5605 = vmul.f32 %v5604, 0.6931472
    %v5606 = vlog2.pop %v5478
    %v5607 = vmul.f32 %v5606, 0.6931472
    %v5608 = vlog2.pop %v5479
    %v5609 = vmul.f32 %v5608, 0.6931472
    %v5610 = vlog2.pop %v5480
    %v5611 = vmul.f32 %v5610, 0.6931472
    %v5612 = vlog2.pop %v5481
    %v5613 = vmul.f32 %v5612, 0.6931472
    %v5614 = vlog2.pop %v5482
    %v5615 = vmul.f32 %v5614, 0.6931472
    %v5616 = vlog2.pop %v5483
    %v5617 = vmul.f32 %v5616, 0.6931472
    %v5618 = vlog2.pop %v5484
    %v5619 = vmul.f32 %v5618, 0.6931472
    %v5620 = vlog2.pop %v5485
    %v5621 = vmul.f32 %v5620, 0.6931472
    %v5622 = vlog2.pop %v5486
    %v5623 = vmul.f32 %v5622, 0.6931472
    %v5624 = vlog2.pop %v5487
    %v5625 = vmul.f32 %v5624, 0.6931472
    %v5626 = vlog2.pop %v5488
    %v5627 = vmul.f32 %v5626, 0.6931472
    %v5628 = vlog2.pop %v5489
    %v5629 = vmul.f32 %v5628, 0.6931472
    %v5630 = vlog2.pop %v5490
    %v5631 = vmul.f32 %v5630, 0.6931472
    %v5632 = vlog2.pop %v5491
    %v5633 = vmul.f32 %v5632, 0.6931472
    %v5634 = vlog2.pop %v5492
    %v5635 = vmul.f32 %v5634, 0.6931472
    %v5636 = vlog2.pop %v5493
    %v5637 = vmul.f32 %v5636, 0.6931472
    %v5638 = vlog2.pop %v5494
    %v5639 = vmul.f32 %v5638, 0.6931472
    %v5640 = vlog2.pop %v5495
    %v5641 = vmul.f32 %v5640, 0.6931472
    %v5642 = vlog2.pop %v5496
    %v5643 = vmul.f32 %v5642, 0.6931472
    %v5644 = vlog2.pop %v5497
    %v5645 = vmul.f32 %v5644, 0.6931472
    %v5646 = vlog2.pop %v5498
    %v5647 = vmul.f32 %v5646, 0.6931472
    %v5648 = vlog2.pop %v5499
    %v5649 = vmul.f32 %v5648, 0.6931472
    %v5650 = vlog2.pop %v5500
    %v5651 = vmul.f32 %v5650, 0.6931472
    %v5652 = vlog2.pop %v5501
    %v5653 = vmul.f32 %v5652, 0.6931472
    %v5654 = vlog2.pop %v5502
    %v5655 = vmul.f32 %v5654, 0.6931472
    %v5656 = vlog2.pop %v5503
    %v5657 = vmul.f32 %v5656, 0.6931472
    %v5658 = vlog2.pop %v5504
    %v5659 = vmul.f32 %v5658, 0.6931472
    %v5660 = vlog2.pop %v5505
    %v5661 = vmul.f32 %v5660, 0.6931472
    %v5662 = vlog2.pop %v5506
    %v5663 = vmul.f32 %v5662, 0.6931472
    %v5664 = vlog2.pop %v5507
    %v5665 = vmul.f32 %v5664, 0.6931472
    %v5666 = vlog2.pop %v5508
    %v5667 = vmul.f32 %v5666, 0.6931472
    %v5668 = vlog2.pop %v5509
    %v5669 = vmul.f32 %v5668, 0.6931472
    %v5670 = vlog2.pop %v5510
    %v5671 = vmul.f32 %v5670, 0.6931472
    %v5672 = vlog2.pop %v5511
    %v5673 = vmul.f32 %v5672, 0.6931472
    %v5674 = vlog2.pop %v5512
    %v5675 = vmul.f32 %v5674, 0.6931472
    %v5676 = vlog2.pop %v5513
    %v5677 = vmul.f32 %v5676, 0.6931472
    %v5678 = vlog2.pop %v5514
    %v5679 = vmul.f32 %v5678, 0.6931472
    %v5680 = vlog2.pop %v5515
    %v5681 = vmul.f32 %v5680, 0.6931472
    %v5682 = vlog2.pop %v5516
    %v5683 = vmul.f32 %v5682, 0.6931472
    %v5684 = vlog2.pop %v5517
    %v5685 = vmul.f32 %v5684, 0.6931472
    %v5686 = vlog2.pop %v5518
    %v5687 = vmul.f32 %v5686, 0.6931472
    %v5688 = vlog2.pop %v5519
    %v5689 = vmul.f32 %v5688, 0.6931472
    %v5690 = vlog2.pop %v5520
    %v5691 = vmul.f32 %v5690, 0.6931472
    %v5692 = vlog2.pop %v5521
    %v5693 = vmul.f32 %v5692, 0.6931472
    %v5694 = vlog2.pop %v5522
    %v5695 = vmul.f32 %v5694, 0.6931472
    %v5696 = vlog2.pop %v5523
    %v5697 = vmul.f32 %v5696, 0.6931472
    %v5698 = vlog2.pop %v5524
    %v5699 = vmul.f32 %v5698, 0.6931472
    %v5700 = vlog2.pop %v5525
    %v5701 = vmul.f32 %v5700, 0.6931472
    %v5702 = vlog2.pop %v5526
    %v5703 = vmul.f32 %v5702, 0.6931472
    %v5704 = vlog2.pop %v5527
    %v5705 = vmul.f32 %v5704, 0.6931472
    %v5706 = vlog2.pop %v5528
    %v5707 = vmul.f32 %v5706, 0.6931472
    %v5708 = vlog2.pop %v5529
    %v5709 = vmul.f32 %v5708, 0.6931472
    %v5710 = vlog2.pop %v5530
    %v5711 = vmul.f32 %v5710, 0.6931472
    %v5712 = vlog2.pop %v5531
    %v5713 = vmul.f32 %v5712, 0.6931472
    %v5714 = vlog2.pop %v5532
    %v5715 = vmul.f32 %v5714, 0.6931472
    %v5716 = vlog2.pop %v5533
    %v5717 = vmul.f32 %v5716, 0.6931472
    %v5718 = vlog2.pop %v5534
    %v5719 = vmul.f32 %v5718, 0.6931472
    %v5720 = vlog2.pop %v5535
    %v5721 = vmul.f32 %v5720, 0.6931472
    %v5722 = vlog2.pop %v5536
    %v5723 = vmul.f32 %v5722, 0.6931472
    %v5724 = vlog2.pop %v5537
    %v5725 = vmul.f32 %v5724, 0.6931472
    %v5726 = vlog2.pop %v5538
    %v5727 = vmul.f32 %v5726, 0.6931472
    %v5728 = vlog2.pop %v5539
    %v5729 = vmul.f32 %v5728, 0.6931472
    %v5730 = vlog2.pop %v5540
    %v5731 = vmul.f32 %v5730, 0.6931472
    %v5732 = vlog2.pop %v5541
    %v5733 = vmul.f32 %v5732, 0.6931472
    %v5734 = vadd.f32 %v4774, %v5543
    %v5735 = vadd.f32 %v4775, %v5545
    %v5736 = vadd.f32 %v4776, %v5547
    %v5737 = vadd.f32 %v4777, %v5549
    %v5738 = vadd.f32 %v4778, %v5551
    %v5739 = vadd.f32 %v4779, %v5553
    %v5740 = vadd.f32 %v4780, %v5555
    %v5741 = vadd.f32 %v4781, %v5557
    %v5742 = vadd.f32 %v4782, %v5559
    %v5743 = vadd.f32 %v4783, %v5561
    %v5744 = vadd.f32 %v4784, %v5563
    %v5745 = vadd.f32 %v4785, %v5565
    %v5746 = vadd.f32 %v4786, %v5567
    %v5747 = vadd.f32 %v4787, %v5569
    %v5748 = vadd.f32 %v4788, %v5571
    %v5749 = vadd.f32 %v4789, %v5573
    %v5750 = vadd.f32 %v4790, %v5575
    %v5751 = vadd.f32 %v4791, %v5577
    %v5752 = vadd.f32 %v4792, %v5579
    %v5753 = vadd.f32 %v4793, %v5581
    %v5754 = vadd.f32 %v4794, %v5583
    %v5755 = vadd.f32 %v4795, %v5585
    %v5756 = vadd.f32 %v4796, %v5587
    %v5757 = vadd.f32 %v4797, %v5589
    %v5758 = vadd.f32 %v4798, %v5591
    %v5759 = vadd.f32 %v4799, %v5593
    %v5760 = vadd.f32 %v4800, %v5595
    %v5761 = vadd.f32 %v4801, %v5597
    %v5762 = vadd.f32 %v4802, %v5599
    %v5763 = vadd.f32 %v4803, %v5601
    %v5764 = vadd.f32 %v4804, %v5603
    %v5765 = vadd.f32 %v4805, %v5605
    %v5766 = vadd.f32 %v4806, %v5607
    %v5767 = vadd.f32 %v4807, %v5609
    %v5768 = vadd.f32 %v4808, %v5611
    %v5769 = vadd.f32 %v4809, %v5613
    %v5770 = vadd.f32 %v4810, %v5615
    %v5771 = vadd.f32 %v4811, %v5617
    %v5772 = vadd.f32 %v4812, %v5619
    %v5773 = vadd.f32 %v4813, %v5621
    %v5774 = vadd.f32 %v4814, %v5623
    %v5775 = vadd.f32 %v4815, %v5625
    %v5776 = vadd.f32 %v4816, %v5627
    %v5777 = vadd.f32 %v4817, %v5629
    %v5778 = vadd.f32 %v4818, %v5631
    %v5779 = vadd.f32 %v4819, %v5633
    %v5780 = vadd.f32 %v4820, %v5635
    %v5781 = vadd.f32 %v4821, %v5637
    %v5782 = vadd.f32 %v4822, %v5639
    %v5783 = vadd.f32 %v4823, %v5641
    %v5784 = vadd.f32 %v4824, %v5643
    %v5785 = vadd.f32 %v4825, %v5645
    %v5786 = vadd.f32 %v4826, %v5647
    %v5787 = vadd.f32 %v4827, %v5649
    %v5788 = vadd.f32 %v4828, %v5651
    %v5789 = vadd.f32 %v4829, %v5653
    %v5790 = vadd.f32 %v4830, %v5655
    %v5791 = vadd.f32 %v4831, %v5657
    %v5792 = vadd.f32 %v4832, %v5659
    %v5793 = vadd.f32 %v4833, %v5661
    %v5794 = vadd.f32 %v4834, %v5663
    %v5795 = vadd.f32 %v4835, %v5665
    %v5796 = vadd.f32 %v4836, %v5667
    %v5797 = vadd.f32 %v4837, %v5669
    %v5798 = vadd.f32 %v4838, %v5671
    %v5799 = vadd.f32 %v4839, %v5673
    %v5800 = vadd.f32 %v4840, %v5675
    %v5801 = vadd.f32 %v4841, %v5677
    %v5802 = vadd.f32 %v4842, %v5679
    %v5803 = vadd.f32 %v4843, %v5681
    %v5804 = vadd.f32 %v4844, %v5683
    %v5805 = vadd.f32 %v4845, %v5685
    %v5806 = vadd.f32 %v4846, %v5687
    %v5807 = vadd.f32 %v4847, %v5689
    %v5808 = vadd.f32 %v4848, %v5691
    %v5809 = vadd.f32 %v4849, %v5693
    %v5810 = vadd.f32 %v4850, %v5695
    %v5811 = vadd.f32 %v4851, %v5697
    %v5812 = vadd.f32 %v4852, %v5699
    %v5813 = vadd.f32 %v4853, %v5701
    %v5814 = vadd.f32 %v4854, %v5703
    %v5815 = vadd.f32 %v4855, %v5705
    %v5816 = vadd.f32 %v4856, %v5707
    %v5817 = vadd.f32 %v4857, %v5709
    %v5818 = vadd.f32 %v4858, %v5711
    %v5819 = vadd.f32 %v4859, %v5713
    %v5820 = vadd.f32 %v4860, %v5715
    %v5821 = vadd.f32 %v4861, %v5717
    %v5822 = vadd.f32 %v4862, %v5719
    %v5823 = vadd.f32 %v4863, %v5721
    %v5824 = vadd.f32 %v4864, %v5723
    %v5825 = vadd.f32 %v4865, %v5725
    %v5826 = vadd.f32 %v4866, %v5727
    %v5827 = vadd.f32 %v4867, %v5729
    %v5828 = vadd.f32 %v4868, %v5731
    %v5829 = vadd.f32 %v4869, %v5733
    %v5830 = vsub.f32 %v4288, %v5734
    %v5831 = vsub.f32 %v4289, %v5735
    %v5832 = vsub.f32 %v4290, %v5736
    %v5833 = vsub.f32 %v4291, %v5737
    %v5834 = vsub.f32 %v4292, %v5738
    %v5835 = vsub.f32 %v4293, %v5739
    %v5836 = vsub.f32 %v4294, %v5740
    %v5837 = vsub.f32 %v4295, %v5741
    %v5838 = vsub.f32 %v4296, %v5742
    %v5839 = vsub.f32 %v4297, %v5743
    %v5840 = vsub.f32 %v4298, %v5744
    %v5841 = vsub.f32 %v4299, %v5745
    %v5842 = vsub.f32 %v4300, %v5746
    %v5843 = vsub.f32 %v4301, %v5747
    %v5844 = vsub.f32 %v4302, %v5748
    %v5845 = vsub.f32 %v4303, %v5749
    %v5846 = vsub.f32 %v4304, %v5750
    %v5847 = vsub.f32 %v4305, %v5751
    %v5848 = vsub.f32 %v4306, %v5752
    %v5849 = vsub.f32 %v4307, %v5753
    %v5850 = vsub.f32 %v4308, %v5754
    %v5851 = vsub.f32 %v4309, %v5755
    %v5852 = vsub.f32 %v4310, %v5756
    %v5853 = vsub.f32 %v4311, %v5757
    %v5854 = vsub.f32 %v4312, %v5758
    %v5855 = vsub.f32 %v4313, %v5759
    %v5856 = vsub.f32 %v4314, %v5760
    %v5857 = vsub.f32 %v4315, %v5761
    %v5858 = vsub.f32 %v4316, %v5762
    %v5859 = vsub.f32 %v4317, %v5763
    %v5860 = vsub.f32 %v4318, %v5764
    %v5861 = vsub.f32 %v4319, %v5765
    %v5862 = vsub.f32 %v4320, %v5766
    %v5863 = vsub.f32 %v4321, %v5767
    %v5864 = vsub.f32 %v4322, %v5768
    %v5865 = vsub.f32 %v4323, %v5769
    %v5866 = vsub.f32 %v4324, %v5770
    %v5867 = vsub.f32 %v4325, %v5771
    %v5868 = vsub.f32 %v4326, %v5772
    %v5869 = vsub.f32 %v4327, %v5773
    %v5870 = vsub.f32 %v4328, %v5774
    %v5871 = vsub.f32 %v4329, %v5775
    %v5872 = vsub.f32 %v4330, %v5776
    %v5873 = vsub.f32 %v4331, %v5777
    %v5874 = vsub.f32 %v4332, %v5778
    %v5875 = vsub.f32 %v4333, %v5779
    %v5876 = vsub.f32 %v4334, %v5780
    %v5877 = vsub.f32 %v4335, %v5781
    %v5878 = vsub.f32 %v4336, %v5782
    %v5879 = vsub.f32 %v4337, %v5783
    %v5880 = vsub.f32 %v4338, %v5784
    %v5881 = vsub.f32 %v4339, %v5785
    %v5882 = vsub.f32 %v4340, %v5786
    %v5883 = vsub.f32 %v4341, %v5787
    %v5884 = vsub.f32 %v4342, %v5788
    %v5885 = vsub.f32 %v4343, %v5789
    %v5886 = vsub.f32 %v4344, %v5790
    %v5887 = vsub.f32 %v4345, %v5791
    %v5888 = vsub.f32 %v4346, %v5792
    %v5889 = vsub.f32 %v4347, %v5793
    %v5890 = vsub.f32 %v4348, %v5794
    %v5891 = vsub.f32 %v4349, %v5795
    %v5892 = vsub.f32 %v4350, %v5796
    %v5893 = vsub.f32 %v4351, %v5797
    %v5894 = vsub.f32 %v4352, %v5798
    %v5895 = vsub.f32 %v4353, %v5799
    %v5896 = vsub.f32 %v4354, %v5800
    %v5897 = vsub.f32 %v4355, %v5801
    %v5898 = vsub.f32 %v4356, %v5802
    %v5899 = vsub.f32 %v4357, %v5803
    %v5900 = vsub.f32 %v4358, %v5804
    %v5901 = vsub.f32 %v4359, %v5805
    %v5902 = vsub.f32 %v4360, %v5806
    %v5903 = vsub.f32 %v4361, %v5807
    %v5904 = vsub.f32 %v4362, %v5808
    %v5905 = vsub.f32 %v4363, %v5809
    %v5906 = vsub.f32 %v4364, %v5810
    %v5907 = vsub.f32 %v4365, %v5811
    %v5908 = vsub.f32 %v4366, %v5812
    %v5909 = vsub.f32 %v4367, %v5813
    %v5910 = vsub.f32 %v4368, %v5814
    %v5911 = vsub.f32 %v4369, %v5815
    %v5912 = vsub.f32 %v4370, %v5816
    %v5913 = vsub.f32 %v4371, %v5817
    %v5914 = vsub.f32 %v4372, %v5818
    %v5915 = vsub.f32 %v4373, %v5819
    %v5916 = vsub.f32 %v4374, %v5820
    %v5917 = vsub.f32 %v4375, %v5821
    %v5918 = vsub.f32 %v4376, %v5822
    %v5919 = vsub.f32 %v4377, %v5823
    %v5920 = vsub.f32 %v4378, %v5824
    %v5921 = vsub.f32 %v4379, %v5825
    %v5922 = vsub.f32 %v4380, %v5826
    %v5923 = vsub.f32 %v4381, %v5827
    %v5924 = vsub.f32 %v4382, %v5828
    %v5925 = vsub.f32 %v4383, %v5829
    %5926 = vst.msk [vmem:[%s7] sm:$0xff] %vm1689, %v5830
    %5927 = vst.msk [vmem:[%s7 + $0x8] sm:$0xff] %vm1689, %v5831
    %5928 = vst.msk [vmem:[%s7 + $0x10] sm:$0xff] %vm1689, %v5832
    %5929 = vst.msk [vmem:[%s7 + $0x18] sm:$0xff] %vm1689, %v5833
    %5930 = vst.msk [vmem:[%s7 + $0x20] sm:$0xff] %vm1689, %v5834
    %5931 = vst.msk [vmem:[%s7 + $0x28] sm:$0xff] %vm1689, %v5835
    %5932 = vst.msk [vmem:[%s7 + $0x30] sm:$0xff] %vm1689, %v5836
    %5933 = vst.msk [vmem:[%s7 + $0x38] sm:$0xff] %vm1689, %v5837
    %5934 = vst.msk [vmem:[%s7 + $0x40] sm:$0xff] %vm1689, %v5838
    %5935 = vst.msk [vmem:[%s7 + $0x48] sm:$0xff] %vm1689, %v5839
    %5936 = vst.msk [vmem:[%s7 + $0x50] sm:$0xff] %vm1689, %v5840
    %5937 = vst.msk [vmem:[%s7 + $0x58] sm:$0xff] %vm1689, %v5841
    %5938 = vst.msk [vmem:[%s7 + $0x60] sm:$0xff] %vm1689, %v5842
    %5939 = vst.msk [vmem:[%s7 + $0x68] sm:$0xff] %vm1689, %v5843
    %5940 = vst.msk [vmem:[%s7 + $0x70] sm:$0xff] %vm1689, %v5844
    %5941 = vst.msk [vmem:[%s7 + $0x78] sm:$0xff] %vm1689, %v5845
    %5942 = vst.msk [vmem:[%s7 + $0x80] sm:$0xff] %vm1689, %v5846
    %5943 = vst.msk [vmem:[%s7 + $0x88] sm:$0xff] %vm1689, %v5847
    %5944 = vst.msk [vmem:[%s7 + $0x90] sm:$0xff] %vm1689, %v5848
    %5945 = vst.msk [vmem:[%s7 + $0x98] sm:$0xff] %vm1689, %v5849
    %5946 = vst.msk [vmem:[%s7 + $0xa0] sm:$0xff] %vm1689, %v5850
    %5947 = vst.msk [vmem:[%s7 + $0xa8] sm:$0xff] %vm1689, %v5851
    %5948 = vst.msk [vmem:[%s7 + $0xb0] sm:$0xff] %vm1689, %v5852
    %5949 = vst.msk [vmem:[%s7 + $0xb8] sm:$0xff] %vm1689, %v5853
    %5950 = vst.msk [vmem:[%s7 + $0xc0] sm:$0xff] %vm1689, %v5854
    %5951 = vst.msk [vmem:[%s7 + $0xc8] sm:$0xff] %vm1689, %v5855
    %5952 = vst.msk [vmem:[%s7 + $0xd0] sm:$0xff] %vm1689, %v5856
    %5953 = vst.msk [vmem:[%s7 + $0xd8] sm:$0xff] %vm1689, %v5857
    %5954 = vst.msk [vmem:[%s7 + $0xe0] sm:$0xff] %vm1689, %v5858
    %5955 = vst.msk [vmem:[%s7 + $0xe8] sm:$0xff] %vm1689, %v5859
    %5956 = vst.msk [vmem:[%s7 + $0xf0] sm:$0xff] %vm1689, %v5860
    %5957 = vst.msk [vmem:[%s7 + $0xf8] sm:$0xff] %vm1689, %v5861
    %5958 = vst.msk [vmem:[%s7 + $0x100] sm:$0xff] %vm1689, %v5862
    %5959 = vst.msk [vmem:[%s7 + $0x108] sm:$0xff] %vm1689, %v5863
    %5960 = vst.msk [vmem:[%s7 + $0x110] sm:$0xff] %vm1689, %v5864
    %5961 = vst.msk [vmem:[%s7 + $0x118] sm:$0xff] %vm1689, %v5865
    %5962 = vst.msk [vmem:[%s7 + $0x120] sm:$0xff] %vm1689, %v5866
    %5963 = vst.msk [vmem:[%s7 + $0x128] sm:$0xff] %vm1689, %v5867
    %5964 = vst.msk [vmem:[%s7 + $0x130] sm:$0xff] %vm1689, %v5868
    %5965 = vst.msk [vmem:[%s7 + $0x138] sm:$0xff] %vm1689, %v5869
    %5966 = vst.msk [vmem:[%s7 + $0x140] sm:$0xff] %vm1689, %v5870
    %5967 = vst.msk [vmem:[%s7 + $0x148] sm:$0xff] %vm1689, %v5871
    %5968 = vst.msk [vmem:[%s7 + $0x150] sm:$0xff] %vm1689, %v5872
    %5969 = vst.msk [vmem:[%s7 + $0x158] sm:$0xff] %vm1689, %v5873
    %5970 = vst.msk [vmem:[%s7 + $0x160] sm:$0xff] %vm1689, %v5874
    %5971 = vst.msk [vmem:[%s7 + $0x168] sm:$0xff] %vm1689, %v5875
    %5972 = vst.msk [vmem:[%s7 + $0x170] sm:$0xff] %vm1689, %v5876
    %5973 = vst.msk [vmem:[%s7 + $0x178] sm:$0xff] %vm1689, %v5877
    %5974 = vst.msk [vmem:[%s7 + $0x180] sm:$0xff] %vm1689, %v5878
    %5975 = vst.msk [vmem:[%s7 + $0x188] sm:$0xff] %vm1689, %v5879
    %5976 = vst.msk [vmem:[%s7 + $0x190] sm:$0xff] %vm1689, %v5880
    %5977 = vst.msk [vmem:[%s7 + $0x198] sm:$0xff] %vm1689, %v5881
    %5978 = vst.msk [vmem:[%s7 + $0x1a0] sm:$0xff] %vm1689, %v5882
    %5979 = vst.msk [vmem:[%s7 + $0x1a8] sm:$0xff] %vm1689, %v5883
    %5980 = vst.msk [vmem:[%s7 + $0x1b0] sm:$0xff] %vm1689, %v5884
    %5981 = vst.msk [vmem:[%s7 + $0x1b8] sm:$0xff] %vm1689, %v5885
    %5982 = vst.msk [vmem:[%s7 + $0x1c0] sm:$0xff] %vm1689, %v5886
    %5983 = vst.msk [vmem:[%s7 + $0x1c8] sm:$0xff] %vm1689, %v5887
    %5984 = vst.msk [vmem:[%s7 + $0x1d0] sm:$0xff] %vm1689, %v5888
    %5985 = vst.msk [vmem:[%s7 + $0x1d8] sm:$0xff] %vm1689, %v5889
    %5986 = vst.msk [vmem:[%s7 + $0x1e0] sm:$0xff] %vm1689, %v5890
    %5987 = vst.msk [vmem:[%s7 + $0x1e8] sm:$0xff] %vm1689, %v5891
    %5988 = vst.msk [vmem:[%s7 + $0x1f0] sm:$0xff] %vm1689, %v5892
    %5989 = vst.msk [vmem:[%s7 + $0x1f8] sm:$0xff] %vm1689, %v5893
    %5990 = vst.msk [vmem:[%s7 + $0x200] sm:$0xff] %vm1689, %v5894
    %5991 = vst.msk [vmem:[%s7 + $0x208] sm:$0xff] %vm1689, %v5895
    %5992 = vst.msk [vmem:[%s7 + $0x210] sm:$0xff] %vm1689, %v5896
    %5993 = vst.msk [vmem:[%s7 + $0x218] sm:$0xff] %vm1689, %v5897
    %5994 = vst.msk [vmem:[%s7 + $0x220] sm:$0xff] %vm1689, %v5898
    %5995 = vst.msk [vmem:[%s7 + $0x228] sm:$0xff] %vm1689, %v5899
    %5996 = vst.msk [vmem:[%s7 + $0x230] sm:$0xff] %vm1689, %v5900
    %5997 = vst.msk [vmem:[%s7 + $0x238] sm:$0xff] %vm1689, %v5901
    %5998 = vst.msk [vmem:[%s7 + $0x240] sm:$0xff] %vm1689, %v5902
    %5999 = vst.msk [vmem:[%s7 + $0x248] sm:$0xff] %vm1689, %v5903
    %6000 = vst.msk [vmem:[%s7 + $0x250] sm:$0xff] %vm1689, %v5904
    %6001 = vst.msk [vmem:[%s7 + $0x258] sm:$0xff] %vm1689, %v5905
    %6002 = vst.msk [vmem:[%s7 + $0x260] sm:$0xff] %vm1689, %v5906
    %6003 = vst.msk [vmem:[%s7 + $0x268] sm:$0xff] %vm1689, %v5907
    %6004 = vst.msk [vmem:[%s7 + $0x270] sm:$0xff] %vm1689, %v5908
    %6005 = vst.msk [vmem:[%s7 + $0x278] sm:$0xff] %vm1689, %v5909
    %6006 = vst.msk [vmem:[%s7 + $0x280] sm:$0xff] %vm1689, %v5910
    %6007 = vst.msk [vmem:[%s7 + $0x288] sm:$0xff] %vm1689, %v5911
    %6008 = vst.msk [vmem:[%s7 + $0x290] sm:$0xff] %vm1689, %v5912
    %6009 = vst.msk [vmem:[%s7 + $0x298] sm:$0xff] %vm1689, %v5913
    %6010 = vst.msk [vmem:[%s7 + $0x2a0] sm:$0xff] %vm1689, %v5914
    %6011 = vst.msk [vmem:[%s7 + $0x2a8] sm:$0xff] %vm1689, %v5915
    %6012 = vst.msk [vmem:[%s7 + $0x2b0] sm:$0xff] %vm1689, %v5916
    %6013 = vst.msk [vmem:[%s7 + $0x2b8] sm:$0xff] %vm1689, %v5917
    %6014 = vst.msk [vmem:[%s7 + $0x2c0] sm:$0xff] %vm1689, %v5918
    %6015 = vst.msk [vmem:[%s7 + $0x2c8] sm:$0xff] %vm1689, %v5919
    %6016 = vst.msk [vmem:[%s7 + $0x2d0] sm:$0xff] %vm1689, %v5920
    %6017 = vst.msk [vmem:[%s7 + $0x2d8] sm:$0xff] %vm1689, %v5921
    %6018 = vst.msk [vmem:[%s7 + $0x2e0] sm:$0xff] %vm1689, %v5922
    %6019 = vst.msk [vmem:[%s7 + $0x2e8] sm:$0xff] %vm1689, %v5923
    %6020 = vst.msk [vmem:[%s7 + $0x2f0] sm:$0xff] %vm1689, %v5924
    %6021 = vst.msk [vmem:[%s7 + $0x2f8] sm:$0xff] %vm1689, %v5925
    %v6022 = vsub.f32 %v4678, %v5734
    %v6023 = vsub.f32 %v4679, %v5735
    %v6024 = vsub.f32 %v4680, %v5736
    %v6025 = vsub.f32 %v4681, %v5737
    %v6026 = vsub.f32 %v4682, %v5738
    %v6027 = vsub.f32 %v4683, %v5739
    %v6028 = vsub.f32 %v4684, %v5740
    %v6029 = vsub.f32 %v4685, %v5741
    %v6030 = vsub.f32 %v4686, %v5742
    %v6031 = vsub.f32 %v4687, %v5743
    %v6032 = vsub.f32 %v4688, %v5744
    %v6033 = vsub.f32 %v4689, %v5745
    %v6034 = vsub.f32 %v4690, %v5746
    %v6035 = vsub.f32 %v4691, %v5747
    %v6036 = vsub.f32 %v4692, %v5748
    %v6037 = vsub.f32 %v4693, %v5749
    %v6038 = vsub.f32 %v4694, %v5750
    %v6039 = vsub.f32 %v4695, %v5751
    %v6040 = vsub.f32 %v4696, %v5752
    %v6041 = vsub.f32 %v4697, %v5753
    %v6042 = vsub.f32 %v4698, %v5754
    %v6043 = vsub.f32 %v4699, %v5755
    %v6044 = vsub.f32 %v4700, %v5756
    %v6045 = vsub.f32 %v4701, %v5757
    %v6046 = vsub.f32 %v4702, %v5758
    %v6047 = vsub.f32 %v4703, %v5759
    %v6048 = vsub.f32 %v4704, %v5760
    %v6049 = vsub.f32 %v4705, %v5761
    %v6050 = vsub.f32 %v4706, %v5762
    %v6051 = vsub.f32 %v4707, %v5763
    %v6052 = vsub.f32 %v4708, %v5764
    %v6053 = vsub.f32 %v4709, %v5765
    %v6054 = vsub.f32 %v4710, %v5766
    %v6055 = vsub.f32 %v4711, %v5767
    %v6056 = vsub.f32 %v4712, %v5768
    %v6057 = vsub.f32 %v4713, %v5769
    %v6058 = vsub.f32 %v4714, %v5770
    %v6059 = vsub.f32 %v4715, %v5771
    %v6060 = vsub.f32 %v4716, %v5772
    %v6061 = vsub.f32 %v4717, %v5773
    %v6062 = vsub.f32 %v4718, %v5774
    %v6063 = vsub.f32 %v4719, %v5775
    %v6064 = vsub.f32 %v4720, %v5776
    %v6065 = vsub.f32 %v4721, %v5777
    %v6066 = vsub.f32 %v4722, %v5778
    %v6067 = vsub.f32 %v4723, %v5779
    %v6068 = vsub.f32 %v4724, %v5780
    %v6069 = vsub.f32 %v4725, %v5781
    %v6070 = vsub.f32 %v4726, %v5782
    %v6071 = vsub.f32 %v4727, %v5783
    %v6072 = vsub.f32 %v4728, %v5784
    %v6073 = vsub.f32 %v4729, %v5785
    %v6074 = vsub.f32 %v4730, %v5786
    %v6075 = vsub.f32 %v4731, %v5787
    %v6076 = vsub.f32 %v4732, %v5788
    %v6077 = vsub.f32 %v4733, %v5789
    %v6078 = vsub.f32 %v4734, %v5790
    %v6079 = vsub.f32 %v4735, %v5791
    %v6080 = vsub.f32 %v4736, %v5792
    %v6081 = vsub.f32 %v4737, %v5793
    %v6082 = vsub.f32 %v4738, %v5794
    %v6083 = vsub.f32 %v4739, %v5795
    %v6084 = vsub.f32 %v4740, %v5796
    %v6085 = vsub.f32 %v4741, %v5797
    %v6086 = vsub.f32 %v4742, %v5798
    %v6087 = vsub.f32 %v4743, %v5799
    %v6088 = vsub.f32 %v4744, %v5800
    %v6089 = vsub.f32 %v4745, %v5801
    %v6090 = vsub.f32 %v4746, %v5802
    %v6091 = vsub.f32 %v4747, %v5803
    %v6092 = vsub.f32 %v4748, %v5804
    %v6093 = vsub.f32 %v4749, %v5805
    %v6094 = vsub.f32 %v4750, %v5806
    %v6095 = vsub.f32 %v4751, %v5807
    %v6096 = vsub.f32 %v4752, %v5808
    %v6097 = vsub.f32 %v4753, %v5809
    %v6098 = vsub.f32 %v4754, %v5810
    %v6099 = vsub.f32 %v4755, %v5811
    %v6100 = vsub.f32 %v4756, %v5812
    %v6101 = vsub.f32 %v4757, %v5813
    %v6102 = vsub.f32 %v4758, %v5814
    %v6103 = vsub.f32 %v4759, %v5815
    %v6104 = vsub.f32 %v4760, %v5816
    %v6105 = vsub.f32 %v4761, %v5817
    %v6106 = vsub.f32 %v4762, %v5818
    %v6107 = vsub.f32 %v4763, %v5819
    %v6108 = vsub.f32 %v4764, %v5820
    %v6109 = vsub.f32 %v4765, %v5821
    %v6110 = vsub.f32 %v4766, %v5822
    %v6111 = vsub.f32 %v4767, %v5823
    %v6112 = vsub.f32 %v4768, %v5824
    %v6113 = vsub.f32 %v4769, %v5825
    %v6114 = vsub.f32 %v4770, %v5826
    %v6115 = vsub.f32 %v4771, %v5827
    %v6116 = vsub.f32 %v4772, %v5828
    %v6117 = vsub.f32 %v4773, %v5829
    %s6118 = scalar_lea.vmem %s7, 768
    %6119 = vst.msk [vmem:[%s6118] sm:$0xff] %vm1689, %v6022
    %6120 = vst.msk [vmem:[%s6118 + $0x8] sm:$0xff] %vm1689, %v6023
    %6121 = vst.msk [vmem:[%s6118 + $0x10] sm:$0xff] %vm1689, %v6024
    %6122 = vst.msk [vmem:[%s6118 + $0x18] sm:$0xff] %vm1689, %v6025
    %6123 = vst.msk [vmem:[%s6118 + $0x20] sm:$0xff] %vm1689, %v6026
    %6124 = vst.msk [vmem:[%s6118 + $0x28] sm:$0xff] %vm1689, %v6027
    %6125 = vst.msk [vmem:[%s6118 + $0x30] sm:$0xff] %vm1689, %v6028
    %6126 = vst.msk [vmem:[%s6118 + $0x38] sm:$0xff] %vm1689, %v6029
    %6127 = vst.msk [vmem:[%s6118 + $0x40] sm:$0xff] %vm1689, %v6030
    %6128 = vst.msk [vmem:[%s6118 + $0x48] sm:$0xff] %vm1689, %v6031
    %6129 = vst.msk [vmem:[%s6118 + $0x50] sm:$0xff] %vm1689, %v6032
    %6130 = vst.msk [vmem:[%s6118 + $0x58] sm:$0xff] %vm1689, %v6033
    %6131 = vst.msk [vmem:[%s6118 + $0x60] sm:$0xff] %vm1689, %v6034
    %6132 = vst.msk [vmem:[%s6118 + $0x68] sm:$0xff] %vm1689, %v6035
    %6133 = vst.msk [vmem:[%s6118 + $0x70] sm:$0xff] %vm1689, %v6036
    %6134 = vst.msk [vmem:[%s6118 + $0x78] sm:$0xff] %vm1689, %v6037
    %6135 = vst.msk [vmem:[%s6118 + $0x80] sm:$0xff] %vm1689, %v6038
    %6136 = vst.msk [vmem:[%s6118 + $0x88] sm:$0xff] %vm1689, %v6039
    %6137 = vst.msk [vmem:[%s6118 + $0x90] sm:$0xff] %vm1689, %v6040
    %6138 = vst.msk [vmem:[%s6118 + $0x98] sm:$0xff] %vm1689, %v6041
    %6139 = vst.msk [vmem:[%s6118 + $0xa0] sm:$0xff] %vm1689, %v6042
    %6140 = vst.msk [vmem:[%s6118 + $0xa8] sm:$0xff] %vm1689, %v6043
    %6141 = vst.msk [vmem:[%s6118 + $0xb0] sm:$0xff] %vm1689, %v6044
    %6142 = vst.msk [vmem:[%s6118 + $0xb8] sm:$0xff] %vm1689, %v6045
    %6143 = vst.msk [vmem:[%s6118 + $0xc0] sm:$0xff] %vm1689, %v6046
    %6144 = vst.msk [vmem:[%s6118 + $0xc8] sm:$0xff] %vm1689, %v6047
    %6145 = vst.msk [vmem:[%s6118 + $0xd0] sm:$0xff] %vm1689, %v6048
    %6146 = vst.msk [vmem:[%s6118 + $0xd8] sm:$0xff] %vm1689, %v6049
    %6147 = vst.msk [vmem:[%s6118 + $0xe0] sm:$0xff] %vm1689, %v6050
    %6148 = vst.msk [vmem:[%s6118 + $0xe8] sm:$0xff] %vm1689, %v6051
    %6149 = vst.msk [vmem:[%s6118 + $0xf0] sm:$0xff] %vm1689, %v6052
    %6150 = vst.msk [vmem:[%s6118 + $0xf8] sm:$0xff] %vm1689, %v6053
    %6151 = vst.msk [vmem:[%s6118 + $0x100] sm:$0xff] %vm1689, %v6054
    %6152 = vst.msk [vmem:[%s6118 + $0x108] sm:$0xff] %vm1689, %v6055
    %6153 = vst.msk [vmem:[%s6118 + $0x110] sm:$0xff] %vm1689, %v6056
    %6154 = vst.msk [vmem:[%s6118 + $0x118] sm:$0xff] %vm1689, %v6057
    %6155 = vst.msk [vmem:[%s6118 + $0x120] sm:$0xff] %vm1689, %v6058
    %6156 = vst.msk [vmem:[%s6118 + $0x128] sm:$0xff] %vm1689, %v6059
    %6157 = vst.msk [vmem:[%s6118 + $0x130] sm:$0xff] %vm1689, %v6060
    %6158 = vst.msk [vmem:[%s6118 + $0x138] sm:$0xff] %vm1689, %v6061
    %6159 = vst.msk [vmem:[%s6118 + $0x140] sm:$0xff] %vm1689, %v6062
    %6160 = vst.msk [vmem:[%s6118 + $0x148] sm:$0xff] %vm1689, %v6063
    %6161 = vst.msk [vmem:[%s6118 + $0x150] sm:$0xff] %vm1689, %v6064
    %6162 = vst.msk [vmem:[%s6118 + $0x158] sm:$0xff] %vm1689, %v6065
    %6163 = vst.msk [vmem:[%s6118 + $0x160] sm:$0xff] %vm1689, %v6066
    %6164 = vst.msk [vmem:[%s6118 + $0x168] sm:$0xff] %vm1689, %v6067
    %6165 = vst.msk [vmem:[%s6118 + $0x170] sm:$0xff] %vm1689, %v6068
    %6166 = vst.msk [vmem:[%s6118 + $0x178] sm:$0xff] %vm1689, %v6069
    %6167 = vst.msk [vmem:[%s6118 + $0x180] sm:$0xff] %vm1689, %v6070
    %6168 = vst.msk [vmem:[%s6118 + $0x188] sm:$0xff] %vm1689, %v6071
    %6169 = vst.msk [vmem:[%s6118 + $0x190] sm:$0xff] %vm1689, %v6072
    %6170 = vst.msk [vmem:[%s6118 + $0x198] sm:$0xff] %vm1689, %v6073
    %6171 = vst.msk [vmem:[%s6118 + $0x1a0] sm:$0xff] %vm1689, %v6074
    %6172 = vst.msk [vmem:[%s6118 + $0x1a8] sm:$0xff] %vm1689, %v6075
    %6173 = vst.msk [vmem:[%s6118 + $0x1b0] sm:$0xff] %vm1689, %v6076
    %6174 = vst.msk [vmem:[%s6118 + $0x1b8] sm:$0xff] %vm1689, %v6077
    %6175 = vst.msk [vmem:[%s6118 + $0x1c0] sm:$0xff] %vm1689, %v6078
    %6176 = vst.msk [vmem:[%s6118 + $0x1c8] sm:$0xff] %vm1689, %v6079
    %6177 = vst.msk [vmem:[%s6118 + $0x1d0] sm:$0xff] %vm1689, %v6080
    %6178 = vst.msk [vmem:[%s6118 + $0x1d8] sm:$0xff] %vm1689, %v6081
    %6179 = vst.msk [vmem:[%s6118 + $0x1e0] sm:$0xff] %vm1689, %v6082
    %6180 = vst.msk [vmem:[%s6118 + $0x1e8] sm:$0xff] %vm1689, %v6083
    %6181 = vst.msk [vmem:[%s6118 + $0x1f0] sm:$0xff] %vm1689, %v6084
    %6182 = vst.msk [vmem:[%s6118 + $0x1f8] sm:$0xff] %vm1689, %v6085
    %6183 = vst.msk [vmem:[%s6118 + $0x200] sm:$0xff] %vm1689, %v6086
    %6184 = vst.msk [vmem:[%s6118 + $0x208] sm:$0xff] %vm1689, %v6087
    %6185 = vst.msk [vmem:[%s6118 + $0x210] sm:$0xff] %vm1689, %v6088
    %6186 = vst.msk [vmem:[%s6118 + $0x218] sm:$0xff] %vm1689, %v6089
    %6187 = vst.msk [vmem:[%s6118 + $0x220] sm:$0xff] %vm1689, %v6090
    %6188 = vst.msk [vmem:[%s6118 + $0x228] sm:$0xff] %vm1689, %v6091
    %6189 = vst.msk [vmem:[%s6118 + $0x230] sm:$0xff] %vm1689, %v6092
    %6190 = vst.msk [vmem:[%s6118 + $0x238] sm:$0xff] %vm1689, %v6093
    %6191 = vst.msk [vmem:[%s6118 + $0x240] sm:$0xff] %vm1689, %v6094
    %6192 = vst.msk [vmem:[%s6118 + $0x248] sm:$0xff] %vm1689, %v6095
    %6193 = vst.msk [vmem:[%s6118 + $0x250] sm:$0xff] %vm1689, %v6096
    %6194 = vst.msk [vmem:[%s6118 + $0x258] sm:$0xff] %vm1689, %v6097
    %6195 = vst.msk [vmem:[%s6118 + $0x260] sm:$0xff] %vm1689, %v6098
    %6196 = vst.msk [vmem:[%s6118 + $0x268] sm:$0xff] %vm1689, %v6099
    %6197 = vst.msk [vmem:[%s6118 + $0x270] sm:$0xff] %vm1689, %v6100
    %6198 = vst.msk [vmem:[%s6118 + $0x278] sm:$0xff] %vm1689, %v6101
    %6199 = vst.msk [vmem:[%s6118 + $0x280] sm:$0xff] %vm1689, %v6102
    %6200 = vst.msk [vmem:[%s6118 + $0x288] sm:$0xff] %vm1689, %v6103
    %6201 = vst.msk [vmem:[%s6118 + $0x290] sm:$0xff] %vm1689, %v6104
    %6202 = vst.msk [vmem:[%s6118 + $0x298] sm:$0xff] %vm1689, %v6105
    %6203 = vst.msk [vmem:[%s6118 + $0x2a0] sm:$0xff] %vm1689, %v6106
    %6204 = vst.msk [vmem:[%s6118 + $0x2a8] sm:$0xff] %vm1689, %v6107
    %6205 = vst.msk [vmem:[%s6118 + $0x2b0] sm:$0xff] %vm1689, %v6108
    %6206 = vst.msk [vmem:[%s6118 + $0x2b8] sm:$0xff] %vm1689, %v6109
    %6207 = vst.msk [vmem:[%s6118 + $0x2c0] sm:$0xff] %vm1689, %v6110
    %6208 = vst.msk [vmem:[%s6118 + $0x2c8] sm:$0xff] %vm1689, %v6111
    %6209 = vst.msk [vmem:[%s6118 + $0x2d0] sm:$0xff] %vm1689, %v6112
    %6210 = vst.msk [vmem:[%s6118 + $0x2d8] sm:$0xff] %vm1689, %v6113
    %6211 = vst.msk [vmem:[%s6118 + $0x2e0] sm:$0xff] %vm1689, %v6114
    %6212 = vst.msk [vmem:[%s6118 + $0x2e8] sm:$0xff] %vm1689, %v6115
    %6213 = vst.msk [vmem:[%s6118 + $0x2f0] sm:$0xff] %vm1689, %v6116
    %6214 = vst.msk [vmem:[%s6118 + $0x2f8] sm:$0xff] %vm1689, %v6117
    // Predicated region
    $region38: #{neural_network_forward.4} parent=1 // pred_check
      _
    $region39: #{neural_network_forward.4} parent=1 // pred_check_branch
      %6216 = sbr.rel (0) target = $region41
    $region40: #{neural_network_forward.4} parent=1 // pred_region
      _
    $region41: #{neural_network_forward.4} parent=1 // pred_fallthru
      _
    // Predicated region
    $region42: #{neural_network_forward.4} parent=1 // pred_check
      _
    $region43: #{neural_network_forward.4} parent=1 // pred_check_branch
      %6218 = sbr.rel (0) target = $region45
    $region44: #{neural_network_forward.4} parent=1 // pred_region
      _
    $region45: #{neural_network_forward.4} parent=1 // pred_fallthru
      _
    %6219 = vsyncpa [#allocation3], 1
    %6220 = vsyncpa [#allocation5], 1

// kernel: neural_network_forward.5
$region0: #{neural_network_forward.5}
  #allocation0 [shape = 'u32[]', space=smem, size = 0x4, offset = 0x4, fixed_abs, tag = 'smem constant byte address 0x4 - core index']
  #allocation1 [shape = 'u32[144,128]{1,0:T(1,128)}', space=vmem, size = 0x12000, scoped, tag = 'internal scratch']
  %s0 = inlined_call_operand.vmem [shape: f32[128,48], index: 0, kind: input, shape index: {}]
  %s1 = inlined_call_operand.vmem [shape: f32[48,4], index: 1, kind: input, shape index: {}]
  %s2 = inlined_call_operand.vmem [shape: f32[1,4], index: 2, kind: input, shape index: {}]
  %s3 = inlined_call_operand.vmem [shape: f32[4,128,43], index: 3, kind: input, shape index: {}]
  %s4 = inlined_call_operand.vmem [shape: f32[1,43], index: 4, kind: input, shape index: {}]
  %s5 = inlined_call_operand.hbm [shape: f32[1,43], index: 5, kind: output, shape index: {}]
  %s6 = sld [smem:[#allocation0]]
  $region30: #{neural_network_forward.5} parent=0
    _
  %s8 = ssub.s32 1, %s6
  %s9 = scalar_select 0, %s8, %s6
  $region1: #{neural_network_forward.5} parent=0
    #allocation2 [shape = 'u8[512]{0}', space=vmem, size = 0x400, scoped, tag = 'output window, operand 0, single buffered']
    #allocation3 [shape = 's32[1]{0}', space=sflag, size = 0x4, scoped, tag = 'scoped memory for neural_network_forward.5']
    %10 = vsyncpa [#allocation3], 0
    // Predicated region
    $region2: #{neural_network_forward.5} parent=1 // pred_check
      _
    $region3: #{neural_network_forward.5} parent=1 // pred_check_branch
      %12 = sbr.rel (0) target = $region5
    $region4: #{neural_network_forward.5} parent=1 // pred_region
      _
    $region5: #{neural_network_forward.5} parent=1 // pred_fallthru
      _
    // Predicated region
    $region6: #{neural_network_forward.5} parent=1 // pred_check
      _
    $region7: #{neural_network_forward.5} parent=1 // pred_check_branch
      %14 = sbr.rel (0) target = $region9
    $region8: #{neural_network_forward.5} parent=1 // pred_region
      _
    $region9: #{neural_network_forward.5} parent=1 // pred_fallthru
      _
    // Predicated region
    $region10: #{neural_network_forward.5} parent=1 // pred_check
      _
    $region11: #{neural_network_forward.5} parent=1 // pred_check_branch
      %16 = sbr.rel (0) target = $region13
    $region12: #{neural_network_forward.5} parent=1 // pred_region
      _
    $region13: #{neural_network_forward.5} parent=1 // pred_fallthru
      _
    // Predicated region
    $region14: #{neural_network_forward.5} parent=1 // pred_check
      _
    $region15: #{neural_network_forward.5} parent=1 // pred_check_branch
      %18 = sbr.rel (0) target = $region17
    $region16: #{neural_network_forward.5} parent=1 // pred_region
      _
    $region17: #{neural_network_forward.5} parent=1 // pred_fallthru
      _
    // Predicated region
    $region18: #{neural_network_forward.5} parent=1 // pred_check
      _
    $region19: #{neural_network_forward.5} parent=1 // pred_check_branch
      %20 = sbr.rel (0) target = $region21
    $region20: #{neural_network_forward.5} parent=1 // pred_region
      _
    $region21: #{neural_network_forward.5} parent=1 // pred_fallthru
      _
    %v21 = vld [vmem:[%s0] sm:$0xff]
    %v22 = vld [vmem:[%s0 + $0x8] sm:$0xff]
    %v23 = vld [vmem:[%s0 + $0x10] sm:$0xff]
    %v24 = vld [vmem:[%s0 + $0x18] sm:$0xff]
    %v25 = vld [vmem:[%s0 + $0x20] sm:$0xff]
    %v26 = vld [vmem:[%s0 + $0x28] sm:$0xff]
    %v27 = vld [vmem:[%s0 + $0x30] sm:$0xff]
    %v28 = vld [vmem:[%s0 + $0x38] sm:$0xff]
    %v29 = vld [vmem:[%s0 + $0x40] sm:$0xff]
    %v30 = vld [vmem:[%s0 + $0x48] sm:$0xff]
    %v31 = vld [vmem:[%s0 + $0x50] sm:$0xff]
    %v32 = vld [vmem:[%s0 + $0x58] sm:$0xff]
    %v33 = vld [vmem:[%s0 + $0x60] sm:$0xff]
    %v34 = vld [vmem:[%s0 + $0x68] sm:$0xff]
    %v35 = vld [vmem:[%s0 + $0x70] sm:$0xff]
    %v36 = vld [vmem:[%s0 + $0x78] sm:$0xff]
    %v37 = vld [vmem:[%s1] sm:$0xff]
    %v38 = vld [vmem:[%s1 + $0x8] sm:$0xff]
    %v39 = vld [vmem:[%s1 + $0x10] sm:$0xff]
    %v40 = vld [vmem:[%s1 + $0x18] sm:$0xff]
    %v41 = vld [vmem:[%s1 + $0x20] sm:$0xff]
    %v42 = vld [vmem:[%s1 + $0x28] sm:$0xff]
    %v43 = vld [vmem:[%s2] sm:$0x1]
    %v45 = vlaneseq
    %v46 = vshrl.u32 %v45, 7
    %v47 = vsub.s32 0, %v46
    %v48 = vrot.slane %v43, %v47
    %vm50 = vcmask 392192
    %v52 = vsel %vm50, %v21, 0
    %v55 = vsel %vm50, %v22, 0
    %v58 = vsel %vm50, %v23, 0
    %v61 = vsel %vm50, %v24, 0
    %v64 = vsel %vm50, %v25, 0
    %v67 = vsel %vm50, %v26, 0
    %v70 = vsel %vm50, %v27, 0
    %v73 = vsel %vm50, %v28, 0
    %v76 = vsel %vm50, %v29, 0
    %v79 = vsel %vm50, %v30, 0
    %v82 = vsel %vm50, %v31, 0
    %v85 = vsel %vm50, %v32, 0
    %v88 = vsel %vm50, %v33, 0
    %v91 = vsel %vm50, %v34, 0
    %v94 = vsel %vm50, %v35, 0
    %v97 = vsel %vm50, %v36, 0
    %99 = vmatprep.subr.mxu0 0.0
    %100 = vmatpush1.msra.mxu0 %v37
    %101 = vmatprep.subr.mxu0 0.0
    %102 = vmatpush1.msra.mxu0 %v38
    %103 = vmatprep.subr.mxu0 0.0
    %104 = vmatpush1.msra.mxu0 %v39
    %105 = vmatprep.subr.mxu0 0.0
    %106 = vmatpush1.msra.mxu0 %v40
    %107 = vmatprep.subr.mxu0 0.0
    %108 = vmatpush1.msra.mxu0 %v41
    %109 = vmatprep.subr.mxu0 0.0
    %110 = vmatpush1.msra.mxu0 %v42
    %111 = vmatprep.subr.mxu0 0.0
    %112 = vmatpush1.msra.mxu0 0.0
    %113 = vmatprep.subr.mxu0 0.0
    %114 = vmatpush1.msra.mxu0 0.0
    %115 = vmatprep.subr.mxu0 0.0
    %116 = vmatpush1.msra.mxu0 0.0
    %117 = vmatprep.subr.mxu0 0.0
    %118 = vmatpush1.msra.mxu0 0.0
    %119 = vmatprep.subr.mxu0 0.0
    %120 = vmatpush1.msra.mxu0 0.0
    %121 = vmatprep.subr.mxu0 0.0
    %122 = vmatpush1.msra.mxu0 0.0
    %123 = vmatprep.subr.mxu0 0.0
    %124 = vmatpush1.msra.mxu0 0.0
    %125 = vmatprep.subr.mxu0 0.0
    %126 = vmatpush1.msra.mxu0 0.0
    %127 = vmatprep.subr.mxu0 0.0
    %128 = vmatpush1.msra.mxu0 0.0
    %129 = vmatprep.subr.mxu0 0.0
    %130 = vmatpush1.msra.mxu0 0.0
    %131 = vmatprep.subr.mxu0 0.0
    %132 = vmatpush1.msra.mxu0 0.0
    %133 = vmatprep.subr.mxu0 0.0
    %134 = vmatpush1.msra.mxu0 0.0
    %135 = vmatprep.subr.mxu0 0.0
    %136 = vmatpush1.msra.mxu0 0.0
    %137 = vmatprep.subr.mxu0 0.0
    %138 = vmatpush1.msra.mxu0 0.0
    %139 = vmatprep.subr.mxu0 0.0
    %140 = vmatpush1.msra.mxu0 0.0
    %141 = vmatprep.subr.mxu0 0.0
    %142 = vmatpush1.msra.mxu0 0.0
    %143 = vmatprep.subr.mxu0 0.0
    %144 = vmatpush1.msra.mxu0 0.0
    %145 = vmatprep.subr.mxu0 0.0
    %146 = vmatpush1.msra.mxu0 0.0
    %147 = vmatprep.subr.mxu0 0.0
    %148 = vmatpush1.msra.mxu0 0.0
    %149 = vmatprep.subr.mxu0 0.0
    %150 = vmatpush1.msra.mxu0 0.0
    %151 = vmatprep.subr.mxu0 0.0
    %152 = vmatpush1.msra.mxu0 0.0
    %153 = vmatprep.subr.mxu0 0.0
    %154 = vmatpush1.msra.mxu0 0.0
    %155 = vmatprep.subr.mxu0 0.0
    %156 = vmatpush1.msra.mxu0 0.0
    %157 = vmatprep.subr.mxu0 0.0
    %158 = vmatpush1.msra.mxu0 0.0
    %159 = vmatprep.subr.mxu0 0.0
    %160 = vmatpush1.msra.mxu0 0.0
    %161 = vmatprep.subr.mxu0 0.0
    %162 = vmatpush1.msra.mxu0 0.0
    %163 = vmatprep.mubr.f32.mxu0 0.0
    %164 = vmatmul.mubr.f32.gmra.mrb[0].mxu0 %v52
    %v165 = vpop.f32.mrb[0].mxu0
    %v166 = vadd.f32 %v48, %v165
    %v167 = vpop.f32.mrb[0].mxu0
    %168 = vmatprep.mubr.f32.mxu0 0.0
    %169 = vmatmul.mubr.f32.gmra.mrb[0].mxu0 %v55
    %v170 = vpop.f32.mrb[0].mxu0
    %v171 = vadd.f32 %v48, %v170
    %v172 = vpop.f32.mrb[0].mxu0
    %173 = vmatprep.mubr.f32.mxu0 0.0
    %174 = vmatmul.mubr.f32.gmra.mrb[0].mxu0 %v58
    %v175 = vpop.f32.mrb[0].mxu0
    %v176 = vadd.f32 %v48, %v175
    %v177 = vpop.f32.mrb[0].mxu0
    %178 = vmatprep.mubr.f32.mxu0 0.0
    %179 = vmatmul.mubr.f32.gmra.mrb[0].mxu0 %v61
    %v180 = vpop.f32.mrb[0].mxu0
    %v181 = vadd.f32 %v48, %v180
    %v182 = vpop.f32.mrb[0].mxu0
    %183 = vmatprep.mubr.f32.mxu0 0.0
    %184 = vmatmul.mubr.f32.gmra.mrb[0].mxu0 %v64
    %v185 = vpop.f32.mrb[0].mxu0
    %v186 = vadd.f32 %v48, %v185
    %v187 = vpop.f32.mrb[0].mxu0
    %188 = vmatprep.mubr.f32.mxu0 0.0
    %189 = vmatmul.mubr.f32.gmra.mrb[0].mxu0 %v67
    %v190 = vpop.f32.mrb[0].mxu0
    %v191 = vadd.f32 %v48, %v190
    %v192 = vpop.f32.mrb[0].mxu0
    %193 = vmatprep.mubr.f32.mxu0 0.0
    %194 = vmatmul.mubr.f32.gmra.mrb[0].mxu0 %v70
    %v195 = vpop.f32.mrb[0].mxu0
    %v196 = vadd.f32 %v48, %v195
    %v197 = vpop.f32.mrb[0].mxu0
    %198 = vmatprep.mubr.f32.mxu0 0.0
    %199 = vmatmul.mubr.f32.gmra.mrb[0].mxu0 %v73
    %v200 = vpop.f32.mrb[0].mxu0
    %v201 = vadd.f32 %v48, %v200
    %v202 = vpop.f32.mrb[0].mxu0
    %203 = vmatprep.mubr.f32.mxu0 0.0
    %204 = vmatmul.mubr.f32.gmra.mrb[0].mxu0 %v76
    %v205 = vpop.f32.mrb[0].mxu0
    %v206 = vadd.f32 %v48, %v205
    %v207 = vpop.f32.mrb[0].mxu0
    %208 = vmatprep.mubr.f32.mxu0 0.0
    %209 = vmatmul.mubr.f32.gmra.mrb[0].mxu0 %v79
    %v210 = vpop.f32.mrb[0].mxu0
    %v211 = vadd.f32 %v48, %v210
    %v212 = vpop.f32.mrb[0].mxu0
    %213 = vmatprep.mubr.f32.mxu0 0.0
    %214 = vmatmul.mubr.f32.gmra.mrb[0].mxu0 %v82
    %v215 = vpop.f32.mrb[0].mxu0
    %v216 = vadd.f32 %v48, %v215
    %v217 = vpop.f32.mrb[0].mxu0
    %218 = vmatprep.mubr.f32.mxu0 0.0
    %219 = vmatmul.mubr.f32.gmra.mrb[0].mxu0 %v85
    %v220 = vpop.f32.mrb[0].mxu0
    %v221 = vadd.f32 %v48, %v220
    %v222 = vpop.f32.mrb[0].mxu0
    %223 = vmatprep.mubr.f32.mxu0 0.0
    %224 = vmatmul.mubr.f32.gmra.mrb[0].mxu0 %v88
    %v225 = vpop.f32.mrb[0].mxu0
    %v226 = vadd.f32 %v48, %v225
    %v227 = vpop.f32.mrb[0].mxu0
    %228 = vmatprep.mubr.f32.mxu0 0.0
    %229 = vmatmul.mubr.f32.gmra.mrb[0].mxu0 %v91
    %v230 = vpop.f32.mrb[0].mxu0
    %v231 = vadd.f32 %v48, %v230
    %v232 = vpop.f32.mrb[0].mxu0
    %233 = vmatprep.mubr.f32.mxu0 0.0
    %234 = vmatmul.mubr.f32.gmra.mrb[0].mxu0 %v94
    %v235 = vpop.f32.mrb[0].mxu0
    %v236 = vadd.f32 %v48, %v235
    %v237 = vpop.f32.mrb[0].mxu0
    %238 = vmatprep.mubr.f32.mxu0 0.0
    %239 = vmatmul.mubr.f32.gmra.mrb[0].mxu0 %v97
    %v240 = vpop.f32.mrb[0].mxu0
    %v241 = vadd.f32 %v48, %v240
    %v242 = vpop.f32.mrb[0].mxu0
    %243 = vdwg.mxu0
    %vm244 = vcmask 31744
    %v245 = vsel %vm244, %v166, -inf
    %246 = vmax.xlane.f32.xlu0 %v245
    %v247 = vpop.xlane.xlu0 %246
    %v248 = vsel %vm244, %v171, -inf
    %249 = vmax.xlane.f32.xlu0 %v248
    %v250 = vpop.xlane.xlu0 %249
    %v251 = vsel %vm244, %v176, -inf
    %252 = vmax.xlane.f32.xlu0 %v251
    %v253 = vpop.xlane.xlu0 %252
    %v254 = vsel %vm244, %v181, -inf
    %255 = vmax.xlane.f32.xlu0 %v254
    %v256 = vpop.xlane.xlu0 %255
    %v257 = vsel %vm244, %v186, -inf
    %258 = vmax.xlane.f32.xlu0 %v257
    %v259 = vpop.xlane.xlu0 %258
    %v260 = vsel %vm244, %v191, -inf
    %261 = vmax.xlane.f32.xlu0 %v260
    %v262 = vpop.xlane.xlu0 %261
    %v263 = vsel %vm244, %v196, -inf
    %264 = vmax.xlane.f32.xlu0 %v263
    %v265 = vpop.xlane.xlu0 %264
    %v266 = vsel %vm244, %v201, -inf
    %267 = vmax.xlane.f32.xlu0 %v266
    %v268 = vpop.xlane.xlu0 %267
    %v269 = vsel %vm244, %v206, -inf
    %270 = vmax.xlane.f32.xlu0 %v269
    %v271 = vpop.xlane.xlu0 %270
    %v272 = vsel %vm244, %v211, -inf
    %273 = vmax.xlane.f32.xlu0 %v272
    %v274 = vpop.xlane.xlu0 %273
    %v275 = vsel %vm244, %v216, -inf
    %276 = vmax.xlane.f32.xlu0 %v275
    %v277 = vpop.xlane.xlu0 %276
    %v278 = vsel %vm244, %v221, -inf
    %279 = vmax.xlane.f32.xlu0 %v278
    %v280 = vpop.xlane.xlu0 %279
    %v281 = vsel %vm244, %v226, -inf
    %282 = vmax.xlane.f32.xlu0 %v281
    %v283 = vpop.xlane.xlu0 %282
    %v284 = vsel %vm244, %v231, -inf
    %285 = vmax.xlane.f32.xlu0 %v284
    %v286 = vpop.xlane.xlu0 %285
    %v287 = vsel %vm244, %v236, -inf
    %288 = vmax.xlane.f32.xlu0 %v287
    %v289 = vpop.xlane.xlu0 %288
    %v290 = vsel %vm244, %v241, -inf
    %291 = vmax.xlane.f32.xlu0 %v290
    %v292 = vpop.xlane.xlu0 %291
    %v293 = vsub.f32 %v166, %v247
    %v294 = vsub.f32 %v171, %v250
    %v295 = vsub.f32 %v176, %v253
    %v296 = vsub.f32 %v181, %v256
    %v297 = vsub.f32 %v186, %v259
    %v298 = vsub.f32 %v191, %v262
    %v299 = vsub.f32 %v196, %v265
    %v300 = vsub.f32 %v201, %v268
    %v301 = vsub.f32 %v206, %v271
    %v302 = vsub.f32 %v211, %v274
    %v303 = vsub.f32 %v216, %v277
    %v304 = vsub.f32 %v221, %v280
    %v305 = vsub.f32 %v226, %v283
    %v306 = vsub.f32 %v231, %v286
    %v307 = vsub.f32 %v236, %v289
    %v308 = vsub.f32 %v241, %v292
    %v309 = vmul.f32 %v293, 1.442695
    %v310 = vpow.pop %v309
    %v311 = vmul.f32 %v294, 1.442695
    %v312 = vpow.pop %v311
    %v313 = vmul.f32 %v295, 1.442695
    %v314 = vpow.pop %v313
    %v315 = vmul.f32 %v296, 1.442695
    %v316 = vpow.pop %v315
    %v317 = vmul.f32 %v297, 1.442695
    %v318 = vpow.pop %v317
    %v319 = vmul.f32 %v298, 1.442695
    %v320 = vpow.pop %v319
    %v321 = vmul.f32 %v299, 1.442695
    %v322 = vpow.pop %v321
    %v323 = vmul.f32 %v300, 1.442695
    %v324 = vpow.pop %v323
    %v325 = vmul.f32 %v301, 1.442695
    %v326 = vpow.pop %v325
    %v327 = vmul.f32 %v302, 1.442695
    %v328 = vpow.pop %v327
    %v329 = vmul.f32 %v303, 1.442695
    %v330 = vpow.pop %v329
    %v331 = vmul.f32 %v304, 1.442695
    %v332 = vpow.pop %v331
    %v333 = vmul.f32 %v305, 1.442695
    %v334 = vpow.pop %v333
    %v335 = vmul.f32 %v306, 1.442695
    %v336 = vpow.pop %v335
    %v337 = vmul.f32 %v307, 1.442695
    %v338 = vpow.pop %v337
    %v339 = vmul.f32 %v308, 1.442695
    %v340 = vpow.pop %v339
    %v341 = vsel %vm244, %v310, 0.0
    %342 = vadd.xlane.f32.xlu0 %v341
    %v343 = vpop.xlane.xlu0 %342
    %v344 = vsel %vm244, %v312, 0.0
    %345 = vadd.xlane.f32.xlu0 %v344
    %v346 = vpop.xlane.xlu0 %345
    %v347 = vsel %vm244, %v314, 0.0
    %348 = vadd.xlane.f32.xlu0 %v347
    %v349 = vpop.xlane.xlu0 %348
    %v350 = vsel %vm244, %v316, 0.0
    %351 = vadd.xlane.f32.xlu0 %v350
    %v352 = vpop.xlane.xlu0 %351
    %v353 = vsel %vm244, %v318, 0.0
    %354 = vadd.xlane.f32.xlu0 %v353
    %v355 = vpop.xlane.xlu0 %354
    %v356 = vsel %vm244, %v320, 0.0
    %357 = vadd.xlane.f32.xlu0 %v356
    %v358 = vpop.xlane.xlu0 %357
    %v359 = vsel %vm244, %v322, 0.0
    %360 = vadd.xlane.f32.xlu0 %v359
    %v361 = vpop.xlane.xlu0 %360
    %v362 = vsel %vm244, %v324, 0.0
    %363 = vadd.xlane.f32.xlu0 %v362
    %v364 = vpop.xlane.xlu0 %363
    %v365 = vsel %vm244, %v326, 0.0
    %366 = vadd.xlane.f32.xlu0 %v365
    %v367 = vpop.xlane.xlu0 %366
    %v368 = vsel %vm244, %v328, 0.0
    %369 = vadd.xlane.f32.xlu0 %v368
    %v370 = vpop.xlane.xlu0 %369
    %v371 = vsel %vm244, %v330, 0.0
    %372 = vadd.xlane.f32.xlu0 %v371
    %v373 = vpop.xlane.xlu0 %372
    %v374 = vsel %vm244, %v332, 0.0
    %375 = vadd.xlane.f32.xlu0 %v374
    %v376 = vpop.xlane.xlu0 %375
    %v377 = vsel %vm244, %v334, 0.0
    %378 = vadd.xlane.f32.xlu0 %v377
    %v379 = vpop.xlane.xlu0 %378
    %v380 = vsel %vm244, %v336, 0.0
    %381 = vadd.xlane.f32.xlu0 %v380
    %v382 = vpop.xlane.xlu0 %381
    %v383 = vsel %vm244, %v338, 0.0
    %384 = vadd.xlane.f32.xlu0 %v383
    %v385 = vpop.xlane.xlu0 %384
    %v386 = vsel %vm244, %v340, 0.0
    %387 = vadd.xlane.f32.xlu0 %v386
    %v388 = vpop.xlane.xlu0 %387
    %v389 = vlog2.pop %v343
    %v390 = vmul.f32 %v389, 0.6931472
    %v391 = vlog2.pop %v346
    %v392 = vmul.f32 %v391, 0.6931472
    %v393 = vlog2.pop %v349
    %v394 = vmul.f32 %v393, 0.6931472
    %v395 = vlog2.pop %v352
    %v396 = vmul.f32 %v395, 0.6931472
    %v397 = vlog2.pop %v355
    %v398 = vmul.f32 %v397, 0.6931472
    %v399 = vlog2.pop %v358
    %v400 = vmul.f32 %v399, 0.6931472
    %v401 = vlog2.pop %v361
    %v402 = vmul.f32 %v401, 0.6931472
    %v403 = vlog2.pop %v364
    %v404 = vmul.f32 %v403, 0.6931472
    %v405 = vlog2.pop %v367
    %v406 = vmul.f32 %v405, 0.6931472
    %v407 = vlog2.pop %v370
    %v408 = vmul.f32 %v407, 0.6931472
    %v409 = vlog2.pop %v373
    %v410 = vmul.f32 %v409, 0.6931472
    %v411 = vlog2.pop %v376
    %v412 = vmul.f32 %v411, 0.6931472
    %v413 = vlog2.pop %v379
    %v414 = vmul.f32 %v413, 0.6931472
    %v415 = vlog2.pop %v382
    %v416 = vmul.f32 %v415, 0.6931472
    %v417 = vlog2.pop %v385
    %v418 = vmul.f32 %v417, 0.6931472
    %v419 = vlog2.pop %v388
    %v420 = vmul.f32 %v419, 0.6931472
    %v421 = vsub.f32 %v293, %v390
    %v422 = vsub.f32 %v294, %v392
    %v423 = vsub.f32 %v295, %v394
    %v424 = vsub.f32 %v296, %v396
    %v425 = vsub.f32 %v297, %v398
    %v426 = vsub.f32 %v298, %v400
    %v427 = vsub.f32 %v299, %v402
    %v428 = vsub.f32 %v300, %v404
    %v429 = vsub.f32 %v301, %v406
    %v430 = vsub.f32 %v302, %v408
    %v431 = vsub.f32 %v303, %v410
    %v432 = vsub.f32 %v304, %v412
    %v433 = vsub.f32 %v305, %v414
    %v434 = vsub.f32 %v306, %v416
    %v435 = vsub.f32 %v307, %v418
    %v436 = vsub.f32 %v308, %v420
    %v437 = vld [vmem:[%s4] sm:$0x1]
    %v438 = vld [vmem:[%s3] sm:$0xff]
    %v439 = vld [vmem:[%s3 + $0x8] sm:$0xff]
    %v440 = vld [vmem:[%s3 + $0x10] sm:$0xff]
    %v441 = vld [vmem:[%s3 + $0x18] sm:$0xff]
    %v442 = vld [vmem:[%s3 + $0x20] sm:$0xff]
    %v443 = vld [vmem:[%s3 + $0x28] sm:$0xff]
    %v444 = vld [vmem:[%s3 + $0x30] sm:$0xff]
    %v445 = vld [vmem:[%s3 + $0x38] sm:$0xff]
    %v446 = vld [vmem:[%s3 + $0x40] sm:$0xff]
    %v447 = vld [vmem:[%s3 + $0x48] sm:$0xff]
    %v448 = vld [vmem:[%s3 + $0x50] sm:$0xff]
    %v449 = vld [vmem:[%s3 + $0x58] sm:$0xff]
    %v450 = vld [vmem:[%s3 + $0x60] sm:$0xff]
    %v451 = vld [vmem:[%s3 + $0x68] sm:$0xff]
    %v452 = vld [vmem:[%s3 + $0x70] sm:$0xff]
    %v453 = vld [vmem:[%s3 + $0x78] sm:$0xff]
    %455 = vset.pattern.permute.xlu0 0
    %456 = vperm.xlu0 %455, %v421
    %v457 = vpop.permute.xlu0 %456
    %460 = vset.pattern.permute.xlu0 0
    %461 = vperm.xlu0 %460, %v422
    %v462 = vpop.permute.xlu0 %461
    %465 = vset.pattern.permute.xlu0 0
    %466 = vperm.xlu0 %465, %v423
    %v467 = vpop.permute.xlu0 %466
    %470 = vset.pattern.permute.xlu0 0
    %471 = vperm.xlu0 %470, %v424
    %v472 = vpop.permute.xlu0 %471
    %475 = vset.pattern.permute.xlu0 0
    %476 = vperm.xlu0 %475, %v425
    %v477 = vpop.permute.xlu0 %476
    %480 = vset.pattern.permute.xlu0 0
    %481 = vperm.xlu0 %480, %v426
    %v482 = vpop.permute.xlu0 %481
    %485 = vset.pattern.permute.xlu0 0
    %486 = vperm.xlu0 %485, %v427
    %v487 = vpop.permute.xlu0 %486
    %490 = vset.pattern.permute.xlu0 0
    %491 = vperm.xlu0 %490, %v428
    %v492 = vpop.permute.xlu0 %491
    %495 = vset.pattern.permute.xlu0 0
    %496 = vperm.xlu0 %495, %v429
    %v497 = vpop.permute.xlu0 %496
    %500 = vset.pattern.permute.xlu0 0
    %501 = vperm.xlu0 %500, %v430
    %v502 = vpop.permute.xlu0 %501
    %505 = vset.pattern.permute.xlu0 0
    %506 = vperm.xlu0 %505, %v431
    %v507 = vpop.permute.xlu0 %506
    %510 = vset.pattern.permute.xlu0 0
    %511 = vperm.xlu0 %510, %v432
    %v512 = vpop.permute.xlu0 %511
    %515 = vset.pattern.permute.xlu0 0
    %516 = vperm.xlu0 %515, %v433
    %v517 = vpop.permute.xlu0 %516
    %520 = vset.pattern.permute.xlu0 0
    %521 = vperm.xlu0 %520, %v434
    %v522 = vpop.permute.xlu0 %521
    %525 = vset.pattern.permute.xlu0 0
    %526 = vperm.xlu0 %525, %v435
    %v527 = vpop.permute.xlu0 %526
    %530 = vset.pattern.permute.xlu0 0
    %531 = vperm.xlu0 %530, %v436
    %v532 = vpop.permute.xlu0 %531
    %v534 = vmul.f32 %v457, %v438
    %v535 = vmul.f32 %v462, %v439
    %v536 = vmul.f32 %v467, %v440
    %v537 = vmul.f32 %v472, %v441
    %v538 = vmul.f32 %v477, %v442
    %v539 = vmul.f32 %v482, %v443
    %v540 = vmul.f32 %v487, %v444
    %v541 = vmul.f32 %v492, %v445
    %v542 = vmul.f32 %v497, %v446
    %v543 = vmul.f32 %v502, %v447
    %v544 = vmul.f32 %v507, %v448
    %v545 = vmul.f32 %v512, %v449
    %v546 = vmul.f32 %v517, %v450
    %v547 = vmul.f32 %v522, %v451
    %v548 = vmul.f32 %v527, %v452
    %v549 = vmul.f32 %v532, %v453
    %vm550 = vcmask 351232
    %v551 = vsel %vm550, %v534, 0.0
    %v552 = vsel %vm550, %v535, 0.0
    %v553 = vadd.f32 %v551, %v552
    %v554 = vsel %vm550, %v536, 0.0
    %v555 = vadd.f32 %v553, %v554
    %v556 = vsel %vm550, %v537, 0.0
    %v557 = vadd.f32 %v555, %v556
    %v558 = vsel %vm550, %v538, 0.0
    %v559 = vadd.f32 %v557, %v558
    %v560 = vsel %vm550, %v539, 0.0
    %v561 = vadd.f32 %v559, %v560
    %v562 = vsel %vm550, %v540, 0.0
    %v563 = vadd.f32 %v561, %v562
    %v564 = vsel %vm550, %v541, 0.0
    %v565 = vadd.f32 %v563, %v564
    %v566 = vsel %vm550, %v542, 0.0
    %v567 = vadd.f32 %v565, %v566
    %v568 = vsel %vm550, %v543, 0.0
    %v569 = vadd.f32 %v567, %v568
    %v570 = vsel %vm550, %v544, 0.0
    %v571 = vadd.f32 %v569, %v570
    %v572 = vsel %vm550, %v545, 0.0
    %v573 = vadd.f32 %v571, %v572
    %v574 = vsel %vm550, %v546, 0.0
    %v575 = vadd.f32 %v573, %v574
    %v576 = vsel %vm550, %v547, 0.0
    %v577 = vadd.f32 %v575, %v576
    %v578 = vsel %vm550, %v548, 0.0
    %v579 = vadd.f32 %v577, %v578
    %v580 = vsel %vm550, %v549, 0.0
    %v581 = vadd.f32 %v579, %v580
    %v582 = vrot.slane %v581, 4
    %v583 = vadd.f32 %v581, %v582
    %v584 = vrot.slane %v583, 2
    %v585 = vadd.f32 %v583, %v584
    %v586 = vrot.slane %v585, 1
    %v587 = vadd.f32 %v585, %v586
    %v588 = vadd.f32 %v437, %v587
    %s589 = scalar_lea.vmem %s3, 128
    %v590 = vld [vmem:[%s589] sm:$0xff]
    %v591 = vld [vmem:[%s589 + $0x8] sm:$0xff]
    %v592 = vld [vmem:[%s589 + $0x10] sm:$0xff]
    %v593 = vld [vmem:[%s589 + $0x18] sm:$0xff]
    %v594 = vld [vmem:[%s589 + $0x20] sm:$0xff]
    %v595 = vld [vmem:[%s589 + $0x28] sm:$0xff]
    %v596 = vld [vmem:[%s589 + $0x30] sm:$0xff]
    %v597 = vld [vmem:[%s589 + $0x38] sm:$0xff]
    %v598 = vld [vmem:[%s589 + $0x40] sm:$0xff]
    %v599 = vld [vmem:[%s589 + $0x48] sm:$0xff]
    %v600 = vld [vmem:[%s589 + $0x50] sm:$0xff]
    %v601 = vld [vmem:[%s589 + $0x58] sm:$0xff]
    %v602 = vld [vmem:[%s589 + $0x60] sm:$0xff]
    %v603 = vld [vmem:[%s589 + $0x68] sm:$0xff]
    %v604 = vld [vmem:[%s589 + $0x70] sm:$0xff]
    %v605 = vld [vmem:[%s589 + $0x78] sm:$0xff]
    %606 = vset.pattern.permute.xlu0 1
    %607 = vperm.xlu0 %606, %v421
    %v608 = vpop.permute.xlu0 %607
    %610 = vset.pattern.permute.xlu0 1
    %611 = vperm.xlu0 %610, %v422
    %v612 = vpop.permute.xlu0 %611
    %614 = vset.pattern.permute.xlu0 1
    %615 = vperm.xlu0 %614, %v423
    %v616 = vpop.permute.xlu0 %615
    %618 = vset.pattern.permute.xlu0 1
    %619 = vperm.xlu0 %618, %v424
    %v620 = vpop.permute.xlu0 %619
    %622 = vset.pattern.permute.xlu0 1
    %623 = vperm.xlu0 %622, %v425
    %v624 = vpop.permute.xlu0 %623
    %626 = vset.pattern.permute.xlu0 1
    %627 = vperm.xlu0 %626, %v426
    %v628 = vpop.permute.xlu0 %627
    %630 = vset.pattern.permute.xlu0 1
    %631 = vperm.xlu0 %630, %v427
    %v632 = vpop.permute.xlu0 %631
    %634 = vset.pattern.permute.xlu0 1
    %635 = vperm.xlu0 %634, %v428
    %v636 = vpop.permute.xlu0 %635
    %638 = vset.pattern.permute.xlu0 1
    %639 = vperm.xlu0 %638, %v429
    %v640 = vpop.permute.xlu0 %639
    %642 = vset.pattern.permute.xlu0 1
    %643 = vperm.xlu0 %642, %v430
    %v644 = vpop.permute.xlu0 %643
    %646 = vset.pattern.permute.xlu0 1
    %647 = vperm.xlu0 %646, %v431
    %v648 = vpop.permute.xlu0 %647
    %650 = vset.pattern.permute.xlu0 1
    %651 = vperm.xlu0 %650, %v432
    %v652 = vpop.permute.xlu0 %651
    %654 = vset.pattern.permute.xlu0 1
    %655 = vperm.xlu0 %654, %v433
    %v656 = vpop.permute.xlu0 %655
    %658 = vset.pattern.permute.xlu0 1
    %659 = vperm.xlu0 %658, %v434
    %v660 = vpop.permute.xlu0 %659
    %662 = vset.pattern.permute.xlu0 1
    %663 = vperm.xlu0 %662, %v435
    %v664 = vpop.permute.xlu0 %663
    %666 = vset.pattern.permute.xlu0 1
    %667 = vperm.xlu0 %666, %v436
    %v668 = vpop.permute.xlu0 %667
    %v670 = vmul.f32 %v608, %v590
    %v671 = vmul.f32 %v612, %v591
    %v672 = vmul.f32 %v616, %v592
    %v673 = vmul.f32 %v620, %v593
    %v674 = vmul.f32 %v624, %v594
    %v675 = vmul.f32 %v628, %v595
    %v676 = vmul.f32 %v632, %v596
    %v677 = vmul.f32 %v636, %v597
    %v678 = vmul.f32 %v640, %v598
    %v679 = vmul.f32 %v644, %v599
    %v680 = vmul.f32 %v648, %v600
    %v681 = vmul.f32 %v652, %v601
    %v682 = vmul.f32 %v656, %v602
    %v683 = vmul.f32 %v660, %v603
    %v684 = vmul.f32 %v664, %v604
    %v685 = vmul.f32 %v668, %v605
    %v686 = vsel %vm550, %v670, 0.0
    %v687 = vsel %vm550, %v671, 0.0
    %v688 = vadd.f32 %v686, %v687
    %v689 = vsel %vm550, %v672, 0.0
    %v690 = vadd.f32 %v688, %v689
    %v691 = vsel %vm550, %v673, 0.0
    %v692 = vadd.f32 %v690, %v691
    %v693 = vsel %vm550, %v674, 0.0
    %v694 = vadd.f32 %v692, %v693
    %v695 = vsel %vm550, %v675, 0.0
    %v696 = vadd.f32 %v694, %v695
    %v697 = vsel %vm550, %v676, 0.0
    %v698 = vadd.f32 %v696, %v697
    %v699 = vsel %vm550, %v677, 0.0
    %v700 = vadd.f32 %v698, %v699
    %v701 = vsel %vm550, %v678, 0.0
    %v702 = vadd.f32 %v700, %v701
    %v703 = vsel %vm550, %v679, 0.0
    %v704 = vadd.f32 %v702, %v703
    %v705 = vsel %vm550, %v680, 0.0
    %v706 = vadd.f32 %v704, %v705
    %v707 = vsel %vm550, %v681, 0.0
    %v708 = vadd.f32 %v706, %v707
    %v709 = vsel %vm550, %v682, 0.0
    %v710 = vadd.f32 %v708, %v709
    %v711 = vsel %vm550, %v683, 0.0
    %v712 = vadd.f32 %v710, %v711
    %v713 = vsel %vm550, %v684, 0.0
    %v714 = vadd.f32 %v712, %v713
    %v715 = vsel %vm550, %v685, 0.0
    %v716 = vadd.f32 %v714, %v715
    %v717 = vrot.slane %v716, 4
    %v718 = vadd.f32 %v716, %v717
    %v719 = vrot.slane %v718, 2
    %v720 = vadd.f32 %v718, %v719
    %v721 = vrot.slane %v720, 1
    %v722 = vadd.f32 %v720, %v721
    %v723 = vadd.f32 %v588, %v722
    %s724 = scalar_lea.vmem %s3, 256
    %v725 = vld [vmem:[%s724] sm:$0xff]
    %v726 = vld [vmem:[%s724 + $0x8] sm:$0xff]
    %v727 = vld [vmem:[%s724 + $0x10] sm:$0xff]
    %v728 = vld [vmem:[%s724 + $0x18] sm:$0xff]
    %v729 = vld [vmem:[%s724 + $0x20] sm:$0xff]
    %v730 = vld [vmem:[%s724 + $0x28] sm:$0xff]
    %v731 = vld [vmem:[%s724 + $0x30] sm:$0xff]
    %v732 = vld [vmem:[%s724 + $0x38] sm:$0xff]
    %v733 = vld [vmem:[%s724 + $0x40] sm:$0xff]
    %v734 = vld [vmem:[%s724 + $0x48] sm:$0xff]
    %v735 = vld [vmem:[%s724 + $0x50] sm:$0xff]
    %v736 = vld [vmem:[%s724 + $0x58] sm:$0xff]
    %v737 = vld [vmem:[%s724 + $0x60] sm:$0xff]
    %v738 = vld [vmem:[%s724 + $0x68] sm:$0xff]
    %v739 = vld [vmem:[%s724 + $0x70] sm:$0xff]
    %v740 = vld [vmem:[%s724 + $0x78] sm:$0xff]
    %741 = vset.pattern.permute.xlu0 2
    %742 = vperm.xlu0 %741, %v421
    %v743 = vpop.permute.xlu0 %742
    %745 = vset.pattern.permute.xlu0 2
    %746 = vperm.xlu0 %745, %v422
    %v747 = vpop.permute.xlu0 %746
    %749 = vset.pattern.permute.xlu0 2
    %750 = vperm.xlu0 %749, %v423
    %v751 = vpop.permute.xlu0 %750
    %753 = vset.pattern.permute.xlu0 2
    %754 = vperm.xlu0 %753, %v424
    %v755 = vpop.permute.xlu0 %754
    %757 = vset.pattern.permute.xlu0 2
    %758 = vperm.xlu0 %757, %v425
    %v759 = vpop.permute.xlu0 %758
    %761 = vset.pattern.permute.xlu0 2
    %762 = vperm.xlu0 %761, %v426
    %v763 = vpop.permute.xlu0 %762
    %765 = vset.pattern.permute.xlu0 2
    %766 = vperm.xlu0 %765, %v427
    %v767 = vpop.permute.xlu0 %766
    %769 = vset.pattern.permute.xlu0 2
    %770 = vperm.xlu0 %769, %v428
    %v771 = vpop.permute.xlu0 %770
    %773 = vset.pattern.permute.xlu0 2
    %774 = vperm.xlu0 %773, %v429
    %v775 = vpop.permute.xlu0 %774
    %777 = vset.pattern.permute.xlu0 2
    %778 = vperm.xlu0 %777, %v430
    %v779 = vpop.permute.xlu0 %778
    %781 = vset.pattern.permute.xlu0 2
    %782 = vperm.xlu0 %781, %v431
    %v783 = vpop.permute.xlu0 %782
    %785 = vset.pattern.permute.xlu0 2
    %786 = vperm.xlu0 %785, %v432
    %v787 = vpop.permute.xlu0 %786
    %789 = vset.pattern.permute.xlu0 2
    %790 = vperm.xlu0 %789, %v433
    %v791 = vpop.permute.xlu0 %790
    %793 = vset.pattern.permute.xlu0 2
    %794 = vperm.xlu0 %793, %v434
    %v795 = vpop.permute.xlu0 %794
    %797 = vset.pattern.permute.xlu0 2
    %798 = vperm.xlu0 %797, %v435
    %v799 = vpop.permute.xlu0 %798
    %801 = vset.pattern.permute.xlu0 2
    %802 = vperm.xlu0 %801, %v436
    %v803 = vpop.permute.xlu0 %802
    %v805 = vmul.f32 %v743, %v725
    %v806 = vmul.f32 %v747, %v726
    %v807 = vmul.f32 %v751, %v727
    %v808 = vmul.f32 %v755, %v728
    %v809 = vmul.f32 %v759, %v729
    %v810 = vmul.f32 %v763, %v730
    %v811 = vmul.f32 %v767, %v731
    %v812 = vmul.f32 %v771, %v732
    %v813 = vmul.f32 %v775, %v733
    %v814 = vmul.f32 %v779, %v734
    %v815 = vmul.f32 %v783, %v735
    %v816 = vmul.f32 %v787, %v736
    %v817 = vmul.f32 %v791, %v737
    %v818 = vmul.f32 %v795, %v738
    %v819 = vmul.f32 %v799, %v739
    %v820 = vmul.f32 %v803, %v740
    %v821 = vsel %vm550, %v805, 0.0
    %v822 = vsel %vm550, %v806, 0.0
    %v823 = vadd.f32 %v821, %v822
    %v824 = vsel %vm550, %v807, 0.0
    %v825 = vadd.f32 %v823, %v824
    %v826 = vsel %vm550, %v808, 0.0
    %v827 = vadd.f32 %v825, %v826
    %v828 = vsel %vm550, %v809, 0.0
    %v829 = vadd.f32 %v827, %v828
    %v830 = vsel %vm550, %v810, 0.0
    %v831 = vadd.f32 %v829, %v830
    %v832 = vsel %vm550, %v811, 0.0
    %v833 = vadd.f32 %v831, %v832
    %v834 = vsel %vm550, %v812, 0.0
    %v835 = vadd.f32 %v833, %v834
    %v836 = vsel %vm550, %v813, 0.0
    %v837 = vadd.f32 %v835, %v836
    %v838 = vsel %vm550, %v814, 0.0
    %v839 = vadd.f32 %v837, %v838
    %v840 = vsel %vm550, %v815, 0.0
    %v841 = vadd.f32 %v839, %v840
    %v842 = vsel %vm550, %v816, 0.0
    %v843 = vadd.f32 %v841, %v842
    %v844 = vsel %vm550, %v817, 0.0
    %v845 = vadd.f32 %v843, %v844
    %v846 = vsel %vm550, %v818, 0.0
    %v847 = vadd.f32 %v845, %v846
    %v848 = vsel %vm550, %v819, 0.0
    %v849 = vadd.f32 %v847, %v848
    %v850 = vsel %vm550, %v820, 0.0
    %v851 = vadd.f32 %v849, %v850
    %v852 = vrot.slane %v851, 4
    %v853 = vadd.f32 %v851, %v852
    %v854 = vrot.slane %v853, 2
    %v855 = vadd.f32 %v853, %v854
    %v856 = vrot.slane %v855, 1
    %v857 = vadd.f32 %v855, %v856
    %v858 = vadd.f32 %v723, %v857
    %s859 = scalar_lea.vmem %s3, 384
    %v860 = vld [vmem:[%s859] sm:$0xff]
    %v861 = vld [vmem:[%s859 + $0x8] sm:$0xff]
    %v862 = vld [vmem:[%s859 + $0x10] sm:$0xff]
    %v863 = vld [vmem:[%s859 + $0x18] sm:$0xff]
    %v864 = vld [vmem:[%s859 + $0x20] sm:$0xff]
    %v865 = vld [vmem:[%s859 + $0x28] sm:$0xff]
    %v866 = vld [vmem:[%s859 + $0x30] sm:$0xff]
    %v867 = vld [vmem:[%s859 + $0x38] sm:$0xff]
    %v868 = vld [vmem:[%s859 + $0x40] sm:$0xff]
    %v869 = vld [vmem:[%s859 + $0x48] sm:$0xff]
    %v870 = vld [vmem:[%s859 + $0x50] sm:$0xff]
    %v871 = vld [vmem:[%s859 + $0x58] sm:$0xff]
    %v872 = vld [vmem:[%s859 + $0x60] sm:$0xff]
    %v873 = vld [vmem:[%s859 + $0x68] sm:$0xff]
    %v874 = vld [vmem:[%s859 + $0x70] sm:$0xff]
    %v875 = vld [vmem:[%s859 + $0x78] sm:$0xff]
    %876 = vset.pattern.permute.xlu0 3
    %877 = vperm.xlu0 %876, %v421
    %v878 = vpop.permute.xlu0 %877
    %880 = vset.pattern.permute.xlu0 3
    %881 = vperm.xlu0 %880, %v422
    %v882 = vpop.permute.xlu0 %881
    %884 = vset.pattern.permute.xlu0 3
    %885 = vperm.xlu0 %884, %v423
    %v886 = vpop.permute.xlu0 %885
    %888 = vset.pattern.permute.xlu0 3
    %889 = vperm.xlu0 %888, %v424
    %v890 = vpop.permute.xlu0 %889
    %892 = vset.pattern.permute.xlu0 3
    %893 = vperm.xlu0 %892, %v425
    %v894 = vpop.permute.xlu0 %893
    %896 = vset.pattern.permute.xlu0 3
    %897 = vperm.xlu0 %896, %v426
    %v898 = vpop.permute.xlu0 %897
    %900 = vset.pattern.permute.xlu0 3
    %901 = vperm.xlu0 %900, %v427
    %v902 = vpop.permute.xlu0 %901
    %904 = vset.pattern.permute.xlu0 3
    %905 = vperm.xlu0 %904, %v428
    %v906 = vpop.permute.xlu0 %905
    %908 = vset.pattern.permute.xlu0 3
    %909 = vperm.xlu0 %908, %v429
    %v910 = vpop.permute.xlu0 %909
    %912 = vset.pattern.permute.xlu0 3
    %913 = vperm.xlu0 %912, %v430
    %v914 = vpop.permute.xlu0 %913
    %916 = vset.pattern.permute.xlu0 3
    %917 = vperm.xlu0 %916, %v431
    %v918 = vpop.permute.xlu0 %917
    %920 = vset.pattern.permute.xlu0 3
    %921 = vperm.xlu0 %920, %v432
    %v922 = vpop.permute.xlu0 %921
    %924 = vset.pattern.permute.xlu0 3
    %925 = vperm.xlu0 %924, %v433
    %v926 = vpop.permute.xlu0 %925
    %928 = vset.pattern.permute.xlu0 3
    %929 = vperm.xlu0 %928, %v434
    %v930 = vpop.permute.xlu0 %929
    %932 = vset.pattern.permute.xlu0 3
    %933 = vperm.xlu0 %932, %v435
    %v934 = vpop.permute.xlu0 %933
    %936 = vset.pattern.permute.xlu0 3
    %937 = vperm.xlu0 %936, %v436
    %v938 = vpop.permute.xlu0 %937
    %v940 = vmul.f32 %v878, %v860
    %v941 = vmul.f32 %v882, %v861
    %v942 = vmul.f32 %v886, %v862
    %v943 = vmul.f32 %v890, %v863
    %v944 = vmul.f32 %v894, %v864
    %v945 = vmul.f32 %v898, %v865
    %v946 = vmul.f32 %v902, %v866
    %v947 = vmul.f32 %v906, %v867
    %v948 = vmul.f32 %v910, %v868
    %v949 = vmul.f32 %v914, %v869
    %v950 = vmul.f32 %v918, %v870
    %v951 = vmul.f32 %v922, %v871
    %v952 = vmul.f32 %v926, %v872
    %v953 = vmul.f32 %v930, %v873
    %v954 = vmul.f32 %v934, %v874
    %v955 = vmul.f32 %v938, %v875
    %v956 = vsel %vm550, %v940, 0.0
    %v957 = vsel %vm550, %v941, 0.0
    %v958 = vadd.f32 %v956, %v957
    %v959 = vsel %vm550, %v942, 0.0
    %v960 = vadd.f32 %v958, %v959
    %v961 = vsel %vm550, %v943, 0.0
    %v962 = vadd.f32 %v960, %v961
    %v963 = vsel %vm550, %v944, 0.0
    %v964 = vadd.f32 %v962, %v963
    %v965 = vsel %vm550, %v945, 0.0
    %v966 = vadd.f32 %v964, %v965
    %v967 = vsel %vm550, %v946, 0.0
    %v968 = vadd.f32 %v966, %v967
    %v969 = vsel %vm550, %v947, 0.0
    %v970 = vadd.f32 %v968, %v969
    %v971 = vsel %vm550, %v948, 0.0
    %v972 = vadd.f32 %v970, %v971
    %v973 = vsel %vm550, %v949, 0.0
    %v974 = vadd.f32 %v972, %v973
    %v975 = vsel %vm550, %v950, 0.0
    %v976 = vadd.f32 %v974, %v975
    %v977 = vsel %vm550, %v951, 0.0
    %v978 = vadd.f32 %v976, %v977
    %v979 = vsel %vm550, %v952, 0.0
    %v980 = vadd.f32 %v978, %v979
    %v981 = vsel %vm550, %v953, 0.0
    %v982 = vadd.f32 %v980, %v981
    %v983 = vsel %vm550, %v954, 0.0
    %v984 = vadd.f32 %v982, %v983
    %v985 = vsel %vm550, %v955, 0.0
    %v986 = vadd.f32 %v984, %v985
    %v987 = vrot.slane %v986, 4
    %v988 = vadd.f32 %v986, %v987
    %v989 = vrot.slane %v988, 2
    %v990 = vadd.f32 %v988, %v989
    %v991 = vrot.slane %v990, 1
    %v992 = vadd.f32 %v990, %v991
    %v993 = vadd.f32 %v858, %v992
    %vm994 = vcmask 344064
    %995 = vst.msk [vmem:[#allocation2] sm:$0x1] %vm994, %v993
    // Predicated region
    $region22: #{neural_network_forward.5} parent=1 // pred_check
      _
    $region23: #{neural_network_forward.5} parent=1 // pred_check_branch
      %997 = sbr.rel (0) target = $region25
    $region24: #{neural_network_forward.5} parent=1 // pred_region
      %s999 = ssub.s32 16, 16
      %1000 = vsyncadd [#allocation3], %s999
      %s1002 = sshll.u32 [#allocation2], 4
      %s1003 = int_to_ptr.vmem [resolvable:$true] %s1002
      %1005 = dma.vmem_to_hbm [thread:$0]  %s1003, 16, %s5, [#allocation3]
    $region25: #{neural_network_forward.5} parent=1 // pred_fallthru
      _
    // Predicated region
    $region26: #{neural_network_forward.5} parent=1 // pred_check
      _
    $region27: #{neural_network_forward.5} parent=1 // pred_check_branch
      %1007 = sbr.rel (0) target = $region29
    $region28: #{neural_network_forward.5} parent=1 // pred_region
      %1008 = dma.done [#allocation3], 16
    $region29: #{neural_network_forward.5} parent=1 // pred_fallthru
      _
    %1009 = vsyncpa [#allocation3], 1

</llo_original>
